<compile_context>
chip_gen: v7x
topology: tpu7x:2x2x1
jax: 0.10.0
libtpu: 0.0.40
codegen_flags: <defaults>
</compile_context>

<pallas_src>
import numpy as np
import jax
import jax.numpy as jnp
from jax import lax
from jax.experimental import pallas as pl
from jax.experimental.pallas import tpu as pltpu


def _round_up(x, m):
    return ((x + m - 1) // m) * m


# ============================================================================
# Kernel 1: fused L2NonExpaResBlock forward (stride=1, downsample=None).
# ============================================================================
def _make_block_kernel(cin, planes, width, lw, margin):
    # tap shift in flat padded-pixel coordinates, for each of the 9 kernel taps
    shifts = [(kh - 1) * (width + 2) + (kw - 1)
              for kh in range(3) for kw in range(3)]

    def kernel(t_ref, x_ref, w1_ref, w2_ref, mask_ref, o_ref, pa_ref, pb_ref):
        tv = t_ref[...].astype(jnp.float32)                     # [1, 1]
        sres = jnp.sqrt(1.0 - tv * tv)                          # [1, 1]
        mask = mask_ref[...]                                    # [1, lw]

        # ---- conv1(CReLU(x)): weight split over the two CReLU halves ----
        acc1 = jnp.zeros((planes, lw), jnp.float32)
        for tap, s in enumerate(shifts):
            xs = x_ref[0, :, margin + s: margin + s + lw].astype(jnp.float32)
            wp = w1_ref[tap, :, 0:cin].astype(jnp.float32)          # [planes, cin]
            wn = w1_ref[tap, :, cin:2 * cin].astype(jnp.float32)    # [planes, cin]
            acc1 = acc1 + jnp.dot(wp, jnp.maximum(xs, 0.0),
                                  preferred_element_type=jnp.float32)
            acc1 = acc1 + jnp.dot(wn, jnp.maximum(-xs, 0.0),
                                  preferred_element_type=jnp.float32)

        # ---- CReLU(conv1 out), re-zero-padded spatially, staged in VMEM ----
        pa_ref[...] = jnp.zeros_like(pa_ref)
        pb_ref[...] = jnp.zeros_like(pb_ref)
        pa_ref[:, margin:margin + lw] = jnp.maximum(acc1, 0.0) * mask
        pb_ref[:, margin:margin + lw] = jnp.maximum(-acc1, 0.0) * mask

        # ---- conv2(CReLU(conv1 out)) ----
        acc2 = jnp.zeros((planes, lw), jnp.float32)
        for tap, s in enumerate(shifts):
            ap = pa_ref[:, margin + s: margin + s + lw]
            an = pb_ref[:, margin + s: margin + s + lw]
            wp = w2_ref[tap, :, 0:planes].astype(jnp.float32)
            wn = w2_ref[tap, :, planes:2 * planes].astype(jnp.float32)
            acc2 = acc2 + jnp.dot(wp, ap, preferred_element_type=jnp.float32)
            acc2 = acc2 + jnp.dot(wn, an, preferred_element_type=jnp.float32)

        # ---- residual mix: out * t + x * sqrt(1 - t^2)  (cin == planes) ----
        resid = x_ref[0, :, margin:margin + lw].astype(jnp.float32)
        o_ref[0] = (acc2 * tv + resid * sres).astype(o_ref.dtype)

    return kernel


def l2_res_block_forward(x, w1, w2, t):
    """x: [N, C, H, W] (NCHW); w1: [P, 2C, 3, 3]; w2: [P, 2P, 3, 3]; t: scalar."""
    N, C, H, W = x.shape
    P = w1.shape[0]
    if w1.shape[1] != 2 * C or w2.shape[0] != P or w2.shape[1] != 2 * P:
        raise ValueError("inconsistent conv weight shapes for the block")
    if C != P:
        # TODO(synk): stride>1 / downsample (shape-changing residual) not implemented.
        raise NotImplementedError("residual add requires inplanes == planes")

    L = (H + 2) * (W + 2)
    lw = _round_up(L, 128)                       # lane-dense compute window
    margin = _round_up(max(W + 3, 128), 128)     # >= max |tap shift|, lane-aligned
    buf = margin + lw + margin

    # padded image, flattened over (H+2, W+2), embedded at lane offset `margin`
    xp = jnp.pad(x, ((0, 0), (0, 0), (1, 1), (1, 1))).reshape(N, C, L)
    x_buf = jnp.pad(xp.astype(jnp.float32),
                    ((0, 0), (0, 0), (margin, buf - margin - L)))

    # interior-pixel mask: 1 where a real HxW output pixel lives in the window
    m2d = np.zeros((H + 2, W + 2), np.float32)
    m2d[1:H + 1, 1:W + 1] = 1.0
    mask_np = np.zeros((1, lw), np.float32)
    mask_np[0, :L] = m2d.reshape(-1)
    mask = jnp.asarray(mask_np)

    # OIHW -> [tap, out, in]  so the in-kernel dots need no transposes
    w1r = jnp.transpose(w1, (2, 3, 0, 1)).reshape(9, P, 2 * C).astype(jnp.float32)
    w2r = jnp.transpose(w2, (2, 3, 0, 1)).reshape(9, P, 2 * P).astype(jnp.float32)
    t11 = jnp.reshape(t, (1, 1)).astype(jnp.float32)

    out_flat = pl.pallas_call(
        _make_block_kernel(C, P, W, lw, margin),
        grid=(N,),
        in_specs=[
            pl.BlockSpec((1, 1), lambda n: (0, 0)),               # t
            pl.BlockSpec((1, C, buf), lambda n: (n, 0, 0)),       # x (flat, padded)
            pl.BlockSpec((9, P, 2 * C), lambda n: (0, 0, 0)),     # conv1 weights
            pl.BlockSpec((9, P, 2 * P), lambda n: (0, 0, 0)),     # conv2 weights
            pl.BlockSpec((1, lw), lambda n: (0, 0)),              # interior mask
        ],
        out_specs=pl.BlockSpec((1, P, lw), lambda n: (n, 0, 0)),
        out_shape=jax.ShapeDtypeStruct((N, P, lw), jnp.float32),
        scratch_shapes=[pltpu.VMEM((P, buf), jnp.float32),
                        pltpu.VMEM((P, buf), jnp.float32)],
        compiler_params=pltpu.CompilerParams(
            dimension_semantics=("parallel",)),
    )(t11, x_buf, w1r, w2r, mask)

    out = out_flat[:, :, :L].reshape(N, P, H + 2, W + 2)[:, :, 1:H + 1, 1:W + 1]
    return out


# ============================================================================
# Kernel 2: norm(w) = min( r(w w^T), r(w^T w) )  for a batch of weights.
# ============================================================================
def _norm_kernel(w_ref, o_ref):
    # Contractions go straight to the MXU via dot_general (no materialized
    # transposes).  Zero-padded rows/cols contribute 0 row-sums and are neutral.
    w = w_ref[0].astype(jnp.float32)                                  # [Op, Kp]
    m = lax.dot_general(w, w, (((1,), (1,)), ((), ())),
                        preferred_element_type=jnp.float32)           # w w^T
    mt = lax.dot_general(w, w, (((0,), (0,)), ((), ())),
                         preferred_element_type=jnp.float32)          # w^T w
    r_m = jnp.max(jnp.sum(jnp.abs(m), axis=1, keepdims=True),
                  axis=0, keepdims=True)
    r_mt = jnp.max(jnp.sum(jnp.abs(mt), axis=1, keepdims=True),
                   axis=0, keepdims=True)
    o_ref[0] = jnp.minimum(r_m, r_mt)


def weight_l2_norm_bounds(weights):
    """norm(w) for a list of weights, computed in a single fused pallas_call
    (one launch, grid over weights, 'parallel' so v7x uses both TCs)."""
    flats = [w.reshape(w.shape[0], -1).astype(jnp.float32) for w in weights]
    op = max(_round_up(f.shape[0], 8) for f in flats)
    kp = max(_round_up(f.shape[1], 128) for f in flats)
    # NOTE: for very large fan-in (kp >> 1024) the Kp x Kp Gram should be tiled
    # over a grid with row-sum accumulators instead of materialized whole.
    stacked = jnp.stack(
        [jnp.pad(f, ((0, op - f.shape[0]), (0, kp - f.shape[1]))) for f in flats])
    nw = stacked.shape[0]
    out = pl.pallas_call(
        _norm_kernel,
        grid=(nw,),
        in_specs=[pl.BlockSpec((1, op, kp), lambda i: (i, 0, 0))],
        out_specs=pl.BlockSpec((1, 1, 1), lambda i: (i, 0, 0)),
        out_shape=jax.ShapeDtypeStruct((nw, 1, 1), jnp.float32),
        compiler_params=pltpu.CompilerParams(
            dimension_semantics=("parallel",)),
    )(stacked)
    return [out[i, 0, 0] for i in range(nw)]


# ============================================================================
# Python-side module mirroring L2NonExpaResBlock.
# ============================================================================
class L2NonExpaResBlockPallas:
    expansion = 1

    def __init__(self, w1, w2, t=None, stride=1, downsample=None):
        if stride != 1 or downsample is not None:
            # TODO(synk): strided conv1 / downsample branch not implemented in the kernel.
            raise NotImplementedError("only stride=1, downsample=None is supported")
        self.w1 = w1                      # [planes, 2*inplanes, 3, 3]
        self.w2 = w2                      # [planes, 2*planes,  3, 3]
        self.stride = stride
        self.downsample = downsample
        self.t = (jnp.sqrt(jnp.float32(0.5)) if t is None
                  else jnp.asarray(t, jnp.float32))

    def __call__(self, x):
        return self.forward(x)

    def forward(self, x):
        # TODO(synk): config.div_before_conv (undefined global in the reference)
        # is assumed False, i.e. plain conv forward.
        return l2_res_block_forward(x, self.w1, self.w2, self.t)

    def L2Norm(self):
        n1, n2 = weight_l2_norm_bounds([self.w1, self.w2])
        # NE_Conv2d.L2Norm with div_before_conv == False:
        #   norm(w) * prod(kernel_size) / prod(stride)
        n1 = n1 * 9.0 / float(self.stride * self.stride)
        n2 = n2 * 9.0
        norm_o = n1 * n2
        norm_r = 1.0                      # downsample is None
        return norm_o * self.t ** 2 + norm_r * (1.0 - self.t ** 2)


# ============================================================================
# Pure-JAX references (sanity check).
# ============================================================================
def _ref_crelu(x):
    return jnp.concatenate([jax.nn.relu(x), jax.nn.relu(-x)], axis=1)


def _ref_conv3x3(x, w):
    return lax.conv_general_dilated(
        x, w, window_strides=(1, 1), padding=((1, 1), (1, 1)),
        dimension_numbers=("NCHW", "OIHW", "NCHW"),
        precision=lax.Precision.HIGHEST)


def _ref_forward(x, w1, w2, t):
    out = _ref_crelu(x)
    out = _ref_conv3x3(out, w1)
    out = _ref_crelu(out)
    out = _ref_conv3x3(out, w2)
    return out * t + x * jnp.sqrt(1.0 - t * t)


def _ref_norm(w):
    w_ = w.reshape(w.shape[0], -1)
    m = w_ @ w_.T
    mt = w_.T @ w_
    return jnp.minimum(jnp.max(jnp.sum(jnp.abs(m), axis=1)),
                       jnp.max(jnp.sum(jnp.abs(mt), axis=1)))


def _ref_l2norm(w1, w2, t):
    n1 = _ref_norm(w1) * 9.0
    n2 = _ref_norm(w2) * 9.0
    return n1 * n2 * t ** 2 + 1.0 * (1.0 - t ** 2)


if __name__ == "__main__":
    key = jax.random.PRNGKey(0)
    kx, k1, k2 = jax.random.split(key, 3)

    # batch=2, inplanes=planes=4, 16x16 spatial
    N, C, H, W = 2, 4, 16, 16
    planes = 4
    x = jax.random.normal(kx, (N, C, H, W), jnp.float32)
    w1 = jax.random.normal(k1, (planes, 2 * C, 3, 3), jnp.float32) * 0.1
    w2 = jax.random.normal(k2, (planes, 2 * planes, 3, 3), jnp.float32) * 0.1

    block = L2NonExpaResBlockPallas(w1, w2)

    out = block(x)                       # fused Pallas forward
    l2n = block.L2Norm()                 # Pallas weight-norm kernel
    jax.block_until_ready((out, l2n))

    ref_out = _ref_forward(x, w1, w2, block.t)
    ref_l2 = _ref_l2norm(w1, w2, block.t)
    assert out.shape == ref_out.shape
    assert jnp.allclose(out, ref_out, rtol=1e-2, atol=1e-2), "forward mismatch"
    assert jnp.allclose(l2n, ref_l2, rtol=1e-2, atol=1e-2), "L2Norm mismatch"

    print("KERNEL_OK")
</pallas_src>

<mosaic_0001>
module attributes {stable_mosaic.version = 11 : i64} {
  func.func @kernel(%arg0: i32, %arg1: memref<1x1xf32, #tpu.memory_space<vmem>>, %arg2: memref<1x4x640xf32, #tpu.memory_space<vmem>>, %arg3: memref<9x4x8xf32, #tpu.memory_space<vmem>>, %arg4: memref<9x4x8xf32, #tpu.memory_space<vmem>>, %arg5: memref<1x384xf32, #tpu.memory_space<vmem>>, %arg6: memref<1x4x384xf32, #tpu.memory_space<vmem>>, %arg7: memref<4x640xf32, #tpu.memory_space<vmem>>, %arg8: memref<4x640xf32, #tpu.memory_space<vmem>>) attributes {dimension_semantics = [#tpu.dimension_semantics<parallel>], iteration_bounds = array<i64: 2>, scalar_prefetch = 0 : i64, scratch_operands = 2 : i64, tpu.core_type = #tpu.core_type<tc>, window_params = [{pipeline_mode = #tpu.pipeline_mode<synchronous>, transform_indices = @transform_0, window_bounds = array<i64: 1, 1>}, {transform_indices = @transform_1, window_bounds = array<i64: 1, 4, 640>}, {pipeline_mode = #tpu.pipeline_mode<synchronous>, transform_indices = @transform_2, window_bounds = array<i64: 9, 4, 8>}, {pipeline_mode = #tpu.pipeline_mode<synchronous>, transform_indices = @transform_3, window_bounds = array<i64: 9, 4, 8>}, {pipeline_mode = #tpu.pipeline_mode<synchronous>, transform_indices = @transform_4, window_bounds = array<i64: 1, 384>}, {transform_indices = @transform_5, window_bounds = array<i64: 1, 4, 384>}]} {
    %c0 = arith.constant 0 : index
    %c0_0 = arith.constant 0 : index
    %0 = vector.load %arg1[%c0, %c0_0] : memref<1x1xf32, #tpu.memory_space<vmem>>, vector<1x1xf32>
    %1 = arith.mulf %0, %0 : vector<1x1xf32>
    %cst = arith.constant 1.000000e+00 : f32
    %2 = vector.broadcast %cst : f32 to vector<1x1xf32>
    %3 = arith.subf %2, %1 : vector<1x1xf32>
    %4 = math.sqrt %3 : vector<1x1xf32>
    %c0_1 = arith.constant 0 : index
    %c0_2 = arith.constant 0 : index
    %5 = vector.load %arg5[%c0_1, %c0_2] : memref<1x384xf32, #tpu.memory_space<vmem>>, vector<1x384xf32>
    %cst_3 = arith.constant 0.000000e+00 : f32
    %6 = vector.broadcast %cst_3 : f32 to vector<4x384xf32>
    %c0_4 = arith.constant 0 : index
    %c0_5 = arith.constant 0 : index
    %c109 = arith.constant 109 : index
    %7 = vector.load %arg2[%c0_4, %c0_5, %c109] : memref<1x4x640xf32, #tpu.memory_space<vmem>>, vector<1x4x384xf32>
    %8 = vector.shape_cast %7 : vector<1x4x384xf32> to vector<4x384xf32>
    %c0_6 = arith.constant 0 : index
    %c0_7 = arith.constant 0 : index
    %c0_8 = arith.constant 0 : index
    %9 = vector.load %arg3[%c0_6, %c0_7, %c0_8] : memref<9x4x8xf32, #tpu.memory_space<vmem>>, vector<1x4x4xf32>
    %10 = vector.shape_cast %9 : vector<1x4x4xf32> to vector<4x4xf32>
    %c0_9 = arith.constant 0 : index
    %c0_10 = arith.constant 0 : index
    %c4 = arith.constant 4 : index
    %11 = vector.load %arg3[%c0_9, %c0_10, %c4] : memref<9x4x8xf32, #tpu.memory_space<vmem>>, vector<1x4x4xf32>
    %12 = vector.shape_cast %11 : vector<1x4x4xf32> to vector<4x4xf32>
    %cst_11 = arith.constant 0.000000e+00 : f32
    %13 = vector.broadcast %cst_11 : f32 to vector<4x384xf32>
    %14 = arith.maximumf %8, %13 : vector<4x384xf32>
    %cst_12 = arith.constant dense<0.000000e+00> : vector<4x384xf32>
    %15 = tpu.matmul %10, %14, %cst_12 {dimension_numbers = #tpu.dot_dimension_numbers<[1], [0], [0], [1], [0, 0, 1, 1], [], []>} : vector<4x4xf32>, vector<4x384xf32>, vector<4x384xf32> -> vector<4x384xf32>
    %16 = arith.addf %6, %15 : vector<4x384xf32>
    %cst_13 = arith.constant 0.000000e+00 : f32
    %17 = vector.broadcast %cst_13 : f32 to vector<4x384xf32>
    %18 = arith.subf %17, %8 : vector<4x384xf32>
    %cst_14 = arith.constant 0.000000e+00 : f32
    %19 = vector.broadcast %cst_14 : f32 to vector<4x384xf32>
    %20 = arith.maximumf %18, %19 : vector<4x384xf32>
    %cst_15 = arith.constant dense<0.000000e+00> : vector<4x384xf32>
    %21 = tpu.matmul %12, %20, %cst_15 {dimension_numbers = #tpu.dot_dimension_numbers<[1], [0], [0], [1], [0, 0, 1, 1], [], []>} : vector<4x4xf32>, vector<4x384xf32>, vector<4x384xf32> -> vector<4x384xf32>
    %22 = arith.addf %16, %21 : vector<4x384xf32>
    %c0_16 = arith.constant 0 : index
    %c0_17 = arith.constant 0 : index
    %c110 = arith.constant 110 : index
    %23 = vector.load %arg2[%c0_16, %c0_17, %c110] : memref<1x4x640xf32, #tpu.memory_space<vmem>>, vector<1x4x384xf32>
    %24 = vector.shape_cast %23 : vector<1x4x384xf32> to vector<4x384xf32>
    %c1 = arith.constant 1 : index
    %c0_18 = arith.constant 0 : index
    %c0_19 = arith.constant 0 : index
    %25 = vector.load %arg3[%c1, %c0_18, %c0_19] : memref<9x4x8xf32, #tpu.memory_space<vmem>>, vector<1x4x4xf32>
    %26 = vector.shape_cast %25 : vector<1x4x4xf32> to vector<4x4xf32>
    %c1_20 = arith.constant 1 : index
    %c0_21 = arith.constant 0 : index
    %c4_22 = arith.constant 4 : index
    %27 = vector.load %arg3[%c1_20, %c0_21, %c4_22] : memref<9x4x8xf32, #tpu.memory_space<vmem>>, vector<1x4x4xf32>
    %28 = vector.shape_cast %27 : vector<1x4x4xf32> to vector<4x4xf32>
    %cst_23 = arith.constant 0.000000e+00 : f32
    %29 = vector.broadcast %cst_23 : f32 to vector<4x384xf32>
    %30 = arith.maximumf %24, %29 : vector<4x384xf32>
    %cst_24 = arith.constant dense<0.000000e+00> : vector<4x384xf32>
    %31 = tpu.matmul %26, %30, %cst_24 {dimension_numbers = #tpu.dot_dimension_numbers<[1], [0], [0], [1], [0, 0, 1, 1], [], []>} : vector<4x4xf32>, vector<4x384xf32>, vector<4x384xf32> -> vector<4x384xf32>
    %32 = arith.addf %22, %31 : vector<4x384xf32>
    %cst_25 = arith.constant 0.000000e+00 : f32
    %33 = vector.broadcast %cst_25 : f32 to vector<4x384xf32>
    %34 = arith.subf %33, %24 : vector<4x384xf32>
    %cst_26 = arith.constant 0.000000e+00 : f32
    %35 = vector.broadcast %cst_26 : f32 to vector<4x384xf32>
    %36 = arith.maximumf %34, %35 : vector<4x384xf32>
    %cst_27 = arith.constant dense<0.000000e+00> : vector<4x384xf32>
    %37 = tpu.matmul %28, %36, %cst_27 {dimension_numbers = #tpu.dot_dimension_numbers<[1], [0], [0], [1], [0, 0, 1, 1], [], []>} : vector<4x4xf32>, vector<4x384xf32>, vector<4x384xf32> -> vector<4x384xf32>
    %38 = arith.addf %32, %37 : vector<4x384xf32>
    %c0_28 = arith.constant 0 : index
    %c0_29 = arith.constant 0 : index
    %c111 = arith.constant 111 : index
    %39 = vector.load %arg2[%c0_28, %c0_29, %c111] : memref<1x4x640xf32, #tpu.memory_space<vmem>>, vector<1x4x384xf32>
    %40 = vector.shape_cast %39 : vector<1x4x384xf32> to vector<4x384xf32>
    %c2 = arith.constant 2 : index
    %c0_30 = arith.constant 0 : index
    %c0_31 = arith.constant 0 : index
    %41 = vector.load %arg3[%c2, %c0_30, %c0_31] : memref<9x4x8xf32, #tpu.memory_space<vmem>>, vector<1x4x4xf32>
    %42 = vector.shape_cast %41 : vector<1x4x4xf32> to vector<4x4xf32>
    %c2_32 = arith.constant 2 : index
    %c0_33 = arith.constant 0 : index
    %c4_34 = arith.constant 4 : index
    %43 = vector.load %arg3[%c2_32, %c0_33, %c4_34] : memref<9x4x8xf32, #tpu.memory_space<vmem>>, vector<1x4x4xf32>
    %44 = vector.shape_cast %43 : vector<1x4x4xf32> to vector<4x4xf32>
    %cst_35 = arith.constant 0.000000e+00 : f32
    %45 = vector.broadcast %cst_35 : f32 to vector<4x384xf32>
    %46 = arith.maximumf %40, %45 : vector<4x384xf32>
    %cst_36 = arith.constant dense<0.000000e+00> : vector<4x384xf32>
    %47 = tpu.matmul %42, %46, %cst_36 {dimension_numbers = #tpu.dot_dimension_numbers<[1], [0], [0], [1], [0, 0, 1, 1], [], []>} : vector<4x4xf32>, vector<4x384xf32>, vector<4x384xf32> -> vector<4x384xf32>
    %48 = arith.addf %38, %47 : vector<4x384xf32>
    %cst_37 = arith.constant 0.000000e+00 : f32
    %49 = vector.broadcast %cst_37 : f32 to vector<4x384xf32>
    %50 = arith.subf %49, %40 : vector<4x384xf32>
    %cst_38 = arith.constant 0.000000e+00 : f32
    %51 = vector.broadcast %cst_38 : f32 to vector<4x384xf32>
    %52 = arith.maximumf %50, %51 : vector<4x384xf32>
    %cst_39 = arith.constant dense<0.000000e+00> : vector<4x384xf32>
    %53 = tpu.matmul %44, %52, %cst_39 {dimension_numbers = #tpu.dot_dimension_numbers<[1], [0], [0], [1], [0, 0, 1, 1], [], []>} : vector<4x4xf32>, vector<4x384xf32>, vector<4x384xf32> -> vector<4x384xf32>
    %54 = arith.addf %48, %53 : vector<4x384xf32>
    %c0_40 = arith.constant 0 : index
    %c0_41 = arith.constant 0 : index
    %c127 = arith.constant 127 : index
    %55 = vector.load %arg2[%c0_40, %c0_41, %c127] : memref<1x4x640xf32, #tpu.memory_space<vmem>>, vector<1x4x384xf32>
    %56 = vector.shape_cast %55 : vector<1x4x384xf32> to vector<4x384xf32>
    %c3 = arith.constant 3 : index
    %c0_42 = arith.constant 0 : index
    %c0_43 = arith.constant 0 : index
    %57 = vector.load %arg3[%c3, %c0_42, %c0_43] : memref<9x4x8xf32, #tpu.memory_space<vmem>>, vector<1x4x4xf32>
    %58 = vector.shape_cast %57 : vector<1x4x4xf32> to vector<4x4xf32>
    %c3_44 = arith.constant 3 : index
    %c0_45 = arith.constant 0 : index
    %c4_46 = arith.constant 4 : index
    %59 = vector.load %arg3[%c3_44, %c0_45, %c4_46] : memref<9x4x8xf32, #tpu.memory_space<vmem>>, vector<1x4x4xf32>
    %60 = vector.shape_cast %59 : vector<1x4x4xf32> to vector<4x4xf32>
    %cst_47 = arith.constant 0.000000e+00 : f32
    %61 = vector.broadcast %cst_47 : f32 to vector<4x384xf32>
    %62 = arith.maximumf %56, %61 : vector<4x384xf32>
    %cst_48 = arith.constant dense<0.000000e+00> : vector<4x384xf32>
    %63 = tpu.matmul %58, %62, %cst_48 {dimension_numbers = #tpu.dot_dimension_numbers<[1], [0], [0], [1], [0, 0, 1, 1], [], []>} : vector<4x4xf32>, vector<4x384xf32>, vector<4x384xf32> -> vector<4x384xf32>
    %64 = arith.addf %54, %63 : vector<4x384xf32>
    %cst_49 = arith.constant 0.000000e+00 : f32
    %65 = vector.broadcast %cst_49 : f32 to vector<4x384xf32>
    %66 = arith.subf %65, %56 : vector<4x384xf32>
    %cst_50 = arith.constant 0.000000e+00 : f32
    %67 = vector.broadcast %cst_50 : f32 to vector<4x384xf32>
    %68 = arith.maximumf %66, %67 : vector<4x384xf32>
    %cst_51 = arith.constant dense<0.000000e+00> : vector<4x384xf32>
    %69 = tpu.matmul %60, %68, %cst_51 {dimension_numbers = #tpu.dot_dimension_numbers<[1], [0], [0], [1], [0, 0, 1, 1], [], []>} : vector<4x4xf32>, vector<4x384xf32>, vector<4x384xf32> -> vector<4x384xf32>
    %70 = arith.addf %64, %69 : vector<4x384xf32>
    %c0_52 = arith.constant 0 : index
    %c0_53 = arith.constant 0 : index
    %c128 = arith.constant 128 : index
    %71 = vector.load %arg2[%c0_52, %c0_53, %c128] : memref<1x4x640xf32, #tpu.memory_space<vmem>>, vector<1x4x384xf32>
    %72 = vector.shape_cast %71 : vector<1x4x384xf32> to vector<4x384xf32>
    %c4_54 = arith.constant 4 : index
    %c0_55 = arith.constant 0 : index
    %c0_56 = arith.constant 0 : index
    %73 = vector.load %arg3[%c4_54, %c0_55, %c0_56] : memref<9x4x8xf32, #tpu.memory_space<vmem>>, vector<1x4x4xf32>
    %74 = vector.shape_cast %73 : vector<1x4x4xf32> to vector<4x4xf32>
    %c4_57 = arith.constant 4 : index
    %c0_58 = arith.constant 0 : index
    %c4_59 = arith.constant 4 : index
    %75 = vector.load %arg3[%c4_57, %c0_58, %c4_59] : memref<9x4x8xf32, #tpu.memory_space<vmem>>, vector<1x4x4xf32>
    %76 = vector.shape_cast %75 : vector<1x4x4xf32> to vector<4x4xf32>
    %cst_60 = arith.constant 0.000000e+00 : f32
    %77 = vector.broadcast %cst_60 : f32 to vector<4x384xf32>
    %78 = arith.maximumf %72, %77 : vector<4x384xf32>
    %cst_61 = arith.constant dense<0.000000e+00> : vector<4x384xf32>
    %79 = tpu.matmul %74, %78, %cst_61 {dimension_numbers = #tpu.dot_dimension_numbers<[1], [0], [0], [1], [0, 0, 1, 1], [], []>} : vector<4x4xf32>, vector<4x384xf32>, vector<4x384xf32> -> vector<4x384xf32>
    %80 = arith.addf %70, %79 : vector<4x384xf32>
    %cst_62 = arith.constant 0.000000e+00 : f32
    %81 = vector.broadcast %cst_62 : f32 to vector<4x384xf32>
    %82 = arith.subf %81, %72 : vector<4x384xf32>
    %cst_63 = arith.constant 0.000000e+00 : f32
    %83 = vector.broadcast %cst_63 : f32 to vector<4x384xf32>
    %84 = arith.maximumf %82, %83 : vector<4x384xf32>
    %cst_64 = arith.constant dense<0.000000e+00> : vector<4x384xf32>
    %85 = tpu.matmul %76, %84, %cst_64 {dimension_numbers = #tpu.dot_dimension_numbers<[1], [0], [0], [1], [0, 0, 1, 1], [], []>} : vector<4x4xf32>, vector<4x384xf32>, vector<4x384xf32> -> vector<4x384xf32>
    %86 = arith.addf %80, %85 : vector<4x384xf32>
    %c0_65 = arith.constant 0 : index
    %c0_66 = arith.constant 0 : index
    %c129 = arith.constant 129 : index
    %87 = vector.load %arg2[%c0_65, %c0_66, %c129] : memref<1x4x640xf32, #tpu.memory_space<vmem>>, vector<1x4x384xf32>
    %88 = vector.shape_cast %87 : vector<1x4x384xf32> to vector<4x384xf32>
    %c5 = arith.constant 5 : index
    %c0_67 = arith.constant 0 : index
    %c0_68 = arith.constant 0 : index
    %89 = vector.load %arg3[%c5, %c0_67, %c0_68] : memref<9x4x8xf32, #tpu.memory_space<vmem>>, vector<1x4x4xf32>
    %90 = vector.shape_cast %89 : vector<1x4x4xf32> to vector<4x4xf32>
    %c5_69 = arith.constant 5 : index
    %c0_70 = arith.constant 0 : index
    %c4_71 = arith.constant 4 : index
    %91 = vector.load %arg3[%c5_69, %c0_70, %c4_71] : memref<9x4x8xf32, #tpu.memory_space<vmem>>, vector<1x4x4xf32>
    %92 = vector.shape_cast %91 : vector<1x4x4xf32> to vector<4x4xf32>
    %cst_72 = arith.constant 0.000000e+00 : f32
    %93 = vector.broadcast %cst_72 : f32 to vector<4x384xf32>
    %94 = arith.maximumf %88, %93 : vector<4x384xf32>
    %cst_73 = arith.constant dense<0.000000e+00> : vector<4x384xf32>
    %95 = tpu.matmul %90, %94, %cst_73 {dimension_numbers = #tpu.dot_dimension_numbers<[1], [0], [0], [1], [0, 0, 1, 1], [], []>} : vector<4x4xf32>, vector<4x384xf32>, vector<4x384xf32> -> vector<4x384xf32>
    %96 = arith.addf %86, %95 : vector<4x384xf32>
    %cst_74 = arith.constant 0.000000e+00 : f32
    %97 = vector.broadcast %cst_74 : f32 to vector<4x384xf32>
    %98 = arith.subf %97, %88 : vector<4x384xf32>
    %cst_75 = arith.constant 0.000000e+00 : f32
    %99 = vector.broadcast %cst_75 : f32 to vector<4x384xf32>
    %100 = arith.maximumf %98, %99 : vector<4x384xf32>
    %cst_76 = arith.constant dense<0.000000e+00> : vector<4x384xf32>
    %101 = tpu.matmul %92, %100, %cst_76 {dimension_numbers = #tpu.dot_dimension_numbers<[1], [0], [0], [1], [0, 0, 1, 1], [], []>} : vector<4x4xf32>, vector<4x384xf32>, vector<4x384xf32> -> vector<4x384xf32>
    %102 = arith.addf %96, %101 : vector<4x384xf32>
    %c0_77 = arith.constant 0 : index
    %c0_78 = arith.constant 0 : index
    %c145 = arith.constant 145 : index
    %103 = vector.load %arg2[%c0_77, %c0_78, %c145] : memref<1x4x640xf32, #tpu.memory_space<vmem>>, vector<1x4x384xf32>
    %104 = vector.shape_cast %103 : vector<1x4x384xf32> to vector<4x384xf32>
    %c6 = arith.constant 6 : index
    %c0_79 = arith.constant 0 : index
    %c0_80 = arith.constant 0 : index
    %105 = vector.load %arg3[%c6, %c0_79, %c0_80] : memref<9x4x8xf32, #tpu.memory_space<vmem>>, vector<1x4x4xf32>
    %106 = vector.shape_cast %105 : vector<1x4x4xf32> to vector<4x4xf32>
    %c6_81 = arith.constant 6 : index
    %c0_82 = arith.constant 0 : index
    %c4_83 = arith.constant 4 : index
    %107 = vector.load %arg3[%c6_81, %c0_82, %c4_83] : memref<9x4x8xf32, #tpu.memory_space<vmem>>, vector<1x4x4xf32>
    %108 = vector.shape_cast %107 : vector<1x4x4xf32> to vector<4x4xf32>
    %cst_84 = arith.constant 0.000000e+00 : f32
    %109 = vector.broadcast %cst_84 : f32 to vector<4x384xf32>
    %110 = arith.maximumf %104, %109 : vector<4x384xf32>
    %cst_85 = arith.constant dense<0.000000e+00> : vector<4x384xf32>
    %111 = tpu.matmul %106, %110, %cst_85 {dimension_numbers = #tpu.dot_dimension_numbers<[1], [0], [0], [1], [0, 0, 1, 1], [], []>} : vector<4x4xf32>, vector<4x384xf32>, vector<4x384xf32> -> vector<4x384xf32>
    %112 = arith.addf %102, %111 : vector<4x384xf32>
    %cst_86 = arith.constant 0.000000e+00 : f32
    %113 = vector.broadcast %cst_86 : f32 to vector<4x384xf32>
    %114 = arith.subf %113, %104 : vector<4x384xf32>
    %cst_87 = arith.constant 0.000000e+00 : f32
    %115 = vector.broadcast %cst_87 : f32 to vector<4x384xf32>
    %116 = arith.maximumf %114, %115 : vector<4x384xf32>
    %cst_88 = arith.constant dense<0.000000e+00> : vector<4x384xf32>
    %117 = tpu.matmul %108, %116, %cst_88 {dimension_numbers = #tpu.dot_dimension_numbers<[1], [0], [0], [1], [0, 0, 1, 1], [], []>} : vector<4x4xf32>, vector<4x384xf32>, vector<4x384xf32> -> vector<4x384xf32>
    %118 = arith.addf %112, %117 : vector<4x384xf32>
    %c0_89 = arith.constant 0 : index
    %c0_90 = arith.constant 0 : index
    %c146 = arith.constant 146 : index
    %119 = vector.load %arg2[%c0_89, %c0_90, %c146] : memref<1x4x640xf32, #tpu.memory_space<vmem>>, vector<1x4x384xf32>
    %120 = vector.shape_cast %119 : vector<1x4x384xf32> to vector<4x384xf32>
    %c7 = arith.constant 7 : index
    %c0_91 = arith.constant 0 : index
    %c0_92 = arith.constant 0 : index
    %121 = vector.load %arg3[%c7, %c0_91, %c0_92] : memref<9x4x8xf32, #tpu.memory_space<vmem>>, vector<1x4x4xf32>
    %122 = vector.shape_cast %121 : vector<1x4x4xf32> to vector<4x4xf32>
    %c7_93 = arith.constant 7 : index
    %c0_94 = arith.constant 0 : index
    %c4_95 = arith.constant 4 : index
    %123 = vector.load %arg3[%c7_93, %c0_94, %c4_95] : memref<9x4x8xf32, #tpu.memory_space<vmem>>, vector<1x4x4xf32>
    %124 = vector.shape_cast %123 : vector<1x4x4xf32> to vector<4x4xf32>
    %cst_96 = arith.constant 0.000000e+00 : f32
    %125 = vector.broadcast %cst_96 : f32 to vector<4x384xf32>
    %126 = arith.maximumf %120, %125 : vector<4x384xf32>
    %cst_97 = arith.constant dense<0.000000e+00> : vector<4x384xf32>
    %127 = tpu.matmul %122, %126, %cst_97 {dimension_numbers = #tpu.dot_dimension_numbers<[1], [0], [0], [1], [0, 0, 1, 1], [], []>} : vector<4x4xf32>, vector<4x384xf32>, vector<4x384xf32> -> vector<4x384xf32>
    %128 = arith.addf %118, %127 : vector<4x384xf32>
    %cst_98 = arith.constant 0.000000e+00 : f32
    %129 = vector.broadcast %cst_98 : f32 to vector<4x384xf32>
    %130 = arith.subf %129, %120 : vector<4x384xf32>
    %cst_99 = arith.constant 0.000000e+00 : f32
    %131 = vector.broadcast %cst_99 : f32 to vector<4x384xf32>
    %132 = arith.maximumf %130, %131 : vector<4x384xf32>
    %cst_100 = arith.constant dense<0.000000e+00> : vector<4x384xf32>
    %133 = tpu.matmul %124, %132, %cst_100 {dimension_numbers = #tpu.dot_dimension_numbers<[1], [0], [0], [1], [0, 0, 1, 1], [], []>} : vector<4x4xf32>, vector<4x384xf32>, vector<4x384xf32> -> vector<4x384xf32>
    %134 = arith.addf %128, %133 : vector<4x384xf32>
    %c0_101 = arith.constant 0 : index
    %c0_102 = arith.constant 0 : index
    %c147 = arith.constant 147 : index
    %135 = vector.load %arg2[%c0_101, %c0_102, %c147] : memref<1x4x640xf32, #tpu.memory_space<vmem>>, vector<1x4x384xf32>
    %136 = vector.shape_cast %135 : vector<1x4x384xf32> to vector<4x384xf32>
    %c8 = arith.constant 8 : index
    %c0_103 = arith.constant 0 : index
    %c0_104 = arith.constant 0 : index
    %137 = vector.load %arg3[%c8, %c0_103, %c0_104] : memref<9x4x8xf32, #tpu.memory_space<vmem>>, vector<1x4x4xf32>
    %138 = vector.shape_cast %137 : vector<1x4x4xf32> to vector<4x4xf32>
    %c8_105 = arith.constant 8 : index
    %c0_106 = arith.constant 0 : index
    %c4_107 = arith.constant 4 : index
    %139 = vector.load %arg3[%c8_105, %c0_106, %c4_107] : memref<9x4x8xf32, #tpu.memory_space<vmem>>, vector<1x4x4xf32>
    %140 = vector.shape_cast %139 : vector<1x4x4xf32> to vector<4x4xf32>
    %cst_108 = arith.constant 0.000000e+00 : f32
    %141 = vector.broadcast %cst_108 : f32 to vector<4x384xf32>
    %142 = arith.maximumf %136, %141 : vector<4x384xf32>
    %cst_109 = arith.constant dense<0.000000e+00> : vector<4x384xf32>
    %143 = tpu.matmul %138, %142, %cst_109 {dimension_numbers = #tpu.dot_dimension_numbers<[1], [0], [0], [1], [0, 0, 1, 1], [], []>} : vector<4x4xf32>, vector<4x384xf32>, vector<4x384xf32> -> vector<4x384xf32>
    %144 = arith.addf %134, %143 : vector<4x384xf32>
    %cst_110 = arith.constant 0.000000e+00 : f32
    %145 = vector.broadcast %cst_110 : f32 to vector<4x384xf32>
    %146 = arith.subf %145, %136 : vector<4x384xf32>
    %cst_111 = arith.constant 0.000000e+00 : f32
    %147 = vector.broadcast %cst_111 : f32 to vector<4x384xf32>
    %148 = arith.maximumf %146, %147 : vector<4x384xf32>
    %cst_112 = arith.constant dense<0.000000e+00> : vector<4x384xf32>
    %149 = tpu.matmul %140, %148, %cst_112 {dimension_numbers = #tpu.dot_dimension_numbers<[1], [0], [0], [1], [0, 0, 1, 1], [], []>} : vector<4x4xf32>, vector<4x384xf32>, vector<4x384xf32> -> vector<4x384xf32>
    %150 = arith.addf %144, %149 : vector<4x384xf32>
    %cst_113 = arith.constant 0.000000e+00 : f32
    %151 = vector.broadcast %cst_113 : f32 to vector<4x640xf32>
    %c0_114 = arith.constant 0 : index
    %c0_115 = arith.constant 0 : index
    %152 = vector.load %arg7[%c0_114, %c0_115] : memref<4x640xf32, #tpu.memory_space<vmem>>, vector<4x640xf32>
    tpu.vector_store %arg7[%c0_114, %c0_115], %151 {strides = array<i32>} : memref<4x640xf32, #tpu.memory_space<vmem>>, vector<4x640xf32>,
    %cst_116 = arith.constant 0.000000e+00 : f32
    %153 = vector.broadcast %cst_116 : f32 to vector<4x640xf32>
    %c0_117 = arith.constant 0 : index
    %c0_118 = arith.constant 0 : index
    %154 = vector.load %arg8[%c0_117, %c0_118] : memref<4x640xf32, #tpu.memory_space<vmem>>, vector<4x640xf32>
    tpu.vector_store %arg8[%c0_117, %c0_118], %153 {strides = array<i32>} : memref<4x640xf32, #tpu.memory_space<vmem>>, vector<4x640xf32>,
    %cst_119 = arith.constant 0.000000e+00 : f32
    %155 = vector.broadcast %cst_119 : f32 to vector<4x384xf32>
    %156 = arith.maximumf %150, %155 : vector<4x384xf32>
    %157 = vector.broadcast %5 : vector<1x384xf32> to vector<4x384xf32>
    %158 = arith.mulf %156, %157 : vector<4x384xf32>
    %c0_120 = arith.constant 0 : index
    %c128_121 = arith.constant 128 : index
    %159 = vector.load %arg7[%c0_120, %c128_121] : memref<4x640xf32, #tpu.memory_space<vmem>>, vector<4x384xf32>
    tpu.vector_store %arg7[%c0_120, %c128_121], %158 {strides = array<i32>} : memref<4x640xf32, #tpu.memory_space<vmem>>, vector<4x384xf32>,
    %cst_122 = arith.constant 0.000000e+00 : f32
    %160 = vector.broadcast %cst_122 : f32 to vector<4x384xf32>
    %161 = arith.subf %160, %150 : vector<4x384xf32>
    %cst_123 = arith.constant 0.000000e+00 : f32
    %162 = vector.broadcast %cst_123 : f32 to vector<4x384xf32>
    %163 = arith.maximumf %161, %162 : vector<4x384xf32>
    %164 = vector.broadcast %5 : vector<1x384xf32> to vector<4x384xf32>
    %165 = arith.mulf %163, %164 : vector<4x384xf32>
    %c0_124 = arith.constant 0 : index
    %c128_125 = arith.constant 128 : index
    %166 = vector.load %arg8[%c0_124, %c128_125] : memref<4x640xf32, #tpu.memory_space<vmem>>, vector<4x384xf32>
    tpu.vector_store %arg8[%c0_124, %c128_125], %165 {strides = array<i32>} : memref<4x640xf32, #tpu.memory_space<vmem>>, vector<4x384xf32>,
    %cst_126 = arith.constant 0.000000e+00 : f32
    %167 = vector.broadcast %cst_126 : f32 to vector<4x384xf32>
    %c0_127 = arith.constant 0 : index
    %c109_128 = arith.constant 109 : index
    %168 = vector.load %arg7[%c0_127, %c109_128] : memref<4x640xf32, #tpu.memory_space<vmem>>, vector<4x384xf32>
    %c0_129 = arith.constant 0 : index
    %c109_130 = arith.constant 109 : index
    %169 = vector.load %arg8[%c0_129, %c109_130] : memref<4x640xf32, #tpu.memory_space<vmem>>, vector<4x384xf32>
    %c0_131 = arith.constant 0 : index
    %c0_132 = arith.constant 0 : index
    %c0_133 = arith.constant 0 : index
    %170 = vector.load %arg4[%c0_131, %c0_132, %c0_133] : memref<9x4x8xf32, #tpu.memory_space<vmem>>, vector<1x4x4xf32>
    %171 = vector.shape_cast %170 : vector<1x4x4xf32> to vector<4x4xf32>
    %c0_134 = arith.constant 0 : index
    %c0_135 = arith.constant 0 : index
    %c4_136 = arith.constant 4 : index
    %172 = vector.load %arg4[%c0_134, %c0_135, %c4_136] : memref<9x4x8xf32, #tpu.memory_space<vmem>>, vector<1x4x4xf32>
    %173 = vector.shape_cast %172 : vector<1x4x4xf32> to vector<4x4xf32>
    %cst_137 = arith.constant dense<0.000000e+00> : vector<4x384xf32>
    %174 = tpu.matmul %171, %168, %cst_137 {dimension_numbers = #tpu.dot_dimension_numbers<[1], [0], [0], [1], [0, 0, 1, 1], [], []>} : vector<4x4xf32>, vector<4x384xf32>, vector<4x384xf32> -> vector<4x384xf32>
    %175 = arith.addf %167, %174 : vector<4x384xf32>
    %cst_138 = arith.constant dense<0.000000e+00> : vector<4x384xf32>
    %176 = tpu.matmul %173, %169, %cst_138 {dimension_numbers = #tpu.dot_dimension_numbers<[1], [0], [0], [1], [0, 0, 1, 1], [], []>} : vector<4x4xf32>, vector<4x384xf32>, vector<4x384xf32> -> vector<4x384xf32>
    %177 = arith.addf %175, %176 : vector<4x384xf32>
    %c0_139 = arith.constant 0 : index
    %c110_140 = arith.constant 110 : index
    %178 = vector.load %arg7[%c0_139, %c110_140] : memref<4x640xf32, #tpu.memory_space<vmem>>, vector<4x384xf32>
    %c0_141 = arith.constant 0 : index
    %c110_142 = arith.constant 110 : index
    %179 = vector.load %arg8[%c0_141, %c110_142] : memref<4x640xf32, #tpu.memory_space<vmem>>, vector<4x384xf32>
    %c1_143 = arith.constant 1 : index
    %c0_144 = arith.constant 0 : index
    %c0_145 = arith.constant 0 : index
    %180 = vector.load %arg4[%c1_143, %c0_144, %c0_145] : memref<9x4x8xf32, #tpu.memory_space<vmem>>, vector<1x4x4xf32>
    %181 = vector.shape_cast %180 : vector<1x4x4xf32> to vector<4x4xf32>
    %c1_146 = arith.constant 1 : index
    %c0_147 = arith.constant 0 : index
    %c4_148 = arith.constant 4 : index
    %182 = vector.load %arg4[%c1_146, %c0_147, %c4_148] : memref<9x4x8xf32, #tpu.memory_space<vmem>>, vector<1x4x4xf32>
    %183 = vector.shape_cast %182 : vector<1x4x4xf32> to vector<4x4xf32>
    %cst_149 = arith.constant dense<0.000000e+00> : vector<4x384xf32>
    %184 = tpu.matmul %181, %178, %cst_149 {dimension_numbers = #tpu.dot_dimension_numbers<[1], [0], [0], [1], [0, 0, 1, 1], [], []>} : vector<4x4xf32>, vector<4x384xf32>, vector<4x384xf32> -> vector<4x384xf32>
    %185 = arith.addf %177, %184 : vector<4x384xf32>
    %cst_150 = arith.constant dense<0.000000e+00> : vector<4x384xf32>
    %186 = tpu.matmul %183, %179, %cst_150 {dimension_numbers = #tpu.dot_dimension_numbers<[1], [0], [0], [1], [0, 0, 1, 1], [], []>} : vector<4x4xf32>, vector<4x384xf32>, vector<4x384xf32> -> vector<4x384xf32>
    %187 = arith.addf %185, %186 : vector<4x384xf32>
    %c0_151 = arith.constant 0 : index
    %c111_152 = arith.constant 111 : index
    %188 = vector.load %arg7[%c0_151, %c111_152] : memref<4x640xf32, #tpu.memory_space<vmem>>, vector<4x384xf32>
    %c0_153 = arith.constant 0 : index
    %c111_154 = arith.constant 111 : index
    %189 = vector.load %arg8[%c0_153, %c111_154] : memref<4x640xf32, #tpu.memory_space<vmem>>, vector<4x384xf32>
    %c2_155 = arith.constant 2 : index
    %c0_156 = arith.constant 0 : index
    %c0_157 = arith.constant 0 : index
    %190 = vector.load %arg4[%c2_155, %c0_156, %c0_157] : memref<9x4x8xf32, #tpu.memory_space<vmem>>, vector<1x4x4xf32>
    %191 = vector.shape_cast %190 : vector<1x4x4xf32> to vector<4x4xf32>
    %c2_158 = arith.constant 2 : index
    %c0_159 = arith.constant 0 : index
    %c4_160 = arith.constant 4 : index
    %192 = vector.load %arg4[%c2_158, %c0_159, %c4_160] : memref<9x4x8xf32, #tpu.memory_space<vmem>>, vector<1x4x4xf32>
    %193 = vector.shape_cast %192 : vector<1x4x4xf32> to vector<4x4xf32>
    %cst_161 = arith.constant dense<0.000000e+00> : vector<4x384xf32>
    %194 = tpu.matmul %191, %188, %cst_161 {dimension_numbers = #tpu.dot_dimension_numbers<[1], [0], [0], [1], [0, 0, 1, 1], [], []>} : vector<4x4xf32>, vector<4x384xf32>, vector<4x384xf32> -> vector<4x384xf32>
    %195 = arith.addf %187, %194 : vector<4x384xf32>
    %cst_162 = arith.constant dense<0.000000e+00> : vector<4x384xf32>
    %196 = tpu.matmul %193, %189, %cst_162 {dimension_numbers = #tpu.dot_dimension_numbers<[1], [0], [0], [1], [0, 0, 1, 1], [], []>} : vector<4x4xf32>, vector<4x384xf32>, vector<4x384xf32> -> vector<4x384xf32>
    %197 = arith.addf %195, %196 : vector<4x384xf32>
    %c0_163 = arith.constant 0 : index
    %c127_164 = arith.constant 127 : index
    %198 = vector.load %arg7[%c0_163, %c127_164] : memref<4x640xf32, #tpu.memory_space<vmem>>, vector<4x384xf32>
    %c0_165 = arith.constant 0 : index
    %c127_166 = arith.constant 127 : index
    %199 = vector.load %arg8[%c0_165, %c127_166] : memref<4x640xf32, #tpu.memory_space<vmem>>, vector<4x384xf32>
    %c3_167 = arith.constant 3 : index
    %c0_168 = arith.constant 0 : index
    %c0_169 = arith.constant 0 : index
    %200 = vector.load %arg4[%c3_167, %c0_168, %c0_169] : memref<9x4x8xf32, #tpu.memory_space<vmem>>, vector<1x4x4xf32>
    %201 = vector.shape_cast %200 : vector<1x4x4xf32> to vector<4x4xf32>
    %c3_170 = arith.constant 3 : index
    %c0_171 = arith.constant 0 : index
    %c4_172 = arith.constant 4 : index
    %202 = vector.load %arg4[%c3_170, %c0_171, %c4_172] : memref<9x4x8xf32, #tpu.memory_space<vmem>>, vector<1x4x4xf32>
    %203 = vector.shape_cast %202 : vector<1x4x4xf32> to vector<4x4xf32>
    %cst_173 = arith.constant dense<0.000000e+00> : vector<4x384xf32>
    %204 = tpu.matmul %201, %198, %cst_173 {dimension_numbers = #tpu.dot_dimension_numbers<[1], [0], [0], [1], [0, 0, 1, 1], [], []>} : vector<4x4xf32>, vector<4x384xf32>, vector<4x384xf32> -> vector<4x384xf32>
    %205 = arith.addf %197, %204 : vector<4x384xf32>
    %cst_174 = arith.constant dense<0.000000e+00> : vector<4x384xf32>
    %206 = tpu.matmul %203, %199, %cst_174 {dimension_numbers = #tpu.dot_dimension_numbers<[1], [0], [0], [1], [0, 0, 1, 1], [], []>} : vector<4x4xf32>, vector<4x384xf32>, vector<4x384xf32> -> vector<4x384xf32>
    %207 = arith.addf %205, %206 : vector<4x384xf32>
    %c0_175 = arith.constant 0 : index
    %c128_176 = arith.constant 128 : index
    %208 = vector.load %arg7[%c0_175, %c128_176] : memref<4x640xf32, #tpu.memory_space<vmem>>, vector<4x384xf32>
    %c0_177 = arith.constant 0 : index
    %c128_178 = arith.constant 128 : index
    %209 = vector.load %arg8[%c0_177, %c128_178] : memref<4x640xf32, #tpu.memory_space<vmem>>, vector<4x384xf32>
    %c4_179 = arith.constant 4 : index
    %c0_180 = arith.constant 0 : index
    %c0_181 = arith.constant 0 : index
    %210 = vector.load %arg4[%c4_179, %c0_180, %c0_181] : memref<9x4x8xf32, #tpu.memory_space<vmem>>, vector<1x4x4xf32>
    %211 = vector.shape_cast %210 : vector<1x4x4xf32> to vector<4x4xf32>
    %c4_182 = arith.constant 4 : index
    %c0_183 = arith.constant 0 : index
    %c4_184 = arith.constant 4 : index
    %212 = vector.load %arg4[%c4_182, %c0_183, %c4_184] : memref<9x4x8xf32, #tpu.memory_space<vmem>>, vector<1x4x4xf32>
    %213 = vector.shape_cast %212 : vector<1x4x4xf32> to vector<4x4xf32>
    %cst_185 = arith.constant dense<0.000000e+00> : vector<4x384xf32>
    %214 = tpu.matmul %211, %208, %cst_185 {dimension_numbers = #tpu.dot_dimension_numbers<[1], [0], [0], [1], [0, 0, 1, 1], [], []>} : vector<4x4xf32>, vector<4x384xf32>, vector<4x384xf32> -> vector<4x384xf32>
    %215 = arith.addf %207, %214 : vector<4x384xf32>
    %cst_186 = arith.constant dense<0.000000e+00> : vector<4x384xf32>
    %216 = tpu.matmul %213, %209, %cst_186 {dimension_numbers = #tpu.dot_dimension_numbers<[1], [0], [0], [1], [0, 0, 1, 1], [], []>} : vector<4x4xf32>, vector<4x384xf32>, vector<4x384xf32> -> vector<4x384xf32>
    %217 = arith.addf %215, %216 : vector<4x384xf32>
    %c0_187 = arith.constant 0 : index
    %c129_188 = arith.constant 129 : index
    %218 = vector.load %arg7[%c0_187, %c129_188] : memref<4x640xf32, #tpu.memory_space<vmem>>, vector<4x384xf32>
    %c0_189 = arith.constant 0 : index
    %c129_190 = arith.constant 129 : index
    %219 = vector.load %arg8[%c0_189, %c129_190] : memref<4x640xf32, #tpu.memory_space<vmem>>, vector<4x384xf32>
    %c5_191 = arith.constant 5 : index
    %c0_192 = arith.constant 0 : index
    %c0_193 = arith.constant 0 : index
    %220 = vector.load %arg4[%c5_191, %c0_192, %c0_193] : memref<9x4x8xf32, #tpu.memory_space<vmem>>, vector<1x4x4xf32>
    %221 = vector.shape_cast %220 : vector<1x4x4xf32> to vector<4x4xf32>
    %c5_194 = arith.constant 5 : index
    %c0_195 = arith.constant 0 : index
    %c4_196 = arith.constant 4 : index
    %222 = vector.load %arg4[%c5_194, %c0_195, %c4_196] : memref<9x4x8xf32, #tpu.memory_space<vmem>>, vector<1x4x4xf32>
    %223 = vector.shape_cast %222 : vector<1x4x4xf32> to vector<4x4xf32>
    %cst_197 = arith.constant dense<0.000000e+00> : vector<4x384xf32>
    %224 = tpu.matmul %221, %218, %cst_197 {dimension_numbers = #tpu.dot_dimension_numbers<[1], [0], [0], [1], [0, 0, 1, 1], [], []>} : vector<4x4xf32>, vector<4x384xf32>, vector<4x384xf32> -> vector<4x384xf32>
    %225 = arith.addf %217, %224 : vector<4x384xf32>
    %cst_198 = arith.constant dense<0.000000e+00> : vector<4x384xf32>
    %226 = tpu.matmul %223, %219, %cst_198 {dimension_numbers = #tpu.dot_dimension_numbers<[1], [0], [0], [1], [0, 0, 1, 1], [], []>} : vector<4x4xf32>, vector<4x384xf32>, vector<4x384xf32> -> vector<4x384xf32>
    %227 = arith.addf %225, %226 : vector<4x384xf32>
    %c0_199 = arith.constant 0 : index
    %c145_200 = arith.constant 145 : index
    %228 = vector.load %arg7[%c0_199, %c145_200] : memref<4x640xf32, #tpu.memory_space<vmem>>, vector<4x384xf32>
    %c0_201 = arith.constant 0 : index
    %c145_202 = arith.constant 145 : index
    %229 = vector.load %arg8[%c0_201, %c145_202] : memref<4x640xf32, #tpu.memory_space<vmem>>, vector<4x384xf32>
    %c6_203 = arith.constant 6 : index
    %c0_204 = arith.constant 0 : index
    %c0_205 = arith.constant 0 : index
    %230 = vector.load %arg4[%c6_203, %c0_204, %c0_205] : memref<9x4x8xf32, #tpu.memory_space<vmem>>, vector<1x4x4xf32>
    %231 = vector.shape_cast %230 : vector<1x4x4xf32> to vector<4x4xf32>
    %c6_206 = arith.constant 6 : index
    %c0_207 = arith.constant 0 : index
    %c4_208 = arith.constant 4 : index
    %232 = vector.load %arg4[%c6_206, %c0_207, %c4_208] : memref<9x4x8xf32, #tpu.memory_space<vmem>>, vector<1x4x4xf32>
    %233 = vector.shape_cast %232 : vector<1x4x4xf32> to vector<4x4xf32>
    %cst_209 = arith.constant dense<0.000000e+00> : vector<4x384xf32>
    %234 = tpu.matmul %231, %228, %cst_209 {dimension_numbers = #tpu.dot_dimension_numbers<[1], [0], [0], [1], [0, 0, 1, 1], [], []>} : vector<4x4xf32>, vector<4x384xf32>, vector<4x384xf32> -> vector<4x384xf32>
    %235 = arith.addf %227, %234 : vector<4x384xf32>
    %cst_210 = arith.constant dense<0.000000e+00> : vector<4x384xf32>
    %236 = tpu.matmul %233, %229, %cst_210 {dimension_numbers = #tpu.dot_dimension_numbers<[1], [0], [0], [1], [0, 0, 1, 1], [], []>} : vector<4x4xf32>, vector<4x384xf32>, vector<4x384xf32> -> vector<4x384xf32>
    %237 = arith.addf %235, %236 : vector<4x384xf32>
    %c0_211 = arith.constant 0 : index
    %c146_212 = arith.constant 146 : index
    %238 = vector.load %arg7[%c0_211, %c146_212] : memref<4x640xf32, #tpu.memory_space<vmem>>, vector<4x384xf32>
    %c0_213 = arith.constant 0 : index
    %c146_214 = arith.constant 146 : index
    %239 = vector.load %arg8[%c0_213, %c146_214] : memref<4x640xf32, #tpu.memory_space<vmem>>, vector<4x384xf32>
    %c7_215 = arith.constant 7 : index
    %c0_216 = arith.constant 0 : index
    %c0_217 = arith.constant 0 : index
    %240 = vector.load %arg4[%c7_215, %c0_216, %c0_217] : memref<9x4x8xf32, #tpu.memory_space<vmem>>, vector<1x4x4xf32>
    %241 = vector.shape_cast %240 : vector<1x4x4xf32> to vector<4x4xf32>
    %c7_218 = arith.constant 7 : index
    %c0_219 = arith.constant 0 : index
    %c4_220 = arith.constant 4 : index
    %242 = vector.load %arg4[%c7_218, %c0_219, %c4_220] : memref<9x4x8xf32, #tpu.memory_space<vmem>>, vector<1x4x4xf32>
    %243 = vector.shape_cast %242 : vector<1x4x4xf32> to vector<4x4xf32>
    %cst_221 = arith.constant dense<0.000000e+00> : vector<4x384xf32>
    %244 = tpu.matmul %241, %238, %cst_221 {dimension_numbers = #tpu.dot_dimension_numbers<[1], [0], [0], [1], [0, 0, 1, 1], [], []>} : vector<4x4xf32>, vector<4x384xf32>, vector<4x384xf32> -> vector<4x384xf32>
    %245 = arith.addf %237, %244 : vector<4x384xf32>
    %cst_222 = arith.constant dense<0.000000e+00> : vector<4x384xf32>
    %246 = tpu.matmul %243, %239, %cst_222 {dimension_numbers = #tpu.dot_dimension_numbers<[1], [0], [0], [1], [0, 0, 1, 1], [], []>} : vector<4x4xf32>, vector<4x384xf32>, vector<4x384xf32> -> vector<4x384xf32>
    %247 = arith.addf %245, %246 : vector<4x384xf32>
    %c0_223 = arith.constant 0 : index
    %c147_224 = arith.constant 147 : index
    %248 = vector.load %arg7[%c0_223, %c147_224] : memref<4x640xf32, #tpu.memory_space<vmem>>, vector<4x384xf32>
    %c0_225 = arith.constant 0 : index
    %c147_226 = arith.constant 147 : index
    %249 = vector.load %arg8[%c0_225, %c147_226] : memref<4x640xf32, #tpu.memory_space<vmem>>, vector<4x384xf32>
    %c8_227 = arith.constant 8 : index
    %c0_228 = arith.constant 0 : index
    %c0_229 = arith.constant 0 : index
    %250 = vector.load %arg4[%c8_227, %c0_228, %c0_229] : memref<9x4x8xf32, #tpu.memory_space<vmem>>, vector<1x4x4xf32>
    %251 = vector.shape_cast %250 : vector<1x4x4xf32> to vector<4x4xf32>
    %c8_230 = arith.constant 8 : index
    %c0_231 = arith.constant 0 : index
    %c4_232 = arith.constant 4 : index
    %252 = vector.load %arg4[%c8_230, %c0_231, %c4_232] : memref<9x4x8xf32, #tpu.memory_space<vmem>>, vector<1x4x4xf32>
    %253 = vector.shape_cast %252 : vector<1x4x4xf32> to vector<4x4xf32>
    %cst_233 = arith.constant dense<0.000000e+00> : vector<4x384xf32>
    %254 = tpu.matmul %251, %248, %cst_233 {dimension_numbers = #tpu.dot_dimension_numbers<[1], [0], [0], [1], [0, 0, 1, 1], [], []>} : vector<4x4xf32>, vector<4x384xf32>, vector<4x384xf32> -> vector<4x384xf32>
    %255 = arith.addf %247, %254 : vector<4x384xf32>
    %cst_234 = arith.constant dense<0.000000e+00> : vector<4x384xf32>
    %256 = tpu.matmul %253, %249, %cst_234 {dimension_numbers = #tpu.dot_dimension_numbers<[1], [0], [0], [1], [0, 0, 1, 1], [], []>} : vector<4x4xf32>, vector<4x384xf32>, vector<4x384xf32> -> vector<4x384xf32>
    %257 = arith.addf %255, %256 : vector<4x384xf32>
    %c0_235 = arith.constant 0 : index
    %c0_236 = arith.constant 0 : index
    %c128_237 = arith.constant 128 : index
    %258 = vector.load %arg2[%c0_235, %c0_236, %c128_237] : memref<1x4x640xf32, #tpu.memory_space<vmem>>, vector<1x4x384xf32>
    %259 = vector.shape_cast %258 : vector<1x4x384xf32> to vector<4x384xf32>
    %260 = vector.broadcast %0 : vector<1x1xf32> to vector<4x384xf32>
    %261 = arith.mulf %257, %260 : vector<4x384xf32>
    %262 = vector.broadcast %4 : vector<1x1xf32> to vector<4x384xf32>
    %263 = arith.mulf %259, %262 : vector<4x384xf32>
    %264 = arith.addf %261, %263 : vector<4x384xf32>
    %c0_238 = arith.constant 0 : index
    %c0_239 = arith.constant 0 : index
    %c0_240 = arith.constant 0 : index
    %265 = vector.load %arg6[%c0_238, %c0_239, %c0_240] : memref<1x4x384xf32, #tpu.memory_space<vmem>>, vector<1x4x384xf32>
    %266 = vector.shape_cast %265 : vector<1x4x384xf32> to vector<4x384xf32>
    %267 = vector.shape_cast %264 : vector<4x384xf32> to vector<1x4x384xf32>
    tpu.vector_store %arg6[%c0_238, %c0_239, %c0_240], %267 {strides = array<i32>} : memref<1x4x384xf32, #tpu.memory_space<vmem>>, vector<1x4x384xf32>,
    return
  }
  func.func @transform_0(%arg0: i32) -> (i32, i32) {
    %c0_i32 = arith.constant 0 : i32
    %c0_i32_0 = arith.constant 0 : i32
    %c0_i32_1 = arith.constant 0 : i32
    return %c0_i32, %c0_i32_0 : i32, i32
  }
  func.func @transform_1(%arg0: i32) -> (i32, i32, i32) {
    %c0_i32 = arith.constant 0 : i32
    %c0_i32_0 = arith.constant 0 : i32
    %c0_i32_1 = arith.constant 0 : i32
    return %arg0, %c0_i32, %c0_i32_0 : i32, i32, i32
  }
  func.func @transform_2(%arg0: i32) -> (i32, i32, i32) {
    %c0_i32 = arith.constant 0 : i32
    %c0_i32_0 = arith.constant 0 : i32
    %c0_i32_1 = arith.constant 0 : i32
    %c0_i32_2 = arith.constant 0 : i32
    return %c0_i32, %c0_i32_0, %c0_i32_1 : i32, i32, i32
  }
  func.func @transform_3(%arg0: i32) -> (i32, i32, i32) {
    %c0_i32 = arith.constant 0 : i32
    %c0_i32_0 = arith.constant 0 : i32
    %c0_i32_1 = arith.constant 0 : i32
    %c0_i32_2 = arith.constant 0 : i32
    return %c0_i32, %c0_i32_0, %c0_i32_1 : i32, i32, i32
  }
  func.func @transform_4(%arg0: i32) -> (i32, i32) {
    %c0_i32 = arith.constant 0 : i32
    %c0_i32_0 = arith.constant 0 : i32
    %c0_i32_1 = arith.constant 0 : i32
    return %c0_i32, %c0_i32_0 : i32, i32
  }
  func.func @transform_5(%arg0: i32) -> (i32, i32, i32) {
    %c0_i32 = arith.constant 0 : i32
    %c0_i32_0 = arith.constant 0 : i32
    %c0_i32_1 = arith.constant 0 : i32
    return %arg0, %c0_i32, %c0_i32_0 : i32, i32, i32
  }
}

</mosaic_0001>

<llo_original>
// kernel: tpu_custom_call.1
$region0: #{tpu_custom_call.1}
  #allocation0 [shape = 'u32[]', space=smem, size = 0x4, offset = 0x4, fixed_abs, tag = 'smem constant byte address 0x4 - core index']
  #allocation1 [shape = 'u32[144,128]{1,0:T(1,128)}', space=vmem, size = 0x12000, scoped, tag = 'internal scratch']
  #allocation2 [shape = 'f32[4,640]{1,0:T(4,128)}', space=vmem, size = 0x2800, scoped, tag = 'scratch operand']
  #allocation3 [shape = 'f32[4,640]{1,0:T(4,128)}', space=vmem, size = 0x2800, scoped, tag = 'scratch operand']
  #allocation4 [shape = 'f32[1,1]{1,0:T(1,128)S(1)}', space=vmem, size = 0x200, scoped, tag = 'scoped memory for tpu_custom_call.1']
  %s0 = inlined_call_operand.<no memory space> [shape: f32[1,1], index: 0, kind: input, shape index: {}]
  %s1 = inlined_call_operand.vmem [shape: f32[2,4,640], index: 1, kind: input, shape index: {}]
  %s2 = inlined_call_operand.vmem [shape: f32[9,4,8], index: 2, kind: input, shape index: {}]
  %s3 = inlined_call_operand.vmem [shape: f32[9,4,8], index: 3, kind: input, shape index: {}]
  %s4 = inlined_call_operand.vmem [shape: f32[1,384], index: 4, kind: input, shape index: {}]
  %s5 = inlined_call_operand.hbm [shape: f32[2,4,384], index: 5, kind: output, shape index: {}]
  %s6 = sld [smem:[#allocation0]]
  $region53: #{tpu_custom_call.1} parent=0
    _
  %s8 = ssub.s32 1, %s6
  %s9 = scalar_select 0, %s8, %s6
  %v10 = vstv %s0
  %11 = vst [vmem:[#allocation4] sm:$0x1] %v10
  $region1: #{tpu_custom_call.1} parent=0
    #allocation5 [shape = 'u8[12288]{0}', space=vmem, size = 0x3000, scoped, tag = 'output window, operand 0']
    #allocation6 [shape = 's32[2]{0}', space=sflag, size = 0x8, scoped, tag = 'scoped memory for tpu_custom_call.1']
    %12 = vsyncpa [#allocation6], 0
    %s13 = scalar_lea.sflag [#allocation6], 1
    %14 = vsyncpa %s13, 0
    loop: start=0, step=1, limit=4
    $region2: #{tpu_custom_call.1} parent=1 // loop_pre_header
      _
    $region3: #{tpu_custom_call.1} parent=1 // loop_header
      %s16 = sphi 0, %s20
      %p17 = scmp.ge.s32.totalorder %s16, 4
      %s24 = sphi 0, %s24
      %s26 = sphi 0, %s24
      %s27 = sphi 0, %s26
      %s41 = sphi 0, %s27
      %s47 = sphi 0, %s49
      %s50 = sphi 0, %s47
      %s51 = sphi 0, %s50
      %s67 = sphi 0, %s51
      %s71 = sphi 0, %s71
      %s73 = sphi 0, %s71
      %s74 = sphi 0, %s73
      %s88 = sphi 0, %s74
      %s92 = sphi 0, %s92
      %s94 = sphi 0, %s92
      %s95 = sphi 0, %s94
      %s109 = sphi 0, %s95
      %s113 = sphi 0, %s113
      %s115 = sphi 0, %s113
      %s116 = sphi 0, %s115
      %s130 = sphi 0, %s116
      %s136 = sphi 0, %s138
      %s139 = sphi 0, %s136
      %s140 = sphi 0, %s139
      %s156 = sphi 0, %s140
    $region4: #{tpu_custom_call.1} parent=1 // loop_header_branch
      %19 = sbr.rel (%p17) target = $region8
    $region5: #{tpu_custom_call.1} parent=1 // loop_body
      %s21 = ssub.s32 %s16, 1
      %s22 = ssub.s32 %s16, 2
      %s23 = sadd.s32 %s16, 1
      %s25 = sadd.s32 %s24, 1
      %p28 = scmp.eq.s32.totalorder %s16, 1
      %p29 = scmp.ne.s32.totalorder %s24, %s26
      %p30 = scmp.eq.s32.totalorder %s16, 0
      %p31 = por %p29, %p30
      %p32 = scmp.ne.s32.totalorder %s24, %s26
      %p33 = scmp.eq.s32.totalorder %s21, 1
      %p34 = por %p32, %p33
      %p35 = scmp.ne.s32.totalorder %s26, %s27
      %p36 = scmp.eq.s32.totalorder %s21, 0
      %p37 = por %p35, %p36
      %p38 = scmp.ne.s32.totalorder %s26, %s27
      %p39 = scmp.eq.s32.totalorder %s22, 1
      %p40 = por %p38, %p39
      %p42 = scmp.ne.s32.totalorder %s27, %s41
      %p43 = scmp.eq.s32.totalorder %s22, 0
      %p44 = por %p42, %p43
      %s45 = ssub.s32 %s16, %s23
      %p46 = scmp.eq.s32.totalorder %s45, 0
      %s48 = sadd.s32 %s47, 1
      %s49 = scalar_select %p46, %s47, %s48
      %p52 = pneg %p46
      %p53 = scmp.eq.s32.totalorder %s16, 1
      %p54 = por %p52, %p53
      %p55 = scmp.ne.s32.totalorder %s47, %s50
      %p56 = scmp.eq.s32.totalorder %s16, 0
      %p57 = por %p55, %p56
      %p58 = scmp.ne.s32.totalorder %s47, %s50
      %p59 = scmp.eq.s32.totalorder %s21, 1
      %p60 = por %p58, %p59
      %p61 = scmp.ne.s32.totalorder %s50, %s51
      %p62 = scmp.eq.s32.totalorder %s21, 0
      %p63 = por %p61, %p62
      %p64 = scmp.ne.s32.totalorder %s50, %s51
      %p65 = scmp.eq.s32.totalorder %s22, 1
      %p66 = por %p64, %p65
      %p68 = scmp.ne.s32.totalorder %s51, %s67
      %p69 = scmp.eq.s32.totalorder %s22, 0
      %p70 = por %p68, %p69
      %s72 = sadd.s32 %s71, 1
      %p75 = scmp.eq.s32.totalorder %s16, 1
      %p76 = scmp.ne.s32.totalorder %s71, %s73
      %p77 = scmp.eq.s32.totalorder %s16, 0
      %p78 = por %p76, %p77
      %p79 = scmp.ne.s32.totalorder %s71, %s73
      %p80 = scmp.eq.s32.totalorder %s21, 1
      %p81 = por %p79, %p80
      %p82 = scmp.ne.s32.totalorder %s73, %s74
      %p83 = scmp.eq.s32.totalorder %s21, 0
      %p84 = por %p82, %p83
      %p85 = scmp.ne.s32.totalorder %s73, %s74
      %p86 = scmp.eq.s32.totalorder %s22, 1
      %p87 = por %p85, %p86
      %p89 = scmp.ne.s32.totalorder %s74, %s88
      %p90 = scmp.eq.s32.totalorder %s22, 0
      %p91 = por %p89, %p90
      %s93 = sadd.s32 %s92, 1
      %p96 = scmp.eq.s32.totalorder %s16, 1
      %p97 = scmp.ne.s32.totalorder %s92, %s94
      %p98 = scmp.eq.s32.totalorder %s16, 0
      %p99 = por %p97, %p98
      %p100 = scmp.ne.s32.totalorder %s92, %s94
      %p101 = scmp.eq.s32.totalorder %s21, 1
      %p102 = por %p100, %p101
      %p103 = scmp.ne.s32.totalorder %s94, %s95
      %p104 = scmp.eq.s32.totalorder %s21, 0
      %p105 = por %p103, %p104
      %p106 = scmp.ne.s32.totalorder %s94, %s95
      %p107 = scmp.eq.s32.totalorder %s22, 1
      %p108 = por %p106, %p107
      %p110 = scmp.ne.s32.totalorder %s95, %s109
      %p111 = scmp.eq.s32.totalorder %s22, 0
      %p112 = por %p110, %p111
      %s114 = sadd.s32 %s113, 1
      %p117 = scmp.eq.s32.totalorder %s16, 1
      %p118 = scmp.ne.s32.totalorder %s113, %s115
      %p119 = scmp.eq.s32.totalorder %s16, 0
      %p120 = por %p118, %p119
      %p121 = scmp.ne.s32.totalorder %s113, %s115
      %p122 = scmp.eq.s32.totalorder %s21, 1
      %p123 = por %p121, %p122
      %p124 = scmp.ne.s32.totalorder %s115, %s116
      %p125 = scmp.eq.s32.totalorder %s21, 0
      %p126 = por %p124, %p125
      %p127 = scmp.ne.s32.totalorder %s115, %s116
      %p128 = scmp.eq.s32.totalorder %s22, 1
      %p129 = por %p127, %p128
      %p131 = scmp.ne.s32.totalorder %s116, %s130
      %p132 = scmp.eq.s32.totalorder %s22, 0
      %p133 = por %p131, %p132
      %s134 = ssub.s32 %s16, %s23
      %p135 = scmp.eq.s32.totalorder %s134, 0
      %s137 = sadd.s32 %s136, 1
      %s138 = scalar_select %p135, %s136, %s137
      %p141 = pneg %p135
      %p142 = scmp.eq.s32.totalorder %s16, 1
      %p143 = por %p141, %p142
      %p144 = scmp.ne.s32.totalorder %s136, %s139
      %p145 = scmp.eq.s32.totalorder %s16, 0
      %p146 = por %p144, %p145
      %p147 = scmp.ne.s32.totalorder %s136, %s139
      %p148 = scmp.eq.s32.totalorder %s21, 1
      %p149 = por %p147, %p148
      %p150 = scmp.ne.s32.totalorder %s139, %s140
      %p151 = scmp.eq.s32.totalorder %s21, 0
      %p152 = por %p150, %p151
      %p153 = scmp.ne.s32.totalorder %s139, %s140
      %p154 = scmp.eq.s32.totalorder %s22, 1
      %p155 = por %p153, %p154
      %p157 = scmp.ne.s32.totalorder %s140, %s156
      %p158 = scmp.eq.s32.totalorder %s22, 0
      %p159 = por %p157, %p158
      %p160 = scmp.le.s32.totalorder 1, %s16
      %p161 = scmp.lt.s32.totalorder %s16, 3
      %p162 = pnand %p160, %p161
      %p163 = pneg %p162
      // Predicated region
      $region9: #{tpu_custom_call.1} parent=5 // pred_check
        _
      $region10: #{tpu_custom_call.1} parent=5 // pred_check_branch
        %165 = sbr.rel (%p162) target = $region12
      $region11: #{tpu_custom_call.1} parent=5 // pred_region
        %s166 = ssub.s32 %s16, 1
        // Predicated region
        $region13: #{tpu_custom_call.1} parent=11 // pred_check
          %p167 = pneg %p37
        $region14: #{tpu_custom_call.1} parent=11 // pred_check_branch
          %169 = sbr.rel (%p167) target = $region16
        $region15: #{tpu_custom_call.1} parent=11 // pred_region
          _
        $region16: #{tpu_custom_call.1} parent=11 // pred_fallthru
          _
        // Predicated region
        $region17: #{tpu_custom_call.1} parent=11 // pred_check
          %p170 = pneg %p84
        $region18: #{tpu_custom_call.1} parent=11 // pred_check_branch
          %172 = sbr.rel (%p170) target = $region20
        $region19: #{tpu_custom_call.1} parent=11 // pred_region
          _
        $region20: #{tpu_custom_call.1} parent=11 // pred_fallthru
          _
        // Predicated region
        $region21: #{tpu_custom_call.1} parent=11 // pred_check
          %p173 = pneg %p105
        $region22: #{tpu_custom_call.1} parent=11 // pred_check_branch
          %175 = sbr.rel (%p173) target = $region24
        $region23: #{tpu_custom_call.1} parent=11 // pred_region
          _
        $region24: #{tpu_custom_call.1} parent=11 // pred_fallthru
          _
        // Predicated region
        $region25: #{tpu_custom_call.1} parent=11 // pred_check
          %p176 = pneg %p126
        $region26: #{tpu_custom_call.1} parent=11 // pred_check_branch
          %178 = sbr.rel (%p176) target = $region28
        $region27: #{tpu_custom_call.1} parent=11 // pred_region
          _
        $region28: #{tpu_custom_call.1} parent=11 // pred_fallthru
          _
      $region12: #{tpu_custom_call.1} parent=5 // pred_fallthru
        _
      %p179 = scmp.lt.s32.totalorder %s16, 2
      // Predicated region
      $region29: #{tpu_custom_call.1} parent=5 // pred_check
        %p180 = pneg %p179
      $region30: #{tpu_custom_call.1} parent=5 // pred_check_branch
        %182 = sbr.rel (%p180) target = $region32
      $region31: #{tpu_custom_call.1} parent=5 // pred_region
        // Predicated region
        $region33: #{tpu_custom_call.1} parent=31 // pred_check
          %p183 = pneg %p57
        $region34: #{tpu_custom_call.1} parent=31 // pred_check_branch
          %185 = sbr.rel (%p183) target = $region36
        $region35: #{tpu_custom_call.1} parent=31 // pred_region
          %p186 = scmp.lt.s32.totalorder %s16, 1
          %s187 = scalar_select %p186, %s16, 1
          %s188 = smul.addr %s187, 5
          %s189 = smul.addr %s188, 4
          %s190 = scalar_lea.vmem %s1, %s189
        $region36: #{tpu_custom_call.1} parent=31 // pred_fallthru
          _
      $region32: #{tpu_custom_call.1} parent=5 // pred_fallthru
        _
      %p191 = scmp.le.s32.totalorder 1, %s16
      %p192 = scmp.lt.s32.totalorder %s16, 3
      %p193 = pnand %p191, %p192
      %p194 = pneg %p193
      // Predicated region
      $region37: #{tpu_custom_call.1} parent=5 // pred_check
        _
      $region38: #{tpu_custom_call.1} parent=5 // pred_check_branch
        %196 = sbr.rel (%p193) target = $region40
      $region39: #{tpu_custom_call.1} parent=5 // pred_region
        %s197 = ssub.s32 %s16, 1
        %p198 = pneg %p37
        %p199 = pneg %p34
        %p200 = scmp.lt.s32.totalorder %s21, 1
        %s201 = scalar_select %p200, %s21, 1
        %s202 = smul.addr %s201, 5
        %s203 = smul.addr %s202, 4
        %s204 = scalar_lea.vmem %s1, %s203
        %p205 = pneg %p63
        %p206 = pneg %p60
        %p207 = pneg %p84
        %p208 = pneg %p81
        %p209 = pneg %p105
        %p210 = pneg %p102
        %p211 = pneg %p126
        %p212 = pneg %p123
        %p213 = pneg %p152
        %p214 = pneg %p149
        %s215 = sand.u32 %s139, 1
        %s216 = scalar_lea.sflag [#allocation6], %s215
        %s217 = sand.u32 %s139, 1
        %s218 = smul.addr %s217, 12
        %s219 = scalar_lea.vmem [#allocation5], %s218
        %p220 = scmp.lt.s32.totalorder %s21, 1
        %s221 = scalar_select %p220, %s21, 1
        %s222 = smul.addr %s221, 5
        %s223 = smul.addr %s222, 4
        %s224 = scalar_lea.vmem %s1, %s223
        %v225 = vld [vmem:[#allocation4] sm:$0x1]
        %v226 = vmul.f32 %v225, %v225
        %v227 = vsub.f32 1.0, %v226
        %v228 = vrsqrt.pop %v227
        %v229 = vmul.f32 %v227, %v228
        %vm230 = vcmp.eq.f32.partialorder %v227, inf
        %v231 = vsel %vm230, %v227, %v229
        %vm232 = vcmp.eq.f32.partialorder %v227, 0.0
        %v233 = vand.u32 %v227, 2147483648
        %v234 = vsel %vm232, %v233, %v231
        %v235 = vld [vmem:[%s4] sm:$0x7]
        %v236 = vld [vmem:[%s224] sm:$0xff]
        %v237 = vld [vmem:[%s224 + $0x8] sm:$0xff]
        %v238 = vld [vmem:[%s2] sm:$0xf]
        %v239 = vmax.f32 %v236, 0.0
        %v240 = vmax.f32 %v237, 0.0
        %v241 = vsub.f32 0.0, %v236
        %v242 = vsub.f32 0.0, %v237
        %v243 = vmax.f32 %v241, 0.0
        %v244 = vmax.f32 %v242, 0.0
        %246 = vrot.lane.b32.xlu0 %v238, 124
        %v247 = vpop.permute.xlu0 %246
        %v250 = vcombine.high %v243, %v243
        %v251 = vcombine.high %v244, %v244
        %252 = vrot.lane.b32.xlu0 %v243, 19
        %v253 = vpop.permute.xlu0 %252
        %254 = vrot.lane.b32.xlu0 %v250, 19
        %v255 = vpop.permute.xlu0 %254
        %256 = vrot.lane.b32.xlu0 %v244, 19
        %v257 = vpop.permute.xlu0 %256
        %258 = vrot.lane.b32.xlu0 %v251, 19
        %v259 = vpop.permute.xlu0 %258
        %vm260 = vcmask 154624
        %v261 = vsel %vm260, %v253, %v255
        %v262 = vsel %vm260, %v255, %v257
        %v263 = vsel %vm260, %v257, %v259
        %vm264 = vcmask 31744
        %v265 = vsel %vm264, %v247, 0
        %vm267 = vcmask 1043456
        %v268 = vsel %vm267, %v261, 0
        %v270 = vsel %vm267, %v262, 0
        %v272 = vsel %vm267, %v263, 0
        %274 = vmatprep.subr.mxu0 %v270
        %275 = vmatpush1.msra.mxu0 %v268
        %276 = vmatprep.subr.mxu0 0.0
        %277 = vmatpush1.msra.mxu0 0.0
        %278 = vmatprep.subr.mxu0 0.0
        %279 = vmatpush1.msra.mxu0 0.0
        %280 = vmatprep.subr.mxu0 0.0
        %281 = vmatpush1.msra.mxu0 0.0
        %282 = vmatprep.subr.mxu0 0.0
        %283 = vmatpush1.msra.mxu0 0.0
        %284 = vmatprep.subr.mxu0 0.0
        %285 = vmatpush1.msra.mxu0 0.0
        %286 = vmatprep.subr.mxu0 0.0
        %287 = vmatpush1.msra.mxu0 0.0
        %288 = vmatprep.subr.mxu0 0.0
        %289 = vmatpush1.msra.mxu0 0.0
        %290 = vmatprep.subr.mxu0 0.0
        %291 = vmatpush1.msra.mxu0 0.0
        %292 = vmatprep.subr.mxu0 0.0
        %293 = vmatpush1.msra.mxu0 0.0
        %294 = vmatprep.subr.mxu0 0.0
        %295 = vmatpush1.msra.mxu0 0.0
        %296 = vmatprep.subr.mxu0 0.0
        %297 = vmatpush1.msra.mxu0 0.0
        %298 = vmatprep.subr.mxu0 0.0
        %299 = vmatpush1.msra.mxu0 0.0
        %300 = vmatprep.subr.mxu0 0.0
        %301 = vmatpush1.msra.mxu0 0.0
        %302 = vmatprep.subr.mxu0 0.0
        %303 = vmatpush1.msra.mxu0 0.0
        %304 = vmatprep.subr.mxu0 0.0
        %305 = vmatpush1.msra.mxu0 0.0
        %306 = vmatprep.subr.mxu0 0.0
        %307 = vmatpush1.msra.mxu0 0.0
        %308 = vmatprep.subr.mxu0 0.0
        %309 = vmatpush1.msra.mxu0 0.0
        %310 = vmatprep.subr.mxu0 0.0
        %311 = vmatpush1.msra.mxu0 0.0
        %312 = vmatprep.subr.mxu0 0.0
        %313 = vmatpush1.msra.mxu0 0.0
        %314 = vmatprep.subr.mxu0 0.0
        %315 = vmatpush1.msra.mxu0 0.0
        %316 = vmatprep.subr.mxu0 0.0
        %317 = vmatpush1.msra.mxu0 0.0
        %318 = vmatprep.subr.mxu0 0.0
        %319 = vmatpush1.msra.mxu0 0.0
        %320 = vmatprep.subr.mxu0 0.0
        %321 = vmatpush1.msra.mxu0 0.0
        %322 = vmatprep.subr.mxu0 0.0
        %323 = vmatpush1.msra.mxu0 0.0
        %324 = vmatprep.subr.mxu0 0.0
        %325 = vmatpush1.msra.mxu0 0.0
        %326 = vmatprep.subr.mxu0 0.0
        %327 = vmatpush1.msra.mxu0 0.0
        %328 = vmatprep.subr.mxu0 0.0
        %329 = vmatpush1.msra.mxu0 0.0
        %330 = vmatprep.subr.mxu0 0.0
        %331 = vmatpush1.msra.mxu0 0.0
        %332 = vmatprep.subr.mxu0 0.0
        %333 = vmatpush1.msra.mxu0 0.0
        %334 = vmatprep.subr.mxu0 0.0
        %335 = vmatpush1.msra.mxu0 0.0
        %336 = vmatprep.subr.mxu0 0.0
        %337 = vmatpush1.msra.mxu0 0.0
        %338 = vmatprep.mubr.f32.mxu0 0.0
        %339 = vmatmul.mubr.f32.gmra.mrb[0].mxu0 %v265
        %v340 = vpop.f32.mrb[0].mxu0
        %v341 = vadd.f32 0.0, %v340
        %v342 = vpop.f32.mrb[0].mxu0
        %v343 = vadd.f32 0.0, %v342
        %344 = vdwg.mxu0
        %345 = vmatprep.subr.mxu0 0.0
        %346 = vmatpush1.msra.mxu0 %v272
        %347 = vmatprep.subr.mxu0 0.0
        %348 = vmatpush1.msra.mxu0 0.0
        %349 = vmatprep.subr.mxu0 0.0
        %350 = vmatpush1.msra.mxu0 0.0
        %351 = vmatprep.subr.mxu0 0.0
        %352 = vmatpush1.msra.mxu0 0.0
        %353 = vmatprep.subr.mxu0 0.0
        %354 = vmatpush1.msra.mxu0 0.0
        %355 = vmatprep.subr.mxu0 0.0
        %356 = vmatpush1.msra.mxu0 0.0
        %357 = vmatprep.subr.mxu0 0.0
        %358 = vmatpush1.msra.mxu0 0.0
        %359 = vmatprep.subr.mxu0 0.0
        %360 = vmatpush1.msra.mxu0 0.0
        %361 = vmatprep.subr.mxu0 0.0
        %362 = vmatpush1.msra.mxu0 0.0
        %363 = vmatprep.subr.mxu0 0.0
        %364 = vmatpush1.msra.mxu0 0.0
        %365 = vmatprep.subr.mxu0 0.0
        %366 = vmatpush1.msra.mxu0 0.0
        %367 = vmatprep.subr.mxu0 0.0
        %368 = vmatpush1.msra.mxu0 0.0
        %369 = vmatprep.subr.mxu0 0.0
        %370 = vmatpush1.msra.mxu0 0.0
        %371 = vmatprep.subr.mxu0 0.0
        %372 = vmatpush1.msra.mxu0 0.0
        %373 = vmatprep.subr.mxu0 0.0
        %374 = vmatpush1.msra.mxu0 0.0
        %375 = vmatprep.subr.mxu0 0.0
        %376 = vmatpush1.msra.mxu0 0.0
        %377 = vmatprep.subr.mxu0 0.0
        %378 = vmatpush1.msra.mxu0 0.0
        %379 = vmatprep.subr.mxu0 0.0
        %380 = vmatpush1.msra.mxu0 0.0
        %381 = vmatprep.subr.mxu0 0.0
        %382 = vmatpush1.msra.mxu0 0.0
        %383 = vmatprep.subr.mxu0 0.0
        %384 = vmatpush1.msra.mxu0 0.0
        %385 = vmatprep.subr.mxu0 0.0
        %386 = vmatpush1.msra.mxu0 0.0
        %387 = vmatprep.subr.mxu0 0.0
        %388 = vmatpush1.msra.mxu0 0.0
        %389 = vmatprep.subr.mxu0 0.0
        %390 = vmatpush1.msra.mxu0 0.0
        %391 = vmatprep.subr.mxu0 0.0
        %392 = vmatpush1.msra.mxu0 0.0
        %393 = vmatprep.subr.mxu0 0.0
        %394 = vmatpush1.msra.mxu0 0.0
        %395 = vmatprep.subr.mxu0 0.0
        %396 = vmatpush1.msra.mxu0 0.0
        %397 = vmatprep.subr.mxu0 0.0
        %398 = vmatpush1.msra.mxu0 0.0
        %399 = vmatprep.subr.mxu0 0.0
        %400 = vmatpush1.msra.mxu0 0.0
        %401 = vmatprep.subr.mxu0 0.0
        %402 = vmatpush1.msra.mxu0 0.0
        %403 = vmatprep.subr.mxu0 0.0
        %404 = vmatpush1.msra.mxu0 0.0
        %405 = vmatprep.subr.mxu0 0.0
        %406 = vmatpush1.msra.mxu0 0.0
        %407 = vmatprep.subr.mxu0 0.0
        %408 = vmatpush1.msra.mxu0 0.0
        %409 = vmatprep.mubr.f32.mxu0 0.0
        %410 = vmatmul.mubr.f32.gmra.mrb[0].mxu0 %v265
        %v411 = vpop.f32.mrb[0].mxu0
        %v412 = vadd.f32 0.0, %v411
        %v413 = vpop.f32.mrb[0].mxu0
        %414 = vdwg.mxu0
        %v417 = vcombine.high %v239, %v239
        %v418 = vcombine.high %v240, %v240
        %419 = vrot.lane.b32.xlu0 %v239, 19
        %v420 = vpop.permute.xlu0 %419
        %421 = vrot.lane.b32.xlu0 %v417, 19
        %v422 = vpop.permute.xlu0 %421
        %423 = vrot.lane.b32.xlu0 %v240, 19
        %v424 = vpop.permute.xlu0 %423
        %425 = vrot.lane.b32.xlu0 %v418, 19
        %v426 = vpop.permute.xlu0 %425
        %v427 = vsel %vm260, %v420, %v422
        %v428 = vsel %vm260, %v422, %v424
        %v429 = vsel %vm260, %v424, %v426
        %v430 = vsel %vm264, %v238, 0
        %v432 = vsel %vm267, %v427, 0
        %v434 = vsel %vm267, %v428, 0
        %v436 = vsel %vm267, %v429, 0
        %438 = vmatprep.subr.mxu0 %v434
        %439 = vmatpush1.msra.mxu0 %v432
        %440 = vmatprep.subr.mxu0 0.0
        %441 = vmatpush1.msra.mxu0 0.0
        %442 = vmatprep.subr.mxu0 0.0
        %443 = vmatpush1.msra.mxu0 0.0
        %444 = vmatprep.subr.mxu0 0.0
        %445 = vmatpush1.msra.mxu0 0.0
        %446 = vmatprep.subr.mxu0 0.0
        %447 = vmatpush1.msra.mxu0 0.0
        %448 = vmatprep.subr.mxu0 0.0
        %449 = vmatpush1.msra.mxu0 0.0
        %450 = vmatprep.subr.mxu0 0.0
        %451 = vmatpush1.msra.mxu0 0.0
        %452 = vmatprep.subr.mxu0 0.0
        %453 = vmatpush1.msra.mxu0 0.0
        %454 = vmatprep.subr.mxu0 0.0
        %455 = vmatpush1.msra.mxu0 0.0
        %456 = vmatprep.subr.mxu0 0.0
        %457 = vmatpush1.msra.mxu0 0.0
        %458 = vmatprep.subr.mxu0 0.0
        %459 = vmatpush1.msra.mxu0 0.0
        %460 = vmatprep.subr.mxu0 0.0
        %461 = vmatpush1.msra.mxu0 0.0
        %462 = vmatprep.subr.mxu0 0.0
        %463 = vmatpush1.msra.mxu0 0.0
        %464 = vmatprep.subr.mxu0 0.0
        %465 = vmatpush1.msra.mxu0 0.0
        %466 = vmatprep.subr.mxu0 0.0
        %467 = vmatpush1.msra.mxu0 0.0
        %468 = vmatprep.subr.mxu0 0.0
        %469 = vmatpush1.msra.mxu0 0.0
        %470 = vmatprep.subr.mxu0 0.0
        %471 = vmatpush1.msra.mxu0 0.0
        %472 = vmatprep.subr.mxu0 0.0
        %473 = vmatpush1.msra.mxu0 0.0
        %474 = vmatprep.subr.mxu0 0.0
        %475 = vmatpush1.msra.mxu0 0.0
        %476 = vmatprep.subr.mxu0 0.0
        %477 = vmatpush1.msra.mxu0 0.0
        %478 = vmatprep.subr.mxu0 0.0
        %479 = vmatpush1.msra.mxu0 0.0
        %480 = vmatprep.subr.mxu0 0.0
        %481 = vmatpush1.msra.mxu0 0.0
        %482 = vmatprep.subr.mxu0 0.0
        %483 = vmatpush1.msra.mxu0 0.0
        %484 = vmatprep.subr.mxu0 0.0
        %485 = vmatpush1.msra.mxu0 0.0
        %486 = vmatprep.subr.mxu0 0.0
        %487 = vmatpush1.msra.mxu0 0.0
        %488 = vmatprep.subr.mxu0 0.0
        %489 = vmatpush1.msra.mxu0 0.0
        %490 = vmatprep.subr.mxu0 0.0
        %491 = vmatpush1.msra.mxu0 0.0
        %492 = vmatprep.subr.mxu0 0.0
        %493 = vmatpush1.msra.mxu0 0.0
        %494 = vmatprep.subr.mxu0 0.0
        %495 = vmatpush1.msra.mxu0 0.0
        %496 = vmatprep.subr.mxu0 0.0
        %497 = vmatpush1.msra.mxu0 0.0
        %498 = vmatprep.subr.mxu0 0.0
        %499 = vmatpush1.msra.mxu0 0.0
        %500 = vmatprep.subr.mxu0 0.0
        %501 = vmatpush1.msra.mxu0 0.0
        %502 = vmatprep.mubr.f32.mxu0 0.0
        %503 = vmatmul.mubr.f32.gmra.mrb[0].mxu0 %v430
        %v504 = vpop.f32.mrb[0].mxu0
        %v505 = vadd.f32 %v341, %v504
        %v506 = vpop.f32.mrb[0].mxu0
        %v507 = vadd.f32 %v343, %v506
        %508 = vdwg.mxu0
        %509 = vmatprep.subr.mxu0 0.0
        %510 = vmatpush1.msra.mxu0 %v436
        %511 = vmatprep.subr.mxu0 0.0
        %512 = vmatpush1.msra.mxu0 0.0
        %513 = vmatprep.subr.mxu0 0.0
        %514 = vmatpush1.msra.mxu0 0.0
        %515 = vmatprep.subr.mxu0 0.0
        %516 = vmatpush1.msra.mxu0 0.0
        %517 = vmatprep.subr.mxu0 0.0
        %518 = vmatpush1.msra.mxu0 0.0
        %519 = vmatprep.subr.mxu0 0.0
        %520 = vmatpush1.msra.mxu0 0.0
        %521 = vmatprep.subr.mxu0 0.0
        %522 = vmatpush1.msra.mxu0 0.0
        %523 = vmatprep.subr.mxu0 0.0
        %524 = vmatpush1.msra.mxu0 0.0
        %525 = vmatprep.subr.mxu0 0.0
        %526 = vmatpush1.msra.mxu0 0.0
        %527 = vmatprep.subr.mxu0 0.0
        %528 = vmatpush1.msra.mxu0 0.0
        %529 = vmatprep.subr.mxu0 0.0
        %530 = vmatpush1.msra.mxu0 0.0
        %531 = vmatprep.subr.mxu0 0.0
        %532 = vmatpush1.msra.mxu0 0.0
        %533 = vmatprep.subr.mxu0 0.0
        %534 = vmatpush1.msra.mxu0 0.0
        %535 = vmatprep.subr.mxu0 0.0
        %536 = vmatpush1.msra.mxu0 0.0
        %537 = vmatprep.subr.mxu0 0.0
        %538 = vmatpush1.msra.mxu0 0.0
        %539 = vmatprep.subr.mxu0 0.0
        %540 = vmatpush1.msra.mxu0 0.0
        %541 = vmatprep.subr.mxu0 0.0
        %542 = vmatpush1.msra.mxu0 0.0
        %543 = vmatprep.subr.mxu0 0.0
        %544 = vmatpush1.msra.mxu0 0.0
        %545 = vmatprep.subr.mxu0 0.0
        %546 = vmatpush1.msra.mxu0 0.0
        %547 = vmatprep.subr.mxu0 0.0
        %548 = vmatpush1.msra.mxu0 0.0
        %549 = vmatprep.subr.mxu0 0.0
        %550 = vmatpush1.msra.mxu0 0.0
        %551 = vmatprep.subr.mxu0 0.0
        %552 = vmatpush1.msra.mxu0 0.0
        %553 = vmatprep.subr.mxu0 0.0
        %554 = vmatpush1.msra.mxu0 0.0
        %555 = vmatprep.subr.mxu0 0.0
        %556 = vmatpush1.msra.mxu0 0.0
        %557 = vmatprep.subr.mxu0 0.0
        %558 = vmatpush1.msra.mxu0 0.0
        %559 = vmatprep.subr.mxu0 0.0
        %560 = vmatpush1.msra.mxu0 0.0
        %561 = vmatprep.subr.mxu0 0.0
        %562 = vmatpush1.msra.mxu0 0.0
        %563 = vmatprep.subr.mxu0 0.0
        %564 = vmatpush1.msra.mxu0 0.0
        %565 = vmatprep.subr.mxu0 0.0
        %566 = vmatpush1.msra.mxu0 0.0
        %567 = vmatprep.subr.mxu0 0.0
        %568 = vmatpush1.msra.mxu0 0.0
        %569 = vmatprep.subr.mxu0 0.0
        %570 = vmatpush1.msra.mxu0 0.0
        %571 = vmatprep.subr.mxu0 0.0
        %572 = vmatpush1.msra.mxu0 0.0
        %573 = vmatprep.mubr.f32.mxu0 0.0
        %574 = vmatmul.mubr.f32.gmra.mrb[0].mxu0 %v430
        %v575 = vpop.f32.mrb[0].mxu0
        %v576 = vadd.f32 %v412, %v575
        %v577 = vpop.f32.mrb[0].mxu0
        %578 = vdwg.mxu0
        %v579 = vld [vmem:[%s224] sm:$0xff]
        %v580 = vld [vmem:[%s224 + $0x8] sm:$0xff]
        %s581 = scalar_lea.vmem %s2, 4
        %v582 = vld [vmem:[%s581] sm:$0xf]
        %v583 = vmax.f32 %v579, 0.0
        %v584 = vmax.f32 %v580, 0.0
        %v587 = vcombine.high %v583, %v583
        %v588 = vcombine.high %v584, %v584
        %589 = vrot.lane.b32.xlu0 %v583, 18
        %v590 = vpop.permute.xlu0 %589
        %591 = vrot.lane.b32.xlu0 %v587, 18
        %v592 = vpop.permute.xlu0 %591
        %593 = vrot.lane.b32.xlu0 %v584, 18
        %v594 = vpop.permute.xlu0 %593
        %595 = vrot.lane.b32.xlu0 %v588, 18
        %v596 = vpop.permute.xlu0 %595
        %vm597 = vcmask 146432
        %v598 = vsel %vm597, %v590, %v592
        %v599 = vsel %vm597, %v592, %v594
        %v600 = vsel %vm597, %v594, %v596
        %v602 = vsel %vm264, %v582, 0
        %v604 = vsel %vm267, %v598, 0
        %v606 = vsel %vm267, %v599, 0
        %v608 = vsel %vm267, %v600, 0
        %610 = vmatprep.subr.mxu0 %v606
        %611 = vmatpush1.msra.mxu0 %v604
        %612 = vmatprep.subr.mxu0 0.0
        %613 = vmatpush1.msra.mxu0 0.0
        %614 = vmatprep.subr.mxu0 0.0
        %615 = vmatpush1.msra.mxu0 0.0
        %616 = vmatprep.subr.mxu0 0.0
        %617 = vmatpush1.msra.mxu0 0.0
        %618 = vmatprep.subr.mxu0 0.0
        %619 = vmatpush1.msra.mxu0 0.0
        %620 = vmatprep.subr.mxu0 0.0
        %621 = vmatpush1.msra.mxu0 0.0
        %622 = vmatprep.subr.mxu0 0.0
        %623 = vmatpush1.msra.mxu0 0.0
        %624 = vmatprep.subr.mxu0 0.0
        %625 = vmatpush1.msra.mxu0 0.0
        %626 = vmatprep.subr.mxu0 0.0
        %627 = vmatpush1.msra.mxu0 0.0
        %628 = vmatprep.subr.mxu0 0.0
        %629 = vmatpush1.msra.mxu0 0.0
        %630 = vmatprep.subr.mxu0 0.0
        %631 = vmatpush1.msra.mxu0 0.0
        %632 = vmatprep.subr.mxu0 0.0
        %633 = vmatpush1.msra.mxu0 0.0
        %634 = vmatprep.subr.mxu0 0.0
        %635 = vmatpush1.msra.mxu0 0.0
        %636 = vmatprep.subr.mxu0 0.0
        %637 = vmatpush1.msra.mxu0 0.0
        %638 = vmatprep.subr.mxu0 0.0
        %639 = vmatpush1.msra.mxu0 0.0
        %640 = vmatprep.subr.mxu0 0.0
        %641 = vmatpush1.msra.mxu0 0.0
        %642 = vmatprep.subr.mxu0 0.0
        %643 = vmatpush1.msra.mxu0 0.0
        %644 = vmatprep.subr.mxu0 0.0
        %645 = vmatpush1.msra.mxu0 0.0
        %646 = vmatprep.subr.mxu0 0.0
        %647 = vmatpush1.msra.mxu0 0.0
        %648 = vmatprep.subr.mxu0 0.0
        %649 = vmatpush1.msra.mxu0 0.0
        %650 = vmatprep.subr.mxu0 0.0
        %651 = vmatpush1.msra.mxu0 0.0
        %652 = vmatprep.subr.mxu0 0.0
        %653 = vmatpush1.msra.mxu0 0.0
        %654 = vmatprep.subr.mxu0 0.0
        %655 = vmatpush1.msra.mxu0 0.0
        %656 = vmatprep.subr.mxu0 0.0
        %657 = vmatpush1.msra.mxu0 0.0
        %658 = vmatprep.subr.mxu0 0.0
        %659 = vmatpush1.msra.mxu0 0.0
        %660 = vmatprep.subr.mxu0 0.0
        %661 = vmatpush1.msra.mxu0 0.0
        %662 = vmatprep.subr.mxu0 0.0
        %663 = vmatpush1.msra.mxu0 0.0
        %664 = vmatprep.subr.mxu0 0.0
        %665 = vmatpush1.msra.mxu0 0.0
        %666 = vmatprep.subr.mxu0 0.0
        %667 = vmatpush1.msra.mxu0 0.0
        %668 = vmatprep.subr.mxu0 0.0
        %669 = vmatpush1.msra.mxu0 0.0
        %670 = vmatprep.subr.mxu0 0.0
        %671 = vmatpush1.msra.mxu0 0.0
        %672 = vmatprep.subr.mxu0 0.0
        %673 = vmatpush1.msra.mxu0 0.0
        %674 = vmatprep.mubr.f32.mxu0 0.0
        %675 = vmatmul.mubr.f32.gmra.mrb[0].mxu0 %v602
        %v676 = vpop.f32.mrb[0].mxu0
        %v677 = vadd.f32 0.0, %v676
        %v678 = vpop.f32.mrb[0].mxu0
        %v679 = vadd.f32 0.0, %v678
        %680 = vdwg.mxu0
        %681 = vmatprep.subr.mxu0 0.0
        %682 = vmatpush1.msra.mxu0 %v608
        %683 = vmatprep.subr.mxu0 0.0
        %684 = vmatpush1.msra.mxu0 0.0
        %685 = vmatprep.subr.mxu0 0.0
        %686 = vmatpush1.msra.mxu0 0.0
        %687 = vmatprep.subr.mxu0 0.0
        %688 = vmatpush1.msra.mxu0 0.0
        %689 = vmatprep.subr.mxu0 0.0
        %690 = vmatpush1.msra.mxu0 0.0
        %691 = vmatprep.subr.mxu0 0.0
        %692 = vmatpush1.msra.mxu0 0.0
        %693 = vmatprep.subr.mxu0 0.0
        %694 = vmatpush1.msra.mxu0 0.0
        %695 = vmatprep.subr.mxu0 0.0
        %696 = vmatpush1.msra.mxu0 0.0
        %697 = vmatprep.subr.mxu0 0.0
        %698 = vmatpush1.msra.mxu0 0.0
        %699 = vmatprep.subr.mxu0 0.0
        %700 = vmatpush1.msra.mxu0 0.0
        %701 = vmatprep.subr.mxu0 0.0
        %702 = vmatpush1.msra.mxu0 0.0
        %703 = vmatprep.subr.mxu0 0.0
        %704 = vmatpush1.msra.mxu0 0.0
        %705 = vmatprep.subr.mxu0 0.0
        %706 = vmatpush1.msra.mxu0 0.0
        %707 = vmatprep.subr.mxu0 0.0
        %708 = vmatpush1.msra.mxu0 0.0
        %709 = vmatprep.subr.mxu0 0.0
        %710 = vmatpush1.msra.mxu0 0.0
        %711 = vmatprep.subr.mxu0 0.0
        %712 = vmatpush1.msra.mxu0 0.0
        %713 = vmatprep.subr.mxu0 0.0
        %714 = vmatpush1.msra.mxu0 0.0
        %715 = vmatprep.subr.mxu0 0.0
        %716 = vmatpush1.msra.mxu0 0.0
        %717 = vmatprep.subr.mxu0 0.0
        %718 = vmatpush1.msra.mxu0 0.0
        %719 = vmatprep.subr.mxu0 0.0
        %720 = vmatpush1.msra.mxu0 0.0
        %721 = vmatprep.subr.mxu0 0.0
        %722 = vmatpush1.msra.mxu0 0.0
        %723 = vmatprep.subr.mxu0 0.0
        %724 = vmatpush1.msra.mxu0 0.0
        %725 = vmatprep.subr.mxu0 0.0
        %726 = vmatpush1.msra.mxu0 0.0
        %727 = vmatprep.subr.mxu0 0.0
        %728 = vmatpush1.msra.mxu0 0.0
        %729 = vmatprep.subr.mxu0 0.0
        %730 = vmatpush1.msra.mxu0 0.0
        %731 = vmatprep.subr.mxu0 0.0
        %732 = vmatpush1.msra.mxu0 0.0
        %733 = vmatprep.subr.mxu0 0.0
        %734 = vmatpush1.msra.mxu0 0.0
        %735 = vmatprep.subr.mxu0 0.0
        %736 = vmatpush1.msra.mxu0 0.0
        %737 = vmatprep.subr.mxu0 0.0
        %738 = vmatpush1.msra.mxu0 0.0
        %739 = vmatprep.subr.mxu0 0.0
        %740 = vmatpush1.msra.mxu0 0.0
        %741 = vmatprep.subr.mxu0 0.0
        %742 = vmatpush1.msra.mxu0 0.0
        %743 = vmatprep.subr.mxu0 0.0
        %744 = vmatpush1.msra.mxu0 0.0
        %745 = vmatprep.mubr.f32.mxu0 0.0
        %746 = vmatmul.mubr.f32.gmra.mrb[0].mxu0 %v602
        %v747 = vpop.f32.mrb[0].mxu0
        %v748 = vadd.f32 0.0, %v747
        %v749 = vpop.f32.mrb[0].mxu0
        %750 = vdwg.mxu0
        %v751 = vadd.f32 %v505, %v677
        %v752 = vadd.f32 %v507, %v679
        %v753 = vadd.f32 %v576, %v748
        %v754 = vsub.f32 0.0, %v579
        %v755 = vsub.f32 0.0, %v580
        %v756 = vmax.f32 %v754, 0.0
        %v757 = vmax.f32 %v755, 0.0
        %758 = vrot.lane.b32.xlu0 %v582, 124
        %v759 = vpop.permute.xlu0 %758
        %v762 = vcombine.high %v756, %v756
        %v763 = vcombine.high %v757, %v757
        %764 = vrot.lane.b32.xlu0 %v756, 18
        %v765 = vpop.permute.xlu0 %764
        %766 = vrot.lane.b32.xlu0 %v762, 18
        %v767 = vpop.permute.xlu0 %766
        %768 = vrot.lane.b32.xlu0 %v757, 18
        %v769 = vpop.permute.xlu0 %768
        %770 = vrot.lane.b32.xlu0 %v763, 18
        %v771 = vpop.permute.xlu0 %770
        %v772 = vsel %vm597, %v765, %v767
        %v773 = vsel %vm597, %v767, %v769
        %v774 = vsel %vm597, %v769, %v771
        %v775 = vsel %vm264, %v759, 0
        %v777 = vsel %vm267, %v772, 0
        %v779 = vsel %vm267, %v773, 0
        %v781 = vsel %vm267, %v774, 0
        %783 = vmatprep.subr.mxu0 %v779
        %784 = vmatpush1.msra.mxu0 %v777
        %785 = vmatprep.subr.mxu0 0.0
        %786 = vmatpush1.msra.mxu0 0.0
        %787 = vmatprep.subr.mxu0 0.0
        %788 = vmatpush1.msra.mxu0 0.0
        %789 = vmatprep.subr.mxu0 0.0
        %790 = vmatpush1.msra.mxu0 0.0
        %791 = vmatprep.subr.mxu0 0.0
        %792 = vmatpush1.msra.mxu0 0.0
        %793 = vmatprep.subr.mxu0 0.0
        %794 = vmatpush1.msra.mxu0 0.0
        %795 = vmatprep.subr.mxu0 0.0
        %796 = vmatpush1.msra.mxu0 0.0
        %797 = vmatprep.subr.mxu0 0.0
        %798 = vmatpush1.msra.mxu0 0.0
        %799 = vmatprep.subr.mxu0 0.0
        %800 = vmatpush1.msra.mxu0 0.0
        %801 = vmatprep.subr.mxu0 0.0
        %802 = vmatpush1.msra.mxu0 0.0
        %803 = vmatprep.subr.mxu0 0.0
        %804 = vmatpush1.msra.mxu0 0.0
        %805 = vmatprep.subr.mxu0 0.0
        %806 = vmatpush1.msra.mxu0 0.0
        %807 = vmatprep.subr.mxu0 0.0
        %808 = vmatpush1.msra.mxu0 0.0
        %809 = vmatprep.subr.mxu0 0.0
        %810 = vmatpush1.msra.mxu0 0.0
        %811 = vmatprep.subr.mxu0 0.0
        %812 = vmatpush1.msra.mxu0 0.0
        %813 = vmatprep.subr.mxu0 0.0
        %814 = vmatpush1.msra.mxu0 0.0
        %815 = vmatprep.subr.mxu0 0.0
        %816 = vmatpush1.msra.mxu0 0.0
        %817 = vmatprep.subr.mxu0 0.0
        %818 = vmatpush1.msra.mxu0 0.0
        %819 = vmatprep.subr.mxu0 0.0
        %820 = vmatpush1.msra.mxu0 0.0
        %821 = vmatprep.subr.mxu0 0.0
        %822 = vmatpush1.msra.mxu0 0.0
        %823 = vmatprep.subr.mxu0 0.0
        %824 = vmatpush1.msra.mxu0 0.0
        %825 = vmatprep.subr.mxu0 0.0
        %826 = vmatpush1.msra.mxu0 0.0
        %827 = vmatprep.subr.mxu0 0.0
        %828 = vmatpush1.msra.mxu0 0.0
        %829 = vmatprep.subr.mxu0 0.0
        %830 = vmatpush1.msra.mxu0 0.0
        %831 = vmatprep.subr.mxu0 0.0
        %832 = vmatpush1.msra.mxu0 0.0
        %833 = vmatprep.subr.mxu0 0.0
        %834 = vmatpush1.msra.mxu0 0.0
        %835 = vmatprep.subr.mxu0 0.0
        %836 = vmatpush1.msra.mxu0 0.0
        %837 = vmatprep.subr.mxu0 0.0
        %838 = vmatpush1.msra.mxu0 0.0
        %839 = vmatprep.subr.mxu0 0.0
        %840 = vmatpush1.msra.mxu0 0.0
        %841 = vmatprep.subr.mxu0 0.0
        %842 = vmatpush1.msra.mxu0 0.0
        %843 = vmatprep.subr.mxu0 0.0
        %844 = vmatpush1.msra.mxu0 0.0
        %845 = vmatprep.subr.mxu0 0.0
        %846 = vmatpush1.msra.mxu0 0.0
        %847 = vmatprep.mubr.f32.mxu0 0.0
        %848 = vmatmul.mubr.f32.gmra.mrb[0].mxu0 %v775
        %v849 = vpop.f32.mrb[0].mxu0
        %v850 = vadd.f32 0.0, %v849
        %v851 = vpop.f32.mrb[0].mxu0
        %v852 = vadd.f32 0.0, %v851
        %853 = vdwg.mxu0
        %854 = vmatprep.subr.mxu0 0.0
        %855 = vmatpush1.msra.mxu0 %v781
        %856 = vmatprep.subr.mxu0 0.0
        %857 = vmatpush1.msra.mxu0 0.0
        %858 = vmatprep.subr.mxu0 0.0
        %859 = vmatpush1.msra.mxu0 0.0
        %860 = vmatprep.subr.mxu0 0.0
        %861 = vmatpush1.msra.mxu0 0.0
        %862 = vmatprep.subr.mxu0 0.0
        %863 = vmatpush1.msra.mxu0 0.0
        %864 = vmatprep.subr.mxu0 0.0
        %865 = vmatpush1.msra.mxu0 0.0
        %866 = vmatprep.subr.mxu0 0.0
        %867 = vmatpush1.msra.mxu0 0.0
        %868 = vmatprep.subr.mxu0 0.0
        %869 = vmatpush1.msra.mxu0 0.0
        %870 = vmatprep.subr.mxu0 0.0
        %871 = vmatpush1.msra.mxu0 0.0
        %872 = vmatprep.subr.mxu0 0.0
        %873 = vmatpush1.msra.mxu0 0.0
        %874 = vmatprep.subr.mxu0 0.0
        %875 = vmatpush1.msra.mxu0 0.0
        %876 = vmatprep.subr.mxu0 0.0
        %877 = vmatpush1.msra.mxu0 0.0
        %878 = vmatprep.subr.mxu0 0.0
        %879 = vmatpush1.msra.mxu0 0.0
        %880 = vmatprep.subr.mxu0 0.0
        %881 = vmatpush1.msra.mxu0 0.0
        %882 = vmatprep.subr.mxu0 0.0
        %883 = vmatpush1.msra.mxu0 0.0
        %884 = vmatprep.subr.mxu0 0.0
        %885 = vmatpush1.msra.mxu0 0.0
        %886 = vmatprep.subr.mxu0 0.0
        %887 = vmatpush1.msra.mxu0 0.0
        %888 = vmatprep.subr.mxu0 0.0
        %889 = vmatpush1.msra.mxu0 0.0
        %890 = vmatprep.subr.mxu0 0.0
        %891 = vmatpush1.msra.mxu0 0.0
        %892 = vmatprep.subr.mxu0 0.0
        %893 = vmatpush1.msra.mxu0 0.0
        %894 = vmatprep.subr.mxu0 0.0
        %895 = vmatpush1.msra.mxu0 0.0
        %896 = vmatprep.subr.mxu0 0.0
        %897 = vmatpush1.msra.mxu0 0.0
        %898 = vmatprep.subr.mxu0 0.0
        %899 = vmatpush1.msra.mxu0 0.0
        %900 = vmatprep.subr.mxu0 0.0
        %901 = vmatpush1.msra.mxu0 0.0
        %902 = vmatprep.subr.mxu0 0.0
        %903 = vmatpush1.msra.mxu0 0.0
        %904 = vmatprep.subr.mxu0 0.0
        %905 = vmatpush1.msra.mxu0 0.0
        %906 = vmatprep.subr.mxu0 0.0
        %907 = vmatpush1.msra.mxu0 0.0
        %908 = vmatprep.subr.mxu0 0.0
        %909 = vmatpush1.msra.mxu0 0.0
        %910 = vmatprep.subr.mxu0 0.0
        %911 = vmatpush1.msra.mxu0 0.0
        %912 = vmatprep.subr.mxu0 0.0
        %913 = vmatpush1.msra.mxu0 0.0
        %914 = vmatprep.subr.mxu0 0.0
        %915 = vmatpush1.msra.mxu0 0.0
        %916 = vmatprep.subr.mxu0 0.0
        %917 = vmatpush1.msra.mxu0 0.0
        %918 = vmatprep.mubr.f32.mxu0 0.0
        %919 = vmatmul.mubr.f32.gmra.mrb[0].mxu0 %v775
        %v920 = vpop.f32.mrb[0].mxu0
        %v921 = vadd.f32 0.0, %v920
        %v922 = vpop.f32.mrb[0].mxu0
        %923 = vdwg.mxu0
        %v924 = vadd.f32 %v751, %v850
        %v925 = vadd.f32 %v752, %v852
        %v926 = vadd.f32 %v753, %v921
        %v927 = vld [vmem:[%s224] sm:$0xff]
        %v928 = vld [vmem:[%s224 + $0x8] sm:$0xff]
        %s929 = scalar_lea.vmem %s2, 8
        %v930 = vld [vmem:[%s929] sm:$0xf]
        %v931 = vmax.f32 %v927, 0.0
        %v932 = vmax.f32 %v928, 0.0
        %v935 = vcombine.high %v931, %v931
        %v936 = vcombine.high %v932, %v932
        %937 = vrot.lane.b32.xlu0 %v931, 17
        %v938 = vpop.permute.xlu0 %937
        %939 = vrot.lane.b32.xlu0 %v935, 17
        %v940 = vpop.permute.xlu0 %939
        %941 = vrot.lane.b32.xlu0 %v932, 17
        %v942 = vpop.permute.xlu0 %941
        %943 = vrot.lane.b32.xlu0 %v936, 17
        %v944 = vpop.permute.xlu0 %943
        %vm945 = vcmask 138240
        %v946 = vsel %vm945, %v938, %v940
        %v947 = vsel %vm945, %v940, %v942
        %v948 = vsel %vm945, %v942, %v944
        %v950 = vsel %vm264, %v930, 0
        %v952 = vsel %vm267, %v946, 0
        %v954 = vsel %vm267, %v947, 0
        %v956 = vsel %vm267, %v948, 0
        %958 = vmatprep.subr.mxu0 %v954
        %959 = vmatpush1.msra.mxu0 %v952
        %960 = vmatprep.subr.mxu0 0.0
        %961 = vmatpush1.msra.mxu0 0.0
        %962 = vmatprep.subr.mxu0 0.0
        %963 = vmatpush1.msra.mxu0 0.0
        %964 = vmatprep.subr.mxu0 0.0
        %965 = vmatpush1.msra.mxu0 0.0
        %966 = vmatprep.subr.mxu0 0.0
        %967 = vmatpush1.msra.mxu0 0.0
        %968 = vmatprep.subr.mxu0 0.0
        %969 = vmatpush1.msra.mxu0 0.0
        %970 = vmatprep.subr.mxu0 0.0
        %971 = vmatpush1.msra.mxu0 0.0
        %972 = vmatprep.subr.mxu0 0.0
        %973 = vmatpush1.msra.mxu0 0.0
        %974 = vmatprep.subr.mxu0 0.0
        %975 = vmatpush1.msra.mxu0 0.0
        %976 = vmatprep.subr.mxu0 0.0
        %977 = vmatpush1.msra.mxu0 0.0
        %978 = vmatprep.subr.mxu0 0.0
        %979 = vmatpush1.msra.mxu0 0.0
        %980 = vmatprep.subr.mxu0 0.0
        %981 = vmatpush1.msra.mxu0 0.0
        %982 = vmatprep.subr.mxu0 0.0
        %983 = vmatpush1.msra.mxu0 0.0
        %984 = vmatprep.subr.mxu0 0.0
        %985 = vmatpush1.msra.mxu0 0.0
        %986 = vmatprep.subr.mxu0 0.0
        %987 = vmatpush1.msra.mxu0 0.0
        %988 = vmatprep.subr.mxu0 0.0
        %989 = vmatpush1.msra.mxu0 0.0
        %990 = vmatprep.subr.mxu0 0.0
        %991 = vmatpush1.msra.mxu0 0.0
        %992 = vmatprep.subr.mxu0 0.0
        %993 = vmatpush1.msra.mxu0 0.0
        %994 = vmatprep.subr.mxu0 0.0
        %995 = vmatpush1.msra.mxu0 0.0
        %996 = vmatprep.subr.mxu0 0.0
        %997 = vmatpush1.msra.mxu0 0.0
        %998 = vmatprep.subr.mxu0 0.0
        %999 = vmatpush1.msra.mxu0 0.0
        %1000 = vmatprep.subr.mxu0 0.0
        %1001 = vmatpush1.msra.mxu0 0.0
        %1002 = vmatprep.subr.mxu0 0.0
        %1003 = vmatpush1.msra.mxu0 0.0
        %1004 = vmatprep.subr.mxu0 0.0
        %1005 = vmatpush1.msra.mxu0 0.0
        %1006 = vmatprep.subr.mxu0 0.0
        %1007 = vmatpush1.msra.mxu0 0.0
        %1008 = vmatprep.subr.mxu0 0.0
        %1009 = vmatpush1.msra.mxu0 0.0
        %1010 = vmatprep.subr.mxu0 0.0
        %1011 = vmatpush1.msra.mxu0 0.0
        %1012 = vmatprep.subr.mxu0 0.0
        %1013 = vmatpush1.msra.mxu0 0.0
        %1014 = vmatprep.subr.mxu0 0.0
        %1015 = vmatpush1.msra.mxu0 0.0
        %1016 = vmatprep.subr.mxu0 0.0
        %1017 = vmatpush1.msra.mxu0 0.0
        %1018 = vmatprep.subr.mxu0 0.0
        %1019 = vmatpush1.msra.mxu0 0.0
        %1020 = vmatprep.subr.mxu0 0.0
        %1021 = vmatpush1.msra.mxu0 0.0
        %1022 = vmatprep.mubr.f32.mxu0 0.0
        %1023 = vmatmul.mubr.f32.gmra.mrb[0].mxu0 %v950
        %v1024 = vpop.f32.mrb[0].mxu0
        %v1025 = vadd.f32 0.0, %v1024
        %v1026 = vpop.f32.mrb[0].mxu0
        %v1027 = vadd.f32 0.0, %v1026
        %1028 = vdwg.mxu0
        %1029 = vmatprep.subr.mxu0 0.0
        %1030 = vmatpush1.msra.mxu0 %v956
        %1031 = vmatprep.subr.mxu0 0.0
        %1032 = vmatpush1.msra.mxu0 0.0
        %1033 = vmatprep.subr.mxu0 0.0
        %1034 = vmatpush1.msra.mxu0 0.0
        %1035 = vmatprep.subr.mxu0 0.0
        %1036 = vmatpush1.msra.mxu0 0.0
        %1037 = vmatprep.subr.mxu0 0.0
        %1038 = vmatpush1.msra.mxu0 0.0
        %1039 = vmatprep.subr.mxu0 0.0
        %1040 = vmatpush1.msra.mxu0 0.0
        %1041 = vmatprep.subr.mxu0 0.0
        %1042 = vmatpush1.msra.mxu0 0.0
        %1043 = vmatprep.subr.mxu0 0.0
        %1044 = vmatpush1.msra.mxu0 0.0
        %1045 = vmatprep.subr.mxu0 0.0
        %1046 = vmatpush1.msra.mxu0 0.0
        %1047 = vmatprep.subr.mxu0 0.0
        %1048 = vmatpush1.msra.mxu0 0.0
        %1049 = vmatprep.subr.mxu0 0.0
        %1050 = vmatpush1.msra.mxu0 0.0
        %1051 = vmatprep.subr.mxu0 0.0
        %1052 = vmatpush1.msra.mxu0 0.0
        %1053 = vmatprep.subr.mxu0 0.0
        %1054 = vmatpush1.msra.mxu0 0.0
        %1055 = vmatprep.subr.mxu0 0.0
        %1056 = vmatpush1.msra.mxu0 0.0
        %1057 = vmatprep.subr.mxu0 0.0
        %1058 = vmatpush1.msra.mxu0 0.0
        %1059 = vmatprep.subr.mxu0 0.0
        %1060 = vmatpush1.msra.mxu0 0.0
        %1061 = vmatprep.subr.mxu0 0.0
        %1062 = vmatpush1.msra.mxu0 0.0
        %1063 = vmatprep.subr.mxu0 0.0
        %1064 = vmatpush1.msra.mxu0 0.0
        %1065 = vmatprep.subr.mxu0 0.0
        %1066 = vmatpush1.msra.mxu0 0.0
        %1067 = vmatprep.subr.mxu0 0.0
        %1068 = vmatpush1.msra.mxu0 0.0
        %1069 = vmatprep.subr.mxu0 0.0
        %1070 = vmatpush1.msra.mxu0 0.0
        %1071 = vmatprep.subr.mxu0 0.0
        %1072 = vmatpush1.msra.mxu0 0.0
        %1073 = vmatprep.subr.mxu0 0.0
        %1074 = vmatpush1.msra.mxu0 0.0
        %1075 = vmatprep.subr.mxu0 0.0
        %1076 = vmatpush1.msra.mxu0 0.0
        %1077 = vmatprep.subr.mxu0 0.0
        %1078 = vmatpush1.msra.mxu0 0.0
        %1079 = vmatprep.subr.mxu0 0.0
        %1080 = vmatpush1.msra.mxu0 0.0
        %1081 = vmatprep.subr.mxu0 0.0
        %1082 = vmatpush1.msra.mxu0 0.0
        %1083 = vmatprep.subr.mxu0 0.0
        %1084 = vmatpush1.msra.mxu0 0.0
        %1085 = vmatprep.subr.mxu0 0.0
        %1086 = vmatpush1.msra.mxu0 0.0
        %1087 = vmatprep.subr.mxu0 0.0
        %1088 = vmatpush1.msra.mxu0 0.0
        %1089 = vmatprep.subr.mxu0 0.0
        %1090 = vmatpush1.msra.mxu0 0.0
        %1091 = vmatprep.subr.mxu0 0.0
        %1092 = vmatpush1.msra.mxu0 0.0
        %1093 = vmatprep.mubr.f32.mxu0 0.0
        %1094 = vmatmul.mubr.f32.gmra.mrb[0].mxu0 %v950
        %v1095 = vpop.f32.mrb[0].mxu0
        %v1096 = vadd.f32 0.0, %v1095
        %v1097 = vpop.f32.mrb[0].mxu0
        %1098 = vdwg.mxu0
        %v1099 = vadd.f32 %v924, %v1025
        %v1100 = vadd.f32 %v925, %v1027
        %v1101 = vadd.f32 %v926, %v1096
        %v1102 = vsub.f32 0.0, %v927
        %v1103 = vsub.f32 0.0, %v928
        %v1104 = vmax.f32 %v1102, 0.0
        %v1105 = vmax.f32 %v1103, 0.0
        %1106 = vrot.lane.b32.xlu0 %v930, 124
        %v1107 = vpop.permute.xlu0 %1106
        %v1110 = vcombine.high %v1104, %v1104
        %v1111 = vcombine.high %v1105, %v1105
        %1112 = vrot.lane.b32.xlu0 %v1104, 17
        %v1113 = vpop.permute.xlu0 %1112
        %1114 = vrot.lane.b32.xlu0 %v1110, 17
        %v1115 = vpop.permute.xlu0 %1114
        %1116 = vrot.lane.b32.xlu0 %v1105, 17
        %v1117 = vpop.permute.xlu0 %1116
        %1118 = vrot.lane.b32.xlu0 %v1111, 17
        %v1119 = vpop.permute.xlu0 %1118
        %v1120 = vsel %vm945, %v1113, %v1115
        %v1121 = vsel %vm945, %v1115, %v1117
        %v1122 = vsel %vm945, %v1117, %v1119
        %v1123 = vsel %vm264, %v1107, 0
        %v1125 = vsel %vm267, %v1120, 0
        %v1127 = vsel %vm267, %v1121, 0
        %v1129 = vsel %vm267, %v1122, 0
        %1131 = vmatprep.subr.mxu0 %v1127
        %1132 = vmatpush1.msra.mxu0 %v1125
        %1133 = vmatprep.subr.mxu0 0.0
        %1134 = vmatpush1.msra.mxu0 0.0
        %1135 = vmatprep.subr.mxu0 0.0
        %1136 = vmatpush1.msra.mxu0 0.0
        %1137 = vmatprep.subr.mxu0 0.0
        %1138 = vmatpush1.msra.mxu0 0.0
        %1139 = vmatprep.subr.mxu0 0.0
        %1140 = vmatpush1.msra.mxu0 0.0
        %1141 = vmatprep.subr.mxu0 0.0
        %1142 = vmatpush1.msra.mxu0 0.0
        %1143 = vmatprep.subr.mxu0 0.0
        %1144 = vmatpush1.msra.mxu0 0.0
        %1145 = vmatprep.subr.mxu0 0.0
        %1146 = vmatpush1.msra.mxu0 0.0
        %1147 = vmatprep.subr.mxu0 0.0
        %1148 = vmatpush1.msra.mxu0 0.0
        %1149 = vmatprep.subr.mxu0 0.0
        %1150 = vmatpush1.msra.mxu0 0.0
        %1151 = vmatprep.subr.mxu0 0.0
        %1152 = vmatpush1.msra.mxu0 0.0
        %1153 = vmatprep.subr.mxu0 0.0
        %1154 = vmatpush1.msra.mxu0 0.0
        %1155 = vmatprep.subr.mxu0 0.0
        %1156 = vmatpush1.msra.mxu0 0.0
        %1157 = vmatprep.subr.mxu0 0.0
        %1158 = vmatpush1.msra.mxu0 0.0
        %1159 = vmatprep.subr.mxu0 0.0
        %1160 = vmatpush1.msra.mxu0 0.0
        %1161 = vmatprep.subr.mxu0 0.0
        %1162 = vmatpush1.msra.mxu0 0.0
        %1163 = vmatprep.subr.mxu0 0.0
        %1164 = vmatpush1.msra.mxu0 0.0
        %1165 = vmatprep.subr.mxu0 0.0
        %1166 = vmatpush1.msra.mxu0 0.0
        %1167 = vmatprep.subr.mxu0 0.0
        %1168 = vmatpush1.msra.mxu0 0.0
        %1169 = vmatprep.subr.mxu0 0.0
        %1170 = vmatpush1.msra.mxu0 0.0
        %1171 = vmatprep.subr.mxu0 0.0
        %1172 = vmatpush1.msra.mxu0 0.0
        %1173 = vmatprep.subr.mxu0 0.0
        %1174 = vmatpush1.msra.mxu0 0.0
        %1175 = vmatprep.subr.mxu0 0.0
        %1176 = vmatpush1.msra.mxu0 0.0
        %1177 = vmatprep.subr.mxu0 0.0
        %1178 = vmatpush1.msra.mxu0 0.0
        %1179 = vmatprep.subr.mxu0 0.0
        %1180 = vmatpush1.msra.mxu0 0.0
        %1181 = vmatprep.subr.mxu0 0.0
        %1182 = vmatpush1.msra.mxu0 0.0
        %1183 = vmatprep.subr.mxu0 0.0
        %1184 = vmatpush1.msra.mxu0 0.0
        %1185 = vmatprep.subr.mxu0 0.0
        %1186 = vmatpush1.msra.mxu0 0.0
        %1187 = vmatprep.subr.mxu0 0.0
        %1188 = vmatpush1.msra.mxu0 0.0
        %1189 = vmatprep.subr.mxu0 0.0
        %1190 = vmatpush1.msra.mxu0 0.0
        %1191 = vmatprep.subr.mxu0 0.0
        %1192 = vmatpush1.msra.mxu0 0.0
        %1193 = vmatprep.subr.mxu0 0.0
        %1194 = vmatpush1.msra.mxu0 0.0
        %1195 = vmatprep.mubr.f32.mxu0 0.0
        %1196 = vmatmul.mubr.f32.gmra.mrb[0].mxu0 %v1123
        %v1197 = vpop.f32.mrb[0].mxu0
        %v1198 = vadd.f32 0.0, %v1197
        %v1199 = vpop.f32.mrb[0].mxu0
        %v1200 = vadd.f32 0.0, %v1199
        %1201 = vdwg.mxu0
        %1202 = vmatprep.subr.mxu0 0.0
        %1203 = vmatpush1.msra.mxu0 %v1129
        %1204 = vmatprep.subr.mxu0 0.0
        %1205 = vmatpush1.msra.mxu0 0.0
        %1206 = vmatprep.subr.mxu0 0.0
        %1207 = vmatpush1.msra.mxu0 0.0
        %1208 = vmatprep.subr.mxu0 0.0
        %1209 = vmatpush1.msra.mxu0 0.0
        %1210 = vmatprep.subr.mxu0 0.0
        %1211 = vmatpush1.msra.mxu0 0.0
        %1212 = vmatprep.subr.mxu0 0.0
        %1213 = vmatpush1.msra.mxu0 0.0
        %1214 = vmatprep.subr.mxu0 0.0
        %1215 = vmatpush1.msra.mxu0 0.0
        %1216 = vmatprep.subr.mxu0 0.0
        %1217 = vmatpush1.msra.mxu0 0.0
        %1218 = vmatprep.subr.mxu0 0.0
        %1219 = vmatpush1.msra.mxu0 0.0
        %1220 = vmatprep.subr.mxu0 0.0
        %1221 = vmatpush1.msra.mxu0 0.0
        %1222 = vmatprep.subr.mxu0 0.0
        %1223 = vmatpush1.msra.mxu0 0.0
        %1224 = vmatprep.subr.mxu0 0.0
        %1225 = vmatpush1.msra.mxu0 0.0
        %1226 = vmatprep.subr.mxu0 0.0
        %1227 = vmatpush1.msra.mxu0 0.0
        %1228 = vmatprep.subr.mxu0 0.0
        %1229 = vmatpush1.msra.mxu0 0.0
        %1230 = vmatprep.subr.mxu0 0.0
        %1231 = vmatpush1.msra.mxu0 0.0
        %1232 = vmatprep.subr.mxu0 0.0
        %1233 = vmatpush1.msra.mxu0 0.0
        %1234 = vmatprep.subr.mxu0 0.0
        %1235 = vmatpush1.msra.mxu0 0.0
        %1236 = vmatprep.subr.mxu0 0.0
        %1237 = vmatpush1.msra.mxu0 0.0
        %1238 = vmatprep.subr.mxu0 0.0
        %1239 = vmatpush1.msra.mxu0 0.0
        %1240 = vmatprep.subr.mxu0 0.0
        %1241 = vmatpush1.msra.mxu0 0.0
        %1242 = vmatprep.subr.mxu0 0.0
        %1243 = vmatpush1.msra.mxu0 0.0
        %1244 = vmatprep.subr.mxu0 0.0
        %1245 = vmatpush1.msra.mxu0 0.0
        %1246 = vmatprep.subr.mxu0 0.0
        %1247 = vmatpush1.msra.mxu0 0.0
        %1248 = vmatprep.subr.mxu0 0.0
        %1249 = vmatpush1.msra.mxu0 0.0
        %1250 = vmatprep.subr.mxu0 0.0
        %1251 = vmatpush1.msra.mxu0 0.0
        %1252 = vmatprep.subr.mxu0 0.0
        %1253 = vmatpush1.msra.mxu0 0.0
        %1254 = vmatprep.subr.mxu0 0.0
        %1255 = vmatpush1.msra.mxu0 0.0
        %1256 = vmatprep.subr.mxu0 0.0
        %1257 = vmatpush1.msra.mxu0 0.0
        %1258 = vmatprep.subr.mxu0 0.0
        %1259 = vmatpush1.msra.mxu0 0.0
        %1260 = vmatprep.subr.mxu0 0.0
        %1261 = vmatpush1.msra.mxu0 0.0
        %1262 = vmatprep.subr.mxu0 0.0
        %1263 = vmatpush1.msra.mxu0 0.0
        %1264 = vmatprep.subr.mxu0 0.0
        %1265 = vmatpush1.msra.mxu0 0.0
        %1266 = vmatprep.mubr.f32.mxu0 0.0
        %1267 = vmatmul.mubr.f32.gmra.mrb[0].mxu0 %v1123
        %v1268 = vpop.f32.mrb[0].mxu0
        %v1269 = vadd.f32 0.0, %v1268
        %v1270 = vpop.f32.mrb[0].mxu0
        %1271 = vdwg.mxu0
        %v1272 = vadd.f32 %v1099, %v1198
        %v1273 = vadd.f32 %v1100, %v1200
        %v1274 = vadd.f32 %v1101, %v1269
        %v1275 = vld [vmem:[%s224] sm:$0xff]
        %v1276 = vld [vmem:[%s224 + $0x8] sm:$0xff]
        %s1277 = scalar_lea.vmem %s2, 12
        %v1278 = vld [vmem:[%s1277] sm:$0xf]
        %v1279 = vmax.f32 %v1275, 0.0
        %v1280 = vmax.f32 %v1276, 0.0
        %v1283 = vcombine.high %v1279, %v1279
        %v1284 = vcombine.high %v1280, %v1280
        %1285 = vrot.lane.b32.xlu0 %v1279, 1
        %v1286 = vpop.permute.xlu0 %1285
        %1287 = vrot.lane.b32.xlu0 %v1283, 1
        %v1288 = vpop.permute.xlu0 %1287
        %1289 = vrot.lane.b32.xlu0 %v1280, 1
        %v1290 = vpop.permute.xlu0 %1289
        %1291 = vrot.lane.b32.xlu0 %v1284, 1
        %v1292 = vpop.permute.xlu0 %1291
        %vm1293 = vcmask 7168
        %v1294 = vsel %vm1293, %v1286, %v1288
        %v1295 = vsel %vm1293, %v1288, %v1290
        %v1296 = vsel %vm1293, %v1290, %v1292
        %v1298 = vsel %vm264, %v1278, 0
        %v1300 = vsel %vm267, %v1294, 0
        %v1302 = vsel %vm267, %v1295, 0
        %v1304 = vsel %vm267, %v1296, 0
        %1306 = vmatprep.subr.mxu0 %v1302
        %1307 = vmatpush1.msra.mxu0 %v1300
        %1308 = vmatprep.subr.mxu0 0.0
        %1309 = vmatpush1.msra.mxu0 0.0
        %1310 = vmatprep.subr.mxu0 0.0
        %1311 = vmatpush1.msra.mxu0 0.0
        %1312 = vmatprep.subr.mxu0 0.0
        %1313 = vmatpush1.msra.mxu0 0.0
        %1314 = vmatprep.subr.mxu0 0.0
        %1315 = vmatpush1.msra.mxu0 0.0
        %1316 = vmatprep.subr.mxu0 0.0
        %1317 = vmatpush1.msra.mxu0 0.0
        %1318 = vmatprep.subr.mxu0 0.0
        %1319 = vmatpush1.msra.mxu0 0.0
        %1320 = vmatprep.subr.mxu0 0.0
        %1321 = vmatpush1.msra.mxu0 0.0
        %1322 = vmatprep.subr.mxu0 0.0
        %1323 = vmatpush1.msra.mxu0 0.0
        %1324 = vmatprep.subr.mxu0 0.0
        %1325 = vmatpush1.msra.mxu0 0.0
        %1326 = vmatprep.subr.mxu0 0.0
        %1327 = vmatpush1.msra.mxu0 0.0
        %1328 = vmatprep.subr.mxu0 0.0
        %1329 = vmatpush1.msra.mxu0 0.0
        %1330 = vmatprep.subr.mxu0 0.0
        %1331 = vmatpush1.msra.mxu0 0.0
        %1332 = vmatprep.subr.mxu0 0.0
        %1333 = vmatpush1.msra.mxu0 0.0
        %1334 = vmatprep.subr.mxu0 0.0
        %1335 = vmatpush1.msra.mxu0 0.0
        %1336 = vmatprep.subr.mxu0 0.0
        %1337 = vmatpush1.msra.mxu0 0.0
        %1338 = vmatprep.subr.mxu0 0.0
        %1339 = vmatpush1.msra.mxu0 0.0
        %1340 = vmatprep.subr.mxu0 0.0
        %1341 = vmatpush1.msra.mxu0 0.0
        %1342 = vmatprep.subr.mxu0 0.0
        %1343 = vmatpush1.msra.mxu0 0.0
        %1344 = vmatprep.subr.mxu0 0.0
        %1345 = vmatpush1.msra.mxu0 0.0
        %1346 = vmatprep.subr.mxu0 0.0
        %1347 = vmatpush1.msra.mxu0 0.0
        %1348 = vmatprep.subr.mxu0 0.0
        %1349 = vmatpush1.msra.mxu0 0.0
        %1350 = vmatprep.subr.mxu0 0.0
        %1351 = vmatpush1.msra.mxu0 0.0
        %1352 = vmatprep.subr.mxu0 0.0
        %1353 = vmatpush1.msra.mxu0 0.0
        %1354 = vmatprep.subr.mxu0 0.0
        %1355 = vmatpush1.msra.mxu0 0.0
        %1356 = vmatprep.subr.mxu0 0.0
        %1357 = vmatpush1.msra.mxu0 0.0
        %1358 = vmatprep.subr.mxu0 0.0
        %1359 = vmatpush1.msra.mxu0 0.0
        %1360 = vmatprep.subr.mxu0 0.0
        %1361 = vmatpush1.msra.mxu0 0.0
        %1362 = vmatprep.subr.mxu0 0.0
        %1363 = vmatpush1.msra.mxu0 0.0
        %1364 = vmatprep.subr.mxu0 0.0
        %1365 = vmatpush1.msra.mxu0 0.0
        %1366 = vmatprep.subr.mxu0 0.0
        %1367 = vmatpush1.msra.mxu0 0.0
        %1368 = vmatprep.subr.mxu0 0.0
        %1369 = vmatpush1.msra.mxu0 0.0
        %1370 = vmatprep.mubr.f32.mxu0 0.0
        %1371 = vmatmul.mubr.f32.gmra.mrb[0].mxu0 %v1298
        %v1372 = vpop.f32.mrb[0].mxu0
        %v1373 = vadd.f32 0.0, %v1372
        %v1374 = vpop.f32.mrb[0].mxu0
        %v1375 = vadd.f32 0.0, %v1374
        %1376 = vdwg.mxu0
        %1377 = vmatprep.subr.mxu0 0.0
        %1378 = vmatpush1.msra.mxu0 %v1304
        %1379 = vmatprep.subr.mxu0 0.0
        %1380 = vmatpush1.msra.mxu0 0.0
        %1381 = vmatprep.subr.mxu0 0.0
        %1382 = vmatpush1.msra.mxu0 0.0
        %1383 = vmatprep.subr.mxu0 0.0
        %1384 = vmatpush1.msra.mxu0 0.0
        %1385 = vmatprep.subr.mxu0 0.0
        %1386 = vmatpush1.msra.mxu0 0.0
        %1387 = vmatprep.subr.mxu0 0.0
        %1388 = vmatpush1.msra.mxu0 0.0
        %1389 = vmatprep.subr.mxu0 0.0
        %1390 = vmatpush1.msra.mxu0 0.0
        %1391 = vmatprep.subr.mxu0 0.0
        %1392 = vmatpush1.msra.mxu0 0.0
        %1393 = vmatprep.subr.mxu0 0.0
        %1394 = vmatpush1.msra.mxu0 0.0
        %1395 = vmatprep.subr.mxu0 0.0
        %1396 = vmatpush1.msra.mxu0 0.0
        %1397 = vmatprep.subr.mxu0 0.0
        %1398 = vmatpush1.msra.mxu0 0.0
        %1399 = vmatprep.subr.mxu0 0.0
        %1400 = vmatpush1.msra.mxu0 0.0
        %1401 = vmatprep.subr.mxu0 0.0
        %1402 = vmatpush1.msra.mxu0 0.0
        %1403 = vmatprep.subr.mxu0 0.0
        %1404 = vmatpush1.msra.mxu0 0.0
        %1405 = vmatprep.subr.mxu0 0.0
        %1406 = vmatpush1.msra.mxu0 0.0
        %1407 = vmatprep.subr.mxu0 0.0
        %1408 = vmatpush1.msra.mxu0 0.0
        %1409 = vmatprep.subr.mxu0 0.0
        %1410 = vmatpush1.msra.mxu0 0.0
        %1411 = vmatprep.subr.mxu0 0.0
        %1412 = vmatpush1.msra.mxu0 0.0
        %1413 = vmatprep.subr.mxu0 0.0
        %1414 = vmatpush1.msra.mxu0 0.0
        %1415 = vmatprep.subr.mxu0 0.0
        %1416 = vmatpush1.msra.mxu0 0.0
        %1417 = vmatprep.subr.mxu0 0.0
        %1418 = vmatpush1.msra.mxu0 0.0
        %1419 = vmatprep.subr.mxu0 0.0
        %1420 = vmatpush1.msra.mxu0 0.0
        %1421 = vmatprep.subr.mxu0 0.0
        %1422 = vmatpush1.msra.mxu0 0.0
        %1423 = vmatprep.subr.mxu0 0.0
        %1424 = vmatpush1.msra.mxu0 0.0
        %1425 = vmatprep.subr.mxu0 0.0
        %1426 = vmatpush1.msra.mxu0 0.0
        %1427 = vmatprep.subr.mxu0 0.0
        %1428 = vmatpush1.msra.mxu0 0.0
        %1429 = vmatprep.subr.mxu0 0.0
        %1430 = vmatpush1.msra.mxu0 0.0
        %1431 = vmatprep.subr.mxu0 0.0
        %1432 = vmatpush1.msra.mxu0 0.0
        %1433 = vmatprep.subr.mxu0 0.0
        %1434 = vmatpush1.msra.mxu0 0.0
        %1435 = vmatprep.subr.mxu0 0.0
        %1436 = vmatpush1.msra.mxu0 0.0
        %1437 = vmatprep.subr.mxu0 0.0
        %1438 = vmatpush1.msra.mxu0 0.0
        %1439 = vmatprep.subr.mxu0 0.0
        %1440 = vmatpush1.msra.mxu0 0.0
        %1441 = vmatprep.mubr.f32.mxu0 0.0
        %1442 = vmatmul.mubr.f32.gmra.mrb[0].mxu0 %v1298
        %v1443 = vpop.f32.mrb[0].mxu0
        %v1444 = vadd.f32 0.0, %v1443
        %v1445 = vpop.f32.mrb[0].mxu0
        %1446 = vdwg.mxu0
        %v1447 = vadd.f32 %v1272, %v1373
        %v1448 = vadd.f32 %v1273, %v1375
        %v1449 = vadd.f32 %v1274, %v1444
        %v1450 = vsub.f32 0.0, %v1275
        %v1451 = vsub.f32 0.0, %v1276
        %v1452 = vmax.f32 %v1450, 0.0
        %v1453 = vmax.f32 %v1451, 0.0
        %1454 = vrot.lane.b32.xlu0 %v1278, 124
        %v1455 = vpop.permute.xlu0 %1454
        %v1458 = vcombine.high %v1452, %v1452
        %v1459 = vcombine.high %v1453, %v1453
        %1460 = vrot.lane.b32.xlu0 %v1452, 1
        %v1461 = vpop.permute.xlu0 %1460
        %1462 = vrot.lane.b32.xlu0 %v1458, 1
        %v1463 = vpop.permute.xlu0 %1462
        %1464 = vrot.lane.b32.xlu0 %v1453, 1
        %v1465 = vpop.permute.xlu0 %1464
        %1466 = vrot.lane.b32.xlu0 %v1459, 1
        %v1467 = vpop.permute.xlu0 %1466
        %v1468 = vsel %vm1293, %v1461, %v1463
        %v1469 = vsel %vm1293, %v1463, %v1465
        %v1470 = vsel %vm1293, %v1465, %v1467
        %v1471 = vsel %vm264, %v1455, 0
        %v1473 = vsel %vm267, %v1468, 0
        %v1475 = vsel %vm267, %v1469, 0
        %v1477 = vsel %vm267, %v1470, 0
        %1479 = vmatprep.subr.mxu0 %v1475
        %1480 = vmatpush1.msra.mxu0 %v1473
        %1481 = vmatprep.subr.mxu0 0.0
        %1482 = vmatpush1.msra.mxu0 0.0
        %1483 = vmatprep.subr.mxu0 0.0
        %1484 = vmatpush1.msra.mxu0 0.0
        %1485 = vmatprep.subr.mxu0 0.0
        %1486 = vmatpush1.msra.mxu0 0.0
        %1487 = vmatprep.subr.mxu0 0.0
        %1488 = vmatpush1.msra.mxu0 0.0
        %1489 = vmatprep.subr.mxu0 0.0
        %1490 = vmatpush1.msra.mxu0 0.0
        %1491 = vmatprep.subr.mxu0 0.0
        %1492 = vmatpush1.msra.mxu0 0.0
        %1493 = vmatprep.subr.mxu0 0.0
        %1494 = vmatpush1.msra.mxu0 0.0
        %1495 = vmatprep.subr.mxu0 0.0
        %1496 = vmatpush1.msra.mxu0 0.0
        %1497 = vmatprep.subr.mxu0 0.0
        %1498 = vmatpush1.msra.mxu0 0.0
        %1499 = vmatprep.subr.mxu0 0.0
        %1500 = vmatpush1.msra.mxu0 0.0
        %1501 = vmatprep.subr.mxu0 0.0
        %1502 = vmatpush1.msra.mxu0 0.0
        %1503 = vmatprep.subr.mxu0 0.0
        %1504 = vmatpush1.msra.mxu0 0.0
        %1505 = vmatprep.subr.mxu0 0.0
        %1506 = vmatpush1.msra.mxu0 0.0
        %1507 = vmatprep.subr.mxu0 0.0
        %1508 = vmatpush1.msra.mxu0 0.0
        %1509 = vmatprep.subr.mxu0 0.0
        %1510 = vmatpush1.msra.mxu0 0.0
        %1511 = vmatprep.subr.mxu0 0.0
        %1512 = vmatpush1.msra.mxu0 0.0
        %1513 = vmatprep.subr.mxu0 0.0
        %1514 = vmatpush1.msra.mxu0 0.0
        %1515 = vmatprep.subr.mxu0 0.0
        %1516 = vmatpush1.msra.mxu0 0.0
        %1517 = vmatprep.subr.mxu0 0.0
        %1518 = vmatpush1.msra.mxu0 0.0
        %1519 = vmatprep.subr.mxu0 0.0
        %1520 = vmatpush1.msra.mxu0 0.0
        %1521 = vmatprep.subr.mxu0 0.0
        %1522 = vmatpush1.msra.mxu0 0.0
        %1523 = vmatprep.subr.mxu0 0.0
        %1524 = vmatpush1.msra.mxu0 0.0
        %1525 = vmatprep.subr.mxu0 0.0
        %1526 = vmatpush1.msra.mxu0 0.0
        %1527 = vmatprep.subr.mxu0 0.0
        %1528 = vmatpush1.msra.mxu0 0.0
        %1529 = vmatprep.subr.mxu0 0.0
        %1530 = vmatpush1.msra.mxu0 0.0
        %1531 = vmatprep.subr.mxu0 0.0
        %1532 = vmatpush1.msra.mxu0 0.0
        %1533 = vmatprep.subr.mxu0 0.0
        %1534 = vmatpush1.msra.mxu0 0.0
        %1535 = vmatprep.subr.mxu0 0.0
        %1536 = vmatpush1.msra.mxu0 0.0
        %1537 = vmatprep.subr.mxu0 0.0
        %1538 = vmatpush1.msra.mxu0 0.0
        %1539 = vmatprep.subr.mxu0 0.0
        %1540 = vmatpush1.msra.mxu0 0.0
        %1541 = vmatprep.subr.mxu0 0.0
        %1542 = vmatpush1.msra.mxu0 0.0
        %1543 = vmatprep.mubr.f32.mxu0 0.0
        %1544 = vmatmul.mubr.f32.gmra.mrb[0].mxu0 %v1471
        %v1545 = vpop.f32.mrb[0].mxu0
        %v1546 = vadd.f32 0.0, %v1545
        %v1547 = vpop.f32.mrb[0].mxu0
        %v1548 = vadd.f32 0.0, %v1547
        %1549 = vdwg.mxu0
        %1550 = vmatprep.subr.mxu0 0.0
        %1551 = vmatpush1.msra.mxu0 %v1477
        %1552 = vmatprep.subr.mxu0 0.0
        %1553 = vmatpush1.msra.mxu0 0.0
        %1554 = vmatprep.subr.mxu0 0.0
        %1555 = vmatpush1.msra.mxu0 0.0
        %1556 = vmatprep.subr.mxu0 0.0
        %1557 = vmatpush1.msra.mxu0 0.0
        %1558 = vmatprep.subr.mxu0 0.0
        %1559 = vmatpush1.msra.mxu0 0.0
        %1560 = vmatprep.subr.mxu0 0.0
        %1561 = vmatpush1.msra.mxu0 0.0
        %1562 = vmatprep.subr.mxu0 0.0
        %1563 = vmatpush1.msra.mxu0 0.0
        %1564 = vmatprep.subr.mxu0 0.0
        %1565 = vmatpush1.msra.mxu0 0.0
        %1566 = vmatprep.subr.mxu0 0.0
        %1567 = vmatpush1.msra.mxu0 0.0
        %1568 = vmatprep.subr.mxu0 0.0
        %1569 = vmatpush1.msra.mxu0 0.0
        %1570 = vmatprep.subr.mxu0 0.0
        %1571 = vmatpush1.msra.mxu0 0.0
        %1572 = vmatprep.subr.mxu0 0.0
        %1573 = vmatpush1.msra.mxu0 0.0
        %1574 = vmatprep.subr.mxu0 0.0
        %1575 = vmatpush1.msra.mxu0 0.0
        %1576 = vmatprep.subr.mxu0 0.0
        %1577 = vmatpush1.msra.mxu0 0.0
        %1578 = vmatprep.subr.mxu0 0.0
        %1579 = vmatpush1.msra.mxu0 0.0
        %1580 = vmatprep.subr.mxu0 0.0
        %1581 = vmatpush1.msra.mxu0 0.0
        %1582 = vmatprep.subr.mxu0 0.0
        %1583 = vmatpush1.msra.mxu0 0.0
        %1584 = vmatprep.subr.mxu0 0.0
        %1585 = vmatpush1.msra.mxu0 0.0
        %1586 = vmatprep.subr.mxu0 0.0
        %1587 = vmatpush1.msra.mxu0 0.0
        %1588 = vmatprep.subr.mxu0 0.0
        %1589 = vmatpush1.msra.mxu0 0.0
        %1590 = vmatprep.subr.mxu0 0.0
        %1591 = vmatpush1.msra.mxu0 0.0
        %1592 = vmatprep.subr.mxu0 0.0
        %1593 = vmatpush1.msra.mxu0 0.0
        %1594 = vmatprep.subr.mxu0 0.0
        %1595 = vmatpush1.msra.mxu0 0.0
        %1596 = vmatprep.subr.mxu0 0.0
        %1597 = vmatpush1.msra.mxu0 0.0
        %1598 = vmatprep.subr.mxu0 0.0
        %1599 = vmatpush1.msra.mxu0 0.0
        %1600 = vmatprep.subr.mxu0 0.0
        %1601 = vmatpush1.msra.mxu0 0.0
        %1602 = vmatprep.subr.mxu0 0.0
        %1603 = vmatpush1.msra.mxu0 0.0
        %1604 = vmatprep.subr.mxu0 0.0
        %1605 = vmatpush1.msra.mxu0 0.0
        %1606 = vmatprep.subr.mxu0 0.0
        %1607 = vmatpush1.msra.mxu0 0.0
        %1608 = vmatprep.subr.mxu0 0.0
        %1609 = vmatpush1.msra.mxu0 0.0
        %1610 = vmatprep.subr.mxu0 0.0
        %1611 = vmatpush1.msra.mxu0 0.0
        %1612 = vmatprep.subr.mxu0 0.0
        %1613 = vmatpush1.msra.mxu0 0.0
        %1614 = vmatprep.mubr.f32.mxu0 0.0
        %1615 = vmatmul.mubr.f32.gmra.mrb[0].mxu0 %v1471
        %v1616 = vpop.f32.mrb[0].mxu0
        %v1617 = vadd.f32 0.0, %v1616
        %v1618 = vpop.f32.mrb[0].mxu0
        %1619 = vdwg.mxu0
        %v1620 = vadd.f32 %v1447, %v1546
        %v1621 = vadd.f32 %v1448, %v1548
        %v1622 = vadd.f32 %v1449, %v1617
        %v1623 = vld [vmem:[%s224 + $0x4] sm:$0xff]
        %v1624 = vld [vmem:[%s224 + $0xc] sm:$0xf]
        %s1625 = scalar_lea.vmem %s2, 16
        %v1626 = vld [vmem:[%s1625] sm:$0xf]
        %v1627 = vmax.f32 %v1623, 0.0
        %v1628 = vmax.f32 %v1624, 0.0
        %v1631 = vcombine.high %v1627, %v1627
        %v1633 = vsel %vm264, %v1626, 0
        %v1635 = vsel %vm267, %v1627, 0
        %v1637 = vsel %vm267, %v1631, 0
        %v1639 = vsel %vm267, %v1628, 0
        %1641 = vmatprep.subr.mxu0 %v1637
        %1642 = vmatpush1.msra.mxu0 %v1635
        %1643 = vmatprep.subr.mxu0 0.0
        %1644 = vmatpush1.msra.mxu0 0.0
        %1645 = vmatprep.subr.mxu0 0.0
        %1646 = vmatpush1.msra.mxu0 0.0
        %1647 = vmatprep.subr.mxu0 0.0
        %1648 = vmatpush1.msra.mxu0 0.0
        %1649 = vmatprep.subr.mxu0 0.0
        %1650 = vmatpush1.msra.mxu0 0.0
        %1651 = vmatprep.subr.mxu0 0.0
        %1652 = vmatpush1.msra.mxu0 0.0
        %1653 = vmatprep.subr.mxu0 0.0
        %1654 = vmatpush1.msra.mxu0 0.0
        %1655 = vmatprep.subr.mxu0 0.0
        %1656 = vmatpush1.msra.mxu0 0.0
        %1657 = vmatprep.subr.mxu0 0.0
        %1658 = vmatpush1.msra.mxu0 0.0
        %1659 = vmatprep.subr.mxu0 0.0
        %1660 = vmatpush1.msra.mxu0 0.0
        %1661 = vmatprep.subr.mxu0 0.0
        %1662 = vmatpush1.msra.mxu0 0.0
        %1663 = vmatprep.subr.mxu0 0.0
        %1664 = vmatpush1.msra.mxu0 0.0
        %1665 = vmatprep.subr.mxu0 0.0
        %1666 = vmatpush1.msra.mxu0 0.0
        %1667 = vmatprep.subr.mxu0 0.0
        %1668 = vmatpush1.msra.mxu0 0.0
        %1669 = vmatprep.subr.mxu0 0.0
        %1670 = vmatpush1.msra.mxu0 0.0
        %1671 = vmatprep.subr.mxu0 0.0
        %1672 = vmatpush1.msra.mxu0 0.0
        %1673 = vmatprep.subr.mxu0 0.0
        %1674 = vmatpush1.msra.mxu0 0.0
        %1675 = vmatprep.subr.mxu0 0.0
        %1676 = vmatpush1.msra.mxu0 0.0
        %1677 = vmatprep.subr.mxu0 0.0
        %1678 = vmatpush1.msra.mxu0 0.0
        %1679 = vmatprep.subr.mxu0 0.0
        %1680 = vmatpush1.msra.mxu0 0.0
        %1681 = vmatprep.subr.mxu0 0.0
        %1682 = vmatpush1.msra.mxu0 0.0
        %1683 = vmatprep.subr.mxu0 0.0
        %1684 = vmatpush1.msra.mxu0 0.0
        %1685 = vmatprep.subr.mxu0 0.0
        %1686 = vmatpush1.msra.mxu0 0.0
        %1687 = vmatprep.subr.mxu0 0.0
        %1688 = vmatpush1.msra.mxu0 0.0
        %1689 = vmatprep.subr.mxu0 0.0
        %1690 = vmatpush1.msra.mxu0 0.0
        %1691 = vmatprep.subr.mxu0 0.0
        %1692 = vmatpush1.msra.mxu0 0.0
        %1693 = vmatprep.subr.mxu0 0.0
        %1694 = vmatpush1.msra.mxu0 0.0
        %1695 = vmatprep.subr.mxu0 0.0
        %1696 = vmatpush1.msra.mxu0 0.0
        %1697 = vmatprep.subr.mxu0 0.0
        %1698 = vmatpush1.msra.mxu0 0.0
        %1699 = vmatprep.subr.mxu0 0.0
        %1700 = vmatpush1.msra.mxu0 0.0
        %1701 = vmatprep.subr.mxu0 0.0
        %1702 = vmatpush1.msra.mxu0 0.0
        %1703 = vmatprep.subr.mxu0 0.0
        %1704 = vmatpush1.msra.mxu0 0.0
        %1705 = vmatprep.mubr.f32.mxu0 0.0
        %1706 = vmatmul.mubr.f32.gmra.mrb[0].mxu0 %v1633
        %v1707 = vpop.f32.mrb[0].mxu0
        %v1708 = vadd.f32 0.0, %v1707
        %v1709 = vpop.f32.mrb[0].mxu0
        %v1710 = vadd.f32 0.0, %v1709
        %1711 = vdwg.mxu0
        %1712 = vmatprep.subr.mxu0 0.0
        %1713 = vmatpush1.msra.mxu0 %v1639
        %1714 = vmatprep.subr.mxu0 0.0
        %1715 = vmatpush1.msra.mxu0 0.0
        %1716 = vmatprep.subr.mxu0 0.0
        %1717 = vmatpush1.msra.mxu0 0.0
        %1718 = vmatprep.subr.mxu0 0.0
        %1719 = vmatpush1.msra.mxu0 0.0
        %1720 = vmatprep.subr.mxu0 0.0
        %1721 = vmatpush1.msra.mxu0 0.0
        %1722 = vmatprep.subr.mxu0 0.0
        %1723 = vmatpush1.msra.mxu0 0.0
        %1724 = vmatprep.subr.mxu0 0.0
        %1725 = vmatpush1.msra.mxu0 0.0
        %1726 = vmatprep.subr.mxu0 0.0
        %1727 = vmatpush1.msra.mxu0 0.0
        %1728 = vmatprep.subr.mxu0 0.0
        %1729 = vmatpush1.msra.mxu0 0.0
        %1730 = vmatprep.subr.mxu0 0.0
        %1731 = vmatpush1.msra.mxu0 0.0
        %1732 = vmatprep.subr.mxu0 0.0
        %1733 = vmatpush1.msra.mxu0 0.0
        %1734 = vmatprep.subr.mxu0 0.0
        %1735 = vmatpush1.msra.mxu0 0.0
        %1736 = vmatprep.subr.mxu0 0.0
        %1737 = vmatpush1.msra.mxu0 0.0
        %1738 = vmatprep.subr.mxu0 0.0
        %1739 = vmatpush1.msra.mxu0 0.0
        %1740 = vmatprep.subr.mxu0 0.0
        %1741 = vmatpush1.msra.mxu0 0.0
        %1742 = vmatprep.subr.mxu0 0.0
        %1743 = vmatpush1.msra.mxu0 0.0
        %1744 = vmatprep.subr.mxu0 0.0
        %1745 = vmatpush1.msra.mxu0 0.0
        %1746 = vmatprep.subr.mxu0 0.0
        %1747 = vmatpush1.msra.mxu0 0.0
        %1748 = vmatprep.subr.mxu0 0.0
        %1749 = vmatpush1.msra.mxu0 0.0
        %1750 = vmatprep.subr.mxu0 0.0
        %1751 = vmatpush1.msra.mxu0 0.0
        %1752 = vmatprep.subr.mxu0 0.0
        %1753 = vmatpush1.msra.mxu0 0.0
        %1754 = vmatprep.subr.mxu0 0.0
        %1755 = vmatpush1.msra.mxu0 0.0
        %1756 = vmatprep.subr.mxu0 0.0
        %1757 = vmatpush1.msra.mxu0 0.0
        %1758 = vmatprep.subr.mxu0 0.0
        %1759 = vmatpush1.msra.mxu0 0.0
        %1760 = vmatprep.subr.mxu0 0.0
        %1761 = vmatpush1.msra.mxu0 0.0
        %1762 = vmatprep.subr.mxu0 0.0
        %1763 = vmatpush1.msra.mxu0 0.0
        %1764 = vmatprep.subr.mxu0 0.0
        %1765 = vmatpush1.msra.mxu0 0.0
        %1766 = vmatprep.subr.mxu0 0.0
        %1767 = vmatpush1.msra.mxu0 0.0
        %1768 = vmatprep.subr.mxu0 0.0
        %1769 = vmatpush1.msra.mxu0 0.0
        %1770 = vmatprep.subr.mxu0 0.0
        %1771 = vmatpush1.msra.mxu0 0.0
        %1772 = vmatprep.subr.mxu0 0.0
        %1773 = vmatpush1.msra.mxu0 0.0
        %1774 = vmatprep.subr.mxu0 0.0
        %1775 = vmatpush1.msra.mxu0 0.0
        %1776 = vmatprep.mubr.f32.mxu0 0.0
        %1777 = vmatmul.mubr.f32.gmra.mrb[0].mxu0 %v1633
        %v1778 = vpop.f32.mrb[0].mxu0
        %v1779 = vadd.f32 0.0, %v1778
        %v1780 = vpop.f32.mrb[0].mxu0
        %1781 = vdwg.mxu0
        %v1782 = vadd.f32 %v1620, %v1708
        %v1783 = vadd.f32 %v1621, %v1710
        %v1784 = vadd.f32 %v1622, %v1779
        %v1785 = vsub.f32 0.0, %v1623
        %v1786 = vsub.f32 0.0, %v1624
        %v1787 = vmax.f32 %v1785, 0.0
        %v1788 = vmax.f32 %v1786, 0.0
        %1789 = vrot.lane.b32.xlu0 %v1626, 124
        %v1790 = vpop.permute.xlu0 %1789
        %v1793 = vcombine.high %v1787, %v1787
        %v1794 = vsel %vm264, %v1790, 0
        %v1796 = vsel %vm267, %v1787, 0
        %v1798 = vsel %vm267, %v1793, 0
        %v1800 = vsel %vm267, %v1788, 0
        %1802 = vmatprep.subr.mxu0 %v1798
        %1803 = vmatpush1.msra.mxu0 %v1796
        %1804 = vmatprep.subr.mxu0 0.0
        %1805 = vmatpush1.msra.mxu0 0.0
        %1806 = vmatprep.subr.mxu0 0.0
        %1807 = vmatpush1.msra.mxu0 0.0
        %1808 = vmatprep.subr.mxu0 0.0
        %1809 = vmatpush1.msra.mxu0 0.0
        %1810 = vmatprep.subr.mxu0 0.0
        %1811 = vmatpush1.msra.mxu0 0.0
        %1812 = vmatprep.subr.mxu0 0.0
        %1813 = vmatpush1.msra.mxu0 0.0
        %1814 = vmatprep.subr.mxu0 0.0
        %1815 = vmatpush1.msra.mxu0 0.0
        %1816 = vmatprep.subr.mxu0 0.0
        %1817 = vmatpush1.msra.mxu0 0.0
        %1818 = vmatprep.subr.mxu0 0.0
        %1819 = vmatpush1.msra.mxu0 0.0
        %1820 = vmatprep.subr.mxu0 0.0
        %1821 = vmatpush1.msra.mxu0 0.0
        %1822 = vmatprep.subr.mxu0 0.0
        %1823 = vmatpush1.msra.mxu0 0.0
        %1824 = vmatprep.subr.mxu0 0.0
        %1825 = vmatpush1.msra.mxu0 0.0
        %1826 = vmatprep.subr.mxu0 0.0
        %1827 = vmatpush1.msra.mxu0 0.0
        %1828 = vmatprep.subr.mxu0 0.0
        %1829 = vmatpush1.msra.mxu0 0.0
        %1830 = vmatprep.subr.mxu0 0.0
        %1831 = vmatpush1.msra.mxu0 0.0
        %1832 = vmatprep.subr.mxu0 0.0
        %1833 = vmatpush1.msra.mxu0 0.0
        %1834 = vmatprep.subr.mxu0 0.0
        %1835 = vmatpush1.msra.mxu0 0.0
        %1836 = vmatprep.subr.mxu0 0.0
        %1837 = vmatpush1.msra.mxu0 0.0
        %1838 = vmatprep.subr.mxu0 0.0
        %1839 = vmatpush1.msra.mxu0 0.0
        %1840 = vmatprep.subr.mxu0 0.0
        %1841 = vmatpush1.msra.mxu0 0.0
        %1842 = vmatprep.subr.mxu0 0.0
        %1843 = vmatpush1.msra.mxu0 0.0
        %1844 = vmatprep.subr.mxu0 0.0
        %1845 = vmatpush1.msra.mxu0 0.0
        %1846 = vmatprep.subr.mxu0 0.0
        %1847 = vmatpush1.msra.mxu0 0.0
        %1848 = vmatprep.subr.mxu0 0.0
        %1849 = vmatpush1.msra.mxu0 0.0
        %1850 = vmatprep.subr.mxu0 0.0
        %1851 = vmatpush1.msra.mxu0 0.0
        %1852 = vmatprep.subr.mxu0 0.0
        %1853 = vmatpush1.msra.mxu0 0.0
        %1854 = vmatprep.subr.mxu0 0.0
        %1855 = vmatpush1.msra.mxu0 0.0
        %1856 = vmatprep.subr.mxu0 0.0
        %1857 = vmatpush1.msra.mxu0 0.0
        %1858 = vmatprep.subr.mxu0 0.0
        %1859 = vmatpush1.msra.mxu0 0.0
        %1860 = vmatprep.subr.mxu0 0.0
        %1861 = vmatpush1.msra.mxu0 0.0
        %1862 = vmatprep.subr.mxu0 0.0
        %1863 = vmatpush1.msra.mxu0 0.0
        %1864 = vmatprep.subr.mxu0 0.0
        %1865 = vmatpush1.msra.mxu0 0.0
        %1866 = vmatprep.mubr.f32.mxu0 0.0
        %1867 = vmatmul.mubr.f32.gmra.mrb[0].mxu0 %v1794
        %v1868 = vpop.f32.mrb[0].mxu0
        %v1869 = vadd.f32 0.0, %v1868
        %v1870 = vpop.f32.mrb[0].mxu0
        %v1871 = vadd.f32 0.0, %v1870
        %1872 = vdwg.mxu0
        %1873 = vmatprep.subr.mxu0 0.0
        %1874 = vmatpush1.msra.mxu0 %v1800
        %1875 = vmatprep.subr.mxu0 0.0
        %1876 = vmatpush1.msra.mxu0 0.0
        %1877 = vmatprep.subr.mxu0 0.0
        %1878 = vmatpush1.msra.mxu0 0.0
        %1879 = vmatprep.subr.mxu0 0.0
        %1880 = vmatpush1.msra.mxu0 0.0
        %1881 = vmatprep.subr.mxu0 0.0
        %1882 = vmatpush1.msra.mxu0 0.0
        %1883 = vmatprep.subr.mxu0 0.0
        %1884 = vmatpush1.msra.mxu0 0.0
        %1885 = vmatprep.subr.mxu0 0.0
        %1886 = vmatpush1.msra.mxu0 0.0
        %1887 = vmatprep.subr.mxu0 0.0
        %1888 = vmatpush1.msra.mxu0 0.0
        %1889 = vmatprep.subr.mxu0 0.0
        %1890 = vmatpush1.msra.mxu0 0.0
        %1891 = vmatprep.subr.mxu0 0.0
        %1892 = vmatpush1.msra.mxu0 0.0
        %1893 = vmatprep.subr.mxu0 0.0
        %1894 = vmatpush1.msra.mxu0 0.0
        %1895 = vmatprep.subr.mxu0 0.0
        %1896 = vmatpush1.msra.mxu0 0.0
        %1897 = vmatprep.subr.mxu0 0.0
        %1898 = vmatpush1.msra.mxu0 0.0
        %1899 = vmatprep.subr.mxu0 0.0
        %1900 = vmatpush1.msra.mxu0 0.0
        %1901 = vmatprep.subr.mxu0 0.0
        %1902 = vmatpush1.msra.mxu0 0.0
        %1903 = vmatprep.subr.mxu0 0.0
        %1904 = vmatpush1.msra.mxu0 0.0
        %1905 = vmatprep.subr.mxu0 0.0
        %1906 = vmatpush1.msra.mxu0 0.0
        %1907 = vmatprep.subr.mxu0 0.0
        %1908 = vmatpush1.msra.mxu0 0.0
        %1909 = vmatprep.subr.mxu0 0.0
        %1910 = vmatpush1.msra.mxu0 0.0
        %1911 = vmatprep.subr.mxu0 0.0
        %1912 = vmatpush1.msra.mxu0 0.0
        %1913 = vmatprep.subr.mxu0 0.0
        %1914 = vmatpush1.msra.mxu0 0.0
        %1915 = vmatprep.subr.mxu0 0.0
        %1916 = vmatpush1.msra.mxu0 0.0
        %1917 = vmatprep.subr.mxu0 0.0
        %1918 = vmatpush1.msra.mxu0 0.0
        %1919 = vmatprep.subr.mxu0 0.0
        %1920 = vmatpush1.msra.mxu0 0.0
        %1921 = vmatprep.subr.mxu0 0.0
        %1922 = vmatpush1.msra.mxu0 0.0
        %1923 = vmatprep.subr.mxu0 0.0
        %1924 = vmatpush1.msra.mxu0 0.0
        %1925 = vmatprep.subr.mxu0 0.0
        %1926 = vmatpush1.msra.mxu0 0.0
        %1927 = vmatprep.subr.mxu0 0.0
        %1928 = vmatpush1.msra.mxu0 0.0
        %1929 = vmatprep.subr.mxu0 0.0
        %1930 = vmatpush1.msra.mxu0 0.0
        %1931 = vmatprep.subr.mxu0 0.0
        %1932 = vmatpush1.msra.mxu0 0.0
        %1933 = vmatprep.subr.mxu0 0.0
        %1934 = vmatpush1.msra.mxu0 0.0
        %1935 = vmatprep.subr.mxu0 0.0
        %1936 = vmatpush1.msra.mxu0 0.0
        %1937 = vmatprep.mubr.f32.mxu0 0.0
        %1938 = vmatmul.mubr.f32.gmra.mrb[0].mxu0 %v1794
        %v1939 = vpop.f32.mrb[0].mxu0
        %v1940 = vadd.f32 0.0, %v1939
        %v1941 = vpop.f32.mrb[0].mxu0
        %1942 = vdwg.mxu0
        %v1943 = vadd.f32 %v1782, %v1869
        %v1944 = vadd.f32 %v1783, %v1871
        %v1945 = vadd.f32 %v1784, %v1940
        %v1946 = vld [vmem:[%s224 + $0x4] sm:$0xff]
        %v1947 = vld [vmem:[%s224 + $0xc] sm:$0xff]
        %s1948 = scalar_lea.vmem %s2, 20
        %v1949 = vld [vmem:[%s1948] sm:$0xf]
        %v1950 = vmax.f32 %v1946, 0.0
        %v1951 = vmax.f32 %v1947, 0.0
        %v1954 = vcombine.high %v1950, %v1950
        %v1955 = vcombine.high %v1951, %v1951
        %1956 = vrot.lane.b32.xlu0 %v1950, 127
        %v1957 = vpop.permute.xlu0 %1956
        %1958 = vrot.lane.b32.xlu0 %v1954, 127
        %v1959 = vpop.permute.xlu0 %1958
        %1960 = vrot.lane.b32.xlu0 %v1951, 127
        %v1961 = vpop.permute.xlu0 %1960
        %1962 = vrot.lane.b32.xlu0 %v1955, 127
        %v1963 = vpop.permute.xlu0 %1962
        %vm1964 = vcmask 1039360
        %v1965 = vsel %vm1964, %v1957, %v1959
        %v1966 = vsel %vm1964, %v1959, %v1961
        %v1967 = vsel %vm1964, %v1961, %v1963
        %v1969 = vsel %vm264, %v1949, 0
        %v1971 = vsel %vm267, %v1965, 0
        %v1973 = vsel %vm267, %v1966, 0
        %v1975 = vsel %vm267, %v1967, 0
        %1977 = vmatprep.subr.mxu0 %v1973
        %1978 = vmatpush1.msra.mxu0 %v1971
        %1979 = vmatprep.subr.mxu0 0.0
        %1980 = vmatpush1.msra.mxu0 0.0
        %1981 = vmatprep.subr.mxu0 0.0
        %1982 = vmatpush1.msra.mxu0 0.0
        %1983 = vmatprep.subr.mxu0 0.0
        %1984 = vmatpush1.msra.mxu0 0.0
        %1985 = vmatprep.subr.mxu0 0.0
        %1986 = vmatpush1.msra.mxu0 0.0
        %1987 = vmatprep.subr.mxu0 0.0
        %1988 = vmatpush1.msra.mxu0 0.0
        %1989 = vmatprep.subr.mxu0 0.0
        %1990 = vmatpush1.msra.mxu0 0.0
        %1991 = vmatprep.subr.mxu0 0.0
        %1992 = vmatpush1.msra.mxu0 0.0
        %1993 = vmatprep.subr.mxu0 0.0
        %1994 = vmatpush1.msra.mxu0 0.0
        %1995 = vmatprep.subr.mxu0 0.0
        %1996 = vmatpush1.msra.mxu0 0.0
        %1997 = vmatprep.subr.mxu0 0.0
        %1998 = vmatpush1.msra.mxu0 0.0
        %1999 = vmatprep.subr.mxu0 0.0
        %2000 = vmatpush1.msra.mxu0 0.0
        %2001 = vmatprep.subr.mxu0 0.0
        %2002 = vmatpush1.msra.mxu0 0.0
        %2003 = vmatprep.subr.mxu0 0.0
        %2004 = vmatpush1.msra.mxu0 0.0
        %2005 = vmatprep.subr.mxu0 0.0
        %2006 = vmatpush1.msra.mxu0 0.0
        %2007 = vmatprep.subr.mxu0 0.0
        %2008 = vmatpush1.msra.mxu0 0.0
        %2009 = vmatprep.subr.mxu0 0.0
        %2010 = vmatpush1.msra.mxu0 0.0
        %2011 = vmatprep.subr.mxu0 0.0
        %2012 = vmatpush1.msra.mxu0 0.0
        %2013 = vmatprep.subr.mxu0 0.0
        %2014 = vmatpush1.msra.mxu0 0.0
        %2015 = vmatprep.subr.mxu0 0.0
        %2016 = vmatpush1.msra.mxu0 0.0
        %2017 = vmatprep.subr.mxu0 0.0
        %2018 = vmatpush1.msra.mxu0 0.0
        %2019 = vmatprep.subr.mxu0 0.0
        %2020 = vmatpush1.msra.mxu0 0.0
        %2021 = vmatprep.subr.mxu0 0.0
        %2022 = vmatpush1.msra.mxu0 0.0
        %2023 = vmatprep.subr.mxu0 0.0
        %2024 = vmatpush1.msra.mxu0 0.0
        %2025 = vmatprep.subr.mxu0 0.0
        %2026 = vmatpush1.msra.mxu0 0.0
        %2027 = vmatprep.subr.mxu0 0.0
        %2028 = vmatpush1.msra.mxu0 0.0
        %2029 = vmatprep.subr.mxu0 0.0
        %2030 = vmatpush1.msra.mxu0 0.0
        %2031 = vmatprep.subr.mxu0 0.0
        %2032 = vmatpush1.msra.mxu0 0.0
        %2033 = vmatprep.subr.mxu0 0.0
        %2034 = vmatpush1.msra.mxu0 0.0
        %2035 = vmatprep.subr.mxu0 0.0
        %2036 = vmatpush1.msra.mxu0 0.0
        %2037 = vmatprep.subr.mxu0 0.0
        %2038 = vmatpush1.msra.mxu0 0.0
        %2039 = vmatprep.subr.mxu0 0.0
        %2040 = vmatpush1.msra.mxu0 0.0
        %2041 = vmatprep.mubr.f32.mxu0 0.0
        %2042 = vmatmul.mubr.f32.gmra.mrb[0].mxu0 %v1969
        %v2043 = vpop.f32.mrb[0].mxu0
        %v2044 = vadd.f32 0.0, %v2043
        %v2045 = vpop.f32.mrb[0].mxu0
        %v2046 = vadd.f32 0.0, %v2045
        %2047 = vdwg.mxu0
        %2048 = vmatprep.subr.mxu0 0.0
        %2049 = vmatpush1.msra.mxu0 %v1975
        %2050 = vmatprep.subr.mxu0 0.0
        %2051 = vmatpush1.msra.mxu0 0.0
        %2052 = vmatprep.subr.mxu0 0.0
        %2053 = vmatpush1.msra.mxu0 0.0
        %2054 = vmatprep.subr.mxu0 0.0
        %2055 = vmatpush1.msra.mxu0 0.0
        %2056 = vmatprep.subr.mxu0 0.0
        %2057 = vmatpush1.msra.mxu0 0.0
        %2058 = vmatprep.subr.mxu0 0.0
        %2059 = vmatpush1.msra.mxu0 0.0
        %2060 = vmatprep.subr.mxu0 0.0
        %2061 = vmatpush1.msra.mxu0 0.0
        %2062 = vmatprep.subr.mxu0 0.0
        %2063 = vmatpush1.msra.mxu0 0.0
        %2064 = vmatprep.subr.mxu0 0.0
        %2065 = vmatpush1.msra.mxu0 0.0
        %2066 = vmatprep.subr.mxu0 0.0
        %2067 = vmatpush1.msra.mxu0 0.0
        %2068 = vmatprep.subr.mxu0 0.0
        %2069 = vmatpush1.msra.mxu0 0.0
        %2070 = vmatprep.subr.mxu0 0.0
        %2071 = vmatpush1.msra.mxu0 0.0
        %2072 = vmatprep.subr.mxu0 0.0
        %2073 = vmatpush1.msra.mxu0 0.0
        %2074 = vmatprep.subr.mxu0 0.0
        %2075 = vmatpush1.msra.mxu0 0.0
        %2076 = vmatprep.subr.mxu0 0.0
        %2077 = vmatpush1.msra.mxu0 0.0
        %2078 = vmatprep.subr.mxu0 0.0
        %2079 = vmatpush1.msra.mxu0 0.0
        %2080 = vmatprep.subr.mxu0 0.0
        %2081 = vmatpush1.msra.mxu0 0.0
        %2082 = vmatprep.subr.mxu0 0.0
        %2083 = vmatpush1.msra.mxu0 0.0
        %2084 = vmatprep.subr.mxu0 0.0
        %2085 = vmatpush1.msra.mxu0 0.0
        %2086 = vmatprep.subr.mxu0 0.0
        %2087 = vmatpush1.msra.mxu0 0.0
        %2088 = vmatprep.subr.mxu0 0.0
        %2089 = vmatpush1.msra.mxu0 0.0
        %2090 = vmatprep.subr.mxu0 0.0
        %2091 = vmatpush1.msra.mxu0 0.0
        %2092 = vmatprep.subr.mxu0 0.0
        %2093 = vmatpush1.msra.mxu0 0.0
        %2094 = vmatprep.subr.mxu0 0.0
        %2095 = vmatpush1.msra.mxu0 0.0
        %2096 = vmatprep.subr.mxu0 0.0
        %2097 = vmatpush1.msra.mxu0 0.0
        %2098 = vmatprep.subr.mxu0 0.0
        %2099 = vmatpush1.msra.mxu0 0.0
        %2100 = vmatprep.subr.mxu0 0.0
        %2101 = vmatpush1.msra.mxu0 0.0
        %2102 = vmatprep.subr.mxu0 0.0
        %2103 = vmatpush1.msra.mxu0 0.0
        %2104 = vmatprep.subr.mxu0 0.0
        %2105 = vmatpush1.msra.mxu0 0.0
        %2106 = vmatprep.subr.mxu0 0.0
        %2107 = vmatpush1.msra.mxu0 0.0
        %2108 = vmatprep.subr.mxu0 0.0
        %2109 = vmatpush1.msra.mxu0 0.0
        %2110 = vmatprep.subr.mxu0 0.0
        %2111 = vmatpush1.msra.mxu0 0.0
        %2112 = vmatprep.mubr.f32.mxu0 0.0
        %2113 = vmatmul.mubr.f32.gmra.mrb[0].mxu0 %v1969
        %v2114 = vpop.f32.mrb[0].mxu0
        %v2115 = vadd.f32 0.0, %v2114
        %v2116 = vpop.f32.mrb[0].mxu0
        %2117 = vdwg.mxu0
        %v2118 = vadd.f32 %v1943, %v2044
        %v2119 = vadd.f32 %v1944, %v2046
        %v2120 = vadd.f32 %v1945, %v2115
        %v2121 = vsub.f32 0.0, %v1946
        %v2122 = vsub.f32 0.0, %v1947
        %v2123 = vmax.f32 %v2121, 0.0
        %v2124 = vmax.f32 %v2122, 0.0
        %2125 = vrot.lane.b32.xlu0 %v1949, 124
        %v2126 = vpop.permute.xlu0 %2125
        %v2129 = vcombine.high %v2123, %v2123
        %v2130 = vcombine.high %v2124, %v2124
        %2131 = vrot.lane.b32.xlu0 %v2123, 127
        %v2132 = vpop.permute.xlu0 %2131
        %2133 = vrot.lane.b32.xlu0 %v2129, 127
        %v2134 = vpop.permute.xlu0 %2133
        %2135 = vrot.lane.b32.xlu0 %v2124, 127
        %v2136 = vpop.permute.xlu0 %2135
        %2137 = vrot.lane.b32.xlu0 %v2130, 127
        %v2138 = vpop.permute.xlu0 %2137
        %v2139 = vsel %vm1964, %v2132, %v2134
        %v2140 = vsel %vm1964, %v2134, %v2136
        %v2141 = vsel %vm1964, %v2136, %v2138
        %v2142 = vsel %vm264, %v2126, 0
        %v2144 = vsel %vm267, %v2139, 0
        %v2146 = vsel %vm267, %v2140, 0
        %v2148 = vsel %vm267, %v2141, 0
        %2150 = vmatprep.subr.mxu0 %v2146
        %2151 = vmatpush1.msra.mxu0 %v2144
        %2152 = vmatprep.subr.mxu0 0.0
        %2153 = vmatpush1.msra.mxu0 0.0
        %2154 = vmatprep.subr.mxu0 0.0
        %2155 = vmatpush1.msra.mxu0 0.0
        %2156 = vmatprep.subr.mxu0 0.0
        %2157 = vmatpush1.msra.mxu0 0.0
        %2158 = vmatprep.subr.mxu0 0.0
        %2159 = vmatpush1.msra.mxu0 0.0
        %2160 = vmatprep.subr.mxu0 0.0
        %2161 = vmatpush1.msra.mxu0 0.0
        %2162 = vmatprep.subr.mxu0 0.0
        %2163 = vmatpush1.msra.mxu0 0.0
        %2164 = vmatprep.subr.mxu0 0.0
        %2165 = vmatpush1.msra.mxu0 0.0
        %2166 = vmatprep.subr.mxu0 0.0
        %2167 = vmatpush1.msra.mxu0 0.0
        %2168 = vmatprep.subr.mxu0 0.0
        %2169 = vmatpush1.msra.mxu0 0.0
        %2170 = vmatprep.subr.mxu0 0.0
        %2171 = vmatpush1.msra.mxu0 0.0
        %2172 = vmatprep.subr.mxu0 0.0
        %2173 = vmatpush1.msra.mxu0 0.0
        %2174 = vmatprep.subr.mxu0 0.0
        %2175 = vmatpush1.msra.mxu0 0.0
        %2176 = vmatprep.subr.mxu0 0.0
        %2177 = vmatpush1.msra.mxu0 0.0
        %2178 = vmatprep.subr.mxu0 0.0
        %2179 = vmatpush1.msra.mxu0 0.0
        %2180 = vmatprep.subr.mxu0 0.0
        %2181 = vmatpush1.msra.mxu0 0.0
        %2182 = vmatprep.subr.mxu0 0.0
        %2183 = vmatpush1.msra.mxu0 0.0
        %2184 = vmatprep.subr.mxu0 0.0
        %2185 = vmatpush1.msra.mxu0 0.0
        %2186 = vmatprep.subr.mxu0 0.0
        %2187 = vmatpush1.msra.mxu0 0.0
        %2188 = vmatprep.subr.mxu0 0.0
        %2189 = vmatpush1.msra.mxu0 0.0
        %2190 = vmatprep.subr.mxu0 0.0
        %2191 = vmatpush1.msra.mxu0 0.0
        %2192 = vmatprep.subr.mxu0 0.0
        %2193 = vmatpush1.msra.mxu0 0.0
        %2194 = vmatprep.subr.mxu0 0.0
        %2195 = vmatpush1.msra.mxu0 0.0
        %2196 = vmatprep.subr.mxu0 0.0
        %2197 = vmatpush1.msra.mxu0 0.0
        %2198 = vmatprep.subr.mxu0 0.0
        %2199 = vmatpush1.msra.mxu0 0.0
        %2200 = vmatprep.subr.mxu0 0.0
        %2201 = vmatpush1.msra.mxu0 0.0
        %2202 = vmatprep.subr.mxu0 0.0
        %2203 = vmatpush1.msra.mxu0 0.0
        %2204 = vmatprep.subr.mxu0 0.0
        %2205 = vmatpush1.msra.mxu0 0.0
        %2206 = vmatprep.subr.mxu0 0.0
        %2207 = vmatpush1.msra.mxu0 0.0
        %2208 = vmatprep.subr.mxu0 0.0
        %2209 = vmatpush1.msra.mxu0 0.0
        %2210 = vmatprep.subr.mxu0 0.0
        %2211 = vmatpush1.msra.mxu0 0.0
        %2212 = vmatprep.subr.mxu0 0.0
        %2213 = vmatpush1.msra.mxu0 0.0
        %2214 = vmatprep.mubr.f32.mxu0 0.0
        %2215 = vmatmul.mubr.f32.gmra.mrb[0].mxu0 %v2142
        %v2216 = vpop.f32.mrb[0].mxu0
        %v2217 = vadd.f32 0.0, %v2216
        %v2218 = vpop.f32.mrb[0].mxu0
        %v2219 = vadd.f32 0.0, %v2218
        %2220 = vdwg.mxu0
        %2221 = vmatprep.subr.mxu0 0.0
        %2222 = vmatpush1.msra.mxu0 %v2148
        %2223 = vmatprep.subr.mxu0 0.0
        %2224 = vmatpush1.msra.mxu0 0.0
        %2225 = vmatprep.subr.mxu0 0.0
        %2226 = vmatpush1.msra.mxu0 0.0
        %2227 = vmatprep.subr.mxu0 0.0
        %2228 = vmatpush1.msra.mxu0 0.0
        %2229 = vmatprep.subr.mxu0 0.0
        %2230 = vmatpush1.msra.mxu0 0.0
        %2231 = vmatprep.subr.mxu0 0.0
        %2232 = vmatpush1.msra.mxu0 0.0
        %2233 = vmatprep.subr.mxu0 0.0
        %2234 = vmatpush1.msra.mxu0 0.0
        %2235 = vmatprep.subr.mxu0 0.0
        %2236 = vmatpush1.msra.mxu0 0.0
        %2237 = vmatprep.subr.mxu0 0.0
        %2238 = vmatpush1.msra.mxu0 0.0
        %2239 = vmatprep.subr.mxu0 0.0
        %2240 = vmatpush1.msra.mxu0 0.0
        %2241 = vmatprep.subr.mxu0 0.0
        %2242 = vmatpush1.msra.mxu0 0.0
        %2243 = vmatprep.subr.mxu0 0.0
        %2244 = vmatpush1.msra.mxu0 0.0
        %2245 = vmatprep.subr.mxu0 0.0
        %2246 = vmatpush1.msra.mxu0 0.0
        %2247 = vmatprep.subr.mxu0 0.0
        %2248 = vmatpush1.msra.mxu0 0.0
        %2249 = vmatprep.subr.mxu0 0.0
        %2250 = vmatpush1.msra.mxu0 0.0
        %2251 = vmatprep.subr.mxu0 0.0
        %2252 = vmatpush1.msra.mxu0 0.0
        %2253 = vmatprep.subr.mxu0 0.0
        %2254 = vmatpush1.msra.mxu0 0.0
        %2255 = vmatprep.subr.mxu0 0.0
        %2256 = vmatpush1.msra.mxu0 0.0
        %2257 = vmatprep.subr.mxu0 0.0
        %2258 = vmatpush1.msra.mxu0 0.0
        %2259 = vmatprep.subr.mxu0 0.0
        %2260 = vmatpush1.msra.mxu0 0.0
        %2261 = vmatprep.subr.mxu0 0.0
        %2262 = vmatpush1.msra.mxu0 0.0
        %2263 = vmatprep.subr.mxu0 0.0
        %2264 = vmatpush1.msra.mxu0 0.0
        %2265 = vmatprep.subr.mxu0 0.0
        %2266 = vmatpush1.msra.mxu0 0.0
        %2267 = vmatprep.subr.mxu0 0.0
        %2268 = vmatpush1.msra.mxu0 0.0
        %2269 = vmatprep.subr.mxu0 0.0
        %2270 = vmatpush1.msra.mxu0 0.0
        %2271 = vmatprep.subr.mxu0 0.0
        %2272 = vmatpush1.msra.mxu0 0.0
        %2273 = vmatprep.subr.mxu0 0.0
        %2274 = vmatpush1.msra.mxu0 0.0
        %2275 = vmatprep.subr.mxu0 0.0
        %2276 = vmatpush1.msra.mxu0 0.0
        %2277 = vmatprep.subr.mxu0 0.0
        %2278 = vmatpush1.msra.mxu0 0.0
        %2279 = vmatprep.subr.mxu0 0.0
        %2280 = vmatpush1.msra.mxu0 0.0
        %2281 = vmatprep.subr.mxu0 0.0
        %2282 = vmatpush1.msra.mxu0 0.0
        %2283 = vmatprep.subr.mxu0 0.0
        %2284 = vmatpush1.msra.mxu0 0.0
        %2285 = vmatprep.mubr.f32.mxu0 0.0
        %2286 = vmatmul.mubr.f32.gmra.mrb[0].mxu0 %v2142
        %v2287 = vpop.f32.mrb[0].mxu0
        %v2288 = vadd.f32 0.0, %v2287
        %v2289 = vpop.f32.mrb[0].mxu0
        %2290 = vdwg.mxu0
        %v2291 = vadd.f32 %v2118, %v2217
        %v2292 = vadd.f32 %v2119, %v2219
        %v2293 = vadd.f32 %v2120, %v2288
        %v2294 = vld [vmem:[%s224 + $0x4] sm:$0xff]
        %v2295 = vld [vmem:[%s224 + $0xc] sm:$0xff]
        %s2296 = scalar_lea.vmem %s2, 24
        %v2297 = vld [vmem:[%s2296] sm:$0xf]
        %v2298 = vmax.f32 %v2294, 0.0
        %v2299 = vmax.f32 %v2295, 0.0
        %v2302 = vcombine.high %v2298, %v2298
        %v2303 = vcombine.high %v2299, %v2299
        %2304 = vrot.lane.b32.xlu0 %v2298, 111
        %v2305 = vpop.permute.xlu0 %2304
        %2306 = vrot.lane.b32.xlu0 %v2302, 111
        %v2307 = vpop.permute.xlu0 %2306
        %2308 = vrot.lane.b32.xlu0 %v2299, 111
        %v2309 = vpop.permute.xlu0 %2308
        %2310 = vrot.lane.b32.xlu0 %v2303, 111
        %v2311 = vpop.permute.xlu0 %2310
        %vm2312 = vcmask 908288
        %v2313 = vsel %vm2312, %v2305, %v2307
        %v2314 = vsel %vm2312, %v2307, %v2309
        %v2315 = vsel %vm2312, %v2309, %v2311
        %v2317 = vsel %vm264, %v2297, 0
        %v2319 = vsel %vm267, %v2313, 0
        %v2321 = vsel %vm267, %v2314, 0
        %v2323 = vsel %vm267, %v2315, 0
        %2325 = vmatprep.subr.mxu0 %v2321
        %2326 = vmatpush1.msra.mxu0 %v2319
        %2327 = vmatprep.subr.mxu0 0.0
        %2328 = vmatpush1.msra.mxu0 0.0
        %2329 = vmatprep.subr.mxu0 0.0
        %2330 = vmatpush1.msra.mxu0 0.0
        %2331 = vmatprep.subr.mxu0 0.0
        %2332 = vmatpush1.msra.mxu0 0.0
        %2333 = vmatprep.subr.mxu0 0.0
        %2334 = vmatpush1.msra.mxu0 0.0
        %2335 = vmatprep.subr.mxu0 0.0
        %2336 = vmatpush1.msra.mxu0 0.0
        %2337 = vmatprep.subr.mxu0 0.0
        %2338 = vmatpush1.msra.mxu0 0.0
        %2339 = vmatprep.subr.mxu0 0.0
        %2340 = vmatpush1.msra.mxu0 0.0
        %2341 = vmatprep.subr.mxu0 0.0
        %2342 = vmatpush1.msra.mxu0 0.0
        %2343 = vmatprep.subr.mxu0 0.0
        %2344 = vmatpush1.msra.mxu0 0.0
        %2345 = vmatprep.subr.mxu0 0.0
        %2346 = vmatpush1.msra.mxu0 0.0
        %2347 = vmatprep.subr.mxu0 0.0
        %2348 = vmatpush1.msra.mxu0 0.0
        %2349 = vmatprep.subr.mxu0 0.0
        %2350 = vmatpush1.msra.mxu0 0.0
        %2351 = vmatprep.subr.mxu0 0.0
        %2352 = vmatpush1.msra.mxu0 0.0
        %2353 = vmatprep.subr.mxu0 0.0
        %2354 = vmatpush1.msra.mxu0 0.0
        %2355 = vmatprep.subr.mxu0 0.0
        %2356 = vmatpush1.msra.mxu0 0.0
        %2357 = vmatprep.subr.mxu0 0.0
        %2358 = vmatpush1.msra.mxu0 0.0
        %2359 = vmatprep.subr.mxu0 0.0
        %2360 = vmatpush1.msra.mxu0 0.0
        %2361 = vmatprep.subr.mxu0 0.0
        %2362 = vmatpush1.msra.mxu0 0.0
        %2363 = vmatprep.subr.mxu0 0.0
        %2364 = vmatpush1.msra.mxu0 0.0
        %2365 = vmatprep.subr.mxu0 0.0
        %2366 = vmatpush1.msra.mxu0 0.0
        %2367 = vmatprep.subr.mxu0 0.0
        %2368 = vmatpush1.msra.mxu0 0.0
        %2369 = vmatprep.subr.mxu0 0.0
        %2370 = vmatpush1.msra.mxu0 0.0
        %2371 = vmatprep.subr.mxu0 0.0
        %2372 = vmatpush1.msra.mxu0 0.0
        %2373 = vmatprep.subr.mxu0 0.0
        %2374 = vmatpush1.msra.mxu0 0.0
        %2375 = vmatprep.subr.mxu0 0.0
        %2376 = vmatpush1.msra.mxu0 0.0
        %2377 = vmatprep.subr.mxu0 0.0
        %2378 = vmatpush1.msra.mxu0 0.0
        %2379 = vmatprep.subr.mxu0 0.0
        %2380 = vmatpush1.msra.mxu0 0.0
        %2381 = vmatprep.subr.mxu0 0.0
        %2382 = vmatpush1.msra.mxu0 0.0
        %2383 = vmatprep.subr.mxu0 0.0
        %2384 = vmatpush1.msra.mxu0 0.0
        %2385 = vmatprep.subr.mxu0 0.0
        %2386 = vmatpush1.msra.mxu0 0.0
        %2387 = vmatprep.subr.mxu0 0.0
        %2388 = vmatpush1.msra.mxu0 0.0
        %2389 = vmatprep.mubr.f32.mxu0 0.0
        %2390 = vmatmul.mubr.f32.gmra.mrb[0].mxu0 %v2317
        %v2391 = vpop.f32.mrb[0].mxu0
        %v2392 = vadd.f32 0.0, %v2391
        %v2393 = vpop.f32.mrb[0].mxu0
        %v2394 = vadd.f32 0.0, %v2393
        %2395 = vdwg.mxu0
        %2396 = vmatprep.subr.mxu0 0.0
        %2397 = vmatpush1.msra.mxu0 %v2323
        %2398 = vmatprep.subr.mxu0 0.0
        %2399 = vmatpush1.msra.mxu0 0.0
        %2400 = vmatprep.subr.mxu0 0.0
        %2401 = vmatpush1.msra.mxu0 0.0
        %2402 = vmatprep.subr.mxu0 0.0
        %2403 = vmatpush1.msra.mxu0 0.0
        %2404 = vmatprep.subr.mxu0 0.0
        %2405 = vmatpush1.msra.mxu0 0.0
        %2406 = vmatprep.subr.mxu0 0.0
        %2407 = vmatpush1.msra.mxu0 0.0
        %2408 = vmatprep.subr.mxu0 0.0
        %2409 = vmatpush1.msra.mxu0 0.0
        %2410 = vmatprep.subr.mxu0 0.0
        %2411 = vmatpush1.msra.mxu0 0.0
        %2412 = vmatprep.subr.mxu0 0.0
        %2413 = vmatpush1.msra.mxu0 0.0
        %2414 = vmatprep.subr.mxu0 0.0
        %2415 = vmatpush1.msra.mxu0 0.0
        %2416 = vmatprep.subr.mxu0 0.0
        %2417 = vmatpush1.msra.mxu0 0.0
        %2418 = vmatprep.subr.mxu0 0.0
        %2419 = vmatpush1.msra.mxu0 0.0
        %2420 = vmatprep.subr.mxu0 0.0
        %2421 = vmatpush1.msra.mxu0 0.0
        %2422 = vmatprep.subr.mxu0 0.0
        %2423 = vmatpush1.msra.mxu0 0.0
        %2424 = vmatprep.subr.mxu0 0.0
        %2425 = vmatpush1.msra.mxu0 0.0
        %2426 = vmatprep.subr.mxu0 0.0
        %2427 = vmatpush1.msra.mxu0 0.0
        %2428 = vmatprep.subr.mxu0 0.0
        %2429 = vmatpush1.msra.mxu0 0.0
        %2430 = vmatprep.subr.mxu0 0.0
        %2431 = vmatpush1.msra.mxu0 0.0
        %2432 = vmatprep.subr.mxu0 0.0
        %2433 = vmatpush1.msra.mxu0 0.0
        %2434 = vmatprep.subr.mxu0 0.0
        %2435 = vmatpush1.msra.mxu0 0.0
        %2436 = vmatprep.subr.mxu0 0.0
        %2437 = vmatpush1.msra.mxu0 0.0
        %2438 = vmatprep.subr.mxu0 0.0
        %2439 = vmatpush1.msra.mxu0 0.0
        %2440 = vmatprep.subr.mxu0 0.0
        %2441 = vmatpush1.msra.mxu0 0.0
        %2442 = vmatprep.subr.mxu0 0.0
        %2443 = vmatpush1.msra.mxu0 0.0
        %2444 = vmatprep.subr.mxu0 0.0
        %2445 = vmatpush1.msra.mxu0 0.0
        %2446 = vmatprep.subr.mxu0 0.0
        %2447 = vmatpush1.msra.mxu0 0.0
        %2448 = vmatprep.subr.mxu0 0.0
        %2449 = vmatpush1.msra.mxu0 0.0
        %2450 = vmatprep.subr.mxu0 0.0
        %2451 = vmatpush1.msra.mxu0 0.0
        %2452 = vmatprep.subr.mxu0 0.0
        %2453 = vmatpush1.msra.mxu0 0.0
        %2454 = vmatprep.subr.mxu0 0.0
        %2455 = vmatpush1.msra.mxu0 0.0
        %2456 = vmatprep.subr.mxu0 0.0
        %2457 = vmatpush1.msra.mxu0 0.0
        %2458 = vmatprep.subr.mxu0 0.0
        %2459 = vmatpush1.msra.mxu0 0.0
        %2460 = vmatprep.mubr.f32.mxu0 0.0
        %2461 = vmatmul.mubr.f32.gmra.mrb[0].mxu0 %v2317
        %v2462 = vpop.f32.mrb[0].mxu0
        %v2463 = vadd.f32 0.0, %v2462
        %v2464 = vpop.f32.mrb[0].mxu0
        %2465 = vdwg.mxu0
        %v2466 = vadd.f32 %v2291, %v2392
        %v2467 = vadd.f32 %v2292, %v2394
        %v2468 = vadd.f32 %v2293, %v2463
        %v2469 = vsub.f32 0.0, %v2294
        %v2470 = vsub.f32 0.0, %v2295
        %v2471 = vmax.f32 %v2469, 0.0
        %v2472 = vmax.f32 %v2470, 0.0
        %2473 = vrot.lane.b32.xlu0 %v2297, 124
        %v2474 = vpop.permute.xlu0 %2473
        %v2477 = vcombine.high %v2471, %v2471
        %v2478 = vcombine.high %v2472, %v2472
        %2479 = vrot.lane.b32.xlu0 %v2471, 111
        %v2480 = vpop.permute.xlu0 %2479
        %2481 = vrot.lane.b32.xlu0 %v2477, 111
        %v2482 = vpop.permute.xlu0 %2481
        %2483 = vrot.lane.b32.xlu0 %v2472, 111
        %v2484 = vpop.permute.xlu0 %2483
        %2485 = vrot.lane.b32.xlu0 %v2478, 111
        %v2486 = vpop.permute.xlu0 %2485
        %v2487 = vsel %vm2312, %v2480, %v2482
        %v2488 = vsel %vm2312, %v2482, %v2484
        %v2489 = vsel %vm2312, %v2484, %v2486
        %v2490 = vsel %vm264, %v2474, 0
        %v2492 = vsel %vm267, %v2487, 0
        %v2494 = vsel %vm267, %v2488, 0
        %v2496 = vsel %vm267, %v2489, 0
        %2498 = vmatprep.subr.mxu0 %v2494
        %2499 = vmatpush1.msra.mxu0 %v2492
        %2500 = vmatprep.subr.mxu0 0.0
        %2501 = vmatpush1.msra.mxu0 0.0
        %2502 = vmatprep.subr.mxu0 0.0
        %2503 = vmatpush1.msra.mxu0 0.0
        %2504 = vmatprep.subr.mxu0 0.0
        %2505 = vmatpush1.msra.mxu0 0.0
        %2506 = vmatprep.subr.mxu0 0.0
        %2507 = vmatpush1.msra.mxu0 0.0
        %2508 = vmatprep.subr.mxu0 0.0
        %2509 = vmatpush1.msra.mxu0 0.0
        %2510 = vmatprep.subr.mxu0 0.0
        %2511 = vmatpush1.msra.mxu0 0.0
        %2512 = vmatprep.subr.mxu0 0.0
        %2513 = vmatpush1.msra.mxu0 0.0
        %2514 = vmatprep.subr.mxu0 0.0
        %2515 = vmatpush1.msra.mxu0 0.0
        %2516 = vmatprep.subr.mxu0 0.0
        %2517 = vmatpush1.msra.mxu0 0.0
        %2518 = vmatprep.subr.mxu0 0.0
        %2519 = vmatpush1.msra.mxu0 0.0
        %2520 = vmatprep.subr.mxu0 0.0
        %2521 = vmatpush1.msra.mxu0 0.0
        %2522 = vmatprep.subr.mxu0 0.0
        %2523 = vmatpush1.msra.mxu0 0.0
        %2524 = vmatprep.subr.mxu0 0.0
        %2525 = vmatpush1.msra.mxu0 0.0
        %2526 = vmatprep.subr.mxu0 0.0
        %2527 = vmatpush1.msra.mxu0 0.0
        %2528 = vmatprep.subr.mxu0 0.0
        %2529 = vmatpush1.msra.mxu0 0.0
        %2530 = vmatprep.subr.mxu0 0.0
        %2531 = vmatpush1.msra.mxu0 0.0
        %2532 = vmatprep.subr.mxu0 0.0
        %2533 = vmatpush1.msra.mxu0 0.0
        %2534 = vmatprep.subr.mxu0 0.0
        %2535 = vmatpush1.msra.mxu0 0.0
        %2536 = vmatprep.subr.mxu0 0.0
        %2537 = vmatpush1.msra.mxu0 0.0
        %2538 = vmatprep.subr.mxu0 0.0
        %2539 = vmatpush1.msra.mxu0 0.0
        %2540 = vmatprep.subr.mxu0 0.0
        %2541 = vmatpush1.msra.mxu0 0.0
        %2542 = vmatprep.subr.mxu0 0.0
        %2543 = vmatpush1.msra.mxu0 0.0
        %2544 = vmatprep.subr.mxu0 0.0
        %2545 = vmatpush1.msra.mxu0 0.0
        %2546 = vmatprep.subr.mxu0 0.0
        %2547 = vmatpush1.msra.mxu0 0.0
        %2548 = vmatprep.subr.mxu0 0.0
        %2549 = vmatpush1.msra.mxu0 0.0
        %2550 = vmatprep.subr.mxu0 0.0
        %2551 = vmatpush1.msra.mxu0 0.0
        %2552 = vmatprep.subr.mxu0 0.0
        %2553 = vmatpush1.msra.mxu0 0.0
        %2554 = vmatprep.subr.mxu0 0.0
        %2555 = vmatpush1.msra.mxu0 0.0
        %2556 = vmatprep.subr.mxu0 0.0
        %2557 = vmatpush1.msra.mxu0 0.0
        %2558 = vmatprep.subr.mxu0 0.0
        %2559 = vmatpush1.msra.mxu0 0.0
        %2560 = vmatprep.subr.mxu0 0.0
        %2561 = vmatpush1.msra.mxu0 0.0
        %2562 = vmatprep.mubr.f32.mxu0 0.0
        %2563 = vmatmul.mubr.f32.gmra.mrb[0].mxu0 %v2490
        %v2564 = vpop.f32.mrb[0].mxu0
        %v2565 = vadd.f32 0.0, %v2564
        %v2566 = vpop.f32.mrb[0].mxu0
        %v2567 = vadd.f32 0.0, %v2566
        %2568 = vdwg.mxu0
        %2569 = vmatprep.subr.mxu0 0.0
        %2570 = vmatpush1.msra.mxu0 %v2496
        %2571 = vmatprep.subr.mxu0 0.0
        %2572 = vmatpush1.msra.mxu0 0.0
        %2573 = vmatprep.subr.mxu0 0.0
        %2574 = vmatpush1.msra.mxu0 0.0
        %2575 = vmatprep.subr.mxu0 0.0
        %2576 = vmatpush1.msra.mxu0 0.0
        %2577 = vmatprep.subr.mxu0 0.0
        %2578 = vmatpush1.msra.mxu0 0.0
        %2579 = vmatprep.subr.mxu0 0.0
        %2580 = vmatpush1.msra.mxu0 0.0
        %2581 = vmatprep.subr.mxu0 0.0
        %2582 = vmatpush1.msra.mxu0 0.0
        %2583 = vmatprep.subr.mxu0 0.0
        %2584 = vmatpush1.msra.mxu0 0.0
        %2585 = vmatprep.subr.mxu0 0.0
        %2586 = vmatpush1.msra.mxu0 0.0
        %2587 = vmatprep.subr.mxu0 0.0
        %2588 = vmatpush1.msra.mxu0 0.0
        %2589 = vmatprep.subr.mxu0 0.0
        %2590 = vmatpush1.msra.mxu0 0.0
        %2591 = vmatprep.subr.mxu0 0.0
        %2592 = vmatpush1.msra.mxu0 0.0
        %2593 = vmatprep.subr.mxu0 0.0
        %2594 = vmatpush1.msra.mxu0 0.0
        %2595 = vmatprep.subr.mxu0 0.0
        %2596 = vmatpush1.msra.mxu0 0.0
        %2597 = vmatprep.subr.mxu0 0.0
        %2598 = vmatpush1.msra.mxu0 0.0
        %2599 = vmatprep.subr.mxu0 0.0
        %2600 = vmatpush1.msra.mxu0 0.0
        %2601 = vmatprep.subr.mxu0 0.0
        %2602 = vmatpush1.msra.mxu0 0.0
        %2603 = vmatprep.subr.mxu0 0.0
        %2604 = vmatpush1.msra.mxu0 0.0
        %2605 = vmatprep.subr.mxu0 0.0
        %2606 = vmatpush1.msra.mxu0 0.0
        %2607 = vmatprep.subr.mxu0 0.0
        %2608 = vmatpush1.msra.mxu0 0.0
        %2609 = vmatprep.subr.mxu0 0.0
        %2610 = vmatpush1.msra.mxu0 0.0
        %2611 = vmatprep.subr.mxu0 0.0
        %2612 = vmatpush1.msra.mxu0 0.0
        %2613 = vmatprep.subr.mxu0 0.0
        %2614 = vmatpush1.msra.mxu0 0.0
        %2615 = vmatprep.subr.mxu0 0.0
        %2616 = vmatpush1.msra.mxu0 0.0
        %2617 = vmatprep.subr.mxu0 0.0
        %2618 = vmatpush1.msra.mxu0 0.0
        %2619 = vmatprep.subr.mxu0 0.0
        %2620 = vmatpush1.msra.mxu0 0.0
        %2621 = vmatprep.subr.mxu0 0.0
        %2622 = vmatpush1.msra.mxu0 0.0
        %2623 = vmatprep.subr.mxu0 0.0
        %2624 = vmatpush1.msra.mxu0 0.0
        %2625 = vmatprep.subr.mxu0 0.0
        %2626 = vmatpush1.msra.mxu0 0.0
        %2627 = vmatprep.subr.mxu0 0.0
        %2628 = vmatpush1.msra.mxu0 0.0
        %2629 = vmatprep.subr.mxu0 0.0
        %2630 = vmatpush1.msra.mxu0 0.0
        %2631 = vmatprep.subr.mxu0 0.0
        %2632 = vmatpush1.msra.mxu0 0.0
        %2633 = vmatprep.mubr.f32.mxu0 0.0
        %2634 = vmatmul.mubr.f32.gmra.mrb[0].mxu0 %v2490
        %v2635 = vpop.f32.mrb[0].mxu0
        %v2636 = vadd.f32 0.0, %v2635
        %v2637 = vpop.f32.mrb[0].mxu0
        %2638 = vdwg.mxu0
        %v2639 = vadd.f32 %v2466, %v2565
        %v2640 = vadd.f32 %v2467, %v2567
        %v2641 = vadd.f32 %v2468, %v2636
        %v2642 = vld [vmem:[%s224 + $0x4] sm:$0xff]
        %v2643 = vld [vmem:[%s224 + $0xc] sm:$0xff]
        %s2644 = scalar_lea.vmem %s2, 28
        %v2645 = vld [vmem:[%s2644] sm:$0xf]
        %v2646 = vmax.f32 %v2642, 0.0
        %v2647 = vmax.f32 %v2643, 0.0
        %v2650 = vcombine.high %v2646, %v2646
        %v2651 = vcombine.high %v2647, %v2647
        %2652 = vrot.lane.b32.xlu0 %v2646, 110
        %v2653 = vpop.permute.xlu0 %2652
        %2654 = vrot.lane.b32.xlu0 %v2650, 110
        %v2655 = vpop.permute.xlu0 %2654
        %2656 = vrot.lane.b32.xlu0 %v2647, 110
        %v2657 = vpop.permute.xlu0 %2656
        %2658 = vrot.lane.b32.xlu0 %v2651, 110
        %v2659 = vpop.permute.xlu0 %2658
        %vm2660 = vcmask 900096
        %v2661 = vsel %vm2660, %v2653, %v2655
        %v2662 = vsel %vm2660, %v2655, %v2657
        %v2663 = vsel %vm2660, %v2657, %v2659
        %v2665 = vsel %vm264, %v2645, 0
        %v2667 = vsel %vm267, %v2661, 0
        %v2669 = vsel %vm267, %v2662, 0
        %v2671 = vsel %vm267, %v2663, 0
        %2673 = vmatprep.subr.mxu0 %v2669
        %2674 = vmatpush1.msra.mxu0 %v2667
        %2675 = vmatprep.subr.mxu0 0.0
        %2676 = vmatpush1.msra.mxu0 0.0
        %2677 = vmatprep.subr.mxu0 0.0
        %2678 = vmatpush1.msra.mxu0 0.0
        %2679 = vmatprep.subr.mxu0 0.0
        %2680 = vmatpush1.msra.mxu0 0.0
        %2681 = vmatprep.subr.mxu0 0.0
        %2682 = vmatpush1.msra.mxu0 0.0
        %2683 = vmatprep.subr.mxu0 0.0
        %2684 = vmatpush1.msra.mxu0 0.0
        %2685 = vmatprep.subr.mxu0 0.0
        %2686 = vmatpush1.msra.mxu0 0.0
        %2687 = vmatprep.subr.mxu0 0.0
        %2688 = vmatpush1.msra.mxu0 0.0
        %2689 = vmatprep.subr.mxu0 0.0
        %2690 = vmatpush1.msra.mxu0 0.0
        %2691 = vmatprep.subr.mxu0 0.0
        %2692 = vmatpush1.msra.mxu0 0.0
        %2693 = vmatprep.subr.mxu0 0.0
        %2694 = vmatpush1.msra.mxu0 0.0
        %2695 = vmatprep.subr.mxu0 0.0
        %2696 = vmatpush1.msra.mxu0 0.0
        %2697 = vmatprep.subr.mxu0 0.0
        %2698 = vmatpush1.msra.mxu0 0.0
        %2699 = vmatprep.subr.mxu0 0.0
        %2700 = vmatpush1.msra.mxu0 0.0
        %2701 = vmatprep.subr.mxu0 0.0
        %2702 = vmatpush1.msra.mxu0 0.0
        %2703 = vmatprep.subr.mxu0 0.0
        %2704 = vmatpush1.msra.mxu0 0.0
        %2705 = vmatprep.subr.mxu0 0.0
        %2706 = vmatpush1.msra.mxu0 0.0
        %2707 = vmatprep.subr.mxu0 0.0
        %2708 = vmatpush1.msra.mxu0 0.0
        %2709 = vmatprep.subr.mxu0 0.0
        %2710 = vmatpush1.msra.mxu0 0.0
        %2711 = vmatprep.subr.mxu0 0.0
        %2712 = vmatpush1.msra.mxu0 0.0
        %2713 = vmatprep.subr.mxu0 0.0
        %2714 = vmatpush1.msra.mxu0 0.0
        %2715 = vmatprep.subr.mxu0 0.0
        %2716 = vmatpush1.msra.mxu0 0.0
        %2717 = vmatprep.subr.mxu0 0.0
        %2718 = vmatpush1.msra.mxu0 0.0
        %2719 = vmatprep.subr.mxu0 0.0
        %2720 = vmatpush1.msra.mxu0 0.0
        %2721 = vmatprep.subr.mxu0 0.0
        %2722 = vmatpush1.msra.mxu0 0.0
        %2723 = vmatprep.subr.mxu0 0.0
        %2724 = vmatpush1.msra.mxu0 0.0
        %2725 = vmatprep.subr.mxu0 0.0
        %2726 = vmatpush1.msra.mxu0 0.0
        %2727 = vmatprep.subr.mxu0 0.0
        %2728 = vmatpush1.msra.mxu0 0.0
        %2729 = vmatprep.subr.mxu0 0.0
        %2730 = vmatpush1.msra.mxu0 0.0
        %2731 = vmatprep.subr.mxu0 0.0
        %2732 = vmatpush1.msra.mxu0 0.0
        %2733 = vmatprep.subr.mxu0 0.0
        %2734 = vmatpush1.msra.mxu0 0.0
        %2735 = vmatprep.subr.mxu0 0.0
        %2736 = vmatpush1.msra.mxu0 0.0
        %2737 = vmatprep.mubr.f32.mxu0 0.0
        %2738 = vmatmul.mubr.f32.gmra.mrb[0].mxu0 %v2665
        %v2739 = vpop.f32.mrb[0].mxu0
        %v2740 = vadd.f32 0.0, %v2739
        %v2741 = vpop.f32.mrb[0].mxu0
        %v2742 = vadd.f32 0.0, %v2741
        %2743 = vdwg.mxu0
        %2744 = vmatprep.subr.mxu0 0.0
        %2745 = vmatpush1.msra.mxu0 %v2671
        %2746 = vmatprep.subr.mxu0 0.0
        %2747 = vmatpush1.msra.mxu0 0.0
        %2748 = vmatprep.subr.mxu0 0.0
        %2749 = vmatpush1.msra.mxu0 0.0
        %2750 = vmatprep.subr.mxu0 0.0
        %2751 = vmatpush1.msra.mxu0 0.0
        %2752 = vmatprep.subr.mxu0 0.0
        %2753 = vmatpush1.msra.mxu0 0.0
        %2754 = vmatprep.subr.mxu0 0.0
        %2755 = vmatpush1.msra.mxu0 0.0
        %2756 = vmatprep.subr.mxu0 0.0
        %2757 = vmatpush1.msra.mxu0 0.0
        %2758 = vmatprep.subr.mxu0 0.0
        %2759 = vmatpush1.msra.mxu0 0.0
        %2760 = vmatprep.subr.mxu0 0.0
        %2761 = vmatpush1.msra.mxu0 0.0
        %2762 = vmatprep.subr.mxu0 0.0
        %2763 = vmatpush1.msra.mxu0 0.0
        %2764 = vmatprep.subr.mxu0 0.0
        %2765 = vmatpush1.msra.mxu0 0.0
        %2766 = vmatprep.subr.mxu0 0.0
        %2767 = vmatpush1.msra.mxu0 0.0
        %2768 = vmatprep.subr.mxu0 0.0
        %2769 = vmatpush1.msra.mxu0 0.0
        %2770 = vmatprep.subr.mxu0 0.0
        %2771 = vmatpush1.msra.mxu0 0.0
        %2772 = vmatprep.subr.mxu0 0.0
        %2773 = vmatpush1.msra.mxu0 0.0
        %2774 = vmatprep.subr.mxu0 0.0
        %2775 = vmatpush1.msra.mxu0 0.0
        %2776 = vmatprep.subr.mxu0 0.0
        %2777 = vmatpush1.msra.mxu0 0.0
        %2778 = vmatprep.subr.mxu0 0.0
        %2779 = vmatpush1.msra.mxu0 0.0
        %2780 = vmatprep.subr.mxu0 0.0
        %2781 = vmatpush1.msra.mxu0 0.0
        %2782 = vmatprep.subr.mxu0 0.0
        %2783 = vmatpush1.msra.mxu0 0.0
        %2784 = vmatprep.subr.mxu0 0.0
        %2785 = vmatpush1.msra.mxu0 0.0
        %2786 = vmatprep.subr.mxu0 0.0
        %2787 = vmatpush1.msra.mxu0 0.0
        %2788 = vmatprep.subr.mxu0 0.0
        %2789 = vmatpush1.msra.mxu0 0.0
        %2790 = vmatprep.subr.mxu0 0.0
        %2791 = vmatpush1.msra.mxu0 0.0
        %2792 = vmatprep.subr.mxu0 0.0
        %2793 = vmatpush1.msra.mxu0 0.0
        %2794 = vmatprep.subr.mxu0 0.0
        %2795 = vmatpush1.msra.mxu0 0.0
        %2796 = vmatprep.subr.mxu0 0.0
        %2797 = vmatpush1.msra.mxu0 0.0
        %2798 = vmatprep.subr.mxu0 0.0
        %2799 = vmatpush1.msra.mxu0 0.0
        %2800 = vmatprep.subr.mxu0 0.0
        %2801 = vmatpush1.msra.mxu0 0.0
        %2802 = vmatprep.subr.mxu0 0.0
        %2803 = vmatpush1.msra.mxu0 0.0
        %2804 = vmatprep.subr.mxu0 0.0
        %2805 = vmatpush1.msra.mxu0 0.0
        %2806 = vmatprep.subr.mxu0 0.0
        %2807 = vmatpush1.msra.mxu0 0.0
        %2808 = vmatprep.mubr.f32.mxu0 0.0
        %2809 = vmatmul.mubr.f32.gmra.mrb[0].mxu0 %v2665
        %v2810 = vpop.f32.mrb[0].mxu0
        %v2811 = vadd.f32 0.0, %v2810
        %v2812 = vpop.f32.mrb[0].mxu0
        %2813 = vdwg.mxu0
        %v2814 = vadd.f32 %v2639, %v2740
        %v2815 = vadd.f32 %v2640, %v2742
        %v2816 = vadd.f32 %v2641, %v2811
        %v2817 = vsub.f32 0.0, %v2642
        %v2818 = vsub.f32 0.0, %v2643
        %v2819 = vmax.f32 %v2817, 0.0
        %v2820 = vmax.f32 %v2818, 0.0
        %2821 = vrot.lane.b32.xlu0 %v2645, 124
        %v2822 = vpop.permute.xlu0 %2821
        %v2825 = vcombine.high %v2819, %v2819
        %v2826 = vcombine.high %v2820, %v2820
        %2827 = vrot.lane.b32.xlu0 %v2819, 110
        %v2828 = vpop.permute.xlu0 %2827
        %2829 = vrot.lane.b32.xlu0 %v2825, 110
        %v2830 = vpop.permute.xlu0 %2829
        %2831 = vrot.lane.b32.xlu0 %v2820, 110
        %v2832 = vpop.permute.xlu0 %2831
        %2833 = vrot.lane.b32.xlu0 %v2826, 110
        %v2834 = vpop.permute.xlu0 %2833
        %v2835 = vsel %vm2660, %v2828, %v2830
        %v2836 = vsel %vm2660, %v2830, %v2832
        %v2837 = vsel %vm2660, %v2832, %v2834
        %v2838 = vsel %vm264, %v2822, 0
        %v2840 = vsel %vm267, %v2835, 0
        %v2842 = vsel %vm267, %v2836, 0
        %v2844 = vsel %vm267, %v2837, 0
        %2846 = vmatprep.subr.mxu0 %v2842
        %2847 = vmatpush1.msra.mxu0 %v2840
        %2848 = vmatprep.subr.mxu0 0.0
        %2849 = vmatpush1.msra.mxu0 0.0
        %2850 = vmatprep.subr.mxu0 0.0
        %2851 = vmatpush1.msra.mxu0 0.0
        %2852 = vmatprep.subr.mxu0 0.0
        %2853 = vmatpush1.msra.mxu0 0.0
        %2854 = vmatprep.subr.mxu0 0.0
        %2855 = vmatpush1.msra.mxu0 0.0
        %2856 = vmatprep.subr.mxu0 0.0
        %2857 = vmatpush1.msra.mxu0 0.0
        %2858 = vmatprep.subr.mxu0 0.0
        %2859 = vmatpush1.msra.mxu0 0.0
        %2860 = vmatprep.subr.mxu0 0.0
        %2861 = vmatpush1.msra.mxu0 0.0
        %2862 = vmatprep.subr.mxu0 0.0
        %2863 = vmatpush1.msra.mxu0 0.0
        %2864 = vmatprep.subr.mxu0 0.0
        %2865 = vmatpush1.msra.mxu0 0.0
        %2866 = vmatprep.subr.mxu0 0.0
        %2867 = vmatpush1.msra.mxu0 0.0
        %2868 = vmatprep.subr.mxu0 0.0
        %2869 = vmatpush1.msra.mxu0 0.0
        %2870 = vmatprep.subr.mxu0 0.0
        %2871 = vmatpush1.msra.mxu0 0.0
        %2872 = vmatprep.subr.mxu0 0.0
        %2873 = vmatpush1.msra.mxu0 0.0
        %2874 = vmatprep.subr.mxu0 0.0
        %2875 = vmatpush1.msra.mxu0 0.0
        %2876 = vmatprep.subr.mxu0 0.0
        %2877 = vmatpush1.msra.mxu0 0.0
        %2878 = vmatprep.subr.mxu0 0.0
        %2879 = vmatpush1.msra.mxu0 0.0
        %2880 = vmatprep.subr.mxu0 0.0
        %2881 = vmatpush1.msra.mxu0 0.0
        %2882 = vmatprep.subr.mxu0 0.0
        %2883 = vmatpush1.msra.mxu0 0.0
        %2884 = vmatprep.subr.mxu0 0.0
        %2885 = vmatpush1.msra.mxu0 0.0
        %2886 = vmatprep.subr.mxu0 0.0
        %2887 = vmatpush1.msra.mxu0 0.0
        %2888 = vmatprep.subr.mxu0 0.0
        %2889 = vmatpush1.msra.mxu0 0.0
        %2890 = vmatprep.subr.mxu0 0.0
        %2891 = vmatpush1.msra.mxu0 0.0
        %2892 = vmatprep.subr.mxu0 0.0
        %2893 = vmatpush1.msra.mxu0 0.0
        %2894 = vmatprep.subr.mxu0 0.0
        %2895 = vmatpush1.msra.mxu0 0.0
        %2896 = vmatprep.subr.mxu0 0.0
        %2897 = vmatpush1.msra.mxu0 0.0
        %2898 = vmatprep.subr.mxu0 0.0
        %2899 = vmatpush1.msra.mxu0 0.0
        %2900 = vmatprep.subr.mxu0 0.0
        %2901 = vmatpush1.msra.mxu0 0.0
        %2902 = vmatprep.subr.mxu0 0.0
        %2903 = vmatpush1.msra.mxu0 0.0
        %2904 = vmatprep.subr.mxu0 0.0
        %2905 = vmatpush1.msra.mxu0 0.0
        %2906 = vmatprep.subr.mxu0 0.0
        %2907 = vmatpush1.msra.mxu0 0.0
        %2908 = vmatprep.subr.mxu0 0.0
        %2909 = vmatpush1.msra.mxu0 0.0
        %2910 = vmatprep.mubr.f32.mxu0 0.0
        %2911 = vmatmul.mubr.f32.gmra.mrb[0].mxu0 %v2838
        %v2912 = vpop.f32.mrb[0].mxu0
        %v2913 = vadd.f32 0.0, %v2912
        %v2914 = vpop.f32.mrb[0].mxu0
        %v2915 = vadd.f32 0.0, %v2914
        %2916 = vdwg.mxu0
        %2917 = vmatprep.subr.mxu0 0.0
        %2918 = vmatpush1.msra.mxu0 %v2844
        %2919 = vmatprep.subr.mxu0 0.0
        %2920 = vmatpush1.msra.mxu0 0.0
        %2921 = vmatprep.subr.mxu0 0.0
        %2922 = vmatpush1.msra.mxu0 0.0
        %2923 = vmatprep.subr.mxu0 0.0
        %2924 = vmatpush1.msra.mxu0 0.0
        %2925 = vmatprep.subr.mxu0 0.0
        %2926 = vmatpush1.msra.mxu0 0.0
        %2927 = vmatprep.subr.mxu0 0.0
        %2928 = vmatpush1.msra.mxu0 0.0
        %2929 = vmatprep.subr.mxu0 0.0
        %2930 = vmatpush1.msra.mxu0 0.0
        %2931 = vmatprep.subr.mxu0 0.0
        %2932 = vmatpush1.msra.mxu0 0.0
        %2933 = vmatprep.subr.mxu0 0.0
        %2934 = vmatpush1.msra.mxu0 0.0
        %2935 = vmatprep.subr.mxu0 0.0
        %2936 = vmatpush1.msra.mxu0 0.0
        %2937 = vmatprep.subr.mxu0 0.0
        %2938 = vmatpush1.msra.mxu0 0.0
        %2939 = vmatprep.subr.mxu0 0.0
        %2940 = vmatpush1.msra.mxu0 0.0
        %2941 = vmatprep.subr.mxu0 0.0
        %2942 = vmatpush1.msra.mxu0 0.0
        %2943 = vmatprep.subr.mxu0 0.0
        %2944 = vmatpush1.msra.mxu0 0.0
        %2945 = vmatprep.subr.mxu0 0.0
        %2946 = vmatpush1.msra.mxu0 0.0
        %2947 = vmatprep.subr.mxu0 0.0
        %2948 = vmatpush1.msra.mxu0 0.0
        %2949 = vmatprep.subr.mxu0 0.0
        %2950 = vmatpush1.msra.mxu0 0.0
        %2951 = vmatprep.subr.mxu0 0.0
        %2952 = vmatpush1.msra.mxu0 0.0
        %2953 = vmatprep.subr.mxu0 0.0
        %2954 = vmatpush1.msra.mxu0 0.0
        %2955 = vmatprep.subr.mxu0 0.0
        %2956 = vmatpush1.msra.mxu0 0.0
        %2957 = vmatprep.subr.mxu0 0.0
        %2958 = vmatpush1.msra.mxu0 0.0
        %2959 = vmatprep.subr.mxu0 0.0
        %2960 = vmatpush1.msra.mxu0 0.0
        %2961 = vmatprep.subr.mxu0 0.0
        %2962 = vmatpush1.msra.mxu0 0.0
        %2963 = vmatprep.subr.mxu0 0.0
        %2964 = vmatpush1.msra.mxu0 0.0
        %2965 = vmatprep.subr.mxu0 0.0
        %2966 = vmatpush1.msra.mxu0 0.0
        %2967 = vmatprep.subr.mxu0 0.0
        %2968 = vmatpush1.msra.mxu0 0.0
        %2969 = vmatprep.subr.mxu0 0.0
        %2970 = vmatpush1.msra.mxu0 0.0
        %2971 = vmatprep.subr.mxu0 0.0
        %2972 = vmatpush1.msra.mxu0 0.0
        %2973 = vmatprep.subr.mxu0 0.0
        %2974 = vmatpush1.msra.mxu0 0.0
        %2975 = vmatprep.subr.mxu0 0.0
        %2976 = vmatpush1.msra.mxu0 0.0
        %2977 = vmatprep.subr.mxu0 0.0
        %2978 = vmatpush1.msra.mxu0 0.0
        %2979 = vmatprep.subr.mxu0 0.0
        %2980 = vmatpush1.msra.mxu0 0.0
        %2981 = vmatprep.mubr.f32.mxu0 0.0
        %2982 = vmatmul.mubr.f32.gmra.mrb[0].mxu0 %v2838
        %v2983 = vpop.f32.mrb[0].mxu0
        %v2984 = vadd.f32 0.0, %v2983
        %v2985 = vpop.f32.mrb[0].mxu0
        %2986 = vdwg.mxu0
        %v2987 = vadd.f32 %v2814, %v2913
        %v2988 = vadd.f32 %v2815, %v2915
        %v2989 = vadd.f32 %v2816, %v2984
        %v2990 = vld [vmem:[%s224 + $0x4] sm:$0xff]
        %v2991 = vld [vmem:[%s224 + $0xc] sm:$0xff]
        %s2992 = scalar_lea.vmem %s2, 32
        %v2993 = vld [vmem:[%s2992] sm:$0xf]
        %v2994 = vmax.f32 %v2990, 0.0
        %v2995 = vmax.f32 %v2991, 0.0
        %v2998 = vcombine.high %v2994, %v2994
        %v2999 = vcombine.high %v2995, %v2995
        %3000 = vrot.lane.b32.xlu0 %v2994, 109
        %v3001 = vpop.permute.xlu0 %3000
        %3002 = vrot.lane.b32.xlu0 %v2998, 109
        %v3003 = vpop.permute.xlu0 %3002
        %3004 = vrot.lane.b32.xlu0 %v2995, 109
        %v3005 = vpop.permute.xlu0 %3004
        %3006 = vrot.lane.b32.xlu0 %v2999, 109
        %v3007 = vpop.permute.xlu0 %3006
        %vm3008 = vcmask 891904
        %v3009 = vsel %vm3008, %v3001, %v3003
        %v3010 = vsel %vm3008, %v3003, %v3005
        %v3011 = vsel %vm3008, %v3005, %v3007
        %v3013 = vsel %vm264, %v2993, 0
        %v3015 = vsel %vm267, %v3009, 0
        %v3017 = vsel %vm267, %v3010, 0
        %v3019 = vsel %vm267, %v3011, 0
        %3021 = vmatprep.subr.mxu0 %v3017
        %3022 = vmatpush1.msra.mxu0 %v3015
        %3023 = vmatprep.subr.mxu0 0.0
        %3024 = vmatpush1.msra.mxu0 0.0
        %3025 = vmatprep.subr.mxu0 0.0
        %3026 = vmatpush1.msra.mxu0 0.0
        %3027 = vmatprep.subr.mxu0 0.0
        %3028 = vmatpush1.msra.mxu0 0.0
        %3029 = vmatprep.subr.mxu0 0.0
        %3030 = vmatpush1.msra.mxu0 0.0
        %3031 = vmatprep.subr.mxu0 0.0
        %3032 = vmatpush1.msra.mxu0 0.0
        %3033 = vmatprep.subr.mxu0 0.0
        %3034 = vmatpush1.msra.mxu0 0.0
        %3035 = vmatprep.subr.mxu0 0.0
        %3036 = vmatpush1.msra.mxu0 0.0
        %3037 = vmatprep.subr.mxu0 0.0
        %3038 = vmatpush1.msra.mxu0 0.0
        %3039 = vmatprep.subr.mxu0 0.0
        %3040 = vmatpush1.msra.mxu0 0.0
        %3041 = vmatprep.subr.mxu0 0.0
        %3042 = vmatpush1.msra.mxu0 0.0
        %3043 = vmatprep.subr.mxu0 0.0
        %3044 = vmatpush1.msra.mxu0 0.0
        %3045 = vmatprep.subr.mxu0 0.0
        %3046 = vmatpush1.msra.mxu0 0.0
        %3047 = vmatprep.subr.mxu0 0.0
        %3048 = vmatpush1.msra.mxu0 0.0
        %3049 = vmatprep.subr.mxu0 0.0
        %3050 = vmatpush1.msra.mxu0 0.0
        %3051 = vmatprep.subr.mxu0 0.0
        %3052 = vmatpush1.msra.mxu0 0.0
        %3053 = vmatprep.subr.mxu0 0.0
        %3054 = vmatpush1.msra.mxu0 0.0
        %3055 = vmatprep.subr.mxu0 0.0
        %3056 = vmatpush1.msra.mxu0 0.0
        %3057 = vmatprep.subr.mxu0 0.0
        %3058 = vmatpush1.msra.mxu0 0.0
        %3059 = vmatprep.subr.mxu0 0.0
        %3060 = vmatpush1.msra.mxu0 0.0
        %3061 = vmatprep.subr.mxu0 0.0
        %3062 = vmatpush1.msra.mxu0 0.0
        %3063 = vmatprep.subr.mxu0 0.0
        %3064 = vmatpush1.msra.mxu0 0.0
        %3065 = vmatprep.subr.mxu0 0.0
        %3066 = vmatpush1.msra.mxu0 0.0
        %3067 = vmatprep.subr.mxu0 0.0
        %3068 = vmatpush1.msra.mxu0 0.0
        %3069 = vmatprep.subr.mxu0 0.0
        %3070 = vmatpush1.msra.mxu0 0.0
        %3071 = vmatprep.subr.mxu0 0.0
        %3072 = vmatpush1.msra.mxu0 0.0
        %3073 = vmatprep.subr.mxu0 0.0
        %3074 = vmatpush1.msra.mxu0 0.0
        %3075 = vmatprep.subr.mxu0 0.0
        %3076 = vmatpush1.msra.mxu0 0.0
        %3077 = vmatprep.subr.mxu0 0.0
        %3078 = vmatpush1.msra.mxu0 0.0
        %3079 = vmatprep.subr.mxu0 0.0
        %3080 = vmatpush1.msra.mxu0 0.0
        %3081 = vmatprep.subr.mxu0 0.0
        %3082 = vmatpush1.msra.mxu0 0.0
        %3083 = vmatprep.subr.mxu0 0.0
        %3084 = vmatpush1.msra.mxu0 0.0
        %3085 = vmatprep.mubr.f32.mxu0 0.0
        %3086 = vmatmul.mubr.f32.gmra.mrb[0].mxu0 %v3013
        %v3087 = vpop.f32.mrb[0].mxu0
        %v3088 = vadd.f32 0.0, %v3087
        %v3089 = vpop.f32.mrb[0].mxu0
        %v3090 = vadd.f32 0.0, %v3089
        %3091 = vdwg.mxu0
        %3092 = vmatprep.subr.mxu0 0.0
        %3093 = vmatpush1.msra.mxu0 %v3019
        %3094 = vmatprep.subr.mxu0 0.0
        %3095 = vmatpush1.msra.mxu0 0.0
        %3096 = vmatprep.subr.mxu0 0.0
        %3097 = vmatpush1.msra.mxu0 0.0
        %3098 = vmatprep.subr.mxu0 0.0
        %3099 = vmatpush1.msra.mxu0 0.0
        %3100 = vmatprep.subr.mxu0 0.0
        %3101 = vmatpush1.msra.mxu0 0.0
        %3102 = vmatprep.subr.mxu0 0.0
        %3103 = vmatpush1.msra.mxu0 0.0
        %3104 = vmatprep.subr.mxu0 0.0
        %3105 = vmatpush1.msra.mxu0 0.0
        %3106 = vmatprep.subr.mxu0 0.0
        %3107 = vmatpush1.msra.mxu0 0.0
        %3108 = vmatprep.subr.mxu0 0.0
        %3109 = vmatpush1.msra.mxu0 0.0
        %3110 = vmatprep.subr.mxu0 0.0
        %3111 = vmatpush1.msra.mxu0 0.0
        %3112 = vmatprep.subr.mxu0 0.0
        %3113 = vmatpush1.msra.mxu0 0.0
        %3114 = vmatprep.subr.mxu0 0.0
        %3115 = vmatpush1.msra.mxu0 0.0
        %3116 = vmatprep.subr.mxu0 0.0
        %3117 = vmatpush1.msra.mxu0 0.0
        %3118 = vmatprep.subr.mxu0 0.0
        %3119 = vmatpush1.msra.mxu0 0.0
        %3120 = vmatprep.subr.mxu0 0.0
        %3121 = vmatpush1.msra.mxu0 0.0
        %3122 = vmatprep.subr.mxu0 0.0
        %3123 = vmatpush1.msra.mxu0 0.0
        %3124 = vmatprep.subr.mxu0 0.0
        %3125 = vmatpush1.msra.mxu0 0.0
        %3126 = vmatprep.subr.mxu0 0.0
        %3127 = vmatpush1.msra.mxu0 0.0
        %3128 = vmatprep.subr.mxu0 0.0
        %3129 = vmatpush1.msra.mxu0 0.0
        %3130 = vmatprep.subr.mxu0 0.0
        %3131 = vmatpush1.msra.mxu0 0.0
        %3132 = vmatprep.subr.mxu0 0.0
        %3133 = vmatpush1.msra.mxu0 0.0
        %3134 = vmatprep.subr.mxu0 0.0
        %3135 = vmatpush1.msra.mxu0 0.0
        %3136 = vmatprep.subr.mxu0 0.0
        %3137 = vmatpush1.msra.mxu0 0.0
        %3138 = vmatprep.subr.mxu0 0.0
        %3139 = vmatpush1.msra.mxu0 0.0
        %3140 = vmatprep.subr.mxu0 0.0
        %3141 = vmatpush1.msra.mxu0 0.0
        %3142 = vmatprep.subr.mxu0 0.0
        %3143 = vmatpush1.msra.mxu0 0.0
        %3144 = vmatprep.subr.mxu0 0.0
        %3145 = vmatpush1.msra.mxu0 0.0
        %3146 = vmatprep.subr.mxu0 0.0
        %3147 = vmatpush1.msra.mxu0 0.0
        %3148 = vmatprep.subr.mxu0 0.0
        %3149 = vmatpush1.msra.mxu0 0.0
        %3150 = vmatprep.subr.mxu0 0.0
        %3151 = vmatpush1.msra.mxu0 0.0
        %3152 = vmatprep.subr.mxu0 0.0
        %3153 = vmatpush1.msra.mxu0 0.0
        %3154 = vmatprep.subr.mxu0 0.0
        %3155 = vmatpush1.msra.mxu0 0.0
        %3156 = vmatprep.mubr.f32.mxu0 0.0
        %3157 = vmatmul.mubr.f32.gmra.mrb[0].mxu0 %v3013
        %v3158 = vpop.f32.mrb[0].mxu0
        %v3159 = vadd.f32 0.0, %v3158
        %v3160 = vpop.f32.mrb[0].mxu0
        %3161 = vdwg.mxu0
        %v3162 = vadd.f32 %v2987, %v3088
        %v3163 = vadd.f32 %v2988, %v3090
        %v3164 = vadd.f32 %v2989, %v3159
        %v3165 = vsub.f32 0.0, %v2990
        %v3166 = vsub.f32 0.0, %v2991
        %v3167 = vmax.f32 %v3165, 0.0
        %v3168 = vmax.f32 %v3166, 0.0
        %3169 = vrot.lane.b32.xlu0 %v2993, 124
        %v3170 = vpop.permute.xlu0 %3169
        %v3173 = vcombine.high %v3167, %v3167
        %v3174 = vcombine.high %v3168, %v3168
        %3175 = vrot.lane.b32.xlu0 %v3167, 109
        %v3176 = vpop.permute.xlu0 %3175
        %3177 = vrot.lane.b32.xlu0 %v3173, 109
        %v3178 = vpop.permute.xlu0 %3177
        %3179 = vrot.lane.b32.xlu0 %v3168, 109
        %v3180 = vpop.permute.xlu0 %3179
        %3181 = vrot.lane.b32.xlu0 %v3174, 109
        %v3182 = vpop.permute.xlu0 %3181
        %v3183 = vsel %vm3008, %v3176, %v3178
        %v3184 = vsel %vm3008, %v3178, %v3180
        %v3185 = vsel %vm3008, %v3180, %v3182
        %v3186 = vsel %vm264, %v3170, 0
        %v3188 = vsel %vm267, %v3183, 0
        %v3190 = vsel %vm267, %v3184, 0
        %v3192 = vsel %vm267, %v3185, 0
        %3194 = vmatprep.subr.mxu0 %v3190
        %3195 = vmatpush1.msra.mxu0 %v3188
        %3196 = vmatprep.subr.mxu0 0.0
        %3197 = vmatpush1.msra.mxu0 0.0
        %3198 = vmatprep.subr.mxu0 0.0
        %3199 = vmatpush1.msra.mxu0 0.0
        %3200 = vmatprep.subr.mxu0 0.0
        %3201 = vmatpush1.msra.mxu0 0.0
        %3202 = vmatprep.subr.mxu0 0.0
        %3203 = vmatpush1.msra.mxu0 0.0
        %3204 = vmatprep.subr.mxu0 0.0
        %3205 = vmatpush1.msra.mxu0 0.0
        %3206 = vmatprep.subr.mxu0 0.0
        %3207 = vmatpush1.msra.mxu0 0.0
        %3208 = vmatprep.subr.mxu0 0.0
        %3209 = vmatpush1.msra.mxu0 0.0
        %3210 = vmatprep.subr.mxu0 0.0
        %3211 = vmatpush1.msra.mxu0 0.0
        %3212 = vmatprep.subr.mxu0 0.0
        %3213 = vmatpush1.msra.mxu0 0.0
        %3214 = vmatprep.subr.mxu0 0.0
        %3215 = vmatpush1.msra.mxu0 0.0
        %3216 = vmatprep.subr.mxu0 0.0
        %3217 = vmatpush1.msra.mxu0 0.0
        %3218 = vmatprep.subr.mxu0 0.0
        %3219 = vmatpush1.msra.mxu0 0.0
        %3220 = vmatprep.subr.mxu0 0.0
        %3221 = vmatpush1.msra.mxu0 0.0
        %3222 = vmatprep.subr.mxu0 0.0
        %3223 = vmatpush1.msra.mxu0 0.0
        %3224 = vmatprep.subr.mxu0 0.0
        %3225 = vmatpush1.msra.mxu0 0.0
        %3226 = vmatprep.subr.mxu0 0.0
        %3227 = vmatpush1.msra.mxu0 0.0
        %3228 = vmatprep.subr.mxu0 0.0
        %3229 = vmatpush1.msra.mxu0 0.0
        %3230 = vmatprep.subr.mxu0 0.0
        %3231 = vmatpush1.msra.mxu0 0.0
        %3232 = vmatprep.subr.mxu0 0.0
        %3233 = vmatpush1.msra.mxu0 0.0
        %3234 = vmatprep.subr.mxu0 0.0
        %3235 = vmatpush1.msra.mxu0 0.0
        %3236 = vmatprep.subr.mxu0 0.0
        %3237 = vmatpush1.msra.mxu0 0.0
        %3238 = vmatprep.subr.mxu0 0.0
        %3239 = vmatpush1.msra.mxu0 0.0
        %3240 = vmatprep.subr.mxu0 0.0
        %3241 = vmatpush1.msra.mxu0 0.0
        %3242 = vmatprep.subr.mxu0 0.0
        %3243 = vmatpush1.msra.mxu0 0.0
        %3244 = vmatprep.subr.mxu0 0.0
        %3245 = vmatpush1.msra.mxu0 0.0
        %3246 = vmatprep.subr.mxu0 0.0
        %3247 = vmatpush1.msra.mxu0 0.0
        %3248 = vmatprep.subr.mxu0 0.0
        %3249 = vmatpush1.msra.mxu0 0.0
        %3250 = vmatprep.subr.mxu0 0.0
        %3251 = vmatpush1.msra.mxu0 0.0
        %3252 = vmatprep.subr.mxu0 0.0
        %3253 = vmatpush1.msra.mxu0 0.0
        %3254 = vmatprep.subr.mxu0 0.0
        %3255 = vmatpush1.msra.mxu0 0.0
        %3256 = vmatprep.subr.mxu0 0.0
        %3257 = vmatpush1.msra.mxu0 0.0
        %3258 = vmatprep.mubr.f32.mxu0 0.0
        %3259 = vmatmul.mubr.f32.gmra.mrb[0].mxu0 %v3186
        %v3260 = vpop.f32.mrb[0].mxu0
        %v3261 = vadd.f32 0.0, %v3260
        %v3262 = vpop.f32.mrb[0].mxu0
        %v3263 = vadd.f32 0.0, %v3262
        %3264 = vdwg.mxu0
        %3265 = vmatprep.subr.mxu0 0.0
        %3266 = vmatpush1.msra.mxu0 %v3192
        %3267 = vmatprep.subr.mxu0 0.0
        %3268 = vmatpush1.msra.mxu0 0.0
        %3269 = vmatprep.subr.mxu0 0.0
        %3270 = vmatpush1.msra.mxu0 0.0
        %3271 = vmatprep.subr.mxu0 0.0
        %3272 = vmatpush1.msra.mxu0 0.0
        %3273 = vmatprep.subr.mxu0 0.0
        %3274 = vmatpush1.msra.mxu0 0.0
        %3275 = vmatprep.subr.mxu0 0.0
        %3276 = vmatpush1.msra.mxu0 0.0
        %3277 = vmatprep.subr.mxu0 0.0
        %3278 = vmatpush1.msra.mxu0 0.0
        %3279 = vmatprep.subr.mxu0 0.0
        %3280 = vmatpush1.msra.mxu0 0.0
        %3281 = vmatprep.subr.mxu0 0.0
        %3282 = vmatpush1.msra.mxu0 0.0
        %3283 = vmatprep.subr.mxu0 0.0
        %3284 = vmatpush1.msra.mxu0 0.0
        %3285 = vmatprep.subr.mxu0 0.0
        %3286 = vmatpush1.msra.mxu0 0.0
        %3287 = vmatprep.subr.mxu0 0.0
        %3288 = vmatpush1.msra.mxu0 0.0
        %3289 = vmatprep.subr.mxu0 0.0
        %3290 = vmatpush1.msra.mxu0 0.0
        %3291 = vmatprep.subr.mxu0 0.0
        %3292 = vmatpush1.msra.mxu0 0.0
        %3293 = vmatprep.subr.mxu0 0.0
        %3294 = vmatpush1.msra.mxu0 0.0
        %3295 = vmatprep.subr.mxu0 0.0
        %3296 = vmatpush1.msra.mxu0 0.0
        %3297 = vmatprep.subr.mxu0 0.0
        %3298 = vmatpush1.msra.mxu0 0.0
        %3299 = vmatprep.subr.mxu0 0.0
        %3300 = vmatpush1.msra.mxu0 0.0
        %3301 = vmatprep.subr.mxu0 0.0
        %3302 = vmatpush1.msra.mxu0 0.0
        %3303 = vmatprep.subr.mxu0 0.0
        %3304 = vmatpush1.msra.mxu0 0.0
        %3305 = vmatprep.subr.mxu0 0.0
        %3306 = vmatpush1.msra.mxu0 0.0
        %3307 = vmatprep.subr.mxu0 0.0
        %3308 = vmatpush1.msra.mxu0 0.0
        %3309 = vmatprep.subr.mxu0 0.0
        %3310 = vmatpush1.msra.mxu0 0.0
        %3311 = vmatprep.subr.mxu0 0.0
        %3312 = vmatpush1.msra.mxu0 0.0
        %3313 = vmatprep.subr.mxu0 0.0
        %3314 = vmatpush1.msra.mxu0 0.0
        %3315 = vmatprep.subr.mxu0 0.0
        %3316 = vmatpush1.msra.mxu0 0.0
        %3317 = vmatprep.subr.mxu0 0.0
        %3318 = vmatpush1.msra.mxu0 0.0
        %3319 = vmatprep.subr.mxu0 0.0
        %3320 = vmatpush1.msra.mxu0 0.0
        %3321 = vmatprep.subr.mxu0 0.0
        %3322 = vmatpush1.msra.mxu0 0.0
        %3323 = vmatprep.subr.mxu0 0.0
        %3324 = vmatpush1.msra.mxu0 0.0
        %3325 = vmatprep.subr.mxu0 0.0
        %3326 = vmatpush1.msra.mxu0 0.0
        %3327 = vmatprep.subr.mxu0 0.0
        %3328 = vmatpush1.msra.mxu0 0.0
        %3329 = vmatprep.mubr.f32.mxu0 0.0
        %3330 = vmatmul.mubr.f32.gmra.mrb[0].mxu0 %v3186
        %v3331 = vpop.f32.mrb[0].mxu0
        %v3332 = vadd.f32 0.0, %v3331
        %v3333 = vpop.f32.mrb[0].mxu0
        %3334 = vdwg.mxu0
        %v3335 = vadd.f32 %v3162, %v3261
        %v3336 = vadd.f32 %v3163, %v3263
        %v3337 = vadd.f32 %v3164, %v3332
        %3338 = vst [vmem:[#allocation2] sm:$0xff] 0.0
        %3339 = vst [vmem:[#allocation2 + $0x8] sm:$0xff] 0.0
        %3340 = vst [vmem:[#allocation2 + $0x10] sm:$0xf] 0.0
        %3341 = vst [vmem:[#allocation3] sm:$0xff] 0.0
        %3342 = vst [vmem:[#allocation3 + $0x8] sm:$0xff] 0.0
        %3343 = vst [vmem:[#allocation3 + $0x10] sm:$0xf] 0.0
        %v3344 = vmax.f32 %v3335, 0.0
        %v3345 = vmax.f32 %v3336, 0.0
        %v3346 = vmax.f32 %v3337, 0.0
        %v3348 = vlaneseq
        %v3349 = vshrl.u32 %v3348, 7
        %v3350 = vsub.s32 0, %v3349
        %v3351 = vrot.slane %v235, %v3350
        %v3352 = vlaneseq
        %v3353 = vshrl.u32 %v3352, 7
        %v3354 = vsub.s32 1, %v3353
        %v3355 = vrot.slane %v235, %v3354
        %v3356 = vlaneseq
        %v3357 = vshrl.u32 %v3356, 7
        %v3358 = vsub.s32 2, %v3357
        %v3359 = vrot.slane %v235, %v3358
        %v3363 = vmul.f32 %v3344, %v3351
        %v3364 = vmul.f32 %v3345, %v3355
        %v3365 = vmul.f32 %v3346, %v3359
        %v3368 = vcombine.low %v3363, %v3364
        %3370 = vst [vmem:[#allocation2 + $0x4] sm:$0xff] %v3368
        %3371 = vst [vmem:[#allocation2 + $0xc] sm:$0xf] %v3365
        %v3372 = vsub.f32 0.0, %v3335
        %v3373 = vsub.f32 0.0, %v3336
        %v3374 = vsub.f32 0.0, %v3337
        %v3375 = vmax.f32 %v3372, 0.0
        %v3376 = vmax.f32 %v3373, 0.0
        %v3377 = vmax.f32 %v3374, 0.0
        %v3378 = vmul.f32 %v3375, %v3351
        %v3379 = vmul.f32 %v3376, %v3355
        %v3380 = vmul.f32 %v3377, %v3359
        %v3383 = vcombine.low %v3378, %v3379
        %3385 = vst [vmem:[#allocation3 + $0x4] sm:$0xff] %v3383
        %3386 = vst [vmem:[#allocation3 + $0xc] sm:$0xf] %v3380
        %v3387 = vld [vmem:[#allocation2] sm:$0xff]
        %v3388 = vld [vmem:[#allocation2 + $0x8] sm:$0xff]
        %v3389 = vld [vmem:[#allocation3] sm:$0xff]
        %v3390 = vld [vmem:[#allocation3 + $0x8] sm:$0xff]
        %v3391 = vld [vmem:[%s3] sm:$0xf]
        %3393 = vrot.lane.b32.xlu0 %v3391, 124
        %v3394 = vpop.permute.xlu0 %3393
        %v3397 = vcombine.high %v3389, %v3389
        %v3398 = vcombine.high %v3390, %v3390
        %3399 = vrot.lane.b32.xlu0 %v3389, 19
        %v3400 = vpop.permute.xlu0 %3399
        %3401 = vrot.lane.b32.xlu0 %v3397, 19
        %v3402 = vpop.permute.xlu0 %3401
        %3403 = vrot.lane.b32.xlu0 %v3390, 19
        %v3404 = vpop.permute.xlu0 %3403
        %3405 = vrot.lane.b32.xlu0 %v3398, 19
        %v3406 = vpop.permute.xlu0 %3405
        %v3407 = vsel %vm260, %v3400, %v3402
        %v3408 = vsel %vm260, %v3402, %v3404
        %v3409 = vsel %vm260, %v3404, %v3406
        %v3410 = vsel %vm264, %v3394, 0
        %v3412 = vsel %vm267, %v3407, 0
        %v3414 = vsel %vm267, %v3408, 0
        %v3416 = vsel %vm267, %v3409, 0
        %3418 = vmatprep.subr.mxu0 %v3414
        %3419 = vmatpush1.msra.mxu0 %v3412
        %3420 = vmatprep.subr.mxu0 0.0
        %3421 = vmatpush1.msra.mxu0 0.0
        %3422 = vmatprep.subr.mxu0 0.0
        %3423 = vmatpush1.msra.mxu0 0.0
        %3424 = vmatprep.subr.mxu0 0.0
        %3425 = vmatpush1.msra.mxu0 0.0
        %3426 = vmatprep.subr.mxu0 0.0
        %3427 = vmatpush1.msra.mxu0 0.0
        %3428 = vmatprep.subr.mxu0 0.0
        %3429 = vmatpush1.msra.mxu0 0.0
        %3430 = vmatprep.subr.mxu0 0.0
        %3431 = vmatpush1.msra.mxu0 0.0
        %3432 = vmatprep.subr.mxu0 0.0
        %3433 = vmatpush1.msra.mxu0 0.0
        %3434 = vmatprep.subr.mxu0 0.0
        %3435 = vmatpush1.msra.mxu0 0.0
        %3436 = vmatprep.subr.mxu0 0.0
        %3437 = vmatpush1.msra.mxu0 0.0
        %3438 = vmatprep.subr.mxu0 0.0
        %3439 = vmatpush1.msra.mxu0 0.0
        %3440 = vmatprep.subr.mxu0 0.0
        %3441 = vmatpush1.msra.mxu0 0.0
        %3442 = vmatprep.subr.mxu0 0.0
        %3443 = vmatpush1.msra.mxu0 0.0
        %3444 = vmatprep.subr.mxu0 0.0
        %3445 = vmatpush1.msra.mxu0 0.0
        %3446 = vmatprep.subr.mxu0 0.0
        %3447 = vmatpush1.msra.mxu0 0.0
        %3448 = vmatprep.subr.mxu0 0.0
        %3449 = vmatpush1.msra.mxu0 0.0
        %3450 = vmatprep.subr.mxu0 0.0
        %3451 = vmatpush1.msra.mxu0 0.0
        %3452 = vmatprep.subr.mxu0 0.0
        %3453 = vmatpush1.msra.mxu0 0.0
        %3454 = vmatprep.subr.mxu0 0.0
        %3455 = vmatpush1.msra.mxu0 0.0
        %3456 = vmatprep.subr.mxu0 0.0
        %3457 = vmatpush1.msra.mxu0 0.0
        %3458 = vmatprep.subr.mxu0 0.0
        %3459 = vmatpush1.msra.mxu0 0.0
        %3460 = vmatprep.subr.mxu0 0.0
        %3461 = vmatpush1.msra.mxu0 0.0
        %3462 = vmatprep.subr.mxu0 0.0
        %3463 = vmatpush1.msra.mxu0 0.0
        %3464 = vmatprep.subr.mxu0 0.0
        %3465 = vmatpush1.msra.mxu0 0.0
        %3466 = vmatprep.subr.mxu0 0.0
        %3467 = vmatpush1.msra.mxu0 0.0
        %3468 = vmatprep.subr.mxu0 0.0
        %3469 = vmatpush1.msra.mxu0 0.0
        %3470 = vmatprep.subr.mxu0 0.0
        %3471 = vmatpush1.msra.mxu0 0.0
        %3472 = vmatprep.subr.mxu0 0.0
        %3473 = vmatpush1.msra.mxu0 0.0
        %3474 = vmatprep.subr.mxu0 0.0
        %3475 = vmatpush1.msra.mxu0 0.0
        %3476 = vmatprep.subr.mxu0 0.0
        %3477 = vmatpush1.msra.mxu0 0.0
        %3478 = vmatprep.subr.mxu0 0.0
        %3479 = vmatpush1.msra.mxu0 0.0
        %3480 = vmatprep.subr.mxu0 0.0
        %3481 = vmatpush1.msra.mxu0 0.0
        %3482 = vmatprep.mubr.f32.mxu0 0.0
        %3483 = vmatmul.mubr.f32.gmra.mrb[0].mxu0 %v3410
        %v3484 = vpop.f32.mrb[0].mxu0
        %v3485 = vadd.f32 0.0, %v3484
        %v3486 = vpop.f32.mrb[0].mxu0
        %v3487 = vadd.f32 0.0, %v3486
        %3488 = vdwg.mxu0
        %3489 = vmatprep.subr.mxu0 0.0
        %3490 = vmatpush1.msra.mxu0 %v3416
        %3491 = vmatprep.subr.mxu0 0.0
        %3492 = vmatpush1.msra.mxu0 0.0
        %3493 = vmatprep.subr.mxu0 0.0
        %3494 = vmatpush1.msra.mxu0 0.0
        %3495 = vmatprep.subr.mxu0 0.0
        %3496 = vmatpush1.msra.mxu0 0.0
        %3497 = vmatprep.subr.mxu0 0.0
        %3498 = vmatpush1.msra.mxu0 0.0
        %3499 = vmatprep.subr.mxu0 0.0
        %3500 = vmatpush1.msra.mxu0 0.0
        %3501 = vmatprep.subr.mxu0 0.0
        %3502 = vmatpush1.msra.mxu0 0.0
        %3503 = vmatprep.subr.mxu0 0.0
        %3504 = vmatpush1.msra.mxu0 0.0
        %3505 = vmatprep.subr.mxu0 0.0
        %3506 = vmatpush1.msra.mxu0 0.0
        %3507 = vmatprep.subr.mxu0 0.0
        %3508 = vmatpush1.msra.mxu0 0.0
        %3509 = vmatprep.subr.mxu0 0.0
        %3510 = vmatpush1.msra.mxu0 0.0
        %3511 = vmatprep.subr.mxu0 0.0
        %3512 = vmatpush1.msra.mxu0 0.0
        %3513 = vmatprep.subr.mxu0 0.0
        %3514 = vmatpush1.msra.mxu0 0.0
        %3515 = vmatprep.subr.mxu0 0.0
        %3516 = vmatpush1.msra.mxu0 0.0
        %3517 = vmatprep.subr.mxu0 0.0
        %3518 = vmatpush1.msra.mxu0 0.0
        %3519 = vmatprep.subr.mxu0 0.0
        %3520 = vmatpush1.msra.mxu0 0.0
        %3521 = vmatprep.subr.mxu0 0.0
        %3522 = vmatpush1.msra.mxu0 0.0
        %3523 = vmatprep.subr.mxu0 0.0
        %3524 = vmatpush1.msra.mxu0 0.0
        %3525 = vmatprep.subr.mxu0 0.0
        %3526 = vmatpush1.msra.mxu0 0.0
        %3527 = vmatprep.subr.mxu0 0.0
        %3528 = vmatpush1.msra.mxu0 0.0
        %3529 = vmatprep.subr.mxu0 0.0
        %3530 = vmatpush1.msra.mxu0 0.0
        %3531 = vmatprep.subr.mxu0 0.0
        %3532 = vmatpush1.msra.mxu0 0.0
        %3533 = vmatprep.subr.mxu0 0.0
        %3534 = vmatpush1.msra.mxu0 0.0
        %3535 = vmatprep.subr.mxu0 0.0
        %3536 = vmatpush1.msra.mxu0 0.0
        %3537 = vmatprep.subr.mxu0 0.0
        %3538 = vmatpush1.msra.mxu0 0.0
        %3539 = vmatprep.subr.mxu0 0.0
        %3540 = vmatpush1.msra.mxu0 0.0
        %3541 = vmatprep.subr.mxu0 0.0
        %3542 = vmatpush1.msra.mxu0 0.0
        %3543 = vmatprep.subr.mxu0 0.0
        %3544 = vmatpush1.msra.mxu0 0.0
        %3545 = vmatprep.subr.mxu0 0.0
        %3546 = vmatpush1.msra.mxu0 0.0
        %3547 = vmatprep.subr.mxu0 0.0
        %3548 = vmatpush1.msra.mxu0 0.0
        %3549 = vmatprep.subr.mxu0 0.0
        %3550 = vmatpush1.msra.mxu0 0.0
        %3551 = vmatprep.subr.mxu0 0.0
        %3552 = vmatpush1.msra.mxu0 0.0
        %3553 = vmatprep.mubr.f32.mxu0 0.0
        %3554 = vmatmul.mubr.f32.gmra.mrb[0].mxu0 %v3410
        %v3555 = vpop.f32.mrb[0].mxu0
        %v3556 = vadd.f32 0.0, %v3555
        %v3557 = vpop.f32.mrb[0].mxu0
        %3558 = vdwg.mxu0
        %v3561 = vcombine.high %v3387, %v3387
        %v3562 = vcombine.high %v3388, %v3388
        %3563 = vrot.lane.b32.xlu0 %v3387, 19
        %v3564 = vpop.permute.xlu0 %3563
        %3565 = vrot.lane.b32.xlu0 %v3561, 19
        %v3566 = vpop.permute.xlu0 %3565
        %3567 = vrot.lane.b32.xlu0 %v3388, 19
        %v3568 = vpop.permute.xlu0 %3567
        %3569 = vrot.lane.b32.xlu0 %v3562, 19
        %v3570 = vpop.permute.xlu0 %3569
        %v3571 = vsel %vm260, %v3564, %v3566
        %v3572 = vsel %vm260, %v3566, %v3568
        %v3573 = vsel %vm260, %v3568, %v3570
        %v3574 = vsel %vm264, %v3391, 0
        %v3576 = vsel %vm267, %v3571, 0
        %v3578 = vsel %vm267, %v3572, 0
        %v3580 = vsel %vm267, %v3573, 0
        %3582 = vmatprep.subr.mxu0 %v3578
        %3583 = vmatpush1.msra.mxu0 %v3576
        %3584 = vmatprep.subr.mxu0 0.0
        %3585 = vmatpush1.msra.mxu0 0.0
        %3586 = vmatprep.subr.mxu0 0.0
        %3587 = vmatpush1.msra.mxu0 0.0
        %3588 = vmatprep.subr.mxu0 0.0
        %3589 = vmatpush1.msra.mxu0 0.0
        %3590 = vmatprep.subr.mxu0 0.0
        %3591 = vmatpush1.msra.mxu0 0.0
        %3592 = vmatprep.subr.mxu0 0.0
        %3593 = vmatpush1.msra.mxu0 0.0
        %3594 = vmatprep.subr.mxu0 0.0
        %3595 = vmatpush1.msra.mxu0 0.0
        %3596 = vmatprep.subr.mxu0 0.0
        %3597 = vmatpush1.msra.mxu0 0.0
        %3598 = vmatprep.subr.mxu0 0.0
        %3599 = vmatpush1.msra.mxu0 0.0
        %3600 = vmatprep.subr.mxu0 0.0
        %3601 = vmatpush1.msra.mxu0 0.0
        %3602 = vmatprep.subr.mxu0 0.0
        %3603 = vmatpush1.msra.mxu0 0.0
        %3604 = vmatprep.subr.mxu0 0.0
        %3605 = vmatpush1.msra.mxu0 0.0
        %3606 = vmatprep.subr.mxu0 0.0
        %3607 = vmatpush1.msra.mxu0 0.0
        %3608 = vmatprep.subr.mxu0 0.0
        %3609 = vmatpush1.msra.mxu0 0.0
        %3610 = vmatprep.subr.mxu0 0.0
        %3611 = vmatpush1.msra.mxu0 0.0
        %3612 = vmatprep.subr.mxu0 0.0
        %3613 = vmatpush1.msra.mxu0 0.0
        %3614 = vmatprep.subr.mxu0 0.0
        %3615 = vmatpush1.msra.mxu0 0.0
        %3616 = vmatprep.subr.mxu0 0.0
        %3617 = vmatpush1.msra.mxu0 0.0
        %3618 = vmatprep.subr.mxu0 0.0
        %3619 = vmatpush1.msra.mxu0 0.0
        %3620 = vmatprep.subr.mxu0 0.0
        %3621 = vmatpush1.msra.mxu0 0.0
        %3622 = vmatprep.subr.mxu0 0.0
        %3623 = vmatpush1.msra.mxu0 0.0
        %3624 = vmatprep.subr.mxu0 0.0
        %3625 = vmatpush1.msra.mxu0 0.0
        %3626 = vmatprep.subr.mxu0 0.0
        %3627 = vmatpush1.msra.mxu0 0.0
        %3628 = vmatprep.subr.mxu0 0.0
        %3629 = vmatpush1.msra.mxu0 0.0
        %3630 = vmatprep.subr.mxu0 0.0
        %3631 = vmatpush1.msra.mxu0 0.0
        %3632 = vmatprep.subr.mxu0 0.0
        %3633 = vmatpush1.msra.mxu0 0.0
        %3634 = vmatprep.subr.mxu0 0.0
        %3635 = vmatpush1.msra.mxu0 0.0
        %3636 = vmatprep.subr.mxu0 0.0
        %3637 = vmatpush1.msra.mxu0 0.0
        %3638 = vmatprep.subr.mxu0 0.0
        %3639 = vmatpush1.msra.mxu0 0.0
        %3640 = vmatprep.subr.mxu0 0.0
        %3641 = vmatpush1.msra.mxu0 0.0
        %3642 = vmatprep.subr.mxu0 0.0
        %3643 = vmatpush1.msra.mxu0 0.0
        %3644 = vmatprep.subr.mxu0 0.0
        %3645 = vmatpush1.msra.mxu0 0.0
        %3646 = vmatprep.mubr.f32.mxu0 0.0
        %3647 = vmatmul.mubr.f32.gmra.mrb[0].mxu0 %v3574
        %v3648 = vpop.f32.mrb[0].mxu0
        %v3649 = vadd.f32 %v3485, %v3648
        %v3650 = vpop.f32.mrb[0].mxu0
        %v3651 = vadd.f32 %v3487, %v3650
        %3652 = vdwg.mxu0
        %3653 = vmatprep.subr.mxu0 0.0
        %3654 = vmatpush1.msra.mxu0 %v3580
        %3655 = vmatprep.subr.mxu0 0.0
        %3656 = vmatpush1.msra.mxu0 0.0
        %3657 = vmatprep.subr.mxu0 0.0
        %3658 = vmatpush1.msra.mxu0 0.0
        %3659 = vmatprep.subr.mxu0 0.0
        %3660 = vmatpush1.msra.mxu0 0.0
        %3661 = vmatprep.subr.mxu0 0.0
        %3662 = vmatpush1.msra.mxu0 0.0
        %3663 = vmatprep.subr.mxu0 0.0
        %3664 = vmatpush1.msra.mxu0 0.0
        %3665 = vmatprep.subr.mxu0 0.0
        %3666 = vmatpush1.msra.mxu0 0.0
        %3667 = vmatprep.subr.mxu0 0.0
        %3668 = vmatpush1.msra.mxu0 0.0
        %3669 = vmatprep.subr.mxu0 0.0
        %3670 = vmatpush1.msra.mxu0 0.0
        %3671 = vmatprep.subr.mxu0 0.0
        %3672 = vmatpush1.msra.mxu0 0.0
        %3673 = vmatprep.subr.mxu0 0.0
        %3674 = vmatpush1.msra.mxu0 0.0
        %3675 = vmatprep.subr.mxu0 0.0
        %3676 = vmatpush1.msra.mxu0 0.0
        %3677 = vmatprep.subr.mxu0 0.0
        %3678 = vmatpush1.msra.mxu0 0.0
        %3679 = vmatprep.subr.mxu0 0.0
        %3680 = vmatpush1.msra.mxu0 0.0
        %3681 = vmatprep.subr.mxu0 0.0
        %3682 = vmatpush1.msra.mxu0 0.0
        %3683 = vmatprep.subr.mxu0 0.0
        %3684 = vmatpush1.msra.mxu0 0.0
        %3685 = vmatprep.subr.mxu0 0.0
        %3686 = vmatpush1.msra.mxu0 0.0
        %3687 = vmatprep.subr.mxu0 0.0
        %3688 = vmatpush1.msra.mxu0 0.0
        %3689 = vmatprep.subr.mxu0 0.0
        %3690 = vmatpush1.msra.mxu0 0.0
        %3691 = vmatprep.subr.mxu0 0.0
        %3692 = vmatpush1.msra.mxu0 0.0
        %3693 = vmatprep.subr.mxu0 0.0
        %3694 = vmatpush1.msra.mxu0 0.0
        %3695 = vmatprep.subr.mxu0 0.0
        %3696 = vmatpush1.msra.mxu0 0.0
        %3697 = vmatprep.subr.mxu0 0.0
        %3698 = vmatpush1.msra.mxu0 0.0
        %3699 = vmatprep.subr.mxu0 0.0
        %3700 = vmatpush1.msra.mxu0 0.0
        %3701 = vmatprep.subr.mxu0 0.0
        %3702 = vmatpush1.msra.mxu0 0.0
        %3703 = vmatprep.subr.mxu0 0.0
        %3704 = vmatpush1.msra.mxu0 0.0
        %3705 = vmatprep.subr.mxu0 0.0
        %3706 = vmatpush1.msra.mxu0 0.0
        %3707 = vmatprep.subr.mxu0 0.0
        %3708 = vmatpush1.msra.mxu0 0.0
        %3709 = vmatprep.subr.mxu0 0.0
        %3710 = vmatpush1.msra.mxu0 0.0
        %3711 = vmatprep.subr.mxu0 0.0
        %3712 = vmatpush1.msra.mxu0 0.0
        %3713 = vmatprep.subr.mxu0 0.0
        %3714 = vmatpush1.msra.mxu0 0.0
        %3715 = vmatprep.subr.mxu0 0.0
        %3716 = vmatpush1.msra.mxu0 0.0
        %3717 = vmatprep.mubr.f32.mxu0 0.0
        %3718 = vmatmul.mubr.f32.gmra.mrb[0].mxu0 %v3574
        %v3719 = vpop.f32.mrb[0].mxu0
        %v3720 = vadd.f32 %v3556, %v3719
        %v3721 = vpop.f32.mrb[0].mxu0
        %3722 = vdwg.mxu0
        %v3723 = vld [vmem:[#allocation2] sm:$0xff]
        %v3724 = vld [vmem:[#allocation2 + $0x8] sm:$0xff]
        %v3725 = vld [vmem:[#allocation3] sm:$0xff]
        %v3726 = vld [vmem:[#allocation3 + $0x8] sm:$0xff]
        %s3727 = scalar_lea.vmem %s3, 4
        %v3728 = vld [vmem:[%s3727] sm:$0xf]
        %v3731 = vcombine.high %v3723, %v3723
        %v3732 = vcombine.high %v3724, %v3724
        %3733 = vrot.lane.b32.xlu0 %v3723, 18
        %v3734 = vpop.permute.xlu0 %3733
        %3735 = vrot.lane.b32.xlu0 %v3731, 18
        %v3736 = vpop.permute.xlu0 %3735
        %3737 = vrot.lane.b32.xlu0 %v3724, 18
        %v3738 = vpop.permute.xlu0 %3737
        %3739 = vrot.lane.b32.xlu0 %v3732, 18
        %v3740 = vpop.permute.xlu0 %3739
        %v3741 = vsel %vm597, %v3734, %v3736
        %v3742 = vsel %vm597, %v3736, %v3738
        %v3743 = vsel %vm597, %v3738, %v3740
        %v3745 = vsel %vm264, %v3728, 0
        %v3747 = vsel %vm267, %v3741, 0
        %v3749 = vsel %vm267, %v3742, 0
        %v3751 = vsel %vm267, %v3743, 0
        %3753 = vmatprep.subr.mxu0 %v3749
        %3754 = vmatpush1.msra.mxu0 %v3747
        %3755 = vmatprep.subr.mxu0 0.0
        %3756 = vmatpush1.msra.mxu0 0.0
        %3757 = vmatprep.subr.mxu0 0.0
        %3758 = vmatpush1.msra.mxu0 0.0
        %3759 = vmatprep.subr.mxu0 0.0
        %3760 = vmatpush1.msra.mxu0 0.0
        %3761 = vmatprep.subr.mxu0 0.0
        %3762 = vmatpush1.msra.mxu0 0.0
        %3763 = vmatprep.subr.mxu0 0.0
        %3764 = vmatpush1.msra.mxu0 0.0
        %3765 = vmatprep.subr.mxu0 0.0
        %3766 = vmatpush1.msra.mxu0 0.0
        %3767 = vmatprep.subr.mxu0 0.0
        %3768 = vmatpush1.msra.mxu0 0.0
        %3769 = vmatprep.subr.mxu0 0.0
        %3770 = vmatpush1.msra.mxu0 0.0
        %3771 = vmatprep.subr.mxu0 0.0
        %3772 = vmatpush1.msra.mxu0 0.0
        %3773 = vmatprep.subr.mxu0 0.0
        %3774 = vmatpush1.msra.mxu0 0.0
        %3775 = vmatprep.subr.mxu0 0.0
        %3776 = vmatpush1.msra.mxu0 0.0
        %3777 = vmatprep.subr.mxu0 0.0
        %3778 = vmatpush1.msra.mxu0 0.0
        %3779 = vmatprep.subr.mxu0 0.0
        %3780 = vmatpush1.msra.mxu0 0.0
        %3781 = vmatprep.subr.mxu0 0.0
        %3782 = vmatpush1.msra.mxu0 0.0
        %3783 = vmatprep.subr.mxu0 0.0
        %3784 = vmatpush1.msra.mxu0 0.0
        %3785 = vmatprep.subr.mxu0 0.0
        %3786 = vmatpush1.msra.mxu0 0.0
        %3787 = vmatprep.subr.mxu0 0.0
        %3788 = vmatpush1.msra.mxu0 0.0
        %3789 = vmatprep.subr.mxu0 0.0
        %3790 = vmatpush1.msra.mxu0 0.0
        %3791 = vmatprep.subr.mxu0 0.0
        %3792 = vmatpush1.msra.mxu0 0.0
        %3793 = vmatprep.subr.mxu0 0.0
        %3794 = vmatpush1.msra.mxu0 0.0
        %3795 = vmatprep.subr.mxu0 0.0
        %3796 = vmatpush1.msra.mxu0 0.0
        %3797 = vmatprep.subr.mxu0 0.0
        %3798 = vmatpush1.msra.mxu0 0.0
        %3799 = vmatprep.subr.mxu0 0.0
        %3800 = vmatpush1.msra.mxu0 0.0
        %3801 = vmatprep.subr.mxu0 0.0
        %3802 = vmatpush1.msra.mxu0 0.0
        %3803 = vmatprep.subr.mxu0 0.0
        %3804 = vmatpush1.msra.mxu0 0.0
        %3805 = vmatprep.subr.mxu0 0.0
        %3806 = vmatpush1.msra.mxu0 0.0
        %3807 = vmatprep.subr.mxu0 0.0
        %3808 = vmatpush1.msra.mxu0 0.0
        %3809 = vmatprep.subr.mxu0 0.0
        %3810 = vmatpush1.msra.mxu0 0.0
        %3811 = vmatprep.subr.mxu0 0.0
        %3812 = vmatpush1.msra.mxu0 0.0
        %3813 = vmatprep.subr.mxu0 0.0
        %3814 = vmatpush1.msra.mxu0 0.0
        %3815 = vmatprep.subr.mxu0 0.0
        %3816 = vmatpush1.msra.mxu0 0.0
        %3817 = vmatprep.mubr.f32.mxu0 0.0
        %3818 = vmatmul.mubr.f32.gmra.mrb[0].mxu0 %v3745
        %v3819 = vpop.f32.mrb[0].mxu0
        %v3820 = vadd.f32 0.0, %v3819
        %v3821 = vpop.f32.mrb[0].mxu0
        %v3822 = vadd.f32 0.0, %v3821
        %3823 = vdwg.mxu0
        %3824 = vmatprep.subr.mxu0 0.0
        %3825 = vmatpush1.msra.mxu0 %v3751
        %3826 = vmatprep.subr.mxu0 0.0
        %3827 = vmatpush1.msra.mxu0 0.0
        %3828 = vmatprep.subr.mxu0 0.0
        %3829 = vmatpush1.msra.mxu0 0.0
        %3830 = vmatprep.subr.mxu0 0.0
        %3831 = vmatpush1.msra.mxu0 0.0
        %3832 = vmatprep.subr.mxu0 0.0
        %3833 = vmatpush1.msra.mxu0 0.0
        %3834 = vmatprep.subr.mxu0 0.0
        %3835 = vmatpush1.msra.mxu0 0.0
        %3836 = vmatprep.subr.mxu0 0.0
        %3837 = vmatpush1.msra.mxu0 0.0
        %3838 = vmatprep.subr.mxu0 0.0
        %3839 = vmatpush1.msra.mxu0 0.0
        %3840 = vmatprep.subr.mxu0 0.0
        %3841 = vmatpush1.msra.mxu0 0.0
        %3842 = vmatprep.subr.mxu0 0.0
        %3843 = vmatpush1.msra.mxu0 0.0
        %3844 = vmatprep.subr.mxu0 0.0
        %3845 = vmatpush1.msra.mxu0 0.0
        %3846 = vmatprep.subr.mxu0 0.0
        %3847 = vmatpush1.msra.mxu0 0.0
        %3848 = vmatprep.subr.mxu0 0.0
        %3849 = vmatpush1.msra.mxu0 0.0
        %3850 = vmatprep.subr.mxu0 0.0
        %3851 = vmatpush1.msra.mxu0 0.0
        %3852 = vmatprep.subr.mxu0 0.0
        %3853 = vmatpush1.msra.mxu0 0.0
        %3854 = vmatprep.subr.mxu0 0.0
        %3855 = vmatpush1.msra.mxu0 0.0
        %3856 = vmatprep.subr.mxu0 0.0
        %3857 = vmatpush1.msra.mxu0 0.0
        %3858 = vmatprep.subr.mxu0 0.0
        %3859 = vmatpush1.msra.mxu0 0.0
        %3860 = vmatprep.subr.mxu0 0.0
        %3861 = vmatpush1.msra.mxu0 0.0
        %3862 = vmatprep.subr.mxu0 0.0
        %3863 = vmatpush1.msra.mxu0 0.0
        %3864 = vmatprep.subr.mxu0 0.0
        %3865 = vmatpush1.msra.mxu0 0.0
        %3866 = vmatprep.subr.mxu0 0.0
        %3867 = vmatpush1.msra.mxu0 0.0
        %3868 = vmatprep.subr.mxu0 0.0
        %3869 = vmatpush1.msra.mxu0 0.0
        %3870 = vmatprep.subr.mxu0 0.0
        %3871 = vmatpush1.msra.mxu0 0.0
        %3872 = vmatprep.subr.mxu0 0.0
        %3873 = vmatpush1.msra.mxu0 0.0
        %3874 = vmatprep.subr.mxu0 0.0
        %3875 = vmatpush1.msra.mxu0 0.0
        %3876 = vmatprep.subr.mxu0 0.0
        %3877 = vmatpush1.msra.mxu0 0.0
        %3878 = vmatprep.subr.mxu0 0.0
        %3879 = vmatpush1.msra.mxu0 0.0
        %3880 = vmatprep.subr.mxu0 0.0
        %3881 = vmatpush1.msra.mxu0 0.0
        %3882 = vmatprep.subr.mxu0 0.0
        %3883 = vmatpush1.msra.mxu0 0.0
        %3884 = vmatprep.subr.mxu0 0.0
        %3885 = vmatpush1.msra.mxu0 0.0
        %3886 = vmatprep.subr.mxu0 0.0
        %3887 = vmatpush1.msra.mxu0 0.0
        %3888 = vmatprep.mubr.f32.mxu0 0.0
        %3889 = vmatmul.mubr.f32.gmra.mrb[0].mxu0 %v3745
        %v3890 = vpop.f32.mrb[0].mxu0
        %v3891 = vadd.f32 0.0, %v3890
        %v3892 = vpop.f32.mrb[0].mxu0
        %3893 = vdwg.mxu0
        %v3894 = vadd.f32 %v3649, %v3820
        %v3895 = vadd.f32 %v3651, %v3822
        %v3896 = vadd.f32 %v3720, %v3891
        %3897 = vrot.lane.b32.xlu0 %v3728, 124
        %v3898 = vpop.permute.xlu0 %3897
        %v3901 = vcombine.high %v3725, %v3725
        %v3902 = vcombine.high %v3726, %v3726
        %3903 = vrot.lane.b32.xlu0 %v3725, 18
        %v3904 = vpop.permute.xlu0 %3903
        %3905 = vrot.lane.b32.xlu0 %v3901, 18
        %v3906 = vpop.permute.xlu0 %3905
        %3907 = vrot.lane.b32.xlu0 %v3726, 18
        %v3908 = vpop.permute.xlu0 %3907
        %3909 = vrot.lane.b32.xlu0 %v3902, 18
        %v3910 = vpop.permute.xlu0 %3909
        %v3911 = vsel %vm597, %v3904, %v3906
        %v3912 = vsel %vm597, %v3906, %v3908
        %v3913 = vsel %vm597, %v3908, %v3910
        %v3914 = vsel %vm264, %v3898, 0
        %v3916 = vsel %vm267, %v3911, 0
        %v3918 = vsel %vm267, %v3912, 0
        %v3920 = vsel %vm267, %v3913, 0
        %3922 = vmatprep.subr.mxu0 %v3918
        %3923 = vmatpush1.msra.mxu0 %v3916
        %3924 = vmatprep.subr.mxu0 0.0
        %3925 = vmatpush1.msra.mxu0 0.0
        %3926 = vmatprep.subr.mxu0 0.0
        %3927 = vmatpush1.msra.mxu0 0.0
        %3928 = vmatprep.subr.mxu0 0.0
        %3929 = vmatpush1.msra.mxu0 0.0
        %3930 = vmatprep.subr.mxu0 0.0
        %3931 = vmatpush1.msra.mxu0 0.0
        %3932 = vmatprep.subr.mxu0 0.0
        %3933 = vmatpush1.msra.mxu0 0.0
        %3934 = vmatprep.subr.mxu0 0.0
        %3935 = vmatpush1.msra.mxu0 0.0
        %3936 = vmatprep.subr.mxu0 0.0
        %3937 = vmatpush1.msra.mxu0 0.0
        %3938 = vmatprep.subr.mxu0 0.0
        %3939 = vmatpush1.msra.mxu0 0.0
        %3940 = vmatprep.subr.mxu0 0.0
        %3941 = vmatpush1.msra.mxu0 0.0
        %3942 = vmatprep.subr.mxu0 0.0
        %3943 = vmatpush1.msra.mxu0 0.0
        %3944 = vmatprep.subr.mxu0 0.0
        %3945 = vmatpush1.msra.mxu0 0.0
        %3946 = vmatprep.subr.mxu0 0.0
        %3947 = vmatpush1.msra.mxu0 0.0
        %3948 = vmatprep.subr.mxu0 0.0
        %3949 = vmatpush1.msra.mxu0 0.0
        %3950 = vmatprep.subr.mxu0 0.0
        %3951 = vmatpush1.msra.mxu0 0.0
        %3952 = vmatprep.subr.mxu0 0.0
        %3953 = vmatpush1.msra.mxu0 0.0
        %3954 = vmatprep.subr.mxu0 0.0
        %3955 = vmatpush1.msra.mxu0 0.0
        %3956 = vmatprep.subr.mxu0 0.0
        %3957 = vmatpush1.msra.mxu0 0.0
        %3958 = vmatprep.subr.mxu0 0.0
        %3959 = vmatpush1.msra.mxu0 0.0
        %3960 = vmatprep.subr.mxu0 0.0
        %3961 = vmatpush1.msra.mxu0 0.0
        %3962 = vmatprep.subr.mxu0 0.0
        %3963 = vmatpush1.msra.mxu0 0.0
        %3964 = vmatprep.subr.mxu0 0.0
        %3965 = vmatpush1.msra.mxu0 0.0
        %3966 = vmatprep.subr.mxu0 0.0
        %3967 = vmatpush1.msra.mxu0 0.0
        %3968 = vmatprep.subr.mxu0 0.0
        %3969 = vmatpush1.msra.mxu0 0.0
        %3970 = vmatprep.subr.mxu0 0.0
        %3971 = vmatpush1.msra.mxu0 0.0
        %3972 = vmatprep.subr.mxu0 0.0
        %3973 = vmatpush1.msra.mxu0 0.0
        %3974 = vmatprep.subr.mxu0 0.0
        %3975 = vmatpush1.msra.mxu0 0.0
        %3976 = vmatprep.subr.mxu0 0.0
        %3977 = vmatpush1.msra.mxu0 0.0
        %3978 = vmatprep.subr.mxu0 0.0
        %3979 = vmatpush1.msra.mxu0 0.0
        %3980 = vmatprep.subr.mxu0 0.0
        %3981 = vmatpush1.msra.mxu0 0.0
        %3982 = vmatprep.subr.mxu0 0.0
        %3983 = vmatpush1.msra.mxu0 0.0
        %3984 = vmatprep.subr.mxu0 0.0
        %3985 = vmatpush1.msra.mxu0 0.0
        %3986 = vmatprep.mubr.f32.mxu0 0.0
        %3987 = vmatmul.mubr.f32.gmra.mrb[0].mxu0 %v3914
        %v3988 = vpop.f32.mrb[0].mxu0
        %v3989 = vadd.f32 0.0, %v3988
        %v3990 = vpop.f32.mrb[0].mxu0
        %v3991 = vadd.f32 0.0, %v3990
        %3992 = vdwg.mxu0
        %3993 = vmatprep.subr.mxu0 0.0
        %3994 = vmatpush1.msra.mxu0 %v3920
        %3995 = vmatprep.subr.mxu0 0.0
        %3996 = vmatpush1.msra.mxu0 0.0
        %3997 = vmatprep.subr.mxu0 0.0
        %3998 = vmatpush1.msra.mxu0 0.0
        %3999 = vmatprep.subr.mxu0 0.0
        %4000 = vmatpush1.msra.mxu0 0.0
        %4001 = vmatprep.subr.mxu0 0.0
        %4002 = vmatpush1.msra.mxu0 0.0
        %4003 = vmatprep.subr.mxu0 0.0
        %4004 = vmatpush1.msra.mxu0 0.0
        %4005 = vmatprep.subr.mxu0 0.0
        %4006 = vmatpush1.msra.mxu0 0.0
        %4007 = vmatprep.subr.mxu0 0.0
        %4008 = vmatpush1.msra.mxu0 0.0
        %4009 = vmatprep.subr.mxu0 0.0
        %4010 = vmatpush1.msra.mxu0 0.0
        %4011 = vmatprep.subr.mxu0 0.0
        %4012 = vmatpush1.msra.mxu0 0.0
        %4013 = vmatprep.subr.mxu0 0.0
        %4014 = vmatpush1.msra.mxu0 0.0
        %4015 = vmatprep.subr.mxu0 0.0
        %4016 = vmatpush1.msra.mxu0 0.0
        %4017 = vmatprep.subr.mxu0 0.0
        %4018 = vmatpush1.msra.mxu0 0.0
        %4019 = vmatprep.subr.mxu0 0.0
        %4020 = vmatpush1.msra.mxu0 0.0
        %4021 = vmatprep.subr.mxu0 0.0
        %4022 = vmatpush1.msra.mxu0 0.0
        %4023 = vmatprep.subr.mxu0 0.0
        %4024 = vmatpush1.msra.mxu0 0.0
        %4025 = vmatprep.subr.mxu0 0.0
        %4026 = vmatpush1.msra.mxu0 0.0
        %4027 = vmatprep.subr.mxu0 0.0
        %4028 = vmatpush1.msra.mxu0 0.0
        %4029 = vmatprep.subr.mxu0 0.0
        %4030 = vmatpush1.msra.mxu0 0.0
        %4031 = vmatprep.subr.mxu0 0.0
        %4032 = vmatpush1.msra.mxu0 0.0
        %4033 = vmatprep.subr.mxu0 0.0
        %4034 = vmatpush1.msra.mxu0 0.0
        %4035 = vmatprep.subr.mxu0 0.0
        %4036 = vmatpush1.msra.mxu0 0.0
        %4037 = vmatprep.subr.mxu0 0.0
        %4038 = vmatpush1.msra.mxu0 0.0
        %4039 = vmatprep.subr.mxu0 0.0
        %4040 = vmatpush1.msra.mxu0 0.0
        %4041 = vmatprep.subr.mxu0 0.0
        %4042 = vmatpush1.msra.mxu0 0.0
        %4043 = vmatprep.subr.mxu0 0.0
        %4044 = vmatpush1.msra.mxu0 0.0
        %4045 = vmatprep.subr.mxu0 0.0
        %4046 = vmatpush1.msra.mxu0 0.0
        %4047 = vmatprep.subr.mxu0 0.0
        %4048 = vmatpush1.msra.mxu0 0.0
        %4049 = vmatprep.subr.mxu0 0.0
        %4050 = vmatpush1.msra.mxu0 0.0
        %4051 = vmatprep.subr.mxu0 0.0
        %4052 = vmatpush1.msra.mxu0 0.0
        %4053 = vmatprep.subr.mxu0 0.0
        %4054 = vmatpush1.msra.mxu0 0.0
        %4055 = vmatprep.subr.mxu0 0.0
        %4056 = vmatpush1.msra.mxu0 0.0
        %4057 = vmatprep.mubr.f32.mxu0 0.0
        %4058 = vmatmul.mubr.f32.gmra.mrb[0].mxu0 %v3914
        %v4059 = vpop.f32.mrb[0].mxu0
        %v4060 = vadd.f32 0.0, %v4059
        %v4061 = vpop.f32.mrb[0].mxu0
        %4062 = vdwg.mxu0
        %v4063 = vadd.f32 %v3894, %v3989
        %v4064 = vadd.f32 %v3895, %v3991
        %v4065 = vadd.f32 %v3896, %v4060
        %v4066 = vld [vmem:[#allocation2] sm:$0xff]
        %v4067 = vld [vmem:[#allocation2 + $0x8] sm:$0xff]
        %v4068 = vld [vmem:[#allocation3] sm:$0xff]
        %v4069 = vld [vmem:[#allocation3 + $0x8] sm:$0xff]
        %s4070 = scalar_lea.vmem %s3, 8
        %v4071 = vld [vmem:[%s4070] sm:$0xf]
        %v4074 = vcombine.high %v4066, %v4066
        %v4075 = vcombine.high %v4067, %v4067
        %4076 = vrot.lane.b32.xlu0 %v4066, 17
        %v4077 = vpop.permute.xlu0 %4076
        %4078 = vrot.lane.b32.xlu0 %v4074, 17
        %v4079 = vpop.permute.xlu0 %4078
        %4080 = vrot.lane.b32.xlu0 %v4067, 17
        %v4081 = vpop.permute.xlu0 %4080
        %4082 = vrot.lane.b32.xlu0 %v4075, 17
        %v4083 = vpop.permute.xlu0 %4082
        %v4084 = vsel %vm945, %v4077, %v4079
        %v4085 = vsel %vm945, %v4079, %v4081
        %v4086 = vsel %vm945, %v4081, %v4083
        %v4088 = vsel %vm264, %v4071, 0
        %v4090 = vsel %vm267, %v4084, 0
        %v4092 = vsel %vm267, %v4085, 0
        %v4094 = vsel %vm267, %v4086, 0
        %4096 = vmatprep.subr.mxu0 %v4092
        %4097 = vmatpush1.msra.mxu0 %v4090
        %4098 = vmatprep.subr.mxu0 0.0
        %4099 = vmatpush1.msra.mxu0 0.0
        %4100 = vmatprep.subr.mxu0 0.0
        %4101 = vmatpush1.msra.mxu0 0.0
        %4102 = vmatprep.subr.mxu0 0.0
        %4103 = vmatpush1.msra.mxu0 0.0
        %4104 = vmatprep.subr.mxu0 0.0
        %4105 = vmatpush1.msra.mxu0 0.0
        %4106 = vmatprep.subr.mxu0 0.0
        %4107 = vmatpush1.msra.mxu0 0.0
        %4108 = vmatprep.subr.mxu0 0.0
        %4109 = vmatpush1.msra.mxu0 0.0
        %4110 = vmatprep.subr.mxu0 0.0
        %4111 = vmatpush1.msra.mxu0 0.0
        %4112 = vmatprep.subr.mxu0 0.0
        %4113 = vmatpush1.msra.mxu0 0.0
        %4114 = vmatprep.subr.mxu0 0.0
        %4115 = vmatpush1.msra.mxu0 0.0
        %4116 = vmatprep.subr.mxu0 0.0
        %4117 = vmatpush1.msra.mxu0 0.0
        %4118 = vmatprep.subr.mxu0 0.0
        %4119 = vmatpush1.msra.mxu0 0.0
        %4120 = vmatprep.subr.mxu0 0.0
        %4121 = vmatpush1.msra.mxu0 0.0
        %4122 = vmatprep.subr.mxu0 0.0
        %4123 = vmatpush1.msra.mxu0 0.0
        %4124 = vmatprep.subr.mxu0 0.0
        %4125 = vmatpush1.msra.mxu0 0.0
        %4126 = vmatprep.subr.mxu0 0.0
        %4127 = vmatpush1.msra.mxu0 0.0
        %4128 = vmatprep.subr.mxu0 0.0
        %4129 = vmatpush1.msra.mxu0 0.0
        %4130 = vmatprep.subr.mxu0 0.0
        %4131 = vmatpush1.msra.mxu0 0.0
        %4132 = vmatprep.subr.mxu0 0.0
        %4133 = vmatpush1.msra.mxu0 0.0
        %4134 = vmatprep.subr.mxu0 0.0
        %4135 = vmatpush1.msra.mxu0 0.0
        %4136 = vmatprep.subr.mxu0 0.0
        %4137 = vmatpush1.msra.mxu0 0.0
        %4138 = vmatprep.subr.mxu0 0.0
        %4139 = vmatpush1.msra.mxu0 0.0
        %4140 = vmatprep.subr.mxu0 0.0
        %4141 = vmatpush1.msra.mxu0 0.0
        %4142 = vmatprep.subr.mxu0 0.0
        %4143 = vmatpush1.msra.mxu0 0.0
        %4144 = vmatprep.subr.mxu0 0.0
        %4145 = vmatpush1.msra.mxu0 0.0
        %4146 = vmatprep.subr.mxu0 0.0
        %4147 = vmatpush1.msra.mxu0 0.0
        %4148 = vmatprep.subr.mxu0 0.0
        %4149 = vmatpush1.msra.mxu0 0.0
        %4150 = vmatprep.subr.mxu0 0.0
        %4151 = vmatpush1.msra.mxu0 0.0
        %4152 = vmatprep.subr.mxu0 0.0
        %4153 = vmatpush1.msra.mxu0 0.0
        %4154 = vmatprep.subr.mxu0 0.0
        %4155 = vmatpush1.msra.mxu0 0.0
        %4156 = vmatprep.subr.mxu0 0.0
        %4157 = vmatpush1.msra.mxu0 0.0
        %4158 = vmatprep.subr.mxu0 0.0
        %4159 = vmatpush1.msra.mxu0 0.0
        %4160 = vmatprep.mubr.f32.mxu0 0.0
        %4161 = vmatmul.mubr.f32.gmra.mrb[0].mxu0 %v4088
        %v4162 = vpop.f32.mrb[0].mxu0
        %v4163 = vadd.f32 0.0, %v4162
        %v4164 = vpop.f32.mrb[0].mxu0
        %v4165 = vadd.f32 0.0, %v4164
        %4166 = vdwg.mxu0
        %4167 = vmatprep.subr.mxu0 0.0
        %4168 = vmatpush1.msra.mxu0 %v4094
        %4169 = vmatprep.subr.mxu0 0.0
        %4170 = vmatpush1.msra.mxu0 0.0
        %4171 = vmatprep.subr.mxu0 0.0
        %4172 = vmatpush1.msra.mxu0 0.0
        %4173 = vmatprep.subr.mxu0 0.0
        %4174 = vmatpush1.msra.mxu0 0.0
        %4175 = vmatprep.subr.mxu0 0.0
        %4176 = vmatpush1.msra.mxu0 0.0
        %4177 = vmatprep.subr.mxu0 0.0
        %4178 = vmatpush1.msra.mxu0 0.0
        %4179 = vmatprep.subr.mxu0 0.0
        %4180 = vmatpush1.msra.mxu0 0.0
        %4181 = vmatprep.subr.mxu0 0.0
        %4182 = vmatpush1.msra.mxu0 0.0
        %4183 = vmatprep.subr.mxu0 0.0
        %4184 = vmatpush1.msra.mxu0 0.0
        %4185 = vmatprep.subr.mxu0 0.0
        %4186 = vmatpush1.msra.mxu0 0.0
        %4187 = vmatprep.subr.mxu0 0.0
        %4188 = vmatpush1.msra.mxu0 0.0
        %4189 = vmatprep.subr.mxu0 0.0
        %4190 = vmatpush1.msra.mxu0 0.0
        %4191 = vmatprep.subr.mxu0 0.0
        %4192 = vmatpush1.msra.mxu0 0.0
        %4193 = vmatprep.subr.mxu0 0.0
        %4194 = vmatpush1.msra.mxu0 0.0
        %4195 = vmatprep.subr.mxu0 0.0
        %4196 = vmatpush1.msra.mxu0 0.0
        %4197 = vmatprep.subr.mxu0 0.0
        %4198 = vmatpush1.msra.mxu0 0.0
        %4199 = vmatprep.subr.mxu0 0.0
        %4200 = vmatpush1.msra.mxu0 0.0
        %4201 = vmatprep.subr.mxu0 0.0
        %4202 = vmatpush1.msra.mxu0 0.0
        %4203 = vmatprep.subr.mxu0 0.0
        %4204 = vmatpush1.msra.mxu0 0.0
        %4205 = vmatprep.subr.mxu0 0.0
        %4206 = vmatpush1.msra.mxu0 0.0
        %4207 = vmatprep.subr.mxu0 0.0
        %4208 = vmatpush1.msra.mxu0 0.0
        %4209 = vmatprep.subr.mxu0 0.0
        %4210 = vmatpush1.msra.mxu0 0.0
        %4211 = vmatprep.subr.mxu0 0.0
        %4212 = vmatpush1.msra.mxu0 0.0
        %4213 = vmatprep.subr.mxu0 0.0
        %4214 = vmatpush1.msra.mxu0 0.0
        %4215 = vmatprep.subr.mxu0 0.0
        %4216 = vmatpush1.msra.mxu0 0.0
        %4217 = vmatprep.subr.mxu0 0.0
        %4218 = vmatpush1.msra.mxu0 0.0
        %4219 = vmatprep.subr.mxu0 0.0
        %4220 = vmatpush1.msra.mxu0 0.0
        %4221 = vmatprep.subr.mxu0 0.0
        %4222 = vmatpush1.msra.mxu0 0.0
        %4223 = vmatprep.subr.mxu0 0.0
        %4224 = vmatpush1.msra.mxu0 0.0
        %4225 = vmatprep.subr.mxu0 0.0
        %4226 = vmatpush1.msra.mxu0 0.0
        %4227 = vmatprep.subr.mxu0 0.0
        %4228 = vmatpush1.msra.mxu0 0.0
        %4229 = vmatprep.subr.mxu0 0.0
        %4230 = vmatpush1.msra.mxu0 0.0
        %4231 = vmatprep.mubr.f32.mxu0 0.0
        %4232 = vmatmul.mubr.f32.gmra.mrb[0].mxu0 %v4088
        %v4233 = vpop.f32.mrb[0].mxu0
        %v4234 = vadd.f32 0.0, %v4233
        %v4235 = vpop.f32.mrb[0].mxu0
        %4236 = vdwg.mxu0
        %v4237 = vadd.f32 %v4063, %v4163
        %v4238 = vadd.f32 %v4064, %v4165
        %v4239 = vadd.f32 %v4065, %v4234
        %4240 = vrot.lane.b32.xlu0 %v4071, 124
        %v4241 = vpop.permute.xlu0 %4240
        %v4244 = vcombine.high %v4068, %v4068
        %v4245 = vcombine.high %v4069, %v4069
        %4246 = vrot.lane.b32.xlu0 %v4068, 17
        %v4247 = vpop.permute.xlu0 %4246
        %4248 = vrot.lane.b32.xlu0 %v4244, 17
        %v4249 = vpop.permute.xlu0 %4248
        %4250 = vrot.lane.b32.xlu0 %v4069, 17
        %v4251 = vpop.permute.xlu0 %4250
        %4252 = vrot.lane.b32.xlu0 %v4245, 17
        %v4253 = vpop.permute.xlu0 %4252
        %v4254 = vsel %vm945, %v4247, %v4249
        %v4255 = vsel %vm945, %v4249, %v4251
        %v4256 = vsel %vm945, %v4251, %v4253
        %v4257 = vsel %vm264, %v4241, 0
        %v4259 = vsel %vm267, %v4254, 0
        %v4261 = vsel %vm267, %v4255, 0
        %v4263 = vsel %vm267, %v4256, 0
        %4265 = vmatprep.subr.mxu0 %v4261
        %4266 = vmatpush1.msra.mxu0 %v4259
        %4267 = vmatprep.subr.mxu0 0.0
        %4268 = vmatpush1.msra.mxu0 0.0
        %4269 = vmatprep.subr.mxu0 0.0
        %4270 = vmatpush1.msra.mxu0 0.0
        %4271 = vmatprep.subr.mxu0 0.0
        %4272 = vmatpush1.msra.mxu0 0.0
        %4273 = vmatprep.subr.mxu0 0.0
        %4274 = vmatpush1.msra.mxu0 0.0
        %4275 = vmatprep.subr.mxu0 0.0
        %4276 = vmatpush1.msra.mxu0 0.0
        %4277 = vmatprep.subr.mxu0 0.0
        %4278 = vmatpush1.msra.mxu0 0.0
        %4279 = vmatprep.subr.mxu0 0.0
        %4280 = vmatpush1.msra.mxu0 0.0
        %4281 = vmatprep.subr.mxu0 0.0
        %4282 = vmatpush1.msra.mxu0 0.0
        %4283 = vmatprep.subr.mxu0 0.0
        %4284 = vmatpush1.msra.mxu0 0.0
        %4285 = vmatprep.subr.mxu0 0.0
        %4286 = vmatpush1.msra.mxu0 0.0
        %4287 = vmatprep.subr.mxu0 0.0
        %4288 = vmatpush1.msra.mxu0 0.0
        %4289 = vmatprep.subr.mxu0 0.0
        %4290 = vmatpush1.msra.mxu0 0.0
        %4291 = vmatprep.subr.mxu0 0.0
        %4292 = vmatpush1.msra.mxu0 0.0
        %4293 = vmatprep.subr.mxu0 0.0
        %4294 = vmatpush1.msra.mxu0 0.0
        %4295 = vmatprep.subr.mxu0 0.0
        %4296 = vmatpush1.msra.mxu0 0.0
        %4297 = vmatprep.subr.mxu0 0.0
        %4298 = vmatpush1.msra.mxu0 0.0
        %4299 = vmatprep.subr.mxu0 0.0
        %4300 = vmatpush1.msra.mxu0 0.0
        %4301 = vmatprep.subr.mxu0 0.0
        %4302 = vmatpush1.msra.mxu0 0.0
        %4303 = vmatprep.subr.mxu0 0.0
        %4304 = vmatpush1.msra.mxu0 0.0
        %4305 = vmatprep.subr.mxu0 0.0
        %4306 = vmatpush1.msra.mxu0 0.0
        %4307 = vmatprep.subr.mxu0 0.0
        %4308 = vmatpush1.msra.mxu0 0.0
        %4309 = vmatprep.subr.mxu0 0.0
        %4310 = vmatpush1.msra.mxu0 0.0
        %4311 = vmatprep.subr.mxu0 0.0
        %4312 = vmatpush1.msra.mxu0 0.0
        %4313 = vmatprep.subr.mxu0 0.0
        %4314 = vmatpush1.msra.mxu0 0.0
        %4315 = vmatprep.subr.mxu0 0.0
        %4316 = vmatpush1.msra.mxu0 0.0
        %4317 = vmatprep.subr.mxu0 0.0
        %4318 = vmatpush1.msra.mxu0 0.0
        %4319 = vmatprep.subr.mxu0 0.0
        %4320 = vmatpush1.msra.mxu0 0.0
        %4321 = vmatprep.subr.mxu0 0.0
        %4322 = vmatpush1.msra.mxu0 0.0
        %4323 = vmatprep.subr.mxu0 0.0
        %4324 = vmatpush1.msra.mxu0 0.0
        %4325 = vmatprep.subr.mxu0 0.0
        %4326 = vmatpush1.msra.mxu0 0.0
        %4327 = vmatprep.subr.mxu0 0.0
        %4328 = vmatpush1.msra.mxu0 0.0
        %4329 = vmatprep.mubr.f32.mxu0 0.0
        %4330 = vmatmul.mubr.f32.gmra.mrb[0].mxu0 %v4257
        %v4331 = vpop.f32.mrb[0].mxu0
        %v4332 = vadd.f32 0.0, %v4331
        %v4333 = vpop.f32.mrb[0].mxu0
        %v4334 = vadd.f32 0.0, %v4333
        %4335 = vdwg.mxu0
        %4336 = vmatprep.subr.mxu0 0.0
        %4337 = vmatpush1.msra.mxu0 %v4263
        %4338 = vmatprep.subr.mxu0 0.0
        %4339 = vmatpush1.msra.mxu0 0.0
        %4340 = vmatprep.subr.mxu0 0.0
        %4341 = vmatpush1.msra.mxu0 0.0
        %4342 = vmatprep.subr.mxu0 0.0
        %4343 = vmatpush1.msra.mxu0 0.0
        %4344 = vmatprep.subr.mxu0 0.0
        %4345 = vmatpush1.msra.mxu0 0.0
        %4346 = vmatprep.subr.mxu0 0.0
        %4347 = vmatpush1.msra.mxu0 0.0
        %4348 = vmatprep.subr.mxu0 0.0
        %4349 = vmatpush1.msra.mxu0 0.0
        %4350 = vmatprep.subr.mxu0 0.0
        %4351 = vmatpush1.msra.mxu0 0.0
        %4352 = vmatprep.subr.mxu0 0.0
        %4353 = vmatpush1.msra.mxu0 0.0
        %4354 = vmatprep.subr.mxu0 0.0
        %4355 = vmatpush1.msra.mxu0 0.0
        %4356 = vmatprep.subr.mxu0 0.0
        %4357 = vmatpush1.msra.mxu0 0.0
        %4358 = vmatprep.subr.mxu0 0.0
        %4359 = vmatpush1.msra.mxu0 0.0
        %4360 = vmatprep.subr.mxu0 0.0
        %4361 = vmatpush1.msra.mxu0 0.0
        %4362 = vmatprep.subr.mxu0 0.0
        %4363 = vmatpush1.msra.mxu0 0.0
        %4364 = vmatprep.subr.mxu0 0.0
        %4365 = vmatpush1.msra.mxu0 0.0
        %4366 = vmatprep.subr.mxu0 0.0
        %4367 = vmatpush1.msra.mxu0 0.0
        %4368 = vmatprep.subr.mxu0 0.0
        %4369 = vmatpush1.msra.mxu0 0.0
        %4370 = vmatprep.subr.mxu0 0.0
        %4371 = vmatpush1.msra.mxu0 0.0
        %4372 = vmatprep.subr.mxu0 0.0
        %4373 = vmatpush1.msra.mxu0 0.0
        %4374 = vmatprep.subr.mxu0 0.0
        %4375 = vmatpush1.msra.mxu0 0.0
        %4376 = vmatprep.subr.mxu0 0.0
        %4377 = vmatpush1.msra.mxu0 0.0
        %4378 = vmatprep.subr.mxu0 0.0
        %4379 = vmatpush1.msra.mxu0 0.0
        %4380 = vmatprep.subr.mxu0 0.0
        %4381 = vmatpush1.msra.mxu0 0.0
        %4382 = vmatprep.subr.mxu0 0.0
        %4383 = vmatpush1.msra.mxu0 0.0
        %4384 = vmatprep.subr.mxu0 0.0
        %4385 = vmatpush1.msra.mxu0 0.0
        %4386 = vmatprep.subr.mxu0 0.0
        %4387 = vmatpush1.msra.mxu0 0.0
        %4388 = vmatprep.subr.mxu0 0.0
        %4389 = vmatpush1.msra.mxu0 0.0
        %4390 = vmatprep.subr.mxu0 0.0
        %4391 = vmatpush1.msra.mxu0 0.0
        %4392 = vmatprep.subr.mxu0 0.0
        %4393 = vmatpush1.msra.mxu0 0.0
        %4394 = vmatprep.subr.mxu0 0.0
        %4395 = vmatpush1.msra.mxu0 0.0
        %4396 = vmatprep.subr.mxu0 0.0
        %4397 = vmatpush1.msra.mxu0 0.0
        %4398 = vmatprep.subr.mxu0 0.0
        %4399 = vmatpush1.msra.mxu0 0.0
        %4400 = vmatprep.mubr.f32.mxu0 0.0
        %4401 = vmatmul.mubr.f32.gmra.mrb[0].mxu0 %v4257
        %v4402 = vpop.f32.mrb[0].mxu0
        %v4403 = vadd.f32 0.0, %v4402
        %v4404 = vpop.f32.mrb[0].mxu0
        %4405 = vdwg.mxu0
        %v4406 = vadd.f32 %v4237, %v4332
        %v4407 = vadd.f32 %v4238, %v4334
        %v4408 = vadd.f32 %v4239, %v4403
        %v4409 = vld [vmem:[#allocation2] sm:$0xff]
        %v4410 = vld [vmem:[#allocation2 + $0x8] sm:$0xff]
        %v4411 = vld [vmem:[#allocation3] sm:$0xff]
        %v4412 = vld [vmem:[#allocation3 + $0x8] sm:$0xff]
        %s4413 = scalar_lea.vmem %s3, 12
        %v4414 = vld [vmem:[%s4413] sm:$0xf]
        %v4417 = vcombine.high %v4409, %v4409
        %v4418 = vcombine.high %v4410, %v4410
        %4419 = vrot.lane.b32.xlu0 %v4409, 1
        %v4420 = vpop.permute.xlu0 %4419
        %4421 = vrot.lane.b32.xlu0 %v4417, 1
        %v4422 = vpop.permute.xlu0 %4421
        %4423 = vrot.lane.b32.xlu0 %v4410, 1
        %v4424 = vpop.permute.xlu0 %4423
        %4425 = vrot.lane.b32.xlu0 %v4418, 1
        %v4426 = vpop.permute.xlu0 %4425
        %v4427 = vsel %vm1293, %v4420, %v4422
        %v4428 = vsel %vm1293, %v4422, %v4424
        %v4429 = vsel %vm1293, %v4424, %v4426
        %v4431 = vsel %vm264, %v4414, 0
        %v4433 = vsel %vm267, %v4427, 0
        %v4435 = vsel %vm267, %v4428, 0
        %v4437 = vsel %vm267, %v4429, 0
        %4439 = vmatprep.subr.mxu0 %v4435
        %4440 = vmatpush1.msra.mxu0 %v4433
        %4441 = vmatprep.subr.mxu0 0.0
        %4442 = vmatpush1.msra.mxu0 0.0
        %4443 = vmatprep.subr.mxu0 0.0
        %4444 = vmatpush1.msra.mxu0 0.0
        %4445 = vmatprep.subr.mxu0 0.0
        %4446 = vmatpush1.msra.mxu0 0.0
        %4447 = vmatprep.subr.mxu0 0.0
        %4448 = vmatpush1.msra.mxu0 0.0
        %4449 = vmatprep.subr.mxu0 0.0
        %4450 = vmatpush1.msra.mxu0 0.0
        %4451 = vmatprep.subr.mxu0 0.0
        %4452 = vmatpush1.msra.mxu0 0.0
        %4453 = vmatprep.subr.mxu0 0.0
        %4454 = vmatpush1.msra.mxu0 0.0
        %4455 = vmatprep.subr.mxu0 0.0
        %4456 = vmatpush1.msra.mxu0 0.0
        %4457 = vmatprep.subr.mxu0 0.0
        %4458 = vmatpush1.msra.mxu0 0.0
        %4459 = vmatprep.subr.mxu0 0.0
        %4460 = vmatpush1.msra.mxu0 0.0
        %4461 = vmatprep.subr.mxu0 0.0
        %4462 = vmatpush1.msra.mxu0 0.0
        %4463 = vmatprep.subr.mxu0 0.0
        %4464 = vmatpush1.msra.mxu0 0.0
        %4465 = vmatprep.subr.mxu0 0.0
        %4466 = vmatpush1.msra.mxu0 0.0
        %4467 = vmatprep.subr.mxu0 0.0
        %4468 = vmatpush1.msra.mxu0 0.0
        %4469 = vmatprep.subr.mxu0 0.0
        %4470 = vmatpush1.msra.mxu0 0.0
        %4471 = vmatprep.subr.mxu0 0.0
        %4472 = vmatpush1.msra.mxu0 0.0
        %4473 = vmatprep.subr.mxu0 0.0
        %4474 = vmatpush1.msra.mxu0 0.0
        %4475 = vmatprep.subr.mxu0 0.0
        %4476 = vmatpush1.msra.mxu0 0.0
        %4477 = vmatprep.subr.mxu0 0.0
        %4478 = vmatpush1.msra.mxu0 0.0
        %4479 = vmatprep.subr.mxu0 0.0
        %4480 = vmatpush1.msra.mxu0 0.0
        %4481 = vmatprep.subr.mxu0 0.0
        %4482 = vmatpush1.msra.mxu0 0.0
        %4483 = vmatprep.subr.mxu0 0.0
        %4484 = vmatpush1.msra.mxu0 0.0
        %4485 = vmatprep.subr.mxu0 0.0
        %4486 = vmatpush1.msra.mxu0 0.0
        %4487 = vmatprep.subr.mxu0 0.0
        %4488 = vmatpush1.msra.mxu0 0.0
        %4489 = vmatprep.subr.mxu0 0.0
        %4490 = vmatpush1.msra.mxu0 0.0
        %4491 = vmatprep.subr.mxu0 0.0
        %4492 = vmatpush1.msra.mxu0 0.0
        %4493 = vmatprep.subr.mxu0 0.0
        %4494 = vmatpush1.msra.mxu0 0.0
        %4495 = vmatprep.subr.mxu0 0.0
        %4496 = vmatpush1.msra.mxu0 0.0
        %4497 = vmatprep.subr.mxu0 0.0
        %4498 = vmatpush1.msra.mxu0 0.0
        %4499 = vmatprep.subr.mxu0 0.0
        %4500 = vmatpush1.msra.mxu0 0.0
        %4501 = vmatprep.subr.mxu0 0.0
        %4502 = vmatpush1.msra.mxu0 0.0
        %4503 = vmatprep.mubr.f32.mxu0 0.0
        %4504 = vmatmul.mubr.f32.gmra.mrb[0].mxu0 %v4431
        %v4505 = vpop.f32.mrb[0].mxu0
        %v4506 = vadd.f32 0.0, %v4505
        %v4507 = vpop.f32.mrb[0].mxu0
        %v4508 = vadd.f32 0.0, %v4507
        %4509 = vdwg.mxu0
        %4510 = vmatprep.subr.mxu0 0.0
        %4511 = vmatpush1.msra.mxu0 %v4437
        %4512 = vmatprep.subr.mxu0 0.0
        %4513 = vmatpush1.msra.mxu0 0.0
        %4514 = vmatprep.subr.mxu0 0.0
        %4515 = vmatpush1.msra.mxu0 0.0
        %4516 = vmatprep.subr.mxu0 0.0
        %4517 = vmatpush1.msra.mxu0 0.0
        %4518 = vmatprep.subr.mxu0 0.0
        %4519 = vmatpush1.msra.mxu0 0.0
        %4520 = vmatprep.subr.mxu0 0.0
        %4521 = vmatpush1.msra.mxu0 0.0
        %4522 = vmatprep.subr.mxu0 0.0
        %4523 = vmatpush1.msra.mxu0 0.0
        %4524 = vmatprep.subr.mxu0 0.0
        %4525 = vmatpush1.msra.mxu0 0.0
        %4526 = vmatprep.subr.mxu0 0.0
        %4527 = vmatpush1.msra.mxu0 0.0
        %4528 = vmatprep.subr.mxu0 0.0
        %4529 = vmatpush1.msra.mxu0 0.0
        %4530 = vmatprep.subr.mxu0 0.0
        %4531 = vmatpush1.msra.mxu0 0.0
        %4532 = vmatprep.subr.mxu0 0.0
        %4533 = vmatpush1.msra.mxu0 0.0
        %4534 = vmatprep.subr.mxu0 0.0
        %4535 = vmatpush1.msra.mxu0 0.0
        %4536 = vmatprep.subr.mxu0 0.0
        %4537 = vmatpush1.msra.mxu0 0.0
        %4538 = vmatprep.subr.mxu0 0.0
        %4539 = vmatpush1.msra.mxu0 0.0
        %4540 = vmatprep.subr.mxu0 0.0
        %4541 = vmatpush1.msra.mxu0 0.0
        %4542 = vmatprep.subr.mxu0 0.0
        %4543 = vmatpush1.msra.mxu0 0.0
        %4544 = vmatprep.subr.mxu0 0.0
        %4545 = vmatpush1.msra.mxu0 0.0
        %4546 = vmatprep.subr.mxu0 0.0
        %4547 = vmatpush1.msra.mxu0 0.0
        %4548 = vmatprep.subr.mxu0 0.0
        %4549 = vmatpush1.msra.mxu0 0.0
        %4550 = vmatprep.subr.mxu0 0.0
        %4551 = vmatpush1.msra.mxu0 0.0
        %4552 = vmatprep.subr.mxu0 0.0
        %4553 = vmatpush1.msra.mxu0 0.0
        %4554 = vmatprep.subr.mxu0 0.0
        %4555 = vmatpush1.msra.mxu0 0.0
        %4556 = vmatprep.subr.mxu0 0.0
        %4557 = vmatpush1.msra.mxu0 0.0
        %4558 = vmatprep.subr.mxu0 0.0
        %4559 = vmatpush1.msra.mxu0 0.0
        %4560 = vmatprep.subr.mxu0 0.0
        %4561 = vmatpush1.msra.mxu0 0.0
        %4562 = vmatprep.subr.mxu0 0.0
        %4563 = vmatpush1.msra.mxu0 0.0
        %4564 = vmatprep.subr.mxu0 0.0
        %4565 = vmatpush1.msra.mxu0 0.0
        %4566 = vmatprep.subr.mxu0 0.0
        %4567 = vmatpush1.msra.mxu0 0.0
        %4568 = vmatprep.subr.mxu0 0.0
        %4569 = vmatpush1.msra.mxu0 0.0
        %4570 = vmatprep.subr.mxu0 0.0
        %4571 = vmatpush1.msra.mxu0 0.0
        %4572 = vmatprep.subr.mxu0 0.0
        %4573 = vmatpush1.msra.mxu0 0.0
        %4574 = vmatprep.mubr.f32.mxu0 0.0
        %4575 = vmatmul.mubr.f32.gmra.mrb[0].mxu0 %v4431
        %v4576 = vpop.f32.mrb[0].mxu0
        %v4577 = vadd.f32 0.0, %v4576
        %v4578 = vpop.f32.mrb[0].mxu0
        %4579 = vdwg.mxu0
        %v4580 = vadd.f32 %v4406, %v4506
        %v4581 = vadd.f32 %v4407, %v4508
        %v4582 = vadd.f32 %v4408, %v4577
        %4583 = vrot.lane.b32.xlu0 %v4414, 124
        %v4584 = vpop.permute.xlu0 %4583
        %v4587 = vcombine.high %v4411, %v4411
        %v4588 = vcombine.high %v4412, %v4412
        %4589 = vrot.lane.b32.xlu0 %v4411, 1
        %v4590 = vpop.permute.xlu0 %4589
        %4591 = vrot.lane.b32.xlu0 %v4587, 1
        %v4592 = vpop.permute.xlu0 %4591
        %4593 = vrot.lane.b32.xlu0 %v4412, 1
        %v4594 = vpop.permute.xlu0 %4593
        %4595 = vrot.lane.b32.xlu0 %v4588, 1
        %v4596 = vpop.permute.xlu0 %4595
        %v4597 = vsel %vm1293, %v4590, %v4592
        %v4598 = vsel %vm1293, %v4592, %v4594
        %v4599 = vsel %vm1293, %v4594, %v4596
        %v4600 = vsel %vm264, %v4584, 0
        %v4602 = vsel %vm267, %v4597, 0
        %v4604 = vsel %vm267, %v4598, 0
        %v4606 = vsel %vm267, %v4599, 0
        %4608 = vmatprep.subr.mxu0 %v4604
        %4609 = vmatpush1.msra.mxu0 %v4602
        %4610 = vmatprep.subr.mxu0 0.0
        %4611 = vmatpush1.msra.mxu0 0.0
        %4612 = vmatprep.subr.mxu0 0.0
        %4613 = vmatpush1.msra.mxu0 0.0
        %4614 = vmatprep.subr.mxu0 0.0
        %4615 = vmatpush1.msra.mxu0 0.0
        %4616 = vmatprep.subr.mxu0 0.0
        %4617 = vmatpush1.msra.mxu0 0.0
        %4618 = vmatprep.subr.mxu0 0.0
        %4619 = vmatpush1.msra.mxu0 0.0
        %4620 = vmatprep.subr.mxu0 0.0
        %4621 = vmatpush1.msra.mxu0 0.0
        %4622 = vmatprep.subr.mxu0 0.0
        %4623 = vmatpush1.msra.mxu0 0.0
        %4624 = vmatprep.subr.mxu0 0.0
        %4625 = vmatpush1.msra.mxu0 0.0
        %4626 = vmatprep.subr.mxu0 0.0
        %4627 = vmatpush1.msra.mxu0 0.0
        %4628 = vmatprep.subr.mxu0 0.0
        %4629 = vmatpush1.msra.mxu0 0.0
        %4630 = vmatprep.subr.mxu0 0.0
        %4631 = vmatpush1.msra.mxu0 0.0
        %4632 = vmatprep.subr.mxu0 0.0
        %4633 = vmatpush1.msra.mxu0 0.0
        %4634 = vmatprep.subr.mxu0 0.0
        %4635 = vmatpush1.msra.mxu0 0.0
        %4636 = vmatprep.subr.mxu0 0.0
        %4637 = vmatpush1.msra.mxu0 0.0
        %4638 = vmatprep.subr.mxu0 0.0
        %4639 = vmatpush1.msra.mxu0 0.0
        %4640 = vmatprep.subr.mxu0 0.0
        %4641 = vmatpush1.msra.mxu0 0.0
        %4642 = vmatprep.subr.mxu0 0.0
        %4643 = vmatpush1.msra.mxu0 0.0
        %4644 = vmatprep.subr.mxu0 0.0
        %4645 = vmatpush1.msra.mxu0 0.0
        %4646 = vmatprep.subr.mxu0 0.0
        %4647 = vmatpush1.msra.mxu0 0.0
        %4648 = vmatprep.subr.mxu0 0.0
        %4649 = vmatpush1.msra.mxu0 0.0
        %4650 = vmatprep.subr.mxu0 0.0
        %4651 = vmatpush1.msra.mxu0 0.0
        %4652 = vmatprep.subr.mxu0 0.0
        %4653 = vmatpush1.msra.mxu0 0.0
        %4654 = vmatprep.subr.mxu0 0.0
        %4655 = vmatpush1.msra.mxu0 0.0
        %4656 = vmatprep.subr.mxu0 0.0
        %4657 = vmatpush1.msra.mxu0 0.0
        %4658 = vmatprep.subr.mxu0 0.0
        %4659 = vmatpush1.msra.mxu0 0.0
        %4660 = vmatprep.subr.mxu0 0.0
        %4661 = vmatpush1.msra.mxu0 0.0
        %4662 = vmatprep.subr.mxu0 0.0
        %4663 = vmatpush1.msra.mxu0 0.0
        %4664 = vmatprep.subr.mxu0 0.0
        %4665 = vmatpush1.msra.mxu0 0.0
        %4666 = vmatprep.subr.mxu0 0.0
        %4667 = vmatpush1.msra.mxu0 0.0
        %4668 = vmatprep.subr.mxu0 0.0
        %4669 = vmatpush1.msra.mxu0 0.0
        %4670 = vmatprep.subr.mxu0 0.0
        %4671 = vmatpush1.msra.mxu0 0.0
        %4672 = vmatprep.mubr.f32.mxu0 0.0
        %4673 = vmatmul.mubr.f32.gmra.mrb[0].mxu0 %v4600
        %v4674 = vpop.f32.mrb[0].mxu0
        %v4675 = vadd.f32 0.0, %v4674
        %v4676 = vpop.f32.mrb[0].mxu0
        %v4677 = vadd.f32 0.0, %v4676
        %4678 = vdwg.mxu0
        %4679 = vmatprep.subr.mxu0 0.0
        %4680 = vmatpush1.msra.mxu0 %v4606
        %4681 = vmatprep.subr.mxu0 0.0
        %4682 = vmatpush1.msra.mxu0 0.0
        %4683 = vmatprep.subr.mxu0 0.0
        %4684 = vmatpush1.msra.mxu0 0.0
        %4685 = vmatprep.subr.mxu0 0.0
        %4686 = vmatpush1.msra.mxu0 0.0
        %4687 = vmatprep.subr.mxu0 0.0
        %4688 = vmatpush1.msra.mxu0 0.0
        %4689 = vmatprep.subr.mxu0 0.0
        %4690 = vmatpush1.msra.mxu0 0.0
        %4691 = vmatprep.subr.mxu0 0.0
        %4692 = vmatpush1.msra.mxu0 0.0
        %4693 = vmatprep.subr.mxu0 0.0
        %4694 = vmatpush1.msra.mxu0 0.0
        %4695 = vmatprep.subr.mxu0 0.0
        %4696 = vmatpush1.msra.mxu0 0.0
        %4697 = vmatprep.subr.mxu0 0.0
        %4698 = vmatpush1.msra.mxu0 0.0
        %4699 = vmatprep.subr.mxu0 0.0
        %4700 = vmatpush1.msra.mxu0 0.0
        %4701 = vmatprep.subr.mxu0 0.0
        %4702 = vmatpush1.msra.mxu0 0.0
        %4703 = vmatprep.subr.mxu0 0.0
        %4704 = vmatpush1.msra.mxu0 0.0
        %4705 = vmatprep.subr.mxu0 0.0
        %4706 = vmatpush1.msra.mxu0 0.0
        %4707 = vmatprep.subr.mxu0 0.0
        %4708 = vmatpush1.msra.mxu0 0.0
        %4709 = vmatprep.subr.mxu0 0.0
        %4710 = vmatpush1.msra.mxu0 0.0
        %4711 = vmatprep.subr.mxu0 0.0
        %4712 = vmatpush1.msra.mxu0 0.0
        %4713 = vmatprep.subr.mxu0 0.0
        %4714 = vmatpush1.msra.mxu0 0.0
        %4715 = vmatprep.subr.mxu0 0.0
        %4716 = vmatpush1.msra.mxu0 0.0
        %4717 = vmatprep.subr.mxu0 0.0
        %4718 = vmatpush1.msra.mxu0 0.0
        %4719 = vmatprep.subr.mxu0 0.0
        %4720 = vmatpush1.msra.mxu0 0.0
        %4721 = vmatprep.subr.mxu0 0.0
        %4722 = vmatpush1.msra.mxu0 0.0
        %4723 = vmatprep.subr.mxu0 0.0
        %4724 = vmatpush1.msra.mxu0 0.0
        %4725 = vmatprep.subr.mxu0 0.0
        %4726 = vmatpush1.msra.mxu0 0.0
        %4727 = vmatprep.subr.mxu0 0.0
        %4728 = vmatpush1.msra.mxu0 0.0
        %4729 = vmatprep.subr.mxu0 0.0
        %4730 = vmatpush1.msra.mxu0 0.0
        %4731 = vmatprep.subr.mxu0 0.0
        %4732 = vmatpush1.msra.mxu0 0.0
        %4733 = vmatprep.subr.mxu0 0.0
        %4734 = vmatpush1.msra.mxu0 0.0
        %4735 = vmatprep.subr.mxu0 0.0
        %4736 = vmatpush1.msra.mxu0 0.0
        %4737 = vmatprep.subr.mxu0 0.0
        %4738 = vmatpush1.msra.mxu0 0.0
        %4739 = vmatprep.subr.mxu0 0.0
        %4740 = vmatpush1.msra.mxu0 0.0
        %4741 = vmatprep.subr.mxu0 0.0
        %4742 = vmatpush1.msra.mxu0 0.0
        %4743 = vmatprep.mubr.f32.mxu0 0.0
        %4744 = vmatmul.mubr.f32.gmra.mrb[0].mxu0 %v4600
        %v4745 = vpop.f32.mrb[0].mxu0
        %v4746 = vadd.f32 0.0, %v4745
        %v4747 = vpop.f32.mrb[0].mxu0
        %4748 = vdwg.mxu0
        %v4749 = vadd.f32 %v4580, %v4675
        %v4750 = vadd.f32 %v4581, %v4677
        %v4751 = vadd.f32 %v4582, %v4746
        %v4752 = vld [vmem:[#allocation2 + $0x4] sm:$0xff]
        %v4753 = vld [vmem:[#allocation2 + $0xc] sm:$0xf]
        %v4754 = vld [vmem:[#allocation3 + $0x4] sm:$0xff]
        %v4755 = vld [vmem:[#allocation3 + $0xc] sm:$0xf]
        %s4756 = scalar_lea.vmem %s3, 16
        %v4757 = vld [vmem:[%s4756] sm:$0xf]
        %v4760 = vcombine.high %v4752, %v4752
        %v4762 = vsel %vm264, %v4757, 0
        %v4764 = vsel %vm267, %v4752, 0
        %v4766 = vsel %vm267, %v4760, 0
        %v4768 = vsel %vm267, %v4753, 0
        %4770 = vmatprep.subr.mxu0 %v4766
        %4771 = vmatpush1.msra.mxu0 %v4764
        %4772 = vmatprep.subr.mxu0 0.0
        %4773 = vmatpush1.msra.mxu0 0.0
        %4774 = vmatprep.subr.mxu0 0.0
        %4775 = vmatpush1.msra.mxu0 0.0
        %4776 = vmatprep.subr.mxu0 0.0
        %4777 = vmatpush1.msra.mxu0 0.0
        %4778 = vmatprep.subr.mxu0 0.0
        %4779 = vmatpush1.msra.mxu0 0.0
        %4780 = vmatprep.subr.mxu0 0.0
        %4781 = vmatpush1.msra.mxu0 0.0
        %4782 = vmatprep.subr.mxu0 0.0
        %4783 = vmatpush1.msra.mxu0 0.0
        %4784 = vmatprep.subr.mxu0 0.0
        %4785 = vmatpush1.msra.mxu0 0.0
        %4786 = vmatprep.subr.mxu0 0.0
        %4787 = vmatpush1.msra.mxu0 0.0
        %4788 = vmatprep.subr.mxu0 0.0
        %4789 = vmatpush1.msra.mxu0 0.0
        %4790 = vmatprep.subr.mxu0 0.0
        %4791 = vmatpush1.msra.mxu0 0.0
        %4792 = vmatprep.subr.mxu0 0.0
        %4793 = vmatpush1.msra.mxu0 0.0
        %4794 = vmatprep.subr.mxu0 0.0
        %4795 = vmatpush1.msra.mxu0 0.0
        %4796 = vmatprep.subr.mxu0 0.0
        %4797 = vmatpush1.msra.mxu0 0.0
        %4798 = vmatprep.subr.mxu0 0.0
        %4799 = vmatpush1.msra.mxu0 0.0
        %4800 = vmatprep.subr.mxu0 0.0
        %4801 = vmatpush1.msra.mxu0 0.0
        %4802 = vmatprep.subr.mxu0 0.0
        %4803 = vmatpush1.msra.mxu0 0.0
        %4804 = vmatprep.subr.mxu0 0.0
        %4805 = vmatpush1.msra.mxu0 0.0
        %4806 = vmatprep.subr.mxu0 0.0
        %4807 = vmatpush1.msra.mxu0 0.0
        %4808 = vmatprep.subr.mxu0 0.0
        %4809 = vmatpush1.msra.mxu0 0.0
        %4810 = vmatprep.subr.mxu0 0.0
        %4811 = vmatpush1.msra.mxu0 0.0
        %4812 = vmatprep.subr.mxu0 0.0
        %4813 = vmatpush1.msra.mxu0 0.0
        %4814 = vmatprep.subr.mxu0 0.0
        %4815 = vmatpush1.msra.mxu0 0.0
        %4816 = vmatprep.subr.mxu0 0.0
        %4817 = vmatpush1.msra.mxu0 0.0
        %4818 = vmatprep.subr.mxu0 0.0
        %4819 = vmatpush1.msra.mxu0 0.0
        %4820 = vmatprep.subr.mxu0 0.0
        %4821 = vmatpush1.msra.mxu0 0.0
        %4822 = vmatprep.subr.mxu0 0.0
        %4823 = vmatpush1.msra.mxu0 0.0
        %4824 = vmatprep.subr.mxu0 0.0
        %4825 = vmatpush1.msra.mxu0 0.0
        %4826 = vmatprep.subr.mxu0 0.0
        %4827 = vmatpush1.msra.mxu0 0.0
        %4828 = vmatprep.subr.mxu0 0.0
        %4829 = vmatpush1.msra.mxu0 0.0
        %4830 = vmatprep.subr.mxu0 0.0
        %4831 = vmatpush1.msra.mxu0 0.0
        %4832 = vmatprep.subr.mxu0 0.0
        %4833 = vmatpush1.msra.mxu0 0.0
        %4834 = vmatprep.mubr.f32.mxu0 0.0
        %4835 = vmatmul.mubr.f32.gmra.mrb[0].mxu0 %v4762
        %v4836 = vpop.f32.mrb[0].mxu0
        %v4837 = vadd.f32 0.0, %v4836
        %v4838 = vpop.f32.mrb[0].mxu0
        %v4839 = vadd.f32 0.0, %v4838
        %4840 = vdwg.mxu0
        %4841 = vmatprep.subr.mxu0 0.0
        %4842 = vmatpush1.msra.mxu0 %v4768
        %4843 = vmatprep.subr.mxu0 0.0
        %4844 = vmatpush1.msra.mxu0 0.0
        %4845 = vmatprep.subr.mxu0 0.0
        %4846 = vmatpush1.msra.mxu0 0.0
        %4847 = vmatprep.subr.mxu0 0.0
        %4848 = vmatpush1.msra.mxu0 0.0
        %4849 = vmatprep.subr.mxu0 0.0
        %4850 = vmatpush1.msra.mxu0 0.0
        %4851 = vmatprep.subr.mxu0 0.0
        %4852 = vmatpush1.msra.mxu0 0.0
        %4853 = vmatprep.subr.mxu0 0.0
        %4854 = vmatpush1.msra.mxu0 0.0
        %4855 = vmatprep.subr.mxu0 0.0
        %4856 = vmatpush1.msra.mxu0 0.0
        %4857 = vmatprep.subr.mxu0 0.0
        %4858 = vmatpush1.msra.mxu0 0.0
        %4859 = vmatprep.subr.mxu0 0.0
        %4860 = vmatpush1.msra.mxu0 0.0
        %4861 = vmatprep.subr.mxu0 0.0
        %4862 = vmatpush1.msra.mxu0 0.0
        %4863 = vmatprep.subr.mxu0 0.0
        %4864 = vmatpush1.msra.mxu0 0.0
        %4865 = vmatprep.subr.mxu0 0.0
        %4866 = vmatpush1.msra.mxu0 0.0
        %4867 = vmatprep.subr.mxu0 0.0
        %4868 = vmatpush1.msra.mxu0 0.0
        %4869 = vmatprep.subr.mxu0 0.0
        %4870 = vmatpush1.msra.mxu0 0.0
        %4871 = vmatprep.subr.mxu0 0.0
        %4872 = vmatpush1.msra.mxu0 0.0
        %4873 = vmatprep.subr.mxu0 0.0
        %4874 = vmatpush1.msra.mxu0 0.0
        %4875 = vmatprep.subr.mxu0 0.0
        %4876 = vmatpush1.msra.mxu0 0.0
        %4877 = vmatprep.subr.mxu0 0.0
        %4878 = vmatpush1.msra.mxu0 0.0
        %4879 = vmatprep.subr.mxu0 0.0
        %4880 = vmatpush1.msra.mxu0 0.0
        %4881 = vmatprep.subr.mxu0 0.0
        %4882 = vmatpush1.msra.mxu0 0.0
        %4883 = vmatprep.subr.mxu0 0.0
        %4884 = vmatpush1.msra.mxu0 0.0
        %4885 = vmatprep.subr.mxu0 0.0
        %4886 = vmatpush1.msra.mxu0 0.0
        %4887 = vmatprep.subr.mxu0 0.0
        %4888 = vmatpush1.msra.mxu0 0.0
        %4889 = vmatprep.subr.mxu0 0.0
        %4890 = vmatpush1.msra.mxu0 0.0
        %4891 = vmatprep.subr.mxu0 0.0
        %4892 = vmatpush1.msra.mxu0 0.0
        %4893 = vmatprep.subr.mxu0 0.0
        %4894 = vmatpush1.msra.mxu0 0.0
        %4895 = vmatprep.subr.mxu0 0.0
        %4896 = vmatpush1.msra.mxu0 0.0
        %4897 = vmatprep.subr.mxu0 0.0
        %4898 = vmatpush1.msra.mxu0 0.0
        %4899 = vmatprep.subr.mxu0 0.0
        %4900 = vmatpush1.msra.mxu0 0.0
        %4901 = vmatprep.subr.mxu0 0.0
        %4902 = vmatpush1.msra.mxu0 0.0
        %4903 = vmatprep.subr.mxu0 0.0
        %4904 = vmatpush1.msra.mxu0 0.0
        %4905 = vmatprep.mubr.f32.mxu0 0.0
        %4906 = vmatmul.mubr.f32.gmra.mrb[0].mxu0 %v4762
        %v4907 = vpop.f32.mrb[0].mxu0
        %v4908 = vadd.f32 0.0, %v4907
        %v4909 = vpop.f32.mrb[0].mxu0
        %4910 = vdwg.mxu0
        %v4911 = vadd.f32 %v4749, %v4837
        %v4912 = vadd.f32 %v4750, %v4839
        %v4913 = vadd.f32 %v4751, %v4908
        %4914 = vrot.lane.b32.xlu0 %v4757, 124
        %v4915 = vpop.permute.xlu0 %4914
        %v4918 = vcombine.high %v4754, %v4754
        %v4919 = vsel %vm264, %v4915, 0
        %v4921 = vsel %vm267, %v4754, 0
        %v4923 = vsel %vm267, %v4918, 0
        %v4925 = vsel %vm267, %v4755, 0
        %4927 = vmatprep.subr.mxu0 %v4923
        %4928 = vmatpush1.msra.mxu0 %v4921
        %4929 = vmatprep.subr.mxu0 0.0
        %4930 = vmatpush1.msra.mxu0 0.0
        %4931 = vmatprep.subr.mxu0 0.0
        %4932 = vmatpush1.msra.mxu0 0.0
        %4933 = vmatprep.subr.mxu0 0.0
        %4934 = vmatpush1.msra.mxu0 0.0
        %4935 = vmatprep.subr.mxu0 0.0
        %4936 = vmatpush1.msra.mxu0 0.0
        %4937 = vmatprep.subr.mxu0 0.0
        %4938 = vmatpush1.msra.mxu0 0.0
        %4939 = vmatprep.subr.mxu0 0.0
        %4940 = vmatpush1.msra.mxu0 0.0
        %4941 = vmatprep.subr.mxu0 0.0
        %4942 = vmatpush1.msra.mxu0 0.0
        %4943 = vmatprep.subr.mxu0 0.0
        %4944 = vmatpush1.msra.mxu0 0.0
        %4945 = vmatprep.subr.mxu0 0.0
        %4946 = vmatpush1.msra.mxu0 0.0
        %4947 = vmatprep.subr.mxu0 0.0
        %4948 = vmatpush1.msra.mxu0 0.0
        %4949 = vmatprep.subr.mxu0 0.0
        %4950 = vmatpush1.msra.mxu0 0.0
        %4951 = vmatprep.subr.mxu0 0.0
        %4952 = vmatpush1.msra.mxu0 0.0
        %4953 = vmatprep.subr.mxu0 0.0
        %4954 = vmatpush1.msra.mxu0 0.0
        %4955 = vmatprep.subr.mxu0 0.0
        %4956 = vmatpush1.msra.mxu0 0.0
        %4957 = vmatprep.subr.mxu0 0.0
        %4958 = vmatpush1.msra.mxu0 0.0
        %4959 = vmatprep.subr.mxu0 0.0
        %4960 = vmatpush1.msra.mxu0 0.0
        %4961 = vmatprep.subr.mxu0 0.0
        %4962 = vmatpush1.msra.mxu0 0.0
        %4963 = vmatprep.subr.mxu0 0.0
        %4964 = vmatpush1.msra.mxu0 0.0
        %4965 = vmatprep.subr.mxu0 0.0
        %4966 = vmatpush1.msra.mxu0 0.0
        %4967 = vmatprep.subr.mxu0 0.0
        %4968 = vmatpush1.msra.mxu0 0.0
        %4969 = vmatprep.subr.mxu0 0.0
        %4970 = vmatpush1.msra.mxu0 0.0
        %4971 = vmatprep.subr.mxu0 0.0
        %4972 = vmatpush1.msra.mxu0 0.0
        %4973 = vmatprep.subr.mxu0 0.0
        %4974 = vmatpush1.msra.mxu0 0.0
        %4975 = vmatprep.subr.mxu0 0.0
        %4976 = vmatpush1.msra.mxu0 0.0
        %4977 = vmatprep.subr.mxu0 0.0
        %4978 = vmatpush1.msra.mxu0 0.0
        %4979 = vmatprep.subr.mxu0 0.0
        %4980 = vmatpush1.msra.mxu0 0.0
        %4981 = vmatprep.subr.mxu0 0.0
        %4982 = vmatpush1.msra.mxu0 0.0
        %4983 = vmatprep.subr.mxu0 0.0
        %4984 = vmatpush1.msra.mxu0 0.0
        %4985 = vmatprep.subr.mxu0 0.0
        %4986 = vmatpush1.msra.mxu0 0.0
        %4987 = vmatprep.subr.mxu0 0.0
        %4988 = vmatpush1.msra.mxu0 0.0
        %4989 = vmatprep.subr.mxu0 0.0
        %4990 = vmatpush1.msra.mxu0 0.0
        %4991 = vmatprep.mubr.f32.mxu0 0.0
        %4992 = vmatmul.mubr.f32.gmra.mrb[0].mxu0 %v4919
        %v4993 = vpop.f32.mrb[0].mxu0
        %v4994 = vadd.f32 0.0, %v4993
        %v4995 = vpop.f32.mrb[0].mxu0
        %v4996 = vadd.f32 0.0, %v4995
        %4997 = vdwg.mxu0
        %4998 = vmatprep.subr.mxu0 0.0
        %4999 = vmatpush1.msra.mxu0 %v4925
        %5000 = vmatprep.subr.mxu0 0.0
        %5001 = vmatpush1.msra.mxu0 0.0
        %5002 = vmatprep.subr.mxu0 0.0
        %5003 = vmatpush1.msra.mxu0 0.0
        %5004 = vmatprep.subr.mxu0 0.0
        %5005 = vmatpush1.msra.mxu0 0.0
        %5006 = vmatprep.subr.mxu0 0.0
        %5007 = vmatpush1.msra.mxu0 0.0
        %5008 = vmatprep.subr.mxu0 0.0
        %5009 = vmatpush1.msra.mxu0 0.0
        %5010 = vmatprep.subr.mxu0 0.0
        %5011 = vmatpush1.msra.mxu0 0.0
        %5012 = vmatprep.subr.mxu0 0.0
        %5013 = vmatpush1.msra.mxu0 0.0
        %5014 = vmatprep.subr.mxu0 0.0
        %5015 = vmatpush1.msra.mxu0 0.0
        %5016 = vmatprep.subr.mxu0 0.0
        %5017 = vmatpush1.msra.mxu0 0.0
        %5018 = vmatprep.subr.mxu0 0.0
        %5019 = vmatpush1.msra.mxu0 0.0
        %5020 = vmatprep.subr.mxu0 0.0
        %5021 = vmatpush1.msra.mxu0 0.0
        %5022 = vmatprep.subr.mxu0 0.0
        %5023 = vmatpush1.msra.mxu0 0.0
        %5024 = vmatprep.subr.mxu0 0.0
        %5025 = vmatpush1.msra.mxu0 0.0
        %5026 = vmatprep.subr.mxu0 0.0
        %5027 = vmatpush1.msra.mxu0 0.0
        %5028 = vmatprep.subr.mxu0 0.0
        %5029 = vmatpush1.msra.mxu0 0.0
        %5030 = vmatprep.subr.mxu0 0.0
        %5031 = vmatpush1.msra.mxu0 0.0
        %5032 = vmatprep.subr.mxu0 0.0
        %5033 = vmatpush1.msra.mxu0 0.0
        %5034 = vmatprep.subr.mxu0 0.0
        %5035 = vmatpush1.msra.mxu0 0.0
        %5036 = vmatprep.subr.mxu0 0.0
        %5037 = vmatpush1.msra.mxu0 0.0
        %5038 = vmatprep.subr.mxu0 0.0
        %5039 = vmatpush1.msra.mxu0 0.0
        %5040 = vmatprep.subr.mxu0 0.0
        %5041 = vmatpush1.msra.mxu0 0.0
        %5042 = vmatprep.subr.mxu0 0.0
        %5043 = vmatpush1.msra.mxu0 0.0
        %5044 = vmatprep.subr.mxu0 0.0
        %5045 = vmatpush1.msra.mxu0 0.0
        %5046 = vmatprep.subr.mxu0 0.0
        %5047 = vmatpush1.msra.mxu0 0.0
        %5048 = vmatprep.subr.mxu0 0.0
        %5049 = vmatpush1.msra.mxu0 0.0
        %5050 = vmatprep.subr.mxu0 0.0
        %5051 = vmatpush1.msra.mxu0 0.0
        %5052 = vmatprep.subr.mxu0 0.0
        %5053 = vmatpush1.msra.mxu0 0.0
        %5054 = vmatprep.subr.mxu0 0.0
        %5055 = vmatpush1.msra.mxu0 0.0
        %5056 = vmatprep.subr.mxu0 0.0
        %5057 = vmatpush1.msra.mxu0 0.0
        %5058 = vmatprep.subr.mxu0 0.0
        %5059 = vmatpush1.msra.mxu0 0.0
        %5060 = vmatprep.subr.mxu0 0.0
        %5061 = vmatpush1.msra.mxu0 0.0
        %5062 = vmatprep.mubr.f32.mxu0 0.0
        %5063 = vmatmul.mubr.f32.gmra.mrb[0].mxu0 %v4919
        %v5064 = vpop.f32.mrb[0].mxu0
        %v5065 = vadd.f32 0.0, %v5064
        %v5066 = vpop.f32.mrb[0].mxu0
        %5067 = vdwg.mxu0
        %v5068 = vadd.f32 %v4911, %v4994
        %v5069 = vadd.f32 %v4912, %v4996
        %v5070 = vadd.f32 %v4913, %v5065
        %v5071 = vld [vmem:[#allocation2 + $0x4] sm:$0xff]
        %v5072 = vld [vmem:[#allocation2 + $0xc] sm:$0xff]
        %v5073 = vld [vmem:[#allocation3 + $0x4] sm:$0xff]
        %v5074 = vld [vmem:[#allocation3 + $0xc] sm:$0xff]
        %s5075 = scalar_lea.vmem %s3, 20
        %v5076 = vld [vmem:[%s5075] sm:$0xf]
        %v5079 = vcombine.high %v5071, %v5071
        %v5080 = vcombine.high %v5072, %v5072
        %5081 = vrot.lane.b32.xlu0 %v5071, 127
        %v5082 = vpop.permute.xlu0 %5081
        %5083 = vrot.lane.b32.xlu0 %v5079, 127
        %v5084 = vpop.permute.xlu0 %5083
        %5085 = vrot.lane.b32.xlu0 %v5072, 127
        %v5086 = vpop.permute.xlu0 %5085
        %5087 = vrot.lane.b32.xlu0 %v5080, 127
        %v5088 = vpop.permute.xlu0 %5087
        %v5089 = vsel %vm1964, %v5082, %v5084
        %v5090 = vsel %vm1964, %v5084, %v5086
        %v5091 = vsel %vm1964, %v5086, %v5088
        %v5093 = vsel %vm264, %v5076, 0
        %v5095 = vsel %vm267, %v5089, 0
        %v5097 = vsel %vm267, %v5090, 0
        %v5099 = vsel %vm267, %v5091, 0
        %5101 = vmatprep.subr.mxu0 %v5097
        %5102 = vmatpush1.msra.mxu0 %v5095
        %5103 = vmatprep.subr.mxu0 0.0
        %5104 = vmatpush1.msra.mxu0 0.0
        %5105 = vmatprep.subr.mxu0 0.0
        %5106 = vmatpush1.msra.mxu0 0.0
        %5107 = vmatprep.subr.mxu0 0.0
        %5108 = vmatpush1.msra.mxu0 0.0
        %5109 = vmatprep.subr.mxu0 0.0
        %5110 = vmatpush1.msra.mxu0 0.0
        %5111 = vmatprep.subr.mxu0 0.0
        %5112 = vmatpush1.msra.mxu0 0.0
        %5113 = vmatprep.subr.mxu0 0.0
        %5114 = vmatpush1.msra.mxu0 0.0
        %5115 = vmatprep.subr.mxu0 0.0
        %5116 = vmatpush1.msra.mxu0 0.0
        %5117 = vmatprep.subr.mxu0 0.0
        %5118 = vmatpush1.msra.mxu0 0.0
        %5119 = vmatprep.subr.mxu0 0.0
        %5120 = vmatpush1.msra.mxu0 0.0
        %5121 = vmatprep.subr.mxu0 0.0
        %5122 = vmatpush1.msra.mxu0 0.0
        %5123 = vmatprep.subr.mxu0 0.0
        %5124 = vmatpush1.msra.mxu0 0.0
        %5125 = vmatprep.subr.mxu0 0.0
        %5126 = vmatpush1.msra.mxu0 0.0
        %5127 = vmatprep.subr.mxu0 0.0
        %5128 = vmatpush1.msra.mxu0 0.0
        %5129 = vmatprep.subr.mxu0 0.0
        %5130 = vmatpush1.msra.mxu0 0.0
        %5131 = vmatprep.subr.mxu0 0.0
        %5132 = vmatpush1.msra.mxu0 0.0
        %5133 = vmatprep.subr.mxu0 0.0
        %5134 = vmatpush1.msra.mxu0 0.0
        %5135 = vmatprep.subr.mxu0 0.0
        %5136 = vmatpush1.msra.mxu0 0.0
        %5137 = vmatprep.subr.mxu0 0.0
        %5138 = vmatpush1.msra.mxu0 0.0
        %5139 = vmatprep.subr.mxu0 0.0
        %5140 = vmatpush1.msra.mxu0 0.0
        %5141 = vmatprep.subr.mxu0 0.0
        %5142 = vmatpush1.msra.mxu0 0.0
        %5143 = vmatprep.subr.mxu0 0.0
        %5144 = vmatpush1.msra.mxu0 0.0
        %5145 = vmatprep.subr.mxu0 0.0
        %5146 = vmatpush1.msra.mxu0 0.0
        %5147 = vmatprep.subr.mxu0 0.0
        %5148 = vmatpush1.msra.mxu0 0.0
        %5149 = vmatprep.subr.mxu0 0.0
        %5150 = vmatpush1.msra.mxu0 0.0
        %5151 = vmatprep.subr.mxu0 0.0
        %5152 = vmatpush1.msra.mxu0 0.0
        %5153 = vmatprep.subr.mxu0 0.0
        %5154 = vmatpush1.msra.mxu0 0.0
        %5155 = vmatprep.subr.mxu0 0.0
        %5156 = vmatpush1.msra.mxu0 0.0
        %5157 = vmatprep.subr.mxu0 0.0
        %5158 = vmatpush1.msra.mxu0 0.0
        %5159 = vmatprep.subr.mxu0 0.0
        %5160 = vmatpush1.msra.mxu0 0.0
        %5161 = vmatprep.subr.mxu0 0.0
        %5162 = vmatpush1.msra.mxu0 0.0
        %5163 = vmatprep.subr.mxu0 0.0
        %5164 = vmatpush1.msra.mxu0 0.0
        %5165 = vmatprep.mubr.f32.mxu0 0.0
        %5166 = vmatmul.mubr.f32.gmra.mrb[0].mxu0 %v5093
        %v5167 = vpop.f32.mrb[0].mxu0
        %v5168 = vadd.f32 0.0, %v5167
        %v5169 = vpop.f32.mrb[0].mxu0
        %v5170 = vadd.f32 0.0, %v5169
        %5171 = vdwg.mxu0
        %5172 = vmatprep.subr.mxu0 0.0
        %5173 = vmatpush1.msra.mxu0 %v5099
        %5174 = vmatprep.subr.mxu0 0.0
        %5175 = vmatpush1.msra.mxu0 0.0
        %5176 = vmatprep.subr.mxu0 0.0
        %5177 = vmatpush1.msra.mxu0 0.0
        %5178 = vmatprep.subr.mxu0 0.0
        %5179 = vmatpush1.msra.mxu0 0.0
        %5180 = vmatprep.subr.mxu0 0.0
        %5181 = vmatpush1.msra.mxu0 0.0
        %5182 = vmatprep.subr.mxu0 0.0
        %5183 = vmatpush1.msra.mxu0 0.0
        %5184 = vmatprep.subr.mxu0 0.0
        %5185 = vmatpush1.msra.mxu0 0.0
        %5186 = vmatprep.subr.mxu0 0.0
        %5187 = vmatpush1.msra.mxu0 0.0
        %5188 = vmatprep.subr.mxu0 0.0
        %5189 = vmatpush1.msra.mxu0 0.0
        %5190 = vmatprep.subr.mxu0 0.0
        %5191 = vmatpush1.msra.mxu0 0.0
        %5192 = vmatprep.subr.mxu0 0.0
        %5193 = vmatpush1.msra.mxu0 0.0
        %5194 = vmatprep.subr.mxu0 0.0
        %5195 = vmatpush1.msra.mxu0 0.0
        %5196 = vmatprep.subr.mxu0 0.0
        %5197 = vmatpush1.msra.mxu0 0.0
        %5198 = vmatprep.subr.mxu0 0.0
        %5199 = vmatpush1.msra.mxu0 0.0
        %5200 = vmatprep.subr.mxu0 0.0
        %5201 = vmatpush1.msra.mxu0 0.0
        %5202 = vmatprep.subr.mxu0 0.0
        %5203 = vmatpush1.msra.mxu0 0.0
        %5204 = vmatprep.subr.mxu0 0.0
        %5205 = vmatpush1.msra.mxu0 0.0
        %5206 = vmatprep.subr.mxu0 0.0
        %5207 = vmatpush1.msra.mxu0 0.0
        %5208 = vmatprep.subr.mxu0 0.0
        %5209 = vmatpush1.msra.mxu0 0.0
        %5210 = vmatprep.subr.mxu0 0.0
        %5211 = vmatpush1.msra.mxu0 0.0
        %5212 = vmatprep.subr.mxu0 0.0
        %5213 = vmatpush1.msra.mxu0 0.0
        %5214 = vmatprep.subr.mxu0 0.0
        %5215 = vmatpush1.msra.mxu0 0.0
        %5216 = vmatprep.subr.mxu0 0.0
        %5217 = vmatpush1.msra.mxu0 0.0
        %5218 = vmatprep.subr.mxu0 0.0
        %5219 = vmatpush1.msra.mxu0 0.0
        %5220 = vmatprep.subr.mxu0 0.0
        %5221 = vmatpush1.msra.mxu0 0.0
        %5222 = vmatprep.subr.mxu0 0.0
        %5223 = vmatpush1.msra.mxu0 0.0
        %5224 = vmatprep.subr.mxu0 0.0
        %5225 = vmatpush1.msra.mxu0 0.0
        %5226 = vmatprep.subr.mxu0 0.0
        %5227 = vmatpush1.msra.mxu0 0.0
        %5228 = vmatprep.subr.mxu0 0.0
        %5229 = vmatpush1.msra.mxu0 0.0
        %5230 = vmatprep.subr.mxu0 0.0
        %5231 = vmatpush1.msra.mxu0 0.0
        %5232 = vmatprep.subr.mxu0 0.0
        %5233 = vmatpush1.msra.mxu0 0.0
        %5234 = vmatprep.subr.mxu0 0.0
        %5235 = vmatpush1.msra.mxu0 0.0
        %5236 = vmatprep.mubr.f32.mxu0 0.0
        %5237 = vmatmul.mubr.f32.gmra.mrb[0].mxu0 %v5093
        %v5238 = vpop.f32.mrb[0].mxu0
        %v5239 = vadd.f32 0.0, %v5238
        %v5240 = vpop.f32.mrb[0].mxu0
        %5241 = vdwg.mxu0
        %v5242 = vadd.f32 %v5068, %v5168
        %v5243 = vadd.f32 %v5069, %v5170
        %v5244 = vadd.f32 %v5070, %v5239
        %5245 = vrot.lane.b32.xlu0 %v5076, 124
        %v5246 = vpop.permute.xlu0 %5245
        %v5249 = vcombine.high %v5073, %v5073
        %v5250 = vcombine.high %v5074, %v5074
        %5251 = vrot.lane.b32.xlu0 %v5073, 127
        %v5252 = vpop.permute.xlu0 %5251
        %5253 = vrot.lane.b32.xlu0 %v5249, 127
        %v5254 = vpop.permute.xlu0 %5253
        %5255 = vrot.lane.b32.xlu0 %v5074, 127
        %v5256 = vpop.permute.xlu0 %5255
        %5257 = vrot.lane.b32.xlu0 %v5250, 127
        %v5258 = vpop.permute.xlu0 %5257
        %v5259 = vsel %vm1964, %v5252, %v5254
        %v5260 = vsel %vm1964, %v5254, %v5256
        %v5261 = vsel %vm1964, %v5256, %v5258
        %v5262 = vsel %vm264, %v5246, 0
        %v5264 = vsel %vm267, %v5259, 0
        %v5266 = vsel %vm267, %v5260, 0
        %v5268 = vsel %vm267, %v5261, 0
        %5270 = vmatprep.subr.mxu0 %v5266
        %5271 = vmatpush1.msra.mxu0 %v5264
        %5272 = vmatprep.subr.mxu0 0.0
        %5273 = vmatpush1.msra.mxu0 0.0
        %5274 = vmatprep.subr.mxu0 0.0
        %5275 = vmatpush1.msra.mxu0 0.0
        %5276 = vmatprep.subr.mxu0 0.0
        %5277 = vmatpush1.msra.mxu0 0.0
        %5278 = vmatprep.subr.mxu0 0.0
        %5279 = vmatpush1.msra.mxu0 0.0
        %5280 = vmatprep.subr.mxu0 0.0
        %5281 = vmatpush1.msra.mxu0 0.0
        %5282 = vmatprep.subr.mxu0 0.0
        %5283 = vmatpush1.msra.mxu0 0.0
        %5284 = vmatprep.subr.mxu0 0.0
        %5285 = vmatpush1.msra.mxu0 0.0
        %5286 = vmatprep.subr.mxu0 0.0
        %5287 = vmatpush1.msra.mxu0 0.0
        %5288 = vmatprep.subr.mxu0 0.0
        %5289 = vmatpush1.msra.mxu0 0.0
        %5290 = vmatprep.subr.mxu0 0.0
        %5291 = vmatpush1.msra.mxu0 0.0
        %5292 = vmatprep.subr.mxu0 0.0
        %5293 = vmatpush1.msra.mxu0 0.0
        %5294 = vmatprep.subr.mxu0 0.0
        %5295 = vmatpush1.msra.mxu0 0.0
        %5296 = vmatprep.subr.mxu0 0.0
        %5297 = vmatpush1.msra.mxu0 0.0
        %5298 = vmatprep.subr.mxu0 0.0
        %5299 = vmatpush1.msra.mxu0 0.0
        %5300 = vmatprep.subr.mxu0 0.0
        %5301 = vmatpush1.msra.mxu0 0.0
        %5302 = vmatprep.subr.mxu0 0.0
        %5303 = vmatpush1.msra.mxu0 0.0
        %5304 = vmatprep.subr.mxu0 0.0
        %5305 = vmatpush1.msra.mxu0 0.0
        %5306 = vmatprep.subr.mxu0 0.0
        %5307 = vmatpush1.msra.mxu0 0.0
        %5308 = vmatprep.subr.mxu0 0.0
        %5309 = vmatpush1.msra.mxu0 0.0
        %5310 = vmatprep.subr.mxu0 0.0
        %5311 = vmatpush1.msra.mxu0 0.0
        %5312 = vmatprep.subr.mxu0 0.0
        %5313 = vmatpush1.msra.mxu0 0.0
        %5314 = vmatprep.subr.mxu0 0.0
        %5315 = vmatpush1.msra.mxu0 0.0
        %5316 = vmatprep.subr.mxu0 0.0
        %5317 = vmatpush1.msra.mxu0 0.0
        %5318 = vmatprep.subr.mxu0 0.0
        %5319 = vmatpush1.msra.mxu0 0.0
        %5320 = vmatprep.subr.mxu0 0.0
        %5321 = vmatpush1.msra.mxu0 0.0
        %5322 = vmatprep.subr.mxu0 0.0
        %5323 = vmatpush1.msra.mxu0 0.0
        %5324 = vmatprep.subr.mxu0 0.0
        %5325 = vmatpush1.msra.mxu0 0.0
        %5326 = vmatprep.subr.mxu0 0.0
        %5327 = vmatpush1.msra.mxu0 0.0
        %5328 = vmatprep.subr.mxu0 0.0
        %5329 = vmatpush1.msra.mxu0 0.0
        %5330 = vmatprep.subr.mxu0 0.0
        %5331 = vmatpush1.msra.mxu0 0.0
        %5332 = vmatprep.subr.mxu0 0.0
        %5333 = vmatpush1.msra.mxu0 0.0
        %5334 = vmatprep.mubr.f32.mxu0 0.0
        %5335 = vmatmul.mubr.f32.gmra.mrb[0].mxu0 %v5262
        %v5336 = vpop.f32.mrb[0].mxu0
        %v5337 = vadd.f32 0.0, %v5336
        %v5338 = vpop.f32.mrb[0].mxu0
        %v5339 = vadd.f32 0.0, %v5338
        %5340 = vdwg.mxu0
        %5341 = vmatprep.subr.mxu0 0.0
        %5342 = vmatpush1.msra.mxu0 %v5268
        %5343 = vmatprep.subr.mxu0 0.0
        %5344 = vmatpush1.msra.mxu0 0.0
        %5345 = vmatprep.subr.mxu0 0.0
        %5346 = vmatpush1.msra.mxu0 0.0
        %5347 = vmatprep.subr.mxu0 0.0
        %5348 = vmatpush1.msra.mxu0 0.0
        %5349 = vmatprep.subr.mxu0 0.0
        %5350 = vmatpush1.msra.mxu0 0.0
        %5351 = vmatprep.subr.mxu0 0.0
        %5352 = vmatpush1.msra.mxu0 0.0
        %5353 = vmatprep.subr.mxu0 0.0
        %5354 = vmatpush1.msra.mxu0 0.0
        %5355 = vmatprep.subr.mxu0 0.0
        %5356 = vmatpush1.msra.mxu0 0.0
        %5357 = vmatprep.subr.mxu0 0.0
        %5358 = vmatpush1.msra.mxu0 0.0
        %5359 = vmatprep.subr.mxu0 0.0
        %5360 = vmatpush1.msra.mxu0 0.0
        %5361 = vmatprep.subr.mxu0 0.0
        %5362 = vmatpush1.msra.mxu0 0.0
        %5363 = vmatprep.subr.mxu0 0.0
        %5364 = vmatpush1.msra.mxu0 0.0
        %5365 = vmatprep.subr.mxu0 0.0
        %5366 = vmatpush1.msra.mxu0 0.0
        %5367 = vmatprep.subr.mxu0 0.0
        %5368 = vmatpush1.msra.mxu0 0.0
        %5369 = vmatprep.subr.mxu0 0.0
        %5370 = vmatpush1.msra.mxu0 0.0
        %5371 = vmatprep.subr.mxu0 0.0
        %5372 = vmatpush1.msra.mxu0 0.0
        %5373 = vmatprep.subr.mxu0 0.0
        %5374 = vmatpush1.msra.mxu0 0.0
        %5375 = vmatprep.subr.mxu0 0.0
        %5376 = vmatpush1.msra.mxu0 0.0
        %5377 = vmatprep.subr.mxu0 0.0
        %5378 = vmatpush1.msra.mxu0 0.0
        %5379 = vmatprep.subr.mxu0 0.0
        %5380 = vmatpush1.msra.mxu0 0.0
        %5381 = vmatprep.subr.mxu0 0.0
        %5382 = vmatpush1.msra.mxu0 0.0
        %5383 = vmatprep.subr.mxu0 0.0
        %5384 = vmatpush1.msra.mxu0 0.0
        %5385 = vmatprep.subr.mxu0 0.0
        %5386 = vmatpush1.msra.mxu0 0.0
        %5387 = vmatprep.subr.mxu0 0.0
        %5388 = vmatpush1.msra.mxu0 0.0
        %5389 = vmatprep.subr.mxu0 0.0
        %5390 = vmatpush1.msra.mxu0 0.0
        %5391 = vmatprep.subr.mxu0 0.0
        %5392 = vmatpush1.msra.mxu0 0.0
        %5393 = vmatprep.subr.mxu0 0.0
        %5394 = vmatpush1.msra.mxu0 0.0
        %5395 = vmatprep.subr.mxu0 0.0
        %5396 = vmatpush1.msra.mxu0 0.0
        %5397 = vmatprep.subr.mxu0 0.0
        %5398 = vmatpush1.msra.mxu0 0.0
        %5399 = vmatprep.subr.mxu0 0.0
        %5400 = vmatpush1.msra.mxu0 0.0
        %5401 = vmatprep.subr.mxu0 0.0
        %5402 = vmatpush1.msra.mxu0 0.0
        %5403 = vmatprep.subr.mxu0 0.0
        %5404 = vmatpush1.msra.mxu0 0.0
        %5405 = vmatprep.mubr.f32.mxu0 0.0
        %5406 = vmatmul.mubr.f32.gmra.mrb[0].mxu0 %v5262
        %v5407 = vpop.f32.mrb[0].mxu0
        %v5408 = vadd.f32 0.0, %v5407
        %v5409 = vpop.f32.mrb[0].mxu0
        %5410 = vdwg.mxu0
        %v5411 = vadd.f32 %v5242, %v5337
        %v5412 = vadd.f32 %v5243, %v5339
        %v5413 = vadd.f32 %v5244, %v5408
        %v5414 = vld [vmem:[#allocation2 + $0x4] sm:$0xff]
        %v5415 = vld [vmem:[#allocation2 + $0xc] sm:$0xff]
        %v5416 = vld [vmem:[#allocation3 + $0x4] sm:$0xff]
        %v5417 = vld [vmem:[#allocation3 + $0xc] sm:$0xff]
        %s5418 = scalar_lea.vmem %s3, 24
        %v5419 = vld [vmem:[%s5418] sm:$0xf]
        %v5422 = vcombine.high %v5414, %v5414
        %v5423 = vcombine.high %v5415, %v5415
        %5424 = vrot.lane.b32.xlu0 %v5414, 111
        %v5425 = vpop.permute.xlu0 %5424
        %5426 = vrot.lane.b32.xlu0 %v5422, 111
        %v5427 = vpop.permute.xlu0 %5426
        %5428 = vrot.lane.b32.xlu0 %v5415, 111
        %v5429 = vpop.permute.xlu0 %5428
        %5430 = vrot.lane.b32.xlu0 %v5423, 111
        %v5431 = vpop.permute.xlu0 %5430
        %v5432 = vsel %vm2312, %v5425, %v5427
        %v5433 = vsel %vm2312, %v5427, %v5429
        %v5434 = vsel %vm2312, %v5429, %v5431
        %v5436 = vsel %vm264, %v5419, 0
        %v5438 = vsel %vm267, %v5432, 0
        %v5440 = vsel %vm267, %v5433, 0
        %v5442 = vsel %vm267, %v5434, 0
        %5444 = vmatprep.subr.mxu0 %v5440
        %5445 = vmatpush1.msra.mxu0 %v5438
        %5446 = vmatprep.subr.mxu0 0.0
        %5447 = vmatpush1.msra.mxu0 0.0
        %5448 = vmatprep.subr.mxu0 0.0
        %5449 = vmatpush1.msra.mxu0 0.0
        %5450 = vmatprep.subr.mxu0 0.0
        %5451 = vmatpush1.msra.mxu0 0.0
        %5452 = vmatprep.subr.mxu0 0.0
        %5453 = vmatpush1.msra.mxu0 0.0
        %5454 = vmatprep.subr.mxu0 0.0
        %5455 = vmatpush1.msra.mxu0 0.0
        %5456 = vmatprep.subr.mxu0 0.0
        %5457 = vmatpush1.msra.mxu0 0.0
        %5458 = vmatprep.subr.mxu0 0.0
        %5459 = vmatpush1.msra.mxu0 0.0
        %5460 = vmatprep.subr.mxu0 0.0
        %5461 = vmatpush1.msra.mxu0 0.0
        %5462 = vmatprep.subr.mxu0 0.0
        %5463 = vmatpush1.msra.mxu0 0.0
        %5464 = vmatprep.subr.mxu0 0.0
        %5465 = vmatpush1.msra.mxu0 0.0
        %5466 = vmatprep.subr.mxu0 0.0
        %5467 = vmatpush1.msra.mxu0 0.0
        %5468 = vmatprep.subr.mxu0 0.0
        %5469 = vmatpush1.msra.mxu0 0.0
        %5470 = vmatprep.subr.mxu0 0.0
        %5471 = vmatpush1.msra.mxu0 0.0
        %5472 = vmatprep.subr.mxu0 0.0
        %5473 = vmatpush1.msra.mxu0 0.0
        %5474 = vmatprep.subr.mxu0 0.0
        %5475 = vmatpush1.msra.mxu0 0.0
        %5476 = vmatprep.subr.mxu0 0.0
        %5477 = vmatpush1.msra.mxu0 0.0
        %5478 = vmatprep.subr.mxu0 0.0
        %5479 = vmatpush1.msra.mxu0 0.0
        %5480 = vmatprep.subr.mxu0 0.0
        %5481 = vmatpush1.msra.mxu0 0.0
        %5482 = vmatprep.subr.mxu0 0.0
        %5483 = vmatpush1.msra.mxu0 0.0
        %5484 = vmatprep.subr.mxu0 0.0
        %5485 = vmatpush1.msra.mxu0 0.0
        %5486 = vmatprep.subr.mxu0 0.0
        %5487 = vmatpush1.msra.mxu0 0.0
        %5488 = vmatprep.subr.mxu0 0.0
        %5489 = vmatpush1.msra.mxu0 0.0
        %5490 = vmatprep.subr.mxu0 0.0
        %5491 = vmatpush1.msra.mxu0 0.0
        %5492 = vmatprep.subr.mxu0 0.0
        %5493 = vmatpush1.msra.mxu0 0.0
        %5494 = vmatprep.subr.mxu0 0.0
        %5495 = vmatpush1.msra.mxu0 0.0
        %5496 = vmatprep.subr.mxu0 0.0
        %5497 = vmatpush1.msra.mxu0 0.0
        %5498 = vmatprep.subr.mxu0 0.0
        %5499 = vmatpush1.msra.mxu0 0.0
        %5500 = vmatprep.subr.mxu0 0.0
        %5501 = vmatpush1.msra.mxu0 0.0
        %5502 = vmatprep.subr.mxu0 0.0
        %5503 = vmatpush1.msra.mxu0 0.0
        %5504 = vmatprep.subr.mxu0 0.0
        %5505 = vmatpush1.msra.mxu0 0.0
        %5506 = vmatprep.subr.mxu0 0.0
        %5507 = vmatpush1.msra.mxu0 0.0
        %5508 = vmatprep.mubr.f32.mxu0 0.0
        %5509 = vmatmul.mubr.f32.gmra.mrb[0].mxu0 %v5436
        %v5510 = vpop.f32.mrb[0].mxu0
        %v5511 = vadd.f32 0.0, %v5510
        %v5512 = vpop.f32.mrb[0].mxu0
        %v5513 = vadd.f32 0.0, %v5512
        %5514 = vdwg.mxu0
        %5515 = vmatprep.subr.mxu0 0.0
        %5516 = vmatpush1.msra.mxu0 %v5442
        %5517 = vmatprep.subr.mxu0 0.0
        %5518 = vmatpush1.msra.mxu0 0.0
        %5519 = vmatprep.subr.mxu0 0.0
        %5520 = vmatpush1.msra.mxu0 0.0
        %5521 = vmatprep.subr.mxu0 0.0
        %5522 = vmatpush1.msra.mxu0 0.0
        %5523 = vmatprep.subr.mxu0 0.0
        %5524 = vmatpush1.msra.mxu0 0.0
        %5525 = vmatprep.subr.mxu0 0.0
        %5526 = vmatpush1.msra.mxu0 0.0
        %5527 = vmatprep.subr.mxu0 0.0
        %5528 = vmatpush1.msra.mxu0 0.0
        %5529 = vmatprep.subr.mxu0 0.0
        %5530 = vmatpush1.msra.mxu0 0.0
        %5531 = vmatprep.subr.mxu0 0.0
        %5532 = vmatpush1.msra.mxu0 0.0
        %5533 = vmatprep.subr.mxu0 0.0
        %5534 = vmatpush1.msra.mxu0 0.0
        %5535 = vmatprep.subr.mxu0 0.0
        %5536 = vmatpush1.msra.mxu0 0.0
        %5537 = vmatprep.subr.mxu0 0.0
        %5538 = vmatpush1.msra.mxu0 0.0
        %5539 = vmatprep.subr.mxu0 0.0
        %5540 = vmatpush1.msra.mxu0 0.0
        %5541 = vmatprep.subr.mxu0 0.0
        %5542 = vmatpush1.msra.mxu0 0.0
        %5543 = vmatprep.subr.mxu0 0.0
        %5544 = vmatpush1.msra.mxu0 0.0
        %5545 = vmatprep.subr.mxu0 0.0
        %5546 = vmatpush1.msra.mxu0 0.0
        %5547 = vmatprep.subr.mxu0 0.0
        %5548 = vmatpush1.msra.mxu0 0.0
        %5549 = vmatprep.subr.mxu0 0.0
        %5550 = vmatpush1.msra.mxu0 0.0
        %5551 = vmatprep.subr.mxu0 0.0
        %5552 = vmatpush1.msra.mxu0 0.0
        %5553 = vmatprep.subr.mxu0 0.0
        %5554 = vmatpush1.msra.mxu0 0.0
        %5555 = vmatprep.subr.mxu0 0.0
        %5556 = vmatpush1.msra.mxu0 0.0
        %5557 = vmatprep.subr.mxu0 0.0
        %5558 = vmatpush1.msra.mxu0 0.0
        %5559 = vmatprep.subr.mxu0 0.0
        %5560 = vmatpush1.msra.mxu0 0.0
        %5561 = vmatprep.subr.mxu0 0.0
        %5562 = vmatpush1.msra.mxu0 0.0
        %5563 = vmatprep.subr.mxu0 0.0
        %5564 = vmatpush1.msra.mxu0 0.0
        %5565 = vmatprep.subr.mxu0 0.0
        %5566 = vmatpush1.msra.mxu0 0.0
        %5567 = vmatprep.subr.mxu0 0.0
        %5568 = vmatpush1.msra.mxu0 0.0
        %5569 = vmatprep.subr.mxu0 0.0
        %5570 = vmatpush1.msra.mxu0 0.0
        %5571 = vmatprep.subr.mxu0 0.0
        %5572 = vmatpush1.msra.mxu0 0.0
        %5573 = vmatprep.subr.mxu0 0.0
        %5574 = vmatpush1.msra.mxu0 0.0
        %5575 = vmatprep.subr.mxu0 0.0
        %5576 = vmatpush1.msra.mxu0 0.0
        %5577 = vmatprep.subr.mxu0 0.0
        %5578 = vmatpush1.msra.mxu0 0.0
        %5579 = vmatprep.mubr.f32.mxu0 0.0
        %5580 = vmatmul.mubr.f32.gmra.mrb[0].mxu0 %v5436
        %v5581 = vpop.f32.mrb[0].mxu0
        %v5582 = vadd.f32 0.0, %v5581
        %v5583 = vpop.f32.mrb[0].mxu0
        %5584 = vdwg.mxu0
        %v5585 = vadd.f32 %v5411, %v5511
        %v5586 = vadd.f32 %v5412, %v5513
        %v5587 = vadd.f32 %v5413, %v5582
        %5588 = vrot.lane.b32.xlu0 %v5419, 124
        %v5589 = vpop.permute.xlu0 %5588
        %v5592 = vcombine.high %v5416, %v5416
        %v5593 = vcombine.high %v5417, %v5417
        %5594 = vrot.lane.b32.xlu0 %v5416, 111
        %v5595 = vpop.permute.xlu0 %5594
        %5596 = vrot.lane.b32.xlu0 %v5592, 111
        %v5597 = vpop.permute.xlu0 %5596
        %5598 = vrot.lane.b32.xlu0 %v5417, 111
        %v5599 = vpop.permute.xlu0 %5598
        %5600 = vrot.lane.b32.xlu0 %v5593, 111
        %v5601 = vpop.permute.xlu0 %5600
        %v5602 = vsel %vm2312, %v5595, %v5597
        %v5603 = vsel %vm2312, %v5597, %v5599
        %v5604 = vsel %vm2312, %v5599, %v5601
        %v5605 = vsel %vm264, %v5589, 0
        %v5607 = vsel %vm267, %v5602, 0
        %v5609 = vsel %vm267, %v5603, 0
        %v5611 = vsel %vm267, %v5604, 0
        %5613 = vmatprep.subr.mxu0 %v5609
        %5614 = vmatpush1.msra.mxu0 %v5607
        %5615 = vmatprep.subr.mxu0 0.0
        %5616 = vmatpush1.msra.mxu0 0.0
        %5617 = vmatprep.subr.mxu0 0.0
        %5618 = vmatpush1.msra.mxu0 0.0
        %5619 = vmatprep.subr.mxu0 0.0
        %5620 = vmatpush1.msra.mxu0 0.0
        %5621 = vmatprep.subr.mxu0 0.0
        %5622 = vmatpush1.msra.mxu0 0.0
        %5623 = vmatprep.subr.mxu0 0.0
        %5624 = vmatpush1.msra.mxu0 0.0
        %5625 = vmatprep.subr.mxu0 0.0
        %5626 = vmatpush1.msra.mxu0 0.0
        %5627 = vmatprep.subr.mxu0 0.0
        %5628 = vmatpush1.msra.mxu0 0.0
        %5629 = vmatprep.subr.mxu0 0.0
        %5630 = vmatpush1.msra.mxu0 0.0
        %5631 = vmatprep.subr.mxu0 0.0
        %5632 = vmatpush1.msra.mxu0 0.0
        %5633 = vmatprep.subr.mxu0 0.0
        %5634 = vmatpush1.msra.mxu0 0.0
        %5635 = vmatprep.subr.mxu0 0.0
        %5636 = vmatpush1.msra.mxu0 0.0
        %5637 = vmatprep.subr.mxu0 0.0
        %5638 = vmatpush1.msra.mxu0 0.0
        %5639 = vmatprep.subr.mxu0 0.0
        %5640 = vmatpush1.msra.mxu0 0.0
        %5641 = vmatprep.subr.mxu0 0.0
        %5642 = vmatpush1.msra.mxu0 0.0
        %5643 = vmatprep.subr.mxu0 0.0
        %5644 = vmatpush1.msra.mxu0 0.0
        %5645 = vmatprep.subr.mxu0 0.0
        %5646 = vmatpush1.msra.mxu0 0.0
        %5647 = vmatprep.subr.mxu0 0.0
        %5648 = vmatpush1.msra.mxu0 0.0
        %5649 = vmatprep.subr.mxu0 0.0
        %5650 = vmatpush1.msra.mxu0 0.0
        %5651 = vmatprep.subr.mxu0 0.0
        %5652 = vmatpush1.msra.mxu0 0.0
        %5653 = vmatprep.subr.mxu0 0.0
        %5654 = vmatpush1.msra.mxu0 0.0
        %5655 = vmatprep.subr.mxu0 0.0
        %5656 = vmatpush1.msra.mxu0 0.0
        %5657 = vmatprep.subr.mxu0 0.0
        %5658 = vmatpush1.msra.mxu0 0.0
        %5659 = vmatprep.subr.mxu0 0.0
        %5660 = vmatpush1.msra.mxu0 0.0
        %5661 = vmatprep.subr.mxu0 0.0
        %5662 = vmatpush1.msra.mxu0 0.0
        %5663 = vmatprep.subr.mxu0 0.0
        %5664 = vmatpush1.msra.mxu0 0.0
        %5665 = vmatprep.subr.mxu0 0.0
        %5666 = vmatpush1.msra.mxu0 0.0
        %5667 = vmatprep.subr.mxu0 0.0
        %5668 = vmatpush1.msra.mxu0 0.0
        %5669 = vmatprep.subr.mxu0 0.0
        %5670 = vmatpush1.msra.mxu0 0.0
        %5671 = vmatprep.subr.mxu0 0.0
        %5672 = vmatpush1.msra.mxu0 0.0
        %5673 = vmatprep.subr.mxu0 0.0
        %5674 = vmatpush1.msra.mxu0 0.0
        %5675 = vmatprep.subr.mxu0 0.0
        %5676 = vmatpush1.msra.mxu0 0.0
        %5677 = vmatprep.mubr.f32.mxu0 0.0
        %5678 = vmatmul.mubr.f32.gmra.mrb[0].mxu0 %v5605
        %v5679 = vpop.f32.mrb[0].mxu0
        %v5680 = vadd.f32 0.0, %v5679
        %v5681 = vpop.f32.mrb[0].mxu0
        %v5682 = vadd.f32 0.0, %v5681
        %5683 = vdwg.mxu0
        %5684 = vmatprep.subr.mxu0 0.0
        %5685 = vmatpush1.msra.mxu0 %v5611
        %5686 = vmatprep.subr.mxu0 0.0
        %5687 = vmatpush1.msra.mxu0 0.0
        %5688 = vmatprep.subr.mxu0 0.0
        %5689 = vmatpush1.msra.mxu0 0.0
        %5690 = vmatprep.subr.mxu0 0.0
        %5691 = vmatpush1.msra.mxu0 0.0
        %5692 = vmatprep.subr.mxu0 0.0
        %5693 = vmatpush1.msra.mxu0 0.0
        %5694 = vmatprep.subr.mxu0 0.0
        %5695 = vmatpush1.msra.mxu0 0.0
        %5696 = vmatprep.subr.mxu0 0.0
        %5697 = vmatpush1.msra.mxu0 0.0
        %5698 = vmatprep.subr.mxu0 0.0
        %5699 = vmatpush1.msra.mxu0 0.0
        %5700 = vmatprep.subr.mxu0 0.0
        %5701 = vmatpush1.msra.mxu0 0.0
        %5702 = vmatprep.subr.mxu0 0.0
        %5703 = vmatpush1.msra.mxu0 0.0
        %5704 = vmatprep.subr.mxu0 0.0
        %5705 = vmatpush1.msra.mxu0 0.0
        %5706 = vmatprep.subr.mxu0 0.0
        %5707 = vmatpush1.msra.mxu0 0.0
        %5708 = vmatprep.subr.mxu0 0.0
        %5709 = vmatpush1.msra.mxu0 0.0
        %5710 = vmatprep.subr.mxu0 0.0
        %5711 = vmatpush1.msra.mxu0 0.0
        %5712 = vmatprep.subr.mxu0 0.0
        %5713 = vmatpush1.msra.mxu0 0.0
        %5714 = vmatprep.subr.mxu0 0.0
        %5715 = vmatpush1.msra.mxu0 0.0
        %5716 = vmatprep.subr.mxu0 0.0
        %5717 = vmatpush1.msra.mxu0 0.0
        %5718 = vmatprep.subr.mxu0 0.0
        %5719 = vmatpush1.msra.mxu0 0.0
        %5720 = vmatprep.subr.mxu0 0.0
        %5721 = vmatpush1.msra.mxu0 0.0
        %5722 = vmatprep.subr.mxu0 0.0
        %5723 = vmatpush1.msra.mxu0 0.0
        %5724 = vmatprep.subr.mxu0 0.0
        %5725 = vmatpush1.msra.mxu0 0.0
        %5726 = vmatprep.subr.mxu0 0.0
        %5727 = vmatpush1.msra.mxu0 0.0
        %5728 = vmatprep.subr.mxu0 0.0
        %5729 = vmatpush1.msra.mxu0 0.0
        %5730 = vmatprep.subr.mxu0 0.0
        %5731 = vmatpush1.msra.mxu0 0.0
        %5732 = vmatprep.subr.mxu0 0.0
        %5733 = vmatpush1.msra.mxu0 0.0
        %5734 = vmatprep.subr.mxu0 0.0
        %5735 = vmatpush1.msra.mxu0 0.0
        %5736 = vmatprep.subr.mxu0 0.0
        %5737 = vmatpush1.msra.mxu0 0.0
        %5738 = vmatprep.subr.mxu0 0.0
        %5739 = vmatpush1.msra.mxu0 0.0
        %5740 = vmatprep.subr.mxu0 0.0
        %5741 = vmatpush1.msra.mxu0 0.0
        %5742 = vmatprep.subr.mxu0 0.0
        %5743 = vmatpush1.msra.mxu0 0.0
        %5744 = vmatprep.subr.mxu0 0.0
        %5745 = vmatpush1.msra.mxu0 0.0
        %5746 = vmatprep.subr.mxu0 0.0
        %5747 = vmatpush1.msra.mxu0 0.0
        %5748 = vmatprep.mubr.f32.mxu0 0.0
        %5749 = vmatmul.mubr.f32.gmra.mrb[0].mxu0 %v5605
        %v5750 = vpop.f32.mrb[0].mxu0
        %v5751 = vadd.f32 0.0, %v5750
        %v5752 = vpop.f32.mrb[0].mxu0
        %5753 = vdwg.mxu0
        %v5754 = vadd.f32 %v5585, %v5680
        %v5755 = vadd.f32 %v5586, %v5682
        %v5756 = vadd.f32 %v5587, %v5751
        %v5757 = vld [vmem:[#allocation2 + $0x4] sm:$0xff]
        %v5758 = vld [vmem:[#allocation2 + $0xc] sm:$0xff]
        %v5759 = vld [vmem:[#allocation3 + $0x4] sm:$0xff]
        %v5760 = vld [vmem:[#allocation3 + $0xc] sm:$0xff]
        %s5761 = scalar_lea.vmem %s3, 28
        %v5762 = vld [vmem:[%s5761] sm:$0xf]
        %v5765 = vcombine.high %v5757, %v5757
        %v5766 = vcombine.high %v5758, %v5758
        %5767 = vrot.lane.b32.xlu0 %v5757, 110
        %v5768 = vpop.permute.xlu0 %5767
        %5769 = vrot.lane.b32.xlu0 %v5765, 110
        %v5770 = vpop.permute.xlu0 %5769
        %5771 = vrot.lane.b32.xlu0 %v5758, 110
        %v5772 = vpop.permute.xlu0 %5771
        %5773 = vrot.lane.b32.xlu0 %v5766, 110
        %v5774 = vpop.permute.xlu0 %5773
        %v5775 = vsel %vm2660, %v5768, %v5770
        %v5776 = vsel %vm2660, %v5770, %v5772
        %v5777 = vsel %vm2660, %v5772, %v5774
        %v5779 = vsel %vm264, %v5762, 0
        %v5781 = vsel %vm267, %v5775, 0
        %v5783 = vsel %vm267, %v5776, 0
        %v5785 = vsel %vm267, %v5777, 0
        %5787 = vmatprep.subr.mxu0 %v5783
        %5788 = vmatpush1.msra.mxu0 %v5781
        %5789 = vmatprep.subr.mxu0 0.0
        %5790 = vmatpush1.msra.mxu0 0.0
        %5791 = vmatprep.subr.mxu0 0.0
        %5792 = vmatpush1.msra.mxu0 0.0
        %5793 = vmatprep.subr.mxu0 0.0
        %5794 = vmatpush1.msra.mxu0 0.0
        %5795 = vmatprep.subr.mxu0 0.0
        %5796 = vmatpush1.msra.mxu0 0.0
        %5797 = vmatprep.subr.mxu0 0.0
        %5798 = vmatpush1.msra.mxu0 0.0
        %5799 = vmatprep.subr.mxu0 0.0
        %5800 = vmatpush1.msra.mxu0 0.0
        %5801 = vmatprep.subr.mxu0 0.0
        %5802 = vmatpush1.msra.mxu0 0.0
        %5803 = vmatprep.subr.mxu0 0.0
        %5804 = vmatpush1.msra.mxu0 0.0
        %5805 = vmatprep.subr.mxu0 0.0
        %5806 = vmatpush1.msra.mxu0 0.0
        %5807 = vmatprep.subr.mxu0 0.0
        %5808 = vmatpush1.msra.mxu0 0.0
        %5809 = vmatprep.subr.mxu0 0.0
        %5810 = vmatpush1.msra.mxu0 0.0
        %5811 = vmatprep.subr.mxu0 0.0
        %5812 = vmatpush1.msra.mxu0 0.0
        %5813 = vmatprep.subr.mxu0 0.0
        %5814 = vmatpush1.msra.mxu0 0.0
        %5815 = vmatprep.subr.mxu0 0.0
        %5816 = vmatpush1.msra.mxu0 0.0
        %5817 = vmatprep.subr.mxu0 0.0
        %5818 = vmatpush1.msra.mxu0 0.0
        %5819 = vmatprep.subr.mxu0 0.0
        %5820 = vmatpush1.msra.mxu0 0.0
        %5821 = vmatprep.subr.mxu0 0.0
        %5822 = vmatpush1.msra.mxu0 0.0
        %5823 = vmatprep.subr.mxu0 0.0
        %5824 = vmatpush1.msra.mxu0 0.0
        %5825 = vmatprep.subr.mxu0 0.0
        %5826 = vmatpush1.msra.mxu0 0.0
        %5827 = vmatprep.subr.mxu0 0.0
        %5828 = vmatpush1.msra.mxu0 0.0
        %5829 = vmatprep.subr.mxu0 0.0
        %5830 = vmatpush1.msra.mxu0 0.0
        %5831 = vmatprep.subr.mxu0 0.0
        %5832 = vmatpush1.msra.mxu0 0.0
        %5833 = vmatprep.subr.mxu0 0.0
        %5834 = vmatpush1.msra.mxu0 0.0
        %5835 = vmatprep.subr.mxu0 0.0
        %5836 = vmatpush1.msra.mxu0 0.0
        %5837 = vmatprep.subr.mxu0 0.0
        %5838 = vmatpush1.msra.mxu0 0.0
        %5839 = vmatprep.subr.mxu0 0.0
        %5840 = vmatpush1.msra.mxu0 0.0
        %5841 = vmatprep.subr.mxu0 0.0
        %5842 = vmatpush1.msra.mxu0 0.0
        %5843 = vmatprep.subr.mxu0 0.0
        %5844 = vmatpush1.msra.mxu0 0.0
        %5845 = vmatprep.subr.mxu0 0.0
        %5846 = vmatpush1.msra.mxu0 0.0
        %5847 = vmatprep.subr.mxu0 0.0
        %5848 = vmatpush1.msra.mxu0 0.0
        %5849 = vmatprep.subr.mxu0 0.0
        %5850 = vmatpush1.msra.mxu0 0.0
        %5851 = vmatprep.mubr.f32.mxu0 0.0
        %5852 = vmatmul.mubr.f32.gmra.mrb[0].mxu0 %v5779
        %v5853 = vpop.f32.mrb[0].mxu0
        %v5854 = vadd.f32 0.0, %v5853
        %v5855 = vpop.f32.mrb[0].mxu0
        %v5856 = vadd.f32 0.0, %v5855
        %5857 = vdwg.mxu0
        %5858 = vmatprep.subr.mxu0 0.0
        %5859 = vmatpush1.msra.mxu0 %v5785
        %5860 = vmatprep.subr.mxu0 0.0
        %5861 = vmatpush1.msra.mxu0 0.0
        %5862 = vmatprep.subr.mxu0 0.0
        %5863 = vmatpush1.msra.mxu0 0.0
        %5864 = vmatprep.subr.mxu0 0.0
        %5865 = vmatpush1.msra.mxu0 0.0
        %5866 = vmatprep.subr.mxu0 0.0
        %5867 = vmatpush1.msra.mxu0 0.0
        %5868 = vmatprep.subr.mxu0 0.0
        %5869 = vmatpush1.msra.mxu0 0.0
        %5870 = vmatprep.subr.mxu0 0.0
        %5871 = vmatpush1.msra.mxu0 0.0
        %5872 = vmatprep.subr.mxu0 0.0
        %5873 = vmatpush1.msra.mxu0 0.0
        %5874 = vmatprep.subr.mxu0 0.0
        %5875 = vmatpush1.msra.mxu0 0.0
        %5876 = vmatprep.subr.mxu0 0.0
        %5877 = vmatpush1.msra.mxu0 0.0
        %5878 = vmatprep.subr.mxu0 0.0
        %5879 = vmatpush1.msra.mxu0 0.0
        %5880 = vmatprep.subr.mxu0 0.0
        %5881 = vmatpush1.msra.mxu0 0.0
        %5882 = vmatprep.subr.mxu0 0.0
        %5883 = vmatpush1.msra.mxu0 0.0
        %5884 = vmatprep.subr.mxu0 0.0
        %5885 = vmatpush1.msra.mxu0 0.0
        %5886 = vmatprep.subr.mxu0 0.0
        %5887 = vmatpush1.msra.mxu0 0.0
        %5888 = vmatprep.subr.mxu0 0.0
        %5889 = vmatpush1.msra.mxu0 0.0
        %5890 = vmatprep.subr.mxu0 0.0
        %5891 = vmatpush1.msra.mxu0 0.0
        %5892 = vmatprep.subr.mxu0 0.0
        %5893 = vmatpush1.msra.mxu0 0.0
        %5894 = vmatprep.subr.mxu0 0.0
        %5895 = vmatpush1.msra.mxu0 0.0
        %5896 = vmatprep.subr.mxu0 0.0
        %5897 = vmatpush1.msra.mxu0 0.0
        %5898 = vmatprep.subr.mxu0 0.0
        %5899 = vmatpush1.msra.mxu0 0.0
        %5900 = vmatprep.subr.mxu0 0.0
        %5901 = vmatpush1.msra.mxu0 0.0
        %5902 = vmatprep.subr.mxu0 0.0
        %5903 = vmatpush1.msra.mxu0 0.0
        %5904 = vmatprep.subr.mxu0 0.0
        %5905 = vmatpush1.msra.mxu0 0.0
        %5906 = vmatprep.subr.mxu0 0.0
        %5907 = vmatpush1.msra.mxu0 0.0
        %5908 = vmatprep.subr.mxu0 0.0
        %5909 = vmatpush1.msra.mxu0 0.0
        %5910 = vmatprep.subr.mxu0 0.0
        %5911 = vmatpush1.msra.mxu0 0.0
        %5912 = vmatprep.subr.mxu0 0.0
        %5913 = vmatpush1.msra.mxu0 0.0
        %5914 = vmatprep.subr.mxu0 0.0
        %5915 = vmatpush1.msra.mxu0 0.0
        %5916 = vmatprep.subr.mxu0 0.0
        %5917 = vmatpush1.msra.mxu0 0.0
        %5918 = vmatprep.subr.mxu0 0.0
        %5919 = vmatpush1.msra.mxu0 0.0
        %5920 = vmatprep.subr.mxu0 0.0
        %5921 = vmatpush1.msra.mxu0 0.0
        %5922 = vmatprep.mubr.f32.mxu0 0.0
        %5923 = vmatmul.mubr.f32.gmra.mrb[0].mxu0 %v5779
        %v5924 = vpop.f32.mrb[0].mxu0
        %v5925 = vadd.f32 0.0, %v5924
        %v5926 = vpop.f32.mrb[0].mxu0
        %5927 = vdwg.mxu0
        %v5928 = vadd.f32 %v5754, %v5854
        %v5929 = vadd.f32 %v5755, %v5856
        %v5930 = vadd.f32 %v5756, %v5925
        %5931 = vrot.lane.b32.xlu0 %v5762, 124
        %v5932 = vpop.permute.xlu0 %5931
        %v5935 = vcombine.high %v5759, %v5759
        %v5936 = vcombine.high %v5760, %v5760
        %5937 = vrot.lane.b32.xlu0 %v5759, 110
        %v5938 = vpop.permute.xlu0 %5937
        %5939 = vrot.lane.b32.xlu0 %v5935, 110
        %v5940 = vpop.permute.xlu0 %5939
        %5941 = vrot.lane.b32.xlu0 %v5760, 110
        %v5942 = vpop.permute.xlu0 %5941
        %5943 = vrot.lane.b32.xlu0 %v5936, 110
        %v5944 = vpop.permute.xlu0 %5943
        %v5945 = vsel %vm2660, %v5938, %v5940
        %v5946 = vsel %vm2660, %v5940, %v5942
        %v5947 = vsel %vm2660, %v5942, %v5944
        %v5948 = vsel %vm264, %v5932, 0
        %v5950 = vsel %vm267, %v5945, 0
        %v5952 = vsel %vm267, %v5946, 0
        %v5954 = vsel %vm267, %v5947, 0
        %5956 = vmatprep.subr.mxu0 %v5952
        %5957 = vmatpush1.msra.mxu0 %v5950
        %5958 = vmatprep.subr.mxu0 0.0
        %5959 = vmatpush1.msra.mxu0 0.0
        %5960 = vmatprep.subr.mxu0 0.0
        %5961 = vmatpush1.msra.mxu0 0.0
        %5962 = vmatprep.subr.mxu0 0.0
        %5963 = vmatpush1.msra.mxu0 0.0
        %5964 = vmatprep.subr.mxu0 0.0
        %5965 = vmatpush1.msra.mxu0 0.0
        %5966 = vmatprep.subr.mxu0 0.0
        %5967 = vmatpush1.msra.mxu0 0.0
        %5968 = vmatprep.subr.mxu0 0.0
        %5969 = vmatpush1.msra.mxu0 0.0
        %5970 = vmatprep.subr.mxu0 0.0
        %5971 = vmatpush1.msra.mxu0 0.0
        %5972 = vmatprep.subr.mxu0 0.0
        %5973 = vmatpush1.msra.mxu0 0.0
        %5974 = vmatprep.subr.mxu0 0.0
        %5975 = vmatpush1.msra.mxu0 0.0
        %5976 = vmatprep.subr.mxu0 0.0
        %5977 = vmatpush1.msra.mxu0 0.0
        %5978 = vmatprep.subr.mxu0 0.0
        %5979 = vmatpush1.msra.mxu0 0.0
        %5980 = vmatprep.subr.mxu0 0.0
        %5981 = vmatpush1.msra.mxu0 0.0
        %5982 = vmatprep.subr.mxu0 0.0
        %5983 = vmatpush1.msra.mxu0 0.0
        %5984 = vmatprep.subr.mxu0 0.0
        %5985 = vmatpush1.msra.mxu0 0.0
        %5986 = vmatprep.subr.mxu0 0.0
        %5987 = vmatpush1.msra.mxu0 0.0
        %5988 = vmatprep.subr.mxu0 0.0
        %5989 = vmatpush1.msra.mxu0 0.0
        %5990 = vmatprep.subr.mxu0 0.0
        %5991 = vmatpush1.msra.mxu0 0.0
        %5992 = vmatprep.subr.mxu0 0.0
        %5993 = vmatpush1.msra.mxu0 0.0
        %5994 = vmatprep.subr.mxu0 0.0
        %5995 = vmatpush1.msra.mxu0 0.0
        %5996 = vmatprep.subr.mxu0 0.0
        %5997 = vmatpush1.msra.mxu0 0.0
        %5998 = vmatprep.subr.mxu0 0.0
        %5999 = vmatpush1.msra.mxu0 0.0
        %6000 = vmatprep.subr.mxu0 0.0
        %6001 = vmatpush1.msra.mxu0 0.0
        %6002 = vmatprep.subr.mxu0 0.0
        %6003 = vmatpush1.msra.mxu0 0.0
        %6004 = vmatprep.subr.mxu0 0.0
        %6005 = vmatpush1.msra.mxu0 0.0
        %6006 = vmatprep.subr.mxu0 0.0
        %6007 = vmatpush1.msra.mxu0 0.0
        %6008 = vmatprep.subr.mxu0 0.0
        %6009 = vmatpush1.msra.mxu0 0.0
        %6010 = vmatprep.subr.mxu0 0.0
        %6011 = vmatpush1.msra.mxu0 0.0
        %6012 = vmatprep.subr.mxu0 0.0
        %6013 = vmatpush1.msra.mxu0 0.0
        %6014 = vmatprep.subr.mxu0 0.0
        %6015 = vmatpush1.msra.mxu0 0.0
        %6016 = vmatprep.subr.mxu0 0.0
        %6017 = vmatpush1.msra.mxu0 0.0
        %6018 = vmatprep.subr.mxu0 0.0
        %6019 = vmatpush1.msra.mxu0 0.0
        %6020 = vmatprep.mubr.f32.mxu0 0.0
        %6021 = vmatmul.mubr.f32.gmra.mrb[0].mxu0 %v5948
        %v6022 = vpop.f32.mrb[0].mxu0
        %v6023 = vadd.f32 0.0, %v6022
        %v6024 = vpop.f32.mrb[0].mxu0
        %v6025 = vadd.f32 0.0, %v6024
        %6026 = vdwg.mxu0
        %6027 = vmatprep.subr.mxu0 0.0
        %6028 = vmatpush1.msra.mxu0 %v5954
        %6029 = vmatprep.subr.mxu0 0.0
        %6030 = vmatpush1.msra.mxu0 0.0
        %6031 = vmatprep.subr.mxu0 0.0
        %6032 = vmatpush1.msra.mxu0 0.0
        %6033 = vmatprep.subr.mxu0 0.0
        %6034 = vmatpush1.msra.mxu0 0.0
        %6035 = vmatprep.subr.mxu0 0.0
        %6036 = vmatpush1.msra.mxu0 0.0
        %6037 = vmatprep.subr.mxu0 0.0
        %6038 = vmatpush1.msra.mxu0 0.0
        %6039 = vmatprep.subr.mxu0 0.0
        %6040 = vmatpush1.msra.mxu0 0.0
        %6041 = vmatprep.subr.mxu0 0.0
        %6042 = vmatpush1.msra.mxu0 0.0
        %6043 = vmatprep.subr.mxu0 0.0
        %6044 = vmatpush1.msra.mxu0 0.0
        %6045 = vmatprep.subr.mxu0 0.0
        %6046 = vmatpush1.msra.mxu0 0.0
        %6047 = vmatprep.subr.mxu0 0.0
        %6048 = vmatpush1.msra.mxu0 0.0
        %6049 = vmatprep.subr.mxu0 0.0
        %6050 = vmatpush1.msra.mxu0 0.0
        %6051 = vmatprep.subr.mxu0 0.0
        %6052 = vmatpush1.msra.mxu0 0.0
        %6053 = vmatprep.subr.mxu0 0.0
        %6054 = vmatpush1.msra.mxu0 0.0
        %6055 = vmatprep.subr.mxu0 0.0
        %6056 = vmatpush1.msra.mxu0 0.0
        %6057 = vmatprep.subr.mxu0 0.0
        %6058 = vmatpush1.msra.mxu0 0.0
        %6059 = vmatprep.subr.mxu0 0.0
        %6060 = vmatpush1.msra.mxu0 0.0
        %6061 = vmatprep.subr.mxu0 0.0
        %6062 = vmatpush1.msra.mxu0 0.0
        %6063 = vmatprep.subr.mxu0 0.0
        %6064 = vmatpush1.msra.mxu0 0.0
        %6065 = vmatprep.subr.mxu0 0.0
        %6066 = vmatpush1.msra.mxu0 0.0
        %6067 = vmatprep.subr.mxu0 0.0
        %6068 = vmatpush1.msra.mxu0 0.0
        %6069 = vmatprep.subr.mxu0 0.0
        %6070 = vmatpush1.msra.mxu0 0.0
        %6071 = vmatprep.subr.mxu0 0.0
        %6072 = vmatpush1.msra.mxu0 0.0
        %6073 = vmatprep.subr.mxu0 0.0
        %6074 = vmatpush1.msra.mxu0 0.0
        %6075 = vmatprep.subr.mxu0 0.0
        %6076 = vmatpush1.msra.mxu0 0.0
        %6077 = vmatprep.subr.mxu0 0.0
        %6078 = vmatpush1.msra.mxu0 0.0
        %6079 = vmatprep.subr.mxu0 0.0
        %6080 = vmatpush1.msra.mxu0 0.0
        %6081 = vmatprep.subr.mxu0 0.0
        %6082 = vmatpush1.msra.mxu0 0.0
        %6083 = vmatprep.subr.mxu0 0.0
        %6084 = vmatpush1.msra.mxu0 0.0
        %6085 = vmatprep.subr.mxu0 0.0
        %6086 = vmatpush1.msra.mxu0 0.0
        %6087 = vmatprep.subr.mxu0 0.0
        %6088 = vmatpush1.msra.mxu0 0.0
        %6089 = vmatprep.subr.mxu0 0.0
        %6090 = vmatpush1.msra.mxu0 0.0
        %6091 = vmatprep.mubr.f32.mxu0 0.0
        %6092 = vmatmul.mubr.f32.gmra.mrb[0].mxu0 %v5948
        %v6093 = vpop.f32.mrb[0].mxu0
        %v6094 = vadd.f32 0.0, %v6093
        %v6095 = vpop.f32.mrb[0].mxu0
        %6096 = vdwg.mxu0
        %v6097 = vadd.f32 %v5928, %v6023
        %v6098 = vadd.f32 %v5929, %v6025
        %v6099 = vadd.f32 %v5930, %v6094
        %v6100 = vld [vmem:[#allocation2 + $0x4] sm:$0xff]
        %v6101 = vld [vmem:[#allocation2 + $0xc] sm:$0xff]
        %v6102 = vld [vmem:[#allocation3 + $0x4] sm:$0xff]
        %v6103 = vld [vmem:[#allocation3 + $0xc] sm:$0xff]
        %s6104 = scalar_lea.vmem %s3, 32
        %v6105 = vld [vmem:[%s6104] sm:$0xf]
        %v6108 = vcombine.high %v6100, %v6100
        %v6109 = vcombine.high %v6101, %v6101
        %6110 = vrot.lane.b32.xlu0 %v6100, 109
        %v6111 = vpop.permute.xlu0 %6110
        %6112 = vrot.lane.b32.xlu0 %v6108, 109
        %v6113 = vpop.permute.xlu0 %6112
        %6114 = vrot.lane.b32.xlu0 %v6101, 109
        %v6115 = vpop.permute.xlu0 %6114
        %6116 = vrot.lane.b32.xlu0 %v6109, 109
        %v6117 = vpop.permute.xlu0 %6116
        %v6118 = vsel %vm3008, %v6111, %v6113
        %v6119 = vsel %vm3008, %v6113, %v6115
        %v6120 = vsel %vm3008, %v6115, %v6117
        %v6122 = vsel %vm264, %v6105, 0
        %v6124 = vsel %vm267, %v6118, 0
        %v6126 = vsel %vm267, %v6119, 0
        %v6128 = vsel %vm267, %v6120, 0
        %6130 = vmatprep.subr.mxu0 %v6126
        %6131 = vmatpush1.msra.mxu0 %v6124
        %6132 = vmatprep.subr.mxu0 0.0
        %6133 = vmatpush1.msra.mxu0 0.0
        %6134 = vmatprep.subr.mxu0 0.0
        %6135 = vmatpush1.msra.mxu0 0.0
        %6136 = vmatprep.subr.mxu0 0.0
        %6137 = vmatpush1.msra.mxu0 0.0
        %6138 = vmatprep.subr.mxu0 0.0
        %6139 = vmatpush1.msra.mxu0 0.0
        %6140 = vmatprep.subr.mxu0 0.0
        %6141 = vmatpush1.msra.mxu0 0.0
        %6142 = vmatprep.subr.mxu0 0.0
        %6143 = vmatpush1.msra.mxu0 0.0
        %6144 = vmatprep.subr.mxu0 0.0
        %6145 = vmatpush1.msra.mxu0 0.0
        %6146 = vmatprep.subr.mxu0 0.0
        %6147 = vmatpush1.msra.mxu0 0.0
        %6148 = vmatprep.subr.mxu0 0.0
        %6149 = vmatpush1.msra.mxu0 0.0
        %6150 = vmatprep.subr.mxu0 0.0
        %6151 = vmatpush1.msra.mxu0 0.0
        %6152 = vmatprep.subr.mxu0 0.0
        %6153 = vmatpush1.msra.mxu0 0.0
        %6154 = vmatprep.subr.mxu0 0.0
        %6155 = vmatpush1.msra.mxu0 0.0
        %6156 = vmatprep.subr.mxu0 0.0
        %6157 = vmatpush1.msra.mxu0 0.0
        %6158 = vmatprep.subr.mxu0 0.0
        %6159 = vmatpush1.msra.mxu0 0.0
        %6160 = vmatprep.subr.mxu0 0.0
        %6161 = vmatpush1.msra.mxu0 0.0
        %6162 = vmatprep.subr.mxu0 0.0
        %6163 = vmatpush1.msra.mxu0 0.0
        %6164 = vmatprep.subr.mxu0 0.0
        %6165 = vmatpush1.msra.mxu0 0.0
        %6166 = vmatprep.subr.mxu0 0.0
        %6167 = vmatpush1.msra.mxu0 0.0
        %6168 = vmatprep.subr.mxu0 0.0
        %6169 = vmatpush1.msra.mxu0 0.0
        %6170 = vmatprep.subr.mxu0 0.0
        %6171 = vmatpush1.msra.mxu0 0.0
        %6172 = vmatprep.subr.mxu0 0.0
        %6173 = vmatpush1.msra.mxu0 0.0
        %6174 = vmatprep.subr.mxu0 0.0
        %6175 = vmatpush1.msra.mxu0 0.0
        %6176 = vmatprep.subr.mxu0 0.0
        %6177 = vmatpush1.msra.mxu0 0.0
        %6178 = vmatprep.subr.mxu0 0.0
        %6179 = vmatpush1.msra.mxu0 0.0
        %6180 = vmatprep.subr.mxu0 0.0
        %6181 = vmatpush1.msra.mxu0 0.0
        %6182 = vmatprep.subr.mxu0 0.0
        %6183 = vmatpush1.msra.mxu0 0.0
        %6184 = vmatprep.subr.mxu0 0.0
        %6185 = vmatpush1.msra.mxu0 0.0
        %6186 = vmatprep.subr.mxu0 0.0
        %6187 = vmatpush1.msra.mxu0 0.0
        %6188 = vmatprep.subr.mxu0 0.0
        %6189 = vmatpush1.msra.mxu0 0.0
        %6190 = vmatprep.subr.mxu0 0.0
        %6191 = vmatpush1.msra.mxu0 0.0
        %6192 = vmatprep.subr.mxu0 0.0
        %6193 = vmatpush1.msra.mxu0 0.0
        %6194 = vmatprep.mubr.f32.mxu0 0.0
        %6195 = vmatmul.mubr.f32.gmra.mrb[0].mxu0 %v6122
        %v6196 = vpop.f32.mrb[0].mxu0
        %v6197 = vadd.f32 0.0, %v6196
        %v6198 = vpop.f32.mrb[0].mxu0
        %v6199 = vadd.f32 0.0, %v6198
        %6200 = vdwg.mxu0
        %6201 = vmatprep.subr.mxu0 0.0
        %6202 = vmatpush1.msra.mxu0 %v6128
        %6203 = vmatprep.subr.mxu0 0.0
        %6204 = vmatpush1.msra.mxu0 0.0
        %6205 = vmatprep.subr.mxu0 0.0
        %6206 = vmatpush1.msra.mxu0 0.0
        %6207 = vmatprep.subr.mxu0 0.0
        %6208 = vmatpush1.msra.mxu0 0.0
        %6209 = vmatprep.subr.mxu0 0.0
        %6210 = vmatpush1.msra.mxu0 0.0
        %6211 = vmatprep.subr.mxu0 0.0
        %6212 = vmatpush1.msra.mxu0 0.0
        %6213 = vmatprep.subr.mxu0 0.0
        %6214 = vmatpush1.msra.mxu0 0.0
        %6215 = vmatprep.subr.mxu0 0.0
        %6216 = vmatpush1.msra.mxu0 0.0
        %6217 = vmatprep.subr.mxu0 0.0
        %6218 = vmatpush1.msra.mxu0 0.0
        %6219 = vmatprep.subr.mxu0 0.0
        %6220 = vmatpush1.msra.mxu0 0.0
        %6221 = vmatprep.subr.mxu0 0.0
        %6222 = vmatpush1.msra.mxu0 0.0
        %6223 = vmatprep.subr.mxu0 0.0
        %6224 = vmatpush1.msra.mxu0 0.0
        %6225 = vmatprep.subr.mxu0 0.0
        %6226 = vmatpush1.msra.mxu0 0.0
        %6227 = vmatprep.subr.mxu0 0.0
        %6228 = vmatpush1.msra.mxu0 0.0
        %6229 = vmatprep.subr.mxu0 0.0
        %6230 = vmatpush1.msra.mxu0 0.0
        %6231 = vmatprep.subr.mxu0 0.0
        %6232 = vmatpush1.msra.mxu0 0.0
        %6233 = vmatprep.subr.mxu0 0.0
        %6234 = vmatpush1.msra.mxu0 0.0
        %6235 = vmatprep.subr.mxu0 0.0
        %6236 = vmatpush1.msra.mxu0 0.0
        %6237 = vmatprep.subr.mxu0 0.0
        %6238 = vmatpush1.msra.mxu0 0.0
        %6239 = vmatprep.subr.mxu0 0.0
        %6240 = vmatpush1.msra.mxu0 0.0
        %6241 = vmatprep.subr.mxu0 0.0
        %6242 = vmatpush1.msra.mxu0 0.0
        %6243 = vmatprep.subr.mxu0 0.0
        %6244 = vmatpush1.msra.mxu0 0.0
        %6245 = vmatprep.subr.mxu0 0.0
        %6246 = vmatpush1.msra.mxu0 0.0
        %6247 = vmatprep.subr.mxu0 0.0
        %6248 = vmatpush1.msra.mxu0 0.0
        %6249 = vmatprep.subr.mxu0 0.0
        %6250 = vmatpush1.msra.mxu0 0.0
        %6251 = vmatprep.subr.mxu0 0.0
        %6252 = vmatpush1.msra.mxu0 0.0
        %6253 = vmatprep.subr.mxu0 0.0
        %6254 = vmatpush1.msra.mxu0 0.0
        %6255 = vmatprep.subr.mxu0 0.0
        %6256 = vmatpush1.msra.mxu0 0.0
        %6257 = vmatprep.subr.mxu0 0.0
        %6258 = vmatpush1.msra.mxu0 0.0
        %6259 = vmatprep.subr.mxu0 0.0
        %6260 = vmatpush1.msra.mxu0 0.0
        %6261 = vmatprep.subr.mxu0 0.0
        %6262 = vmatpush1.msra.mxu0 0.0
        %6263 = vmatprep.subr.mxu0 0.0
        %6264 = vmatpush1.msra.mxu0 0.0
        %6265 = vmatprep.mubr.f32.mxu0 0.0
        %6266 = vmatmul.mubr.f32.gmra.mrb[0].mxu0 %v6122
        %v6267 = vpop.f32.mrb[0].mxu0
        %v6268 = vadd.f32 0.0, %v6267
        %v6269 = vpop.f32.mrb[0].mxu0
        %6270 = vdwg.mxu0
        %v6271 = vadd.f32 %v6097, %v6197
        %v6272 = vadd.f32 %v6098, %v6199
        %v6273 = vadd.f32 %v6099, %v6268
        %6274 = vrot.lane.b32.xlu0 %v6105, 124
        %v6275 = vpop.permute.xlu0 %6274
        %v6278 = vcombine.high %v6102, %v6102
        %v6279 = vcombine.high %v6103, %v6103
        %6280 = vrot.lane.b32.xlu0 %v6102, 109
        %v6281 = vpop.permute.xlu0 %6280
        %6282 = vrot.lane.b32.xlu0 %v6278, 109
        %v6283 = vpop.permute.xlu0 %6282
        %6284 = vrot.lane.b32.xlu0 %v6103, 109
        %v6285 = vpop.permute.xlu0 %6284
        %6286 = vrot.lane.b32.xlu0 %v6279, 109
        %v6287 = vpop.permute.xlu0 %6286
        %v6288 = vsel %vm3008, %v6281, %v6283
        %v6289 = vsel %vm3008, %v6283, %v6285
        %v6290 = vsel %vm3008, %v6285, %v6287
        %v6291 = vsel %vm264, %v6275, 0
        %v6293 = vsel %vm267, %v6288, 0
        %v6295 = vsel %vm267, %v6289, 0
        %v6297 = vsel %vm267, %v6290, 0
        %6299 = vmatprep.subr.mxu0 %v6295
        %6300 = vmatpush1.msra.mxu0 %v6293
        %6301 = vmatprep.subr.mxu0 0.0
        %6302 = vmatpush1.msra.mxu0 0.0
        %6303 = vmatprep.subr.mxu0 0.0
        %6304 = vmatpush1.msra.mxu0 0.0
        %6305 = vmatprep.subr.mxu0 0.0
        %6306 = vmatpush1.msra.mxu0 0.0
        %6307 = vmatprep.subr.mxu0 0.0
        %6308 = vmatpush1.msra.mxu0 0.0
        %6309 = vmatprep.subr.mxu0 0.0
        %6310 = vmatpush1.msra.mxu0 0.0
        %6311 = vmatprep.subr.mxu0 0.0
        %6312 = vmatpush1.msra.mxu0 0.0
        %6313 = vmatprep.subr.mxu0 0.0
        %6314 = vmatpush1.msra.mxu0 0.0
        %6315 = vmatprep.subr.mxu0 0.0
        %6316 = vmatpush1.msra.mxu0 0.0
        %6317 = vmatprep.subr.mxu0 0.0
        %6318 = vmatpush1.msra.mxu0 0.0
        %6319 = vmatprep.subr.mxu0 0.0
        %6320 = vmatpush1.msra.mxu0 0.0
        %6321 = vmatprep.subr.mxu0 0.0
        %6322 = vmatpush1.msra.mxu0 0.0
        %6323 = vmatprep.subr.mxu0 0.0
        %6324 = vmatpush1.msra.mxu0 0.0
        %6325 = vmatprep.subr.mxu0 0.0
        %6326 = vmatpush1.msra.mxu0 0.0
        %6327 = vmatprep.subr.mxu0 0.0
        %6328 = vmatpush1.msra.mxu0 0.0
        %6329 = vmatprep.subr.mxu0 0.0
        %6330 = vmatpush1.msra.mxu0 0.0
        %6331 = vmatprep.subr.mxu0 0.0
        %6332 = vmatpush1.msra.mxu0 0.0
        %6333 = vmatprep.subr.mxu0 0.0
        %6334 = vmatpush1.msra.mxu0 0.0
        %6335 = vmatprep.subr.mxu0 0.0
        %6336 = vmatpush1.msra.mxu0 0.0
        %6337 = vmatprep.subr.mxu0 0.0
        %6338 = vmatpush1.msra.mxu0 0.0
        %6339 = vmatprep.subr.mxu0 0.0
        %6340 = vmatpush1.msra.mxu0 0.0
        %6341 = vmatprep.subr.mxu0 0.0
        %6342 = vmatpush1.msra.mxu0 0.0
        %6343 = vmatprep.subr.mxu0 0.0
        %6344 = vmatpush1.msra.mxu0 0.0
        %6345 = vmatprep.subr.mxu0 0.0
        %6346 = vmatpush1.msra.mxu0 0.0
        %6347 = vmatprep.subr.mxu0 0.0
        %6348 = vmatpush1.msra.mxu0 0.0
        %6349 = vmatprep.subr.mxu0 0.0
        %6350 = vmatpush1.msra.mxu0 0.0
        %6351 = vmatprep.subr.mxu0 0.0
        %6352 = vmatpush1.msra.mxu0 0.0
        %6353 = vmatprep.subr.mxu0 0.0
        %6354 = vmatpush1.msra.mxu0 0.0
        %6355 = vmatprep.subr.mxu0 0.0
        %6356 = vmatpush1.msra.mxu0 0.0
        %6357 = vmatprep.subr.mxu0 0.0
        %6358 = vmatpush1.msra.mxu0 0.0
        %6359 = vmatprep.subr.mxu0 0.0
        %6360 = vmatpush1.msra.mxu0 0.0
        %6361 = vmatprep.subr.mxu0 0.0
        %6362 = vmatpush1.msra.mxu0 0.0
        %6363 = vmatprep.mubr.f32.mxu0 0.0
        %6364 = vmatmul.mubr.f32.gmra.mrb[0].mxu0 %v6291
        %v6365 = vpop.f32.mrb[0].mxu0
        %v6366 = vadd.f32 0.0, %v6365
        %v6367 = vpop.f32.mrb[0].mxu0
        %v6368 = vadd.f32 0.0, %v6367
        %6369 = vdwg.mxu0
        %6370 = vmatprep.subr.mxu0 0.0
        %6371 = vmatpush1.msra.mxu0 %v6297
        %6372 = vmatprep.subr.mxu0 0.0
        %6373 = vmatpush1.msra.mxu0 0.0
        %6374 = vmatprep.subr.mxu0 0.0
        %6375 = vmatpush1.msra.mxu0 0.0
        %6376 = vmatprep.subr.mxu0 0.0
        %6377 = vmatpush1.msra.mxu0 0.0
        %6378 = vmatprep.subr.mxu0 0.0
        %6379 = vmatpush1.msra.mxu0 0.0
        %6380 = vmatprep.subr.mxu0 0.0
        %6381 = vmatpush1.msra.mxu0 0.0
        %6382 = vmatprep.subr.mxu0 0.0
        %6383 = vmatpush1.msra.mxu0 0.0
        %6384 = vmatprep.subr.mxu0 0.0
        %6385 = vmatpush1.msra.mxu0 0.0
        %6386 = vmatprep.subr.mxu0 0.0
        %6387 = vmatpush1.msra.mxu0 0.0
        %6388 = vmatprep.subr.mxu0 0.0
        %6389 = vmatpush1.msra.mxu0 0.0
        %6390 = vmatprep.subr.mxu0 0.0
        %6391 = vmatpush1.msra.mxu0 0.0
        %6392 = vmatprep.subr.mxu0 0.0
        %6393 = vmatpush1.msra.mxu0 0.0
        %6394 = vmatprep.subr.mxu0 0.0
        %6395 = vmatpush1.msra.mxu0 0.0
        %6396 = vmatprep.subr.mxu0 0.0
        %6397 = vmatpush1.msra.mxu0 0.0
        %6398 = vmatprep.subr.mxu0 0.0
        %6399 = vmatpush1.msra.mxu0 0.0
        %6400 = vmatprep.subr.mxu0 0.0
        %6401 = vmatpush1.msra.mxu0 0.0
        %6402 = vmatprep.subr.mxu0 0.0
        %6403 = vmatpush1.msra.mxu0 0.0
        %6404 = vmatprep.subr.mxu0 0.0
        %6405 = vmatpush1.msra.mxu0 0.0
        %6406 = vmatprep.subr.mxu0 0.0
        %6407 = vmatpush1.msra.mxu0 0.0
        %6408 = vmatprep.subr.mxu0 0.0
        %6409 = vmatpush1.msra.mxu0 0.0
        %6410 = vmatprep.subr.mxu0 0.0
        %6411 = vmatpush1.msra.mxu0 0.0
        %6412 = vmatprep.subr.mxu0 0.0
        %6413 = vmatpush1.msra.mxu0 0.0
        %6414 = vmatprep.subr.mxu0 0.0
        %6415 = vmatpush1.msra.mxu0 0.0
        %6416 = vmatprep.subr.mxu0 0.0
        %6417 = vmatpush1.msra.mxu0 0.0
        %6418 = vmatprep.subr.mxu0 0.0
        %6419 = vmatpush1.msra.mxu0 0.0
        %6420 = vmatprep.subr.mxu0 0.0
        %6421 = vmatpush1.msra.mxu0 0.0
        %6422 = vmatprep.subr.mxu0 0.0
        %6423 = vmatpush1.msra.mxu0 0.0
        %6424 = vmatprep.subr.mxu0 0.0
        %6425 = vmatpush1.msra.mxu0 0.0
        %6426 = vmatprep.subr.mxu0 0.0
        %6427 = vmatpush1.msra.mxu0 0.0
        %6428 = vmatprep.subr.mxu0 0.0
        %6429 = vmatpush1.msra.mxu0 0.0
        %6430 = vmatprep.subr.mxu0 0.0
        %6431 = vmatpush1.msra.mxu0 0.0
        %6432 = vmatprep.subr.mxu0 0.0
        %6433 = vmatpush1.msra.mxu0 0.0
        %6434 = vmatprep.mubr.f32.mxu0 0.0
        %6435 = vmatmul.mubr.f32.gmra.mrb[0].mxu0 %v6291
        %v6436 = vpop.f32.mrb[0].mxu0
        %v6437 = vadd.f32 0.0, %v6436
        %v6438 = vpop.f32.mrb[0].mxu0
        %6439 = vdwg.mxu0
        %v6440 = vadd.f32 %v6271, %v6366
        %v6441 = vadd.f32 %v6272, %v6368
        %v6442 = vadd.f32 %v6273, %v6437
        %v6443 = vld [vmem:[%s224 + $0x4] sm:$0xff]
        %v6444 = vld [vmem:[%s224 + $0xc] sm:$0xf]
        %v6446 = vlaneseq
        %v6447 = vshrl.u32 %v6446, 7
        %v6448 = vsub.s32 0, %v6447
        %v6449 = vrot.slane %v225, %v6448
        %6450 = vset.pattern.permute.xlu0 0
        %6451 = vperm.xlu0 %6450, %v6449
        %v6452 = vpop.permute.xlu0 %6451
        %v6454 = vmul.f32 %v6440, %v6452
        %v6455 = vmul.f32 %v6441, %v6452
        %v6456 = vmul.f32 %v6442, %v6452
        %v6458 = vlaneseq
        %v6459 = vshrl.u32 %v6458, 7
        %v6460 = vsub.s32 0, %v6459
        %v6461 = vrot.slane %v234, %v6460
        %6462 = vset.pattern.permute.xlu0 0
        %6463 = vperm.xlu0 %6462, %v6461
        %v6464 = vpop.permute.xlu0 %6463
        %v6466 = vmul.f32 %v6443, %v6464
        %v6467 = vmul.f32 %v6444, %v6464
        %v6469 = vcombine.high %v6466, %v6466
        %v6471 = vadd.f32 %v6454, %v6466
        %v6472 = vadd.f32 %v6455, %v6469
        %v6473 = vadd.f32 %v6456, %v6467
        %v6476 = vcombine.low %v6471, %v6472
        %6478 = vst [vmem:[%s219] sm:$0xff] %v6476
        %6479 = vst [vmem:[%s219 + $0x8] sm:$0xf] %v6473
        %s6480 = sand.u32 %s139, 1
        %s6481 = scalar_lea.sflag [#allocation6], %s6480
        %s6482 = sand.u32 %s139, 1
        %s6483 = smul.addr %s6482, 12
        %s6484 = scalar_lea.vmem [#allocation5], %s6483
        // Predicated region
        $region41: #{tpu_custom_call.1} parent=39 // pred_check
          %p6485 = pneg %p149
        $region42: #{tpu_custom_call.1} parent=39 // pred_check_branch
          %6487 = sbr.rel (%p6485) target = $region44
        $region43: #{tpu_custom_call.1} parent=39 // pred_region
          %s6489 = ssub.s32 192, 192
          %6490 = vsyncadd %s6481, %s6489
          %s6491 = smul.addr %s21, 3
          %s6492 = smul.addr %s6491, 64
          %s6493 = scalar_lea.hbm %s5, %s6492
          %s6495 = sshll.u32 %s6484, 4
          %s6496 = int_to_ptr.vmem [resolvable:$true] %s6495
          %6498 = dma.vmem_to_hbm [thread:$0]  %s6496, 192, %s6493, %s6481
        $region44: #{tpu_custom_call.1} parent=39 // pred_fallthru
          _
      $region40: #{tpu_custom_call.1} parent=5 // pred_fallthru
        _
      %p6499 = scmp.le.s32.totalorder 2, %s16
      // Predicated region
      $region45: #{tpu_custom_call.1} parent=5 // pred_check
        %p6500 = pneg %p6499
      $region46: #{tpu_custom_call.1} parent=5 // pred_check_branch
        %6502 = sbr.rel (%p6500) target = $region48
      $region47: #{tpu_custom_call.1} parent=5 // pred_region
        %s6503 = ssub.s32 %s16, 2
        // Predicated region
        $region49: #{tpu_custom_call.1} parent=47 // pred_check
          %p6504 = pneg %p155
        $region50: #{tpu_custom_call.1} parent=47 // pred_check_branch
          %6506 = sbr.rel (%p6504) target = $region52
        $region51: #{tpu_custom_call.1} parent=47 // pred_region
          %s6507 = sand.u32 %s140, 1
          %s6508 = scalar_lea.sflag [#allocation6], %s6507
          %s6509 = sand.u32 %s140, 1
          %s6510 = smul.addr %s6509, 12
          %s6511 = scalar_lea.vmem [#allocation5], %s6510
          %6512 = dma.done %s6508, 192
        $region52: #{tpu_custom_call.1} parent=47 // pred_fallthru
          _
      $region48: #{tpu_custom_call.1} parent=5 // pred_fallthru
        _
    $region6: #{tpu_custom_call.1} parent=1 // loop_footer
      %s20 = sadd.s32 1, %s16
    $region7: #{tpu_custom_call.1} parent=1 // loop_footer_branch
      %15 = sbr.rel target = $region3
    $region8: #{tpu_custom_call.1} parent=1 // loop_exit
      _
    %6513 = vsyncpa [#allocation6], 1
    %s6514 = scalar_lea.sflag [#allocation6], 1
    %6515 = vsyncpa %s6514, 1

</llo_original>
